<compile_context>
chip_gen: v6e
topology: v6e:2x2x1
jax: 0.10.0
libtpu: 0.0.40
codegen_flags: <defaults>
</compile_context>

<pallas_src>
import math

import jax
import jax.numpy as jnp
from jax import lax
from jax.experimental import pallas as pl
from jax.experimental.pallas import tpu as pltpu

FEATURE_SIZE = 32    # channels after conv2 == VQ feature_size
NUM_CODES = 64       # codebook entries for the (Soft)VectorQuant layer
VQ_TAU = 1.0         # soft-VQ softmax temperature

H0 = W0 = 16         # input spatial size
H1 = W1 = 8          # after first 2x2 pool
H2 = W2 = 4          # after second 2x2 pool
PAD1 = 32            # zero rows around the flattened conv1 input (>= W0 + 1)
PAD2 = 16            # idem for the conv2 scratch (>= W1 + 1)
PAD3 = 8             # idem for the conv3 scratch (>= W2 + 1)
ROWS0_PAD = H0 * W0 + 2 * PAD1


# ---------------------------------------------------------------------------
# In-kernel helpers (trace-time Python; all ops are Mosaic-friendly)
# ---------------------------------------------------------------------------

def _erf(x):
    # Abramowitz & Stegun 7.1.26 rational approximation (|err| < 1.5e-7, i.e.
    # float32 resolution) -> reproduces torch.nn.GELU()'s exact-erf form with
    # only elementwise VPU/EUP ops.
    a1, a2, a3, a4, a5 = (0.254829592, -0.284496736, 1.421413741,
                          -1.453152027, 1.061405429)
    p = 0.3275911
    s = jnp.where(x < 0.0, -1.0, 1.0)
    ax = jnp.abs(x)
    t = 1.0 / (1.0 + p * ax)
    poly = ((((a5 * t + a4) * t + a3) * t + a2) * t + a1) * t
    return s * (1.0 - poly * jnp.exp(-ax * ax))


def _gelu(x):
    return 0.5 * x * (1.0 + _erf(x * (1.0 / math.sqrt(2.0))))


def _conv3x3_rows(read_window, rows, width, cin, w_ref, b_ref):
    """3x3 'same' conv on a row-flattened (rows = H*W, cin) feature map.

    `read_window(s)` returns the map shifted by `s` flattened rows, with zeros
    where the shift runs off the top/bottom (it reads from a zero-padded
    buffer).  Horizontal wrap-around across image rows is removed with an
    iota-based row mask.  Weights: (9, cin, cout) with tap t = (dy+1)*3+(dx+1);
    bias: (1, cout).  Returns (rows, cout) float32.
    """
    rm = lax.broadcasted_iota(jnp.int32, (rows, cin), 0) & (width - 1)  # r % W
    acc = None
    t = 0
    for dy in (-1, 0, 1):
        for dx in (-1, 0, 1):
            xs = read_window(dy * width + dx)
            if dx == 1:         # source column w+1 invalid on the right edge
                xs = jnp.where(rm == width - 1, 0.0, xs)
            elif dx == -1:      # source column w-1 invalid on the left edge
                xs = jnp.where(rm == 0, 0.0, xs)
            w_t = w_ref[t]
            if cin == 1:        # conv1: K=1 -> cheaper as a VPU outer product
                contrib = xs * w_t
            else:
                contrib = jnp.dot(xs, w_t, preferred_element_type=jnp.float32)
            acc = contrib if acc is None else acc + contrib
            t += 1
    return acc + b_ref[...]


def _maxpool2x2_rows(y, h_in, w_in):
    """2x2 stride-2 max pool of a row-flattened (h_in*w_in, C) map.

    Implemented as 4 one-hot selection matmuls (MXU), so no strided slicing or
    sublane-splitting reshapes are needed.  Returns (h_in*w_in//4, C).
    """
    r_in = h_in * w_in
    r_out = r_in // 4
    w_out = w_in // 2
    shift = int(math.log2(w_out))
    ri = lax.broadcasted_iota(jnp.int32, (r_out, r_in), 0)
    ci = lax.broadcasted_iota(jnp.int32, (r_out, r_in), 1)
    # source row of the top-left element of output block r': (2*h2)*w_in + 2*w2
    base = (2 * w_in) * (ri >> shift) + 2 * (ri & (w_out - 1))
    pooled = None
    for off in (0, 1, w_in, w_in + 1):
        sel = jnp.where(ci == base + off, 1.0, 0.0).astype(jnp.float32)
        part = jnp.dot(sel, y, preferred_element_type=jnp.float32)
        pooled = part if pooled is None else jnp.maximum(pooled, part)
    return pooled


def _soft_vq(z, cb):
    """Canonical soft VQ: q = softmax(-||z - e||^2 / tau), z_q = q @ e."""
    z_sq = jnp.sum(z * z, axis=-1, keepdims=True)                        # (N,1)
    e_sq = lax.dot_general(jnp.ones((1, z.shape[1]), jnp.float32), cb * cb,
                           (((1,), (1,)), ((), ())),
                           preferred_element_type=jnp.float32)           # (1,M)
    cross = lax.dot_general(z, cb, (((1,), (1,)), ((), ())),
                            preferred_element_type=jnp.float32)          # (N,M)
    d = z_sq - 2.0 * cross + e_sq                                        # sq. L2
    logits = d * (-1.0 / VQ_TAU)
    m = jnp.max(logits, axis=-1, keepdims=True)
    p = jnp.exp(logits - m)
    p = p * pl.reciprocal(jnp.sum(p, axis=-1, keepdims=True), approx=True)
    zq = jnp.dot(p, cb, preferred_element_type=jnp.float32)              # (N,D)
    return zq, d, p


# ---------------------------------------------------------------------------
# The fused forward kernel (one batch element per grid step)
# ---------------------------------------------------------------------------

def _forward_kernel(xp_ref, w1_ref, b1_ref, w2_ref, b2_ref, cb_ref,
                    w3_ref, b3_ref, fcw_ref, fcb_ref,
                    logits_ref, z_ref, zq_ref, d_ref, q_ref,
                    p2_ref, p3_ref):
    # ---- layers_pre_vq ----------------------------------------------------
    # Conv2d(1, 16, 3, padding=1); input comes pre-padded along flattened rows.
    y1 = _conv3x3_rows(lambda s: xp_ref[0, PAD1 + s: PAD1 + s + H0 * W0, :],
                       H0 * W0, W0, 1, w1_ref, b1_ref)                  # (256,16)
    # MaxPool2d(2,2) then GELU (module order).
    z1 = _gelu(_maxpool2x2_rows(y1, H0, W0))                            # (64,16)

    # Conv2d(16, 32, 3, padding=1): stage zero-padded rows in VMEM scratch.
    p2_ref[...] = jnp.zeros(p2_ref.shape, jnp.float32)
    p2_ref[PAD2:PAD2 + H1 * W1, :] = z1
    y2 = _conv3x3_rows(lambda s: p2_ref[PAD2 + s: PAD2 + s + H1 * W1, :],
                       H1 * W1, W1, 16, w2_ref, b2_ref)                 # (64,32)
    z2 = _maxpool2x2_rows(y2, H1, W1)                                   # (16,32)

    # ---- vq_layer (SoftVectorQuant, feature_size=32) ------------------------
    zq, dmat, q = _soft_vq(z2, cb_ref[...])
    z_ref[0] = z2
    zq_ref[0] = zq
    d_ref[0] = dmat
    q_ref[0] = q

    # ---- layers_post_vq -----------------------------------------------------
    # Conv2d(32, 64, 3, padding=1)
    p3_ref[...] = jnp.zeros(p3_ref.shape, jnp.float32)
    p3_ref[PAD3:PAD3 + H2 * W2, :] = zq
    y3 = _conv3x3_rows(lambda s: p3_ref[PAD3 + s: PAD3 + s + H2 * W2, :],
                       H2 * W2, W2, 32, w3_ref, b3_ref)                 # (16,64)

    # AdaptiveMaxPool2d((1,1)) + Flatten + Linear(64, 10)
    g = jnp.max(y3, axis=0, keepdims=True)                              # (1,64)
    logits_ref[0] = (jnp.dot(g, fcw_ref[...],
                             preferred_element_type=jnp.float32)
                     + fcb_ref[...])                                    # (1,10)


# ---------------------------------------------------------------------------
# Parameters (deterministic synthetic init; shapes follow the nn.Module)
# ---------------------------------------------------------------------------

def init_params(key):
    ks = jax.random.split(key, 9)

    def norm(k, shape, scale):
        return jax.random.normal(k, shape, jnp.float32) * scale

    return {
        # Conv weights stored as (9, cin, cout), tap index t = (dy+1)*3+(dx+1)
        "conv1_w": norm(ks[0], (9, 1, 16), 1.0 / math.sqrt(9 * 1)),
        "conv1_b": norm(ks[1], (1, 16), 0.02),
        "conv2_w": norm(ks[2], (9, 16, 32), 1.0 / math.sqrt(9 * 16)),
        "conv2_b": norm(ks[3], (1, 32), 0.02),
        "codebook": norm(ks[4], (NUM_CODES, FEATURE_SIZE), 1.0),
        "conv3_w": norm(ks[5], (9, 32, 64), 1.0 / math.sqrt(9 * 32)),
        "conv3_b": norm(ks[6], (1, 64), 0.02),
        "fc_w": norm(ks[7], (64, 10), 1.0 / math.sqrt(64)),
        "fc_b": norm(ks[8], (1, 10), 0.02),
    }


# ---------------------------------------------------------------------------
# Forward pass wrapper (mirrors SimpleVQClassifier.forward)
# ---------------------------------------------------------------------------

def _const_spec(shape):
    zero = (0,) * len(shape)
    return pl.BlockSpec(shape, lambda i: zero)


def simple_vq_classifier(params, x_nchw):
    b = x_nchw.shape[0]
    n_pos = H2 * W2

    # NCHW (B,1,16,16) -> row-flattened (B, H*W, 1), zero-padded along rows so
    # the in-kernel 3x3 taps are plain contiguous reads (tiny XLA glue; the 9x
    # im2col patch tensor is never materialized in HBM).
    x = x_nchw.astype(jnp.float32).reshape(b, H0 * W0, 1)
    xp = jnp.pad(x, ((0, 0), (PAD1, PAD1), (0, 0)))

    out_shape = (
        jax.ShapeDtypeStruct((b, 1, 10), jnp.float32),                  # logits
        jax.ShapeDtypeStruct((b, n_pos, FEATURE_SIZE), jnp.float32),    # z
        jax.ShapeDtypeStruct((b, n_pos, FEATURE_SIZE), jnp.float32),    # z_q
        jax.ShapeDtypeStruct((b, n_pos, NUM_CODES), jnp.float32),       # d
        jax.ShapeDtypeStruct((b, n_pos, NUM_CODES), jnp.float32),       # q
    )
    out_specs = (
        pl.BlockSpec((1, 1, 10), lambda i: (i, 0, 0)),
        pl.BlockSpec((1, n_pos, FEATURE_SIZE), lambda i: (i, 0, 0)),
        pl.BlockSpec((1, n_pos, FEATURE_SIZE), lambda i: (i, 0, 0)),
        pl.BlockSpec((1, n_pos, NUM_CODES), lambda i: (i, 0, 0)),
        pl.BlockSpec((1, n_pos, NUM_CODES), lambda i: (i, 0, 0)),
    )
    in_specs = [
        pl.BlockSpec((1, ROWS0_PAD, 1), lambda i: (i, 0, 0)),   # padded input
        _const_spec((9, 1, 16)),                                # conv1 w
        _const_spec((1, 16)),                                   # conv1 b
        _const_spec((9, 16, 32)),                               # conv2 w
        _const_spec((1, 32)),                                   # conv2 b
        _const_spec((NUM_CODES, FEATURE_SIZE)),                 # codebook
        _const_spec((9, 32, 64)),                               # conv3 w
        _const_spec((1, 64)),                                   # conv3 b
        _const_spec((64, 10)),                                  # fc w
        _const_spec((1, 10)),                                   # fc b
    ]

    logits, z_pre, zq, dmat, q = pl.pallas_call(
        _forward_kernel,
        out_shape=out_shape,
        grid=(b,),
        in_specs=in_specs,
        out_specs=out_specs,
        scratch_shapes=[
            pltpu.VMEM((H1 * W1 + 2 * PAD2, 16), jnp.float32),           # conv2 pad
            pltpu.VMEM((H2 * W2 + 2 * PAD3, FEATURE_SIZE), jnp.float32), # conv3 pad
        ],
        compiler_params=pltpu.CompilerParams(
            dimension_semantics=("parallel",)),
    )(xp, params["conv1_w"], params["conv1_b"],
      params["conv2_w"], params["conv2_b"], params["codebook"],
      params["conv3_w"], params["conv3_b"], params["fc_w"], params["fc_b"])

    # Tiny layout glue back to the PyTorch-style views.
    logits = logits.reshape(b, 10)
    z_sp = z_pre.reshape(b, H2, W2, FEATURE_SIZE)
    zq_sp = zq.reshape(b, H2, W2, FEATURE_SIZE)
    # TODO(synk): SoftVectorQuant's source is not in the reference snippet; this is the canonical soft VQ (softmax(-||z-e||^2/tau), z_q=q@e, loss=mean(sum(q*d))) and may not match the original module's exact semantics.
    vq_dict = {
        "z": jnp.transpose(z_sp, (0, 3, 1, 2)),        # NCHW, as the torch layer sees it
        "z_q": jnp.transpose(zq_sp, (0, 3, 1, 2)),
        "d": dmat.reshape(b, H2, W2, NUM_CODES),
        "q": q.reshape(b, H2, W2, NUM_CODES),
        "loss": jnp.mean(jnp.sum(q * dmat, axis=-1)),
    }
    return logits, vq_dict


if __name__ == "__main__":
    key = jax.random.PRNGKey(0)
    pkey, xkey = jax.random.split(key)
    params = init_params(pkey)
    x = jax.random.normal(xkey, (2, 1, 16, 16), jnp.float32)  # NCHW, like PyTorch
    logits, vq_dict = jax.jit(simple_vq_classifier)(params, x)
    jax.block_until_ready((logits, vq_dict))
    assert logits.shape == (2, 10)
    assert vq_dict["z_q"].shape == (2, 32, 4, 4)
    assert bool(jnp.all(jnp.isfinite(logits)))
    print("KERNEL_OK")
</pallas_src>

<mosaic_0001>
module attributes {stable_mosaic.version = 11 : i64} {
  func.func @_forward_kernel(%arg0: i32, %arg1: memref<1x320x1xf32, #tpu.memory_space<vmem>>, %arg2: memref<9x1x16xf32, #tpu.memory_space<vmem>>, %arg3: memref<1x16xf32, #tpu.memory_space<vmem>>, %arg4: memref<9x16x32xf32, #tpu.memory_space<vmem>>, %arg5: memref<1x32xf32, #tpu.memory_space<vmem>>, %arg6: memref<64x32xf32, #tpu.memory_space<vmem>>, %arg7: memref<9x32x64xf32, #tpu.memory_space<vmem>>, %arg8: memref<1x64xf32, #tpu.memory_space<vmem>>, %arg9: memref<64x10xf32, #tpu.memory_space<vmem>>, %arg10: memref<1x10xf32, #tpu.memory_space<vmem>>, %arg11: memref<1x1x10xf32, #tpu.memory_space<vmem>>, %arg12: memref<1x16x32xf32, #tpu.memory_space<vmem>>, %arg13: memref<1x16x32xf32, #tpu.memory_space<vmem>>, %arg14: memref<1x16x64xf32, #tpu.memory_space<vmem>>, %arg15: memref<1x16x64xf32, #tpu.memory_space<vmem>>, %arg16: memref<96x16xf32, #tpu.memory_space<vmem>>, %arg17: memref<32x32xf32, #tpu.memory_space<vmem>>) attributes {dimension_semantics = [#tpu.dimension_semantics<parallel>], iteration_bounds = array<i64: 2>, scalar_prefetch = 0 : i64, scratch_operands = 2 : i64, tpu.core_type = #tpu.core_type<tc>, window_params = [{transform_indices = @transform_0, window_bounds = array<i64: 1, 320, 1>}, {pipeline_mode = #tpu.pipeline_mode<synchronous>, transform_indices = @transform_1, window_bounds = array<i64: 9, 1, 16>}, {pipeline_mode = #tpu.pipeline_mode<synchronous>, transform_indices = @transform_2, window_bounds = array<i64: 1, 16>}, {pipeline_mode = #tpu.pipeline_mode<synchronous>, transform_indices = @transform_3, window_bounds = array<i64: 9, 16, 32>}, {pipeline_mode = #tpu.pipeline_mode<synchronous>, transform_indices = @transform_4, window_bounds = array<i64: 1, 32>}, {pipeline_mode = #tpu.pipeline_mode<synchronous>, transform_indices = @transform_5, window_bounds = array<i64: 64, 32>}, {pipeline_mode = #tpu.pipeline_mode<synchronous>, transform_indices = @transform_6, window_bounds = array<i64: 9, 32, 64>}, {pipeline_mode = #tpu.pipeline_mode<synchronous>, transform_indices = @transform_7, window_bounds = array<i64: 1, 64>}, {pipeline_mode = #tpu.pipeline_mode<synchronous>, transform_indices = @transform_8, window_bounds = array<i64: 64, 10>}, {pipeline_mode = #tpu.pipeline_mode<synchronous>, transform_indices = @transform_9, window_bounds = array<i64: 1, 10>}, {transform_indices = @transform_10, window_bounds = array<i64: 1, 1, 10>}, {transform_indices = @transform_11, window_bounds = array<i64: 1, 16, 32>}, {transform_indices = @transform_12, window_bounds = array<i64: 1, 16, 32>}, {transform_indices = @transform_13, window_bounds = array<i64: 1, 16, 64>}, {transform_indices = @transform_14, window_bounds = array<i64: 1, 16, 64>}]} {
    %0 = tpu.iota {dimensions = array<i32: 0>} : vector<256x1xi32>
    %c15_i32 = arith.constant 15 : i32
    %1 = vector.broadcast %c15_i32 : i32 to vector<256x1xi32>
    %2 = arith.andi %0, %1 : vector<256x1xi32>
    %c0 = arith.constant 0 : index
    %c15 = arith.constant 15 : index
    %c0_0 = arith.constant 0 : index
    %3 = vector.load %arg1[%c0, %c15, %c0_0] : memref<1x320x1xf32, #tpu.memory_space<vmem>>, vector<1x256x1xf32>
    %4 = vector.shape_cast %3 : vector<1x256x1xf32> to vector<256x1xf32>
    %c0_i32 = arith.constant 0 : i32
    %5 = vector.broadcast %c0_i32 : i32 to vector<256x1xi32>
    %6 = arith.cmpi eq, %2, %5 : vector<256x1xi32>
    %cst = arith.constant 0.000000e+00 : f32
    %7 = vector.broadcast %cst : f32 to vector<256x1xf32>
    %8 = arith.select %6, %7, %4 : vector<256x1xi1>, vector<256x1xf32>
    %c0_1 = arith.constant 0 : index
    %c0_2 = arith.constant 0 : index
    %c0_3 = arith.constant 0 : index
    %9 = vector.load %arg2[%c0_1, %c0_2, %c0_3] : memref<9x1x16xf32, #tpu.memory_space<vmem>>, vector<1x1x16xf32>
    %10 = vector.shape_cast %9 : vector<1x1x16xf32> to vector<1x16xf32>
    %11 = vector.broadcast %8 : vector<256x1xf32> to vector<256x16xf32>
    %12 = vector.broadcast %10 : vector<1x16xf32> to vector<256x16xf32>
    %13 = arith.mulf %11, %12 : vector<256x16xf32>
    %c0_4 = arith.constant 0 : index
    %c16 = arith.constant 16 : index
    %c0_5 = arith.constant 0 : index
    %14 = vector.load %arg1[%c0_4, %c16, %c0_5] : memref<1x320x1xf32, #tpu.memory_space<vmem>>, vector<1x256x1xf32>
    %15 = vector.shape_cast %14 : vector<1x256x1xf32> to vector<256x1xf32>
    %c1 = arith.constant 1 : index
    %c0_6 = arith.constant 0 : index
    %c0_7 = arith.constant 0 : index
    %16 = vector.load %arg2[%c1, %c0_6, %c0_7] : memref<9x1x16xf32, #tpu.memory_space<vmem>>, vector<1x1x16xf32>
    %17 = vector.shape_cast %16 : vector<1x1x16xf32> to vector<1x16xf32>
    %18 = vector.broadcast %15 : vector<256x1xf32> to vector<256x16xf32>
    %19 = vector.broadcast %17 : vector<1x16xf32> to vector<256x16xf32>
    %20 = arith.mulf %18, %19 : vector<256x16xf32>
    %21 = arith.addf %13, %20 : vector<256x16xf32>
    %c0_8 = arith.constant 0 : index
    %c17 = arith.constant 17 : index
    %c0_9 = arith.constant 0 : index
    %22 = vector.load %arg1[%c0_8, %c17, %c0_9] : memref<1x320x1xf32, #tpu.memory_space<vmem>>, vector<1x256x1xf32>
    %23 = vector.shape_cast %22 : vector<1x256x1xf32> to vector<256x1xf32>
    %c15_i32_10 = arith.constant 15 : i32
    %24 = vector.broadcast %c15_i32_10 : i32 to vector<256x1xi32>
    %25 = arith.cmpi eq, %2, %24 : vector<256x1xi32>
    %cst_11 = arith.constant 0.000000e+00 : f32
    %26 = vector.broadcast %cst_11 : f32 to vector<256x1xf32>
    %27 = arith.select %25, %26, %23 : vector<256x1xi1>, vector<256x1xf32>
    %c2 = arith.constant 2 : index
    %c0_12 = arith.constant 0 : index
    %c0_13 = arith.constant 0 : index
    %28 = vector.load %arg2[%c2, %c0_12, %c0_13] : memref<9x1x16xf32, #tpu.memory_space<vmem>>, vector<1x1x16xf32>
    %29 = vector.shape_cast %28 : vector<1x1x16xf32> to vector<1x16xf32>
    %30 = vector.broadcast %27 : vector<256x1xf32> to vector<256x16xf32>
    %31 = vector.broadcast %29 : vector<1x16xf32> to vector<256x16xf32>
    %32 = arith.mulf %30, %31 : vector<256x16xf32>
    %33 = arith.addf %21, %32 : vector<256x16xf32>
    %c0_14 = arith.constant 0 : index
    %c31 = arith.constant 31 : index
    %c0_15 = arith.constant 0 : index
    %34 = vector.load %arg1[%c0_14, %c31, %c0_15] : memref<1x320x1xf32, #tpu.memory_space<vmem>>, vector<1x256x1xf32>
    %35 = vector.shape_cast %34 : vector<1x256x1xf32> to vector<256x1xf32>
    %c0_i32_16 = arith.constant 0 : i32
    %36 = vector.broadcast %c0_i32_16 : i32 to vector<256x1xi32>
    %37 = arith.cmpi eq, %2, %36 : vector<256x1xi32>
    %cst_17 = arith.constant 0.000000e+00 : f32
    %38 = vector.broadcast %cst_17 : f32 to vector<256x1xf32>
    %39 = arith.select %37, %38, %35 : vector<256x1xi1>, vector<256x1xf32>
    %c3 = arith.constant 3 : index
    %c0_18 = arith.constant 0 : index
    %c0_19 = arith.constant 0 : index
    %40 = vector.load %arg2[%c3, %c0_18, %c0_19] : memref<9x1x16xf32, #tpu.memory_space<vmem>>, vector<1x1x16xf32>
    %41 = vector.shape_cast %40 : vector<1x1x16xf32> to vector<1x16xf32>
    %42 = vector.broadcast %39 : vector<256x1xf32> to vector<256x16xf32>
    %43 = vector.broadcast %41 : vector<1x16xf32> to vector<256x16xf32>
    %44 = arith.mulf %42, %43 : vector<256x16xf32>
    %45 = arith.addf %33, %44 : vector<256x16xf32>
    %c0_20 = arith.constant 0 : index
    %c32 = arith.constant 32 : index
    %c0_21 = arith.constant 0 : index
    %46 = vector.load %arg1[%c0_20, %c32, %c0_21] : memref<1x320x1xf32, #tpu.memory_space<vmem>>, vector<1x256x1xf32>
    %47 = vector.shape_cast %46 : vector<1x256x1xf32> to vector<256x1xf32>
    %c4 = arith.constant 4 : index
    %c0_22 = arith.constant 0 : index
    %c0_23 = arith.constant 0 : index
    %48 = vector.load %arg2[%c4, %c0_22, %c0_23] : memref<9x1x16xf32, #tpu.memory_space<vmem>>, vector<1x1x16xf32>
    %49 = vector.shape_cast %48 : vector<1x1x16xf32> to vector<1x16xf32>
    %50 = vector.broadcast %47 : vector<256x1xf32> to vector<256x16xf32>
    %51 = vector.broadcast %49 : vector<1x16xf32> to vector<256x16xf32>
    %52 = arith.mulf %50, %51 : vector<256x16xf32>
    %53 = arith.addf %45, %52 : vector<256x16xf32>
    %c0_24 = arith.constant 0 : index
    %c33 = arith.constant 33 : index
    %c0_25 = arith.constant 0 : index
    %54 = vector.load %arg1[%c0_24, %c33, %c0_25] : memref<1x320x1xf32, #tpu.memory_space<vmem>>, vector<1x256x1xf32>
    %55 = vector.shape_cast %54 : vector<1x256x1xf32> to vector<256x1xf32>
    %c15_i32_26 = arith.constant 15 : i32
    %56 = vector.broadcast %c15_i32_26 : i32 to vector<256x1xi32>
    %57 = arith.cmpi eq, %2, %56 : vector<256x1xi32>
    %cst_27 = arith.constant 0.000000e+00 : f32
    %58 = vector.broadcast %cst_27 : f32 to vector<256x1xf32>
    %59 = arith.select %57, %58, %55 : vector<256x1xi1>, vector<256x1xf32>
    %c5 = arith.constant 5 : index
    %c0_28 = arith.constant 0 : index
    %c0_29 = arith.constant 0 : index
    %60 = vector.load %arg2[%c5, %c0_28, %c0_29] : memref<9x1x16xf32, #tpu.memory_space<vmem>>, vector<1x1x16xf32>
    %61 = vector.shape_cast %60 : vector<1x1x16xf32> to vector<1x16xf32>
    %62 = vector.broadcast %59 : vector<256x1xf32> to vector<256x16xf32>
    %63 = vector.broadcast %61 : vector<1x16xf32> to vector<256x16xf32>
    %64 = arith.mulf %62, %63 : vector<256x16xf32>
    %65 = arith.addf %53, %64 : vector<256x16xf32>
    %c0_30 = arith.constant 0 : index
    %c47 = arith.constant 47 : index
    %c0_31 = arith.constant 0 : index
    %66 = vector.load %arg1[%c0_30, %c47, %c0_31] : memref<1x320x1xf32, #tpu.memory_space<vmem>>, vector<1x256x1xf32>
    %67 = vector.shape_cast %66 : vector<1x256x1xf32> to vector<256x1xf32>
    %c0_i32_32 = arith.constant 0 : i32
    %68 = vector.broadcast %c0_i32_32 : i32 to vector<256x1xi32>
    %69 = arith.cmpi eq, %2, %68 : vector<256x1xi32>
    %cst_33 = arith.constant 0.000000e+00 : f32
    %70 = vector.broadcast %cst_33 : f32 to vector<256x1xf32>
    %71 = arith.select %69, %70, %67 : vector<256x1xi1>, vector<256x1xf32>
    %c6 = arith.constant 6 : index
    %c0_34 = arith.constant 0 : index
    %c0_35 = arith.constant 0 : index
    %72 = vector.load %arg2[%c6, %c0_34, %c0_35] : memref<9x1x16xf32, #tpu.memory_space<vmem>>, vector<1x1x16xf32>
    %73 = vector.shape_cast %72 : vector<1x1x16xf32> to vector<1x16xf32>
    %74 = vector.broadcast %71 : vector<256x1xf32> to vector<256x16xf32>
    %75 = vector.broadcast %73 : vector<1x16xf32> to vector<256x16xf32>
    %76 = arith.mulf %74, %75 : vector<256x16xf32>
    %77 = arith.addf %65, %76 : vector<256x16xf32>
    %c0_36 = arith.constant 0 : index
    %c48 = arith.constant 48 : index
    %c0_37 = arith.constant 0 : index
    %78 = vector.load %arg1[%c0_36, %c48, %c0_37] : memref<1x320x1xf32, #tpu.memory_space<vmem>>, vector<1x256x1xf32>
    %79 = vector.shape_cast %78 : vector<1x256x1xf32> to vector<256x1xf32>
    %c7 = arith.constant 7 : index
    %c0_38 = arith.constant 0 : index
    %c0_39 = arith.constant 0 : index
    %80 = vector.load %arg2[%c7, %c0_38, %c0_39] : memref<9x1x16xf32, #tpu.memory_space<vmem>>, vector<1x1x16xf32>
    %81 = vector.shape_cast %80 : vector<1x1x16xf32> to vector<1x16xf32>
    %82 = vector.broadcast %79 : vector<256x1xf32> to vector<256x16xf32>
    %83 = vector.broadcast %81 : vector<1x16xf32> to vector<256x16xf32>
    %84 = arith.mulf %82, %83 : vector<256x16xf32>
    %85 = arith.addf %77, %84 : vector<256x16xf32>
    %c0_40 = arith.constant 0 : index
    %c49 = arith.constant 49 : index
    %c0_41 = arith.constant 0 : index
    %86 = vector.load %arg1[%c0_40, %c49, %c0_41] : memref<1x320x1xf32, #tpu.memory_space<vmem>>, vector<1x256x1xf32>
    %87 = vector.shape_cast %86 : vector<1x256x1xf32> to vector<256x1xf32>
    %c15_i32_42 = arith.constant 15 : i32
    %88 = vector.broadcast %c15_i32_42 : i32 to vector<256x1xi32>
    %89 = arith.cmpi eq, %2, %88 : vector<256x1xi32>
    %cst_43 = arith.constant 0.000000e+00 : f32
    %90 = vector.broadcast %cst_43 : f32 to vector<256x1xf32>
    %91 = arith.select %89, %90, %87 : vector<256x1xi1>, vector<256x1xf32>
    %c8 = arith.constant 8 : index
    %c0_44 = arith.constant 0 : index
    %c0_45 = arith.constant 0 : index
    %92 = vector.load %arg2[%c8, %c0_44, %c0_45] : memref<9x1x16xf32, #tpu.memory_space<vmem>>, vector<1x1x16xf32>
    %93 = vector.shape_cast %92 : vector<1x1x16xf32> to vector<1x16xf32>
    %94 = vector.broadcast %91 : vector<256x1xf32> to vector<256x16xf32>
    %95 = vector.broadcast %93 : vector<1x16xf32> to vector<256x16xf32>
    %96 = arith.mulf %94, %95 : vector<256x16xf32>
    %97 = arith.addf %85, %96 : vector<256x16xf32>
    %c0_46 = arith.constant 0 : index
    %c0_47 = arith.constant 0 : index
    %98 = vector.load %arg3[%c0_46, %c0_47] : memref<1x16xf32, #tpu.memory_space<vmem>>, vector<1x16xf32>
    %99 = vector.broadcast %98 : vector<1x16xf32> to vector<256x16xf32>
    %100 = arith.addf %97, %99 : vector<256x16xf32>
    %101 = tpu.iota {dimensions = array<i32: 0>} : vector<64x256xi32>
    %102 = tpu.iota {dimensions = array<i32: 1>} : vector<64x256xi32>
    %c3_i32 = arith.constant 3 : i32
    %103 = vector.broadcast %c3_i32 : i32 to vector<64x256xi32>
    %104 = arith.shrsi %101, %103 : vector<64x256xi32>
    %c32_i32 = arith.constant 32 : i32
    %105 = vector.broadcast %c32_i32 : i32 to vector<64x256xi32>
    %106 = arith.muli %105, %104 : vector<64x256xi32>
    %c7_i32 = arith.constant 7 : i32
    %107 = vector.broadcast %c7_i32 : i32 to vector<64x256xi32>
    %108 = arith.andi %101, %107 : vector<64x256xi32>
    %c2_i32 = arith.constant 2 : i32
    %109 = vector.broadcast %c2_i32 : i32 to vector<64x256xi32>
    %110 = arith.muli %109, %108 : vector<64x256xi32>
    %111 = arith.addi %106, %110 : vector<64x256xi32>
    %c0_i32_48 = arith.constant 0 : i32
    %112 = vector.broadcast %c0_i32_48 : i32 to vector<64x256xi32>
    %113 = arith.addi %111, %112 : vector<64x256xi32>
    %114 = arith.cmpi eq, %102, %113 : vector<64x256xi32>
    %cst_49 = arith.constant 1.000000e+00 : f32
    %cst_50 = arith.constant 0.000000e+00 : f32
    %115 = vector.broadcast %cst_49 : f32 to vector<64x256xf32>
    %116 = vector.broadcast %cst_50 : f32 to vector<64x256xf32>
    %117 = arith.select %114, %115, %116 : vector<64x256xi1>, vector<64x256xf32>
    %cst_51 = arith.constant dense<0.000000e+00> : vector<64x16xf32>
    %118 = tpu.matmul %117, %100, %cst_51 {dimension_numbers = #tpu.dot_dimension_numbers<[1], [0], [0], [1], [0, 0, 1, 1], [], []>} : vector<64x256xf32>, vector<256x16xf32>, vector<64x16xf32> -> vector<64x16xf32>
    %c1_i32 = arith.constant 1 : i32
    %119 = vector.broadcast %c1_i32 : i32 to vector<64x256xi32>
    %120 = arith.addi %111, %119 : vector<64x256xi32>
    %121 = arith.cmpi eq, %102, %120 : vector<64x256xi32>
    %cst_52 = arith.constant 1.000000e+00 : f32
    %cst_53 = arith.constant 0.000000e+00 : f32
    %122 = vector.broadcast %cst_52 : f32 to vector<64x256xf32>
    %123 = vector.broadcast %cst_53 : f32 to vector<64x256xf32>
    %124 = arith.select %121, %122, %123 : vector<64x256xi1>, vector<64x256xf32>
    %cst_54 = arith.constant dense<0.000000e+00> : vector<64x16xf32>
    %125 = tpu.matmul %124, %100, %cst_54 {dimension_numbers = #tpu.dot_dimension_numbers<[1], [0], [0], [1], [0, 0, 1, 1], [], []>} : vector<64x256xf32>, vector<256x16xf32>, vector<64x16xf32> -> vector<64x16xf32>
    %126 = arith.maximumf %118, %125 : vector<64x16xf32>
    %c16_i32 = arith.constant 16 : i32
    %127 = vector.broadcast %c16_i32 : i32 to vector<64x256xi32>
    %128 = arith.addi %111, %127 : vector<64x256xi32>
    %129 = arith.cmpi eq, %102, %128 : vector<64x256xi32>
    %cst_55 = arith.constant 1.000000e+00 : f32
    %cst_56 = arith.constant 0.000000e+00 : f32
    %130 = vector.broadcast %cst_55 : f32 to vector<64x256xf32>
    %131 = vector.broadcast %cst_56 : f32 to vector<64x256xf32>
    %132 = arith.select %129, %130, %131 : vector<64x256xi1>, vector<64x256xf32>
    %cst_57 = arith.constant dense<0.000000e+00> : vector<64x16xf32>
    %133 = tpu.matmul %132, %100, %cst_57 {dimension_numbers = #tpu.dot_dimension_numbers<[1], [0], [0], [1], [0, 0, 1, 1], [], []>} : vector<64x256xf32>, vector<256x16xf32>, vector<64x16xf32> -> vector<64x16xf32>
    %134 = arith.maximumf %126, %133 : vector<64x16xf32>
    %c17_i32 = arith.constant 17 : i32
    %135 = vector.broadcast %c17_i32 : i32 to vector<64x256xi32>
    %136 = arith.addi %111, %135 : vector<64x256xi32>
    %137 = arith.cmpi eq, %102, %136 : vector<64x256xi32>
    %cst_58 = arith.constant 1.000000e+00 : f32
    %cst_59 = arith.constant 0.000000e+00 : f32
    %138 = vector.broadcast %cst_58 : f32 to vector<64x256xf32>
    %139 = vector.broadcast %cst_59 : f32 to vector<64x256xf32>
    %140 = arith.select %137, %138, %139 : vector<64x256xi1>, vector<64x256xf32>
    %cst_60 = arith.constant dense<0.000000e+00> : vector<64x16xf32>
    %141 = tpu.matmul %140, %100, %cst_60 {dimension_numbers = #tpu.dot_dimension_numbers<[1], [0], [0], [1], [0, 0, 1, 1], [], []>} : vector<64x256xf32>, vector<256x16xf32>, vector<64x16xf32> -> vector<64x16xf32>
    %142 = arith.maximumf %134, %141 : vector<64x16xf32>
    %cst_61 = arith.constant 5.000000e-01 : f32
    %143 = vector.broadcast %cst_61 : f32 to vector<64x16xf32>
    %144 = arith.mulf %143, %142 : vector<64x16xf32>
    %cst_62 = arith.constant 0.707106769 : f32
    %145 = vector.broadcast %cst_62 : f32 to vector<64x16xf32>
    %146 = arith.mulf %142, %145 : vector<64x16xf32>
    %cst_63 = arith.constant 0.000000e+00 : f32
    %147 = vector.broadcast %cst_63 : f32 to vector<64x16xf32>
    %148 = arith.cmpf olt, %146, %147 : vector<64x16xf32>
    %cst_64 = arith.constant -1.000000e+00 : f32
    %cst_65 = arith.constant 1.000000e+00 : f32
    %149 = vector.broadcast %cst_64 : f32 to vector<64x16xf32>
    %150 = vector.broadcast %cst_65 : f32 to vector<64x16xf32>
    %151 = arith.select %148, %149, %150 : vector<64x16xi1>, vector<64x16xf32>
    %152 = math.absf %146 : vector<64x16xf32>
    %cst_66 = arith.constant 0.327591091 : f32
    %153 = vector.broadcast %cst_66 : f32 to vector<64x16xf32>
    %154 = arith.mulf %153, %152 : vector<64x16xf32>
    %cst_67 = arith.constant 1.000000e+00 : f32
    %155 = vector.broadcast %cst_67 : f32 to vector<64x16xf32>
    %156 = arith.addf %155, %154 : vector<64x16xf32>
    %cst_68 = arith.constant 1.000000e+00 : f32
    %157 = vector.broadcast %cst_68 : f32 to vector<64x16xf32>
    %158 = arith.divf %157, %156 : vector<64x16xf32>
    %cst_69 = arith.constant 1.06140542 : f32
    %159 = vector.broadcast %cst_69 : f32 to vector<64x16xf32>
    %160 = arith.mulf %159, %158 : vector<64x16xf32>
    %cst_70 = arith.constant -1.45315206 : f32
    %161 = vector.broadcast %cst_70 : f32 to vector<64x16xf32>
    %162 = arith.addf %160, %161 : vector<64x16xf32>
    %163 = arith.mulf %162, %158 : vector<64x16xf32>
    %cst_71 = arith.constant 1.42141378 : f32
    %164 = vector.broadcast %cst_71 : f32 to vector<64x16xf32>
    %165 = arith.addf %163, %164 : vector<64x16xf32>
    %166 = arith.mulf %165, %158 : vector<64x16xf32>
    %cst_72 = arith.constant -0.284496725 : f32
    %167 = vector.broadcast %cst_72 : f32 to vector<64x16xf32>
    %168 = arith.addf %166, %167 : vector<64x16xf32>
    %169 = arith.mulf %168, %158 : vector<64x16xf32>
    %cst_73 = arith.constant 0.254829586 : f32
    %170 = vector.broadcast %cst_73 : f32 to vector<64x16xf32>
    %171 = arith.addf %169, %170 : vector<64x16xf32>
    %172 = arith.mulf %171, %158 : vector<64x16xf32>
    %cst_74 = arith.constant 0.000000e+00 : f32
    %173 = vector.broadcast %cst_74 : f32 to vector<64x16xf32>
    %174 = arith.subf %173, %152 : vector<64x16xf32>
    %175 = arith.mulf %174, %152 : vector<64x16xf32>
    %176 = math.exp %175 : vector<64x16xf32>
    %177 = arith.mulf %172, %176 : vector<64x16xf32>
    %cst_75 = arith.constant 1.000000e+00 : f32
    %178 = vector.broadcast %cst_75 : f32 to vector<64x16xf32>
    %179 = arith.subf %178, %177 : vector<64x16xf32>
    %180 = arith.mulf %151, %179 : vector<64x16xf32>
    %cst_76 = arith.constant 1.000000e+00 : f32
    %181 = vector.broadcast %cst_76 : f32 to vector<64x16xf32>
    %182 = arith.addf %181, %180 : vector<64x16xf32>
    %183 = arith.mulf %144, %182 : vector<64x16xf32>
    %cst_77 = arith.constant 0.000000e+00 : f32
    %184 = vector.broadcast %cst_77 : f32 to vector<96x16xf32>
    %c0_78 = arith.constant 0 : index
    %c0_79 = arith.constant 0 : index
    %185 = vector.load %arg16[%c0_78, %c0_79] : memref<96x16xf32, #tpu.memory_space<vmem>>, vector<96x16xf32>
    tpu.vector_store %arg16[%c0_78, %c0_79], %184 {strides = array<i32>} : memref<96x16xf32, #tpu.memory_space<vmem>>, vector<96x16xf32>,
    %c16_80 = arith.constant 16 : index
    %c0_81 = arith.constant 0 : index
    %186 = vector.load %arg16[%c16_80, %c0_81] : memref<96x16xf32, #tpu.memory_space<vmem>>, vector<64x16xf32>
    tpu.vector_store %arg16[%c16_80, %c0_81], %183 {strides = array<i32>} : memref<96x16xf32, #tpu.memory_space<vmem>>, vector<64x16xf32>,
    %187 = tpu.iota {dimensions = array<i32: 0>} : vector<64x16xi32>
    %c7_i32_82 = arith.constant 7 : i32
    %188 = vector.broadcast %c7_i32_82 : i32 to vector<64x16xi32>
    %189 = arith.andi %187, %188 : vector<64x16xi32>
    %c7_83 = arith.constant 7 : index
    %c0_84 = arith.constant 0 : index
    %190 = vector.load %arg16[%c7_83, %c0_84] : memref<96x16xf32, #tpu.memory_space<vmem>>, vector<64x16xf32>
    %c0_i32_85 = arith.constant 0 : i32
    %191 = vector.broadcast %c0_i32_85 : i32 to vector<64x16xi32>
    %192 = arith.cmpi eq, %189, %191 : vector<64x16xi32>
    %cst_86 = arith.constant 0.000000e+00 : f32
    %193 = vector.broadcast %cst_86 : f32 to vector<64x16xf32>
    %194 = arith.select %192, %193, %190 : vector<64x16xi1>, vector<64x16xf32>
    %c0_87 = arith.constant 0 : index
    %c0_88 = arith.constant 0 : index
    %c0_89 = arith.constant 0 : index
    %195 = vector.load %arg4[%c0_87, %c0_88, %c0_89] : memref<9x16x32xf32, #tpu.memory_space<vmem>>, vector<1x16x32xf32>
    %196 = vector.shape_cast %195 : vector<1x16x32xf32> to vector<16x32xf32>
    %cst_90 = arith.constant dense<0.000000e+00> : vector<64x32xf32>
    %197 = tpu.matmul %194, %196, %cst_90 {dimension_numbers = #tpu.dot_dimension_numbers<[1], [0], [0], [1], [0, 0, 1, 1], [], []>} : vector<64x16xf32>, vector<16x32xf32>, vector<64x32xf32> -> vector<64x32xf32>
    %c8_91 = arith.constant 8 : index
    %c0_92 = arith.constant 0 : index
    %198 = vector.load %arg16[%c8_91, %c0_92] : memref<96x16xf32, #tpu.memory_space<vmem>>, vector<64x16xf32>
    %c1_93 = arith.constant 1 : index
    %c0_94 = arith.constant 0 : index
    %c0_95 = arith.constant 0 : index
    %199 = vector.load %arg4[%c1_93, %c0_94, %c0_95] : memref<9x16x32xf32, #tpu.memory_space<vmem>>, vector<1x16x32xf32>
    %200 = vector.shape_cast %199 : vector<1x16x32xf32> to vector<16x32xf32>
    %cst_96 = arith.constant dense<0.000000e+00> : vector<64x32xf32>
    %201 = tpu.matmul %198, %200, %cst_96 {dimension_numbers = #tpu.dot_dimension_numbers<[1], [0], [0], [1], [0, 0, 1, 1], [], []>} : vector<64x16xf32>, vector<16x32xf32>, vector<64x32xf32> -> vector<64x32xf32>
    %202 = arith.addf %197, %201 : vector<64x32xf32>
    %c9 = arith.constant 9 : index
    %c0_97 = arith.constant 0 : index
    %203 = vector.load %arg16[%c9, %c0_97] : memref<96x16xf32, #tpu.memory_space<vmem>>, vector<64x16xf32>
    %c7_i32_98 = arith.constant 7 : i32
    %204 = vector.broadcast %c7_i32_98 : i32 to vector<64x16xi32>
    %205 = arith.cmpi eq, %189, %204 : vector<64x16xi32>
    %cst_99 = arith.constant 0.000000e+00 : f32
    %206 = vector.broadcast %cst_99 : f32 to vector<64x16xf32>
    %207 = arith.select %205, %206, %203 : vector<64x16xi1>, vector<64x16xf32>
    %c2_100 = arith.constant 2 : index
    %c0_101 = arith.constant 0 : index
    %c0_102 = arith.constant 0 : index
    %208 = vector.load %arg4[%c2_100, %c0_101, %c0_102] : memref<9x16x32xf32, #tpu.memory_space<vmem>>, vector<1x16x32xf32>
    %209 = vector.shape_cast %208 : vector<1x16x32xf32> to vector<16x32xf32>
    %cst_103 = arith.constant dense<0.000000e+00> : vector<64x32xf32>
    %210 = tpu.matmul %207, %209, %cst_103 {dimension_numbers = #tpu.dot_dimension_numbers<[1], [0], [0], [1], [0, 0, 1, 1], [], []>} : vector<64x16xf32>, vector<16x32xf32>, vector<64x32xf32> -> vector<64x32xf32>
    %211 = arith.addf %202, %210 : vector<64x32xf32>
    %c15_104 = arith.constant 15 : index
    %c0_105 = arith.constant 0 : index
    %212 = vector.load %arg16[%c15_104, %c0_105] : memref<96x16xf32, #tpu.memory_space<vmem>>, vector<64x16xf32>
    %c0_i32_106 = arith.constant 0 : i32
    %213 = vector.broadcast %c0_i32_106 : i32 to vector<64x16xi32>
    %214 = arith.cmpi eq, %189, %213 : vector<64x16xi32>
    %cst_107 = arith.constant 0.000000e+00 : f32
    %215 = vector.broadcast %cst_107 : f32 to vector<64x16xf32>
    %216 = arith.select %214, %215, %212 : vector<64x16xi1>, vector<64x16xf32>
    %c3_108 = arith.constant 3 : index
    %c0_109 = arith.constant 0 : index
    %c0_110 = arith.constant 0 : index
    %217 = vector.load %arg4[%c3_108, %c0_109, %c0_110] : memref<9x16x32xf32, #tpu.memory_space<vmem>>, vector<1x16x32xf32>
    %218 = vector.shape_cast %217 : vector<1x16x32xf32> to vector<16x32xf32>
    %cst_111 = arith.constant dense<0.000000e+00> : vector<64x32xf32>
    %219 = tpu.matmul %216, %218, %cst_111 {dimension_numbers = #tpu.dot_dimension_numbers<[1], [0], [0], [1], [0, 0, 1, 1], [], []>} : vector<64x16xf32>, vector<16x32xf32>, vector<64x32xf32> -> vector<64x32xf32>
    %220 = arith.addf %211, %219 : vector<64x32xf32>
    %c16_112 = arith.constant 16 : index
    %c0_113 = arith.constant 0 : index
    %221 = vector.load %arg16[%c16_112, %c0_113] : memref<96x16xf32, #tpu.memory_space<vmem>>, vector<64x16xf32>
    %c4_114 = arith.constant 4 : index
    %c0_115 = arith.constant 0 : index
    %c0_116 = arith.constant 0 : index
    %222 = vector.load %arg4[%c4_114, %c0_115, %c0_116] : memref<9x16x32xf32, #tpu.memory_space<vmem>>, vector<1x16x32xf32>
    %223 = vector.shape_cast %222 : vector<1x16x32xf32> to vector<16x32xf32>
    %cst_117 = arith.constant dense<0.000000e+00> : vector<64x32xf32>
    %224 = tpu.matmul %221, %223, %cst_117 {dimension_numbers = #tpu.dot_dimension_numbers<[1], [0], [0], [1], [0, 0, 1, 1], [], []>} : vector<64x16xf32>, vector<16x32xf32>, vector<64x32xf32> -> vector<64x32xf32>
    %225 = arith.addf %220, %224 : vector<64x32xf32>
    %c17_118 = arith.constant 17 : index
    %c0_119 = arith.constant 0 : index
    %226 = vector.load %arg16[%c17_118, %c0_119] : memref<96x16xf32, #tpu.memory_space<vmem>>, vector<64x16xf32>
    %c7_i32_120 = arith.constant 7 : i32
    %227 = vector.broadcast %c7_i32_120 : i32 to vector<64x16xi32>
    %228 = arith.cmpi eq, %189, %227 : vector<64x16xi32>
    %cst_121 = arith.constant 0.000000e+00 : f32
    %229 = vector.broadcast %cst_121 : f32 to vector<64x16xf32>
    %230 = arith.select %228, %229, %226 : vector<64x16xi1>, vector<64x16xf32>
    %c5_122 = arith.constant 5 : index
    %c0_123 = arith.constant 0 : index
    %c0_124 = arith.constant 0 : index
    %231 = vector.load %arg4[%c5_122, %c0_123, %c0_124] : memref<9x16x32xf32, #tpu.memory_space<vmem>>, vector<1x16x32xf32>
    %232 = vector.shape_cast %231 : vector<1x16x32xf32> to vector<16x32xf32>
    %cst_125 = arith.constant dense<0.000000e+00> : vector<64x32xf32>
    %233 = tpu.matmul %230, %232, %cst_125 {dimension_numbers = #tpu.dot_dimension_numbers<[1], [0], [0], [1], [0, 0, 1, 1], [], []>} : vector<64x16xf32>, vector<16x32xf32>, vector<64x32xf32> -> vector<64x32xf32>
    %234 = arith.addf %225, %233 : vector<64x32xf32>
    %c23 = arith.constant 23 : index
    %c0_126 = arith.constant 0 : index
    %235 = vector.load %arg16[%c23, %c0_126] : memref<96x16xf32, #tpu.memory_space<vmem>>, vector<64x16xf32>
    %c0_i32_127 = arith.constant 0 : i32
    %236 = vector.broadcast %c0_i32_127 : i32 to vector<64x16xi32>
    %237 = arith.cmpi eq, %189, %236 : vector<64x16xi32>
    %cst_128 = arith.constant 0.000000e+00 : f32
    %238 = vector.broadcast %cst_128 : f32 to vector<64x16xf32>
    %239 = arith.select %237, %238, %235 : vector<64x16xi1>, vector<64x16xf32>
    %c6_129 = arith.constant 6 : index
    %c0_130 = arith.constant 0 : index
    %c0_131 = arith.constant 0 : index
    %240 = vector.load %arg4[%c6_129, %c0_130, %c0_131] : memref<9x16x32xf32, #tpu.memory_space<vmem>>, vector<1x16x32xf32>
    %241 = vector.shape_cast %240 : vector<1x16x32xf32> to vector<16x32xf32>
    %cst_132 = arith.constant dense<0.000000e+00> : vector<64x32xf32>
    %242 = tpu.matmul %239, %241, %cst_132 {dimension_numbers = #tpu.dot_dimension_numbers<[1], [0], [0], [1], [0, 0, 1, 1], [], []>} : vector<64x16xf32>, vector<16x32xf32>, vector<64x32xf32> -> vector<64x32xf32>
    %243 = arith.addf %234, %242 : vector<64x32xf32>
    %c24 = arith.constant 24 : index
    %c0_133 = arith.constant 0 : index
    %244 = vector.load %arg16[%c24, %c0_133] : memref<96x16xf32, #tpu.memory_space<vmem>>, vector<64x16xf32>
    %c7_134 = arith.constant 7 : index
    %c0_135 = arith.constant 0 : index
    %c0_136 = arith.constant 0 : index
    %245 = vector.load %arg4[%c7_134, %c0_135, %c0_136] : memref<9x16x32xf32, #tpu.memory_space<vmem>>, vector<1x16x32xf32>
    %246 = vector.shape_cast %245 : vector<1x16x32xf32> to vector<16x32xf32>
    %cst_137 = arith.constant dense<0.000000e+00> : vector<64x32xf32>
    %247 = tpu.matmul %244, %246, %cst_137 {dimension_numbers = #tpu.dot_dimension_numbers<[1], [0], [0], [1], [0, 0, 1, 1], [], []>} : vector<64x16xf32>, vector<16x32xf32>, vector<64x32xf32> -> vector<64x32xf32>
    %248 = arith.addf %243, %247 : vector<64x32xf32>
    %c25 = arith.constant 25 : index
    %c0_138 = arith.constant 0 : index
    %249 = vector.load %arg16[%c25, %c0_138] : memref<96x16xf32, #tpu.memory_space<vmem>>, vector<64x16xf32>
    %c7_i32_139 = arith.constant 7 : i32
    %250 = vector.broadcast %c7_i32_139 : i32 to vector<64x16xi32>
    %251 = arith.cmpi eq, %189, %250 : vector<64x16xi32>
    %cst_140 = arith.constant 0.000000e+00 : f32
    %252 = vector.broadcast %cst_140 : f32 to vector<64x16xf32>
    %253 = arith.select %251, %252, %249 : vector<64x16xi1>, vector<64x16xf32>
    %c8_141 = arith.constant 8 : index
    %c0_142 = arith.constant 0 : index
    %c0_143 = arith.constant 0 : index
    %254 = vector.load %arg4[%c8_141, %c0_142, %c0_143] : memref<9x16x32xf32, #tpu.memory_space<vmem>>, vector<1x16x32xf32>
    %255 = vector.shape_cast %254 : vector<1x16x32xf32> to vector<16x32xf32>
    %cst_144 = arith.constant dense<0.000000e+00> : vector<64x32xf32>
    %256 = tpu.matmul %253, %255, %cst_144 {dimension_numbers = #tpu.dot_dimension_numbers<[1], [0], [0], [1], [0, 0, 1, 1], [], []>} : vector<64x16xf32>, vector<16x32xf32>, vector<64x32xf32> -> vector<64x32xf32>
    %257 = arith.addf %248, %256 : vector<64x32xf32>
    %c0_145 = arith.constant 0 : index
    %c0_146 = arith.constant 0 : index
    %258 = vector.load %arg5[%c0_145, %c0_146] : memref<1x32xf32, #tpu.memory_space<vmem>>, vector<1x32xf32>
    %259 = vector.broadcast %258 : vector<1x32xf32> to vector<64x32xf32>
    %260 = arith.addf %257, %259 : vector<64x32xf32>
    %261 = tpu.iota {dimensions = array<i32: 0>} : vector<16x64xi32>
    %262 = tpu.iota {dimensions = array<i32: 1>} : vector<16x64xi32>
    %c2_i32_147 = arith.constant 2 : i32
    %263 = vector.broadcast %c2_i32_147 : i32 to vector<16x64xi32>
    %264 = arith.shrsi %261, %263 : vector<16x64xi32>
    %c16_i32_148 = arith.constant 16 : i32
    %265 = vector.broadcast %c16_i32_148 : i32 to vector<16x64xi32>
    %266 = arith.muli %265, %264 : vector<16x64xi32>
    %c3_i32_149 = arith.constant 3 : i32
    %267 = vector.broadcast %c3_i32_149 : i32 to vector<16x64xi32>
    %268 = arith.andi %261, %267 : vector<16x64xi32>
    %c2_i32_150 = arith.constant 2 : i32
    %269 = vector.broadcast %c2_i32_150 : i32 to vector<16x64xi32>
    %270 = arith.muli %269, %268 : vector<16x64xi32>
    %271 = arith.addi %266, %270 : vector<16x64xi32>
    %c0_i32_151 = arith.constant 0 : i32
    %272 = vector.broadcast %c0_i32_151 : i32 to vector<16x64xi32>
    %273 = arith.addi %271, %272 : vector<16x64xi32>
    %274 = arith.cmpi eq, %262, %273 : vector<16x64xi32>
    %cst_152 = arith.constant 1.000000e+00 : f32
    %cst_153 = arith.constant 0.000000e+00 : f32
    %275 = vector.broadcast %cst_152 : f32 to vector<16x64xf32>
    %276 = vector.broadcast %cst_153 : f32 to vector<16x64xf32>
    %277 = arith.select %274, %275, %276 : vector<16x64xi1>, vector<16x64xf32>
    %cst_154 = arith.constant dense<0.000000e+00> : vector<16x32xf32>
    %278 = tpu.matmul %277, %260, %cst_154 {dimension_numbers = #tpu.dot_dimension_numbers<[1], [0], [0], [1], [0, 0, 1, 1], [], []>} : vector<16x64xf32>, vector<64x32xf32>, vector<16x32xf32> -> vector<16x32xf32>
    %c1_i32_155 = arith.constant 1 : i32
    %279 = vector.broadcast %c1_i32_155 : i32 to vector<16x64xi32>
    %280 = arith.addi %271, %279 : vector<16x64xi32>
    %281 = arith.cmpi eq, %262, %280 : vector<16x64xi32>
    %cst_156 = arith.constant 1.000000e+00 : f32
    %cst_157 = arith.constant 0.000000e+00 : f32
    %282 = vector.broadcast %cst_156 : f32 to vector<16x64xf32>
    %283 = vector.broadcast %cst_157 : f32 to vector<16x64xf32>
    %284 = arith.select %281, %282, %283 : vector<16x64xi1>, vector<16x64xf32>
    %cst_158 = arith.constant dense<0.000000e+00> : vector<16x32xf32>
    %285 = tpu.matmul %284, %260, %cst_158 {dimension_numbers = #tpu.dot_dimension_numbers<[1], [0], [0], [1], [0, 0, 1, 1], [], []>} : vector<16x64xf32>, vector<64x32xf32>, vector<16x32xf32> -> vector<16x32xf32>
    %286 = arith.maximumf %278, %285 : vector<16x32xf32>
    %c8_i32 = arith.constant 8 : i32
    %287 = vector.broadcast %c8_i32 : i32 to vector<16x64xi32>
    %288 = arith.addi %271, %287 : vector<16x64xi32>
    %289 = arith.cmpi eq, %262, %288 : vector<16x64xi32>
    %cst_159 = arith.constant 1.000000e+00 : f32
    %cst_160 = arith.constant 0.000000e+00 : f32
    %290 = vector.broadcast %cst_159 : f32 to vector<16x64xf32>
    %291 = vector.broadcast %cst_160 : f32 to vector<16x64xf32>
    %292 = arith.select %289, %290, %291 : vector<16x64xi1>, vector<16x64xf32>
    %cst_161 = arith.constant dense<0.000000e+00> : vector<16x32xf32>
    %293 = tpu.matmul %292, %260, %cst_161 {dimension_numbers = #tpu.dot_dimension_numbers<[1], [0], [0], [1], [0, 0, 1, 1], [], []>} : vector<16x64xf32>, vector<64x32xf32>, vector<16x32xf32> -> vector<16x32xf32>
    %294 = arith.maximumf %286, %293 : vector<16x32xf32>
    %c9_i32 = arith.constant 9 : i32
    %295 = vector.broadcast %c9_i32 : i32 to vector<16x64xi32>
    %296 = arith.addi %271, %295 : vector<16x64xi32>
    %297 = arith.cmpi eq, %262, %296 : vector<16x64xi32>
    %cst_162 = arith.constant 1.000000e+00 : f32
    %cst_163 = arith.constant 0.000000e+00 : f32
    %298 = vector.broadcast %cst_162 : f32 to vector<16x64xf32>
    %299 = vector.broadcast %cst_163 : f32 to vector<16x64xf32>
    %300 = arith.select %297, %298, %299 : vector<16x64xi1>, vector<16x64xf32>
    %cst_164 = arith.constant dense<0.000000e+00> : vector<16x32xf32>
    %301 = tpu.matmul %300, %260, %cst_164 {dimension_numbers = #tpu.dot_dimension_numbers<[1], [0], [0], [1], [0, 0, 1, 1], [], []>} : vector<16x64xf32>, vector<64x32xf32>, vector<16x32xf32> -> vector<16x32xf32>
    %302 = arith.maximumf %294, %301 : vector<16x32xf32>
    %c0_165 = arith.constant 0 : index
    %c0_166 = arith.constant 0 : index
    %303 = vector.load %arg6[%c0_165, %c0_166] : memref<64x32xf32, #tpu.memory_space<vmem>>, vector<64x32xf32>
    %304 = arith.mulf %302, %302 : vector<16x32xf32>
    %cst_167 = arith.constant dense<0.000000e+00> : vector<16xf32>
    %305 = vector.multi_reduction <add>, %304, %cst_167 [1] : vector<16x32xf32> to vector<16xf32>
    %306 = vector.shape_cast %305 : vector<16xf32> to vector<16x1xf32>
    %cst_168 = arith.constant 1.000000e+00 : f32
    %307 = vector.broadcast %cst_168 : f32 to vector<1x32xf32>
    %308 = arith.mulf %303, %303 : vector<64x32xf32>
    %cst_169 = arith.constant dense<0.000000e+00> : vector<1x64xf32>
    %309 = tpu.matmul %307, %308, %cst_169 {dimension_numbers = #tpu.dot_dimension_numbers<[1], [1], [0], [0], [0, 0, 1, 0], [], []>} : vector<1x32xf32>, vector<64x32xf32>, vector<1x64xf32> -> vector<1x64xf32>
    %cst_170 = arith.constant dense<0.000000e+00> : vector<16x64xf32>
    %310 = tpu.matmul %302, %303, %cst_170 {dimension_numbers = #tpu.dot_dimension_numbers<[1], [1], [0], [0], [0, 0, 1, 0], [], []>} : vector<16x32xf32>, vector<64x32xf32>, vector<16x64xf32> -> vector<16x64xf32>
    %cst_171 = arith.constant 2.000000e+00 : f32
    %311 = vector.broadcast %cst_171 : f32 to vector<16x64xf32>
    %312 = arith.mulf %311, %310 : vector<16x64xf32>
    %313 = vector.broadcast %306 : vector<16x1xf32> to vector<16x64xf32>
    %314 = arith.subf %313, %312 : vector<16x64xf32>
    %315 = vector.broadcast %309 : vector<1x64xf32> to vector<16x64xf32>
    %316 = arith.addf %314, %315 : vector<16x64xf32>
    %cst_172 = arith.constant -1.000000e+00 : f32
    %317 = vector.broadcast %cst_172 : f32 to vector<16x64xf32>
    %318 = arith.mulf %316, %317 : vector<16x64xf32>
    %cst_173 = arith.constant dense<0xFF800000> : vector<16xf32>
    %319 = vector.multi_reduction <maximumf>, %318, %cst_173 [1] : vector<16x64xf32> to vector<16xf32>
    %320 = vector.shape_cast %319 : vector<16xf32> to vector<16x1xf32>
    %321 = vector.broadcast %320 : vector<16x1xf32> to vector<16x64xf32>
    %322 = arith.subf %318, %321 : vector<16x64xf32>
    %323 = math.exp %322 : vector<16x64xf32>
    %cst_174 = arith.constant dense<0.000000e+00> : vector<16xf32>
    %324 = vector.multi_reduction <add>, %323, %cst_174 [1] : vector<16x64xf32> to vector<16xf32>
    %325 = vector.shape_cast %324 : vector<16xf32> to vector<16x1xf32>
    %326 = tpu.reciprocal %325 {approx = true} : vector<16x1xf32> -> vector<16x1xf32>
    %327 = vector.broadcast %326 : vector<16x1xf32> to vector<16x64xf32>
    %328 = arith.mulf %323, %327 : vector<16x64xf32>
    %cst_175 = arith.constant dense<0.000000e+00> : vector<16x32xf32>
    %329 = tpu.matmul %328, %303, %cst_175 {dimension_numbers = #tpu.dot_dimension_numbers<[1], [0], [0], [1], [0, 0, 1, 1], [], []>} : vector<16x64xf32>, vector<64x32xf32>, vector<16x32xf32> -> vector<16x32xf32>
    %c0_176 = arith.constant 0 : index
    %c0_177 = arith.constant 0 : index
    %c0_178 = arith.constant 0 : index
    %330 = vector.load %arg12[%c0_176, %c0_177, %c0_178] : memref<1x16x32xf32, #tpu.memory_space<vmem>>, vector<1x16x32xf32>
    %331 = vector.shape_cast %330 : vector<1x16x32xf32> to vector<16x32xf32>
    %332 = vector.shape_cast %302 : vector<16x32xf32> to vector<1x16x32xf32>
    tpu.vector_store %arg12[%c0_176, %c0_177, %c0_178], %332 {strides = array<i32>} : memref<1x16x32xf32, #tpu.memory_space<vmem>>, vector<1x16x32xf32>,
    %c0_179 = arith.constant 0 : index
    %c0_180 = arith.constant 0 : index
    %c0_181 = arith.constant 0 : index
    %333 = vector.load %arg13[%c0_179, %c0_180, %c0_181] : memref<1x16x32xf32, #tpu.memory_space<vmem>>, vector<1x16x32xf32>
    %334 = vector.shape_cast %333 : vector<1x16x32xf32> to vector<16x32xf32>
    %335 = vector.shape_cast %329 : vector<16x32xf32> to vector<1x16x32xf32>
    tpu.vector_store %arg13[%c0_179, %c0_180, %c0_181], %335 {strides = array<i32>} : memref<1x16x32xf32, #tpu.memory_space<vmem>>, vector<1x16x32xf32>,
    %c0_182 = arith.constant 0 : index
    %c0_183 = arith.constant 0 : index
    %c0_184 = arith.constant 0 : index
    %336 = vector.load %arg14[%c0_182, %c0_183, %c0_184] : memref<1x16x64xf32, #tpu.memory_space<vmem>>, vector<1x16x64xf32>
    %337 = vector.shape_cast %336 : vector<1x16x64xf32> to vector<16x64xf32>
    %338 = vector.shape_cast %316 : vector<16x64xf32> to vector<1x16x64xf32>
    tpu.vector_store %arg14[%c0_182, %c0_183, %c0_184], %338 {strides = array<i32>} : memref<1x16x64xf32, #tpu.memory_space<vmem>>, vector<1x16x64xf32>,
    %c0_185 = arith.constant 0 : index
    %c0_186 = arith.constant 0 : index
    %c0_187 = arith.constant 0 : index
    %339 = vector.load %arg15[%c0_185, %c0_186, %c0_187] : memref<1x16x64xf32, #tpu.memory_space<vmem>>, vector<1x16x64xf32>
    %340 = vector.shape_cast %339 : vector<1x16x64xf32> to vector<16x64xf32>
    %341 = vector.shape_cast %328 : vector<16x64xf32> to vector<1x16x64xf32>
    tpu.vector_store %arg15[%c0_185, %c0_186, %c0_187], %341 {strides = array<i32>} : memref<1x16x64xf32, #tpu.memory_space<vmem>>, vector<1x16x64xf32>,
    %cst_188 = arith.constant 0.000000e+00 : f32
    %342 = vector.broadcast %cst_188 : f32 to vector<32x32xf32>
    %c0_189 = arith.constant 0 : index
    %c0_190 = arith.constant 0 : index
    %343 = vector.load %arg17[%c0_189, %c0_190] : memref<32x32xf32, #tpu.memory_space<vmem>>, vector<32x32xf32>
    tpu.vector_store %arg17[%c0_189, %c0_190], %342 {strides = array<i32>} : memref<32x32xf32, #tpu.memory_space<vmem>>, vector<32x32xf32>,
    %c8_191 = arith.constant 8 : index
    %c0_192 = arith.constant 0 : index
    %344 = vector.load %arg17[%c8_191, %c0_192] : memref<32x32xf32, #tpu.memory_space<vmem>>, vector<16x32xf32>
    tpu.vector_store %arg17[%c8_191, %c0_192], %329 {strides = array<i32>} : memref<32x32xf32, #tpu.memory_space<vmem>>, vector<16x32xf32>,
    %345 = tpu.iota {dimensions = array<i32: 0>} : vector<16x32xi32>
    %c3_i32_193 = arith.constant 3 : i32
    %346 = vector.broadcast %c3_i32_193 : i32 to vector<16x32xi32>
    %347 = arith.andi %345, %346 : vector<16x32xi32>
    %c3_194 = arith.constant 3 : index
    %c0_195 = arith.constant 0 : index
    %348 = vector.load %arg17[%c3_194, %c0_195] : memref<32x32xf32, #tpu.memory_space<vmem>>, vector<16x32xf32>
    %c0_i32_196 = arith.constant 0 : i32
    %349 = vector.broadcast %c0_i32_196 : i32 to vector<16x32xi32>
    %350 = arith.cmpi eq, %347, %349 : vector<16x32xi32>
    %cst_197 = arith.constant 0.000000e+00 : f32
    %351 = vector.broadcast %cst_197 : f32 to vector<16x32xf32>
    %352 = arith.select %350, %351, %348 : vector<16x32xi1>, vector<16x32xf32>
    %c0_198 = arith.constant 0 : index
    %c0_199 = arith.constant 0 : index
    %c0_200 = arith.constant 0 : index
    %353 = vector.load %arg7[%c0_198, %c0_199, %c0_200] : memref<9x32x64xf32, #tpu.memory_space<vmem>>, vector<1x32x64xf32>
    %354 = vector.shape_cast %353 : vector<1x32x64xf32> to vector<32x64xf32>
    %cst_201 = arith.constant dense<0.000000e+00> : vector<16x64xf32>
    %355 = tpu.matmul %352, %354, %cst_201 {dimension_numbers = #tpu.dot_dimension_numbers<[1], [0], [0], [1], [0, 0, 1, 1], [], []>} : vector<16x32xf32>, vector<32x64xf32>, vector<16x64xf32> -> vector<16x64xf32>
    %c4_202 = arith.constant 4 : index
    %c0_203 = arith.constant 0 : index
    %356 = vector.load %arg17[%c4_202, %c0_203] : memref<32x32xf32, #tpu.memory_space<vmem>>, vector<16x32xf32>
    %c1_204 = arith.constant 1 : index
    %c0_205 = arith.constant 0 : index
    %c0_206 = arith.constant 0 : index
    %357 = vector.load %arg7[%c1_204, %c0_205, %c0_206] : memref<9x32x64xf32, #tpu.memory_space<vmem>>, vector<1x32x64xf32>
    %358 = vector.shape_cast %357 : vector<1x32x64xf32> to vector<32x64xf32>
    %cst_207 = arith.constant dense<0.000000e+00> : vector<16x64xf32>
    %359 = tpu.matmul %356, %358, %cst_207 {dimension_numbers = #tpu.dot_dimension_numbers<[1], [0], [0], [1], [0, 0, 1, 1], [], []>} : vector<16x32xf32>, vector<32x64xf32>, vector<16x64xf32> -> vector<16x64xf32>
    %360 = arith.addf %355, %359 : vector<16x64xf32>
    %c5_208 = arith.constant 5 : index
    %c0_209 = arith.constant 0 : index
    %361 = vector.load %arg17[%c5_208, %c0_209] : memref<32x32xf32, #tpu.memory_space<vmem>>, vector<16x32xf32>
    %c3_i32_210 = arith.constant 3 : i32
    %362 = vector.broadcast %c3_i32_210 : i32 to vector<16x32xi32>
    %363 = arith.cmpi eq, %347, %362 : vector<16x32xi32>
    %cst_211 = arith.constant 0.000000e+00 : f32
    %364 = vector.broadcast %cst_211 : f32 to vector<16x32xf32>
    %365 = arith.select %363, %364, %361 : vector<16x32xi1>, vector<16x32xf32>
    %c2_212 = arith.constant 2 : index
    %c0_213 = arith.constant 0 : index
    %c0_214 = arith.constant 0 : index
    %366 = vector.load %arg7[%c2_212, %c0_213, %c0_214] : memref<9x32x64xf32, #tpu.memory_space<vmem>>, vector<1x32x64xf32>
    %367 = vector.shape_cast %366 : vector<1x32x64xf32> to vector<32x64xf32>
    %cst_215 = arith.constant dense<0.000000e+00> : vector<16x64xf32>
    %368 = tpu.matmul %365, %367, %cst_215 {dimension_numbers = #tpu.dot_dimension_numbers<[1], [0], [0], [1], [0, 0, 1, 1], [], []>} : vector<16x32xf32>, vector<32x64xf32>, vector<16x64xf32> -> vector<16x64xf32>
    %369 = arith.addf %360, %368 : vector<16x64xf32>
    %c7_216 = arith.constant 7 : index
    %c0_217 = arith.constant 0 : index
    %370 = vector.load %arg17[%c7_216, %c0_217] : memref<32x32xf32, #tpu.memory_space<vmem>>, vector<16x32xf32>
    %c0_i32_218 = arith.constant 0 : i32
    %371 = vector.broadcast %c0_i32_218 : i32 to vector<16x32xi32>
    %372 = arith.cmpi eq, %347, %371 : vector<16x32xi32>
    %cst_219 = arith.constant 0.000000e+00 : f32
    %373 = vector.broadcast %cst_219 : f32 to vector<16x32xf32>
    %374 = arith.select %372, %373, %370 : vector<16x32xi1>, vector<16x32xf32>
    %c3_220 = arith.constant 3 : index
    %c0_221 = arith.constant 0 : index
    %c0_222 = arith.constant 0 : index
    %375 = vector.load %arg7[%c3_220, %c0_221, %c0_222] : memref<9x32x64xf32, #tpu.memory_space<vmem>>, vector<1x32x64xf32>
    %376 = vector.shape_cast %375 : vector<1x32x64xf32> to vector<32x64xf32>
    %cst_223 = arith.constant dense<0.000000e+00> : vector<16x64xf32>
    %377 = tpu.matmul %374, %376, %cst_223 {dimension_numbers = #tpu.dot_dimension_numbers<[1], [0], [0], [1], [0, 0, 1, 1], [], []>} : vector<16x32xf32>, vector<32x64xf32>, vector<16x64xf32> -> vector<16x64xf32>
    %378 = arith.addf %369, %377 : vector<16x64xf32>
    %c8_224 = arith.constant 8 : index
    %c0_225 = arith.constant 0 : index
    %379 = vector.load %arg17[%c8_224, %c0_225] : memref<32x32xf32, #tpu.memory_space<vmem>>, vector<16x32xf32>
    %c4_226 = arith.constant 4 : index
    %c0_227 = arith.constant 0 : index
    %c0_228 = arith.constant 0 : index
    %380 = vector.load %arg7[%c4_226, %c0_227, %c0_228] : memref<9x32x64xf32, #tpu.memory_space<vmem>>, vector<1x32x64xf32>
    %381 = vector.shape_cast %380 : vector<1x32x64xf32> to vector<32x64xf32>
    %cst_229 = arith.constant dense<0.000000e+00> : vector<16x64xf32>
    %382 = tpu.matmul %379, %381, %cst_229 {dimension_numbers = #tpu.dot_dimension_numbers<[1], [0], [0], [1], [0, 0, 1, 1], [], []>} : vector<16x32xf32>, vector<32x64xf32>, vector<16x64xf32> -> vector<16x64xf32>
    %383 = arith.addf %378, %382 : vector<16x64xf32>
    %c9_230 = arith.constant 9 : index
    %c0_231 = arith.constant 0 : index
    %384 = vector.load %arg17[%c9_230, %c0_231] : memref<32x32xf32, #tpu.memory_space<vmem>>, vector<16x32xf32>
    %c3_i32_232 = arith.constant 3 : i32
    %385 = vector.broadcast %c3_i32_232 : i32 to vector<16x32xi32>
    %386 = arith.cmpi eq, %347, %385 : vector<16x32xi32>
    %cst_233 = arith.constant 0.000000e+00 : f32
    %387 = vector.broadcast %cst_233 : f32 to vector<16x32xf32>
    %388 = arith.select %386, %387, %384 : vector<16x32xi1>, vector<16x32xf32>
    %c5_234 = arith.constant 5 : index
    %c0_235 = arith.constant 0 : index
    %c0_236 = arith.constant 0 : index
    %389 = vector.load %arg7[%c5_234, %c0_235, %c0_236] : memref<9x32x64xf32, #tpu.memory_space<vmem>>, vector<1x32x64xf32>
    %390 = vector.shape_cast %389 : vector<1x32x64xf32> to vector<32x64xf32>
    %cst_237 = arith.constant dense<0.000000e+00> : vector<16x64xf32>
    %391 = tpu.matmul %388, %390, %cst_237 {dimension_numbers = #tpu.dot_dimension_numbers<[1], [0], [0], [1], [0, 0, 1, 1], [], []>} : vector<16x32xf32>, vector<32x64xf32>, vector<16x64xf32> -> vector<16x64xf32>
    %392 = arith.addf %383, %391 : vector<16x64xf32>
    %c11 = arith.constant 11 : index
    %c0_238 = arith.constant 0 : index
    %393 = vector.load %arg17[%c11, %c0_238] : memref<32x32xf32, #tpu.memory_space<vmem>>, vector<16x32xf32>
    %c0_i32_239 = arith.constant 0 : i32
    %394 = vector.broadcast %c0_i32_239 : i32 to vector<16x32xi32>
    %395 = arith.cmpi eq, %347, %394 : vector<16x32xi32>
    %cst_240 = arith.constant 0.000000e+00 : f32
    %396 = vector.broadcast %cst_240 : f32 to vector<16x32xf32>
    %397 = arith.select %395, %396, %393 : vector<16x32xi1>, vector<16x32xf32>
    %c6_241 = arith.constant 6 : index
    %c0_242 = arith.constant 0 : index
    %c0_243 = arith.constant 0 : index
    %398 = vector.load %arg7[%c6_241, %c0_242, %c0_243] : memref<9x32x64xf32, #tpu.memory_space<vmem>>, vector<1x32x64xf32>
    %399 = vector.shape_cast %398 : vector<1x32x64xf32> to vector<32x64xf32>
    %cst_244 = arith.constant dense<0.000000e+00> : vector<16x64xf32>
    %400 = tpu.matmul %397, %399, %cst_244 {dimension_numbers = #tpu.dot_dimension_numbers<[1], [0], [0], [1], [0, 0, 1, 1], [], []>} : vector<16x32xf32>, vector<32x64xf32>, vector<16x64xf32> -> vector<16x64xf32>
    %401 = arith.addf %392, %400 : vector<16x64xf32>
    %c12 = arith.constant 12 : index
    %c0_245 = arith.constant 0 : index
    %402 = vector.load %arg17[%c12, %c0_245] : memref<32x32xf32, #tpu.memory_space<vmem>>, vector<16x32xf32>
    %c7_246 = arith.constant 7 : index
    %c0_247 = arith.constant 0 : index
    %c0_248 = arith.constant 0 : index
    %403 = vector.load %arg7[%c7_246, %c0_247, %c0_248] : memref<9x32x64xf32, #tpu.memory_space<vmem>>, vector<1x32x64xf32>
    %404 = vector.shape_cast %403 : vector<1x32x64xf32> to vector<32x64xf32>
    %cst_249 = arith.constant dense<0.000000e+00> : vector<16x64xf32>
    %405 = tpu.matmul %402, %404, %cst_249 {dimension_numbers = #tpu.dot_dimension_numbers<[1], [0], [0], [1], [0, 0, 1, 1], [], []>} : vector<16x32xf32>, vector<32x64xf32>, vector<16x64xf32> -> vector<16x64xf32>
    %406 = arith.addf %401, %405 : vector<16x64xf32>
    %c13 = arith.constant 13 : index
    %c0_250 = arith.constant 0 : index
    %407 = vector.load %arg17[%c13, %c0_250] : memref<32x32xf32, #tpu.memory_space<vmem>>, vector<16x32xf32>
    %c3_i32_251 = arith.constant 3 : i32
    %408 = vector.broadcast %c3_i32_251 : i32 to vector<16x32xi32>
    %409 = arith.cmpi eq, %347, %408 : vector<16x32xi32>
    %cst_252 = arith.constant 0.000000e+00 : f32
    %410 = vector.broadcast %cst_252 : f32 to vector<16x32xf32>
    %411 = arith.select %409, %410, %407 : vector<16x32xi1>, vector<16x32xf32>
    %c8_253 = arith.constant 8 : index
    %c0_254 = arith.constant 0 : index
    %c0_255 = arith.constant 0 : index
    %412 = vector.load %arg7[%c8_253, %c0_254, %c0_255] : memref<9x32x64xf32, #tpu.memory_space<vmem>>, vector<1x32x64xf32>
    %413 = vector.shape_cast %412 : vector<1x32x64xf32> to vector<32x64xf32>
    %cst_256 = arith.constant dense<0.000000e+00> : vector<16x64xf32>
    %414 = tpu.matmul %411, %413, %cst_256 {dimension_numbers = #tpu.dot_dimension_numbers<[1], [0], [0], [1], [0, 0, 1, 1], [], []>} : vector<16x32xf32>, vector<32x64xf32>, vector<16x64xf32> -> vector<16x64xf32>
    %415 = arith.addf %406, %414 : vector<16x64xf32>
    %c0_257 = arith.constant 0 : index
    %c0_258 = arith.constant 0 : index
    %416 = vector.load %arg8[%c0_257, %c0_258] : memref<1x64xf32, #tpu.memory_space<vmem>>, vector<1x64xf32>
    %417 = vector.broadcast %416 : vector<1x64xf32> to vector<16x64xf32>
    %418 = arith.addf %415, %417 : vector<16x64xf32>
    %cst_259 = arith.constant dense<0xFF800000> : vector<64xf32>
    %419 = vector.multi_reduction <maximumf>, %418, %cst_259 [0] : vector<16x64xf32> to vector<64xf32>
    %420 = vector.shape_cast %419 : vector<64xf32> to vector<1x64xf32>
    %c0_260 = arith.constant 0 : index
    %c0_261 = arith.constant 0 : index
    %421 = vector.load %arg9[%c0_260, %c0_261] : memref<64x10xf32, #tpu.memory_space<vmem>>, vector<64x10xf32>
    %cst_262 = arith.constant dense<0.000000e+00> : vector<1x10xf32>
    %422 = tpu.matmul %420, %421, %cst_262 {dimension_numbers = #tpu.dot_dimension_numbers<[1], [0], [0], [1], [0, 0, 1, 1], [], []>} : vector<1x64xf32>, vector<64x10xf32>, vector<1x10xf32> -> vector<1x10xf32>
    %c0_263 = arith.constant 0 : index
    %c0_264 = arith.constant 0 : index
    %423 = vector.load %arg10[%c0_263, %c0_264] : memref<1x10xf32, #tpu.memory_space<vmem>>, vector<1x10xf32>
    %424 = arith.addf %422, %423 : vector<1x10xf32>
    %c0_265 = arith.constant 0 : index
    %c0_266 = arith.constant 0 : index
    %c0_267 = arith.constant 0 : index
    %425 = vector.load %arg11[%c0_265, %c0_266, %c0_267] : memref<1x1x10xf32, #tpu.memory_space<vmem>>, vector<1x1x10xf32>
    %426 = vector.shape_cast %425 : vector<1x1x10xf32> to vector<1x10xf32>
    %427 = vector.shape_cast %424 : vector<1x10xf32> to vector<1x1x10xf32>
    tpu.vector_store %arg11[%c0_265, %c0_266, %c0_267], %427 {strides = array<i32>} : memref<1x1x10xf32, #tpu.memory_space<vmem>>, vector<1x1x10xf32>,
    return
  }
  func.func @transform_0(%arg0: i32) -> (i32, i32, i32) {
    %c0_i32 = arith.constant 0 : i32
    %c0_i32_0 = arith.constant 0 : i32
    %c0_i32_1 = arith.constant 0 : i32
    return %arg0, %c0_i32, %c0_i32_0 : i32, i32, i32
  }
  func.func @transform_1(%arg0: i32) -> (i32, i32, i32) {
    %c0_i32 = arith.constant 0 : i32
    %c0_i32_0 = arith.constant 0 : i32
    %c0_i32_1 = arith.constant 0 : i32
    %c0_i32_2 = arith.constant 0 : i32
    return %c0_i32, %c0_i32_0, %c0_i32_1 : i32, i32, i32
  }
  func.func @transform_2(%arg0: i32) -> (i32, i32) {
    %c0_i32 = arith.constant 0 : i32
    %c0_i32_0 = arith.constant 0 : i32
    %c0_i32_1 = arith.constant 0 : i32
    return %c0_i32, %c0_i32_0 : i32, i32
  }
  func.func @transform_3(%arg0: i32) -> (i32, i32, i32) {
    %c0_i32 = arith.constant 0 : i32
    %c0_i32_0 = arith.constant 0 : i32
    %c0_i32_1 = arith.constant 0 : i32
    %c0_i32_2 = arith.constant 0 : i32
    return %c0_i32, %c0_i32_0, %c0_i32_1 : i32, i32, i32
  }
  func.func @transform_4(%arg0: i32) -> (i32, i32) {
    %c0_i32 = arith.constant 0 : i32
    %c0_i32_0 = arith.constant 0 : i32
    %c0_i32_1 = arith.constant 0 : i32
    return %c0_i32, %c0_i32_0 : i32, i32
  }
  func.func @transform_5(%arg0: i32) -> (i32, i32) {
    %c0_i32 = arith.constant 0 : i32
    %c0_i32_0 = arith.constant 0 : i32
    %c0_i32_1 = arith.constant 0 : i32
    return %c0_i32, %c0_i32_0 : i32, i32
  }
  func.func @transform_6(%arg0: i32) -> (i32, i32, i32) {
    %c0_i32 = arith.constant 0 : i32
    %c0_i32_0 = arith.constant 0 : i32
    %c0_i32_1 = arith.constant 0 : i32
    %c0_i32_2 = arith.constant 0 : i32
    return %c0_i32, %c0_i32_0, %c0_i32_1 : i32, i32, i32
  }
  func.func @transform_7(%arg0: i32) -> (i32, i32) {
    %c0_i32 = arith.constant 0 : i32
    %c0_i32_0 = arith.constant 0 : i32
    %c0_i32_1 = arith.constant 0 : i32
    return %c0_i32, %c0_i32_0 : i32, i32
  }
  func.func @transform_8(%arg0: i32) -> (i32, i32) {
    %c0_i32 = arith.constant 0 : i32
    %c0_i32_0 = arith.constant 0 : i32
    %c0_i32_1 = arith.constant 0 : i32
    return %c0_i32, %c0_i32_0 : i32, i32
  }
  func.func @transform_9(%arg0: i32) -> (i32, i32) {
    %c0_i32 = arith.constant 0 : i32
    %c0_i32_0 = arith.constant 0 : i32
    %c0_i32_1 = arith.constant 0 : i32
    return %c0_i32, %c0_i32_0 : i32, i32
  }
  func.func @transform_10(%arg0: i32) -> (i32, i32, i32) {
    %c0_i32 = arith.constant 0 : i32
    %c0_i32_0 = arith.constant 0 : i32
    %c0_i32_1 = arith.constant 0 : i32
    return %arg0, %c0_i32, %c0_i32_0 : i32, i32, i32
  }
  func.func @transform_11(%arg0: i32) -> (i32, i32, i32) {
    %c0_i32 = arith.constant 0 : i32
    %c0_i32_0 = arith.constant 0 : i32
    %c0_i32_1 = arith.constant 0 : i32
    return %arg0, %c0_i32, %c0_i32_0 : i32, i32, i32
  }
  func.func @transform_12(%arg0: i32) -> (i32, i32, i32) {
    %c0_i32 = arith.constant 0 : i32
    %c0_i32_0 = arith.constant 0 : i32
    %c0_i32_1 = arith.constant 0 : i32
    return %arg0, %c0_i32, %c0_i32_0 : i32, i32, i32
  }
  func.func @transform_13(%arg0: i32) -> (i32, i32, i32) {
    %c0_i32 = arith.constant 0 : i32
    %c0_i32_0 = arith.constant 0 : i32
    %c0_i32_1 = arith.constant 0 : i32
    return %arg0, %c0_i32, %c0_i32_0 : i32, i32, i32
  }
  func.func @transform_14(%arg0: i32) -> (i32, i32, i32) {
    %c0_i32 = arith.constant 0 : i32
    %c0_i32_0 = arith.constant 0 : i32
    %c0_i32_1 = arith.constant 0 : i32
    return %arg0, %c0_i32, %c0_i32_0 : i32, i32, i32
  }
}

</mosaic_0001>

<llo_original>
// kernel: simple_vq_classifier.1
$region0: #{simple_vq_classifier.1}
  #allocation0 [shape = 'u32[]', space=smem, size = 0x4, offset = 0x4, fixed_abs, tag = 'smem constant byte address 0x4 - core index']
  #allocation1 [shape = 'u32[144,128]{1,0:T(1,128)}', space=vmem, size = 0x12000, scoped, tag = 'internal scratch']
  #allocation2 [shape = 'f32[96,16]{1,0:T(8,128)}', space=vmem, size = 0xc000, scoped, tag = 'scratch operand']
  #allocation3 [shape = 'f32[32,32]{1,0:T(8,128)}', space=vmem, size = 0x4000, scoped, tag = 'scratch operand']
  %s0 = inlined_call_operand.vmem [shape: f32[2,320,1], index: 0, kind: input, shape index: {}]
  %s1 = inlined_call_operand.vmem [shape: f32[9,1,16], index: 1, kind: input, shape index: {}]
  %s2 = inlined_call_operand.vmem [shape: f32[1,16], index: 2, kind: input, shape index: {}]
  %s3 = inlined_call_operand.vmem [shape: f32[9,16,32], index: 3, kind: input, shape index: {}]
  %s4 = inlined_call_operand.vmem [shape: f32[1,32], index: 4, kind: input, shape index: {}]
  %s5 = inlined_call_operand.vmem [shape: f32[64,32], index: 5, kind: input, shape index: {}]
  %s6 = inlined_call_operand.vmem [shape: f32[9,32,64], index: 6, kind: input, shape index: {}]
  %s7 = inlined_call_operand.vmem [shape: f32[1,64], index: 7, kind: input, shape index: {}]
  %s8 = inlined_call_operand.vmem [shape: f32[64,10], index: 8, kind: input, shape index: {}]
  %s9 = inlined_call_operand.vmem [shape: f32[1,10], index: 9, kind: input, shape index: {}]
  %s10 = inlined_call_operand.hbm [shape: f32[2,1,10], index: 10, kind: output, shape index: {0}]
  %s11 = inlined_call_operand.hbm [shape: f32[2,16,32], index: 11, kind: output, shape index: {1}]
  %s12 = inlined_call_operand.hbm [shape: f32[2,16,32], index: 12, kind: output, shape index: {2}]
  %s13 = inlined_call_operand.vmem [shape: f32[2,16,64], index: 13, kind: output, shape index: {3}]
  %s14 = inlined_call_operand.vmem [shape: f32[2,16,64], index: 14, kind: output, shape index: {4}]
  %15 = xla_tuple %s10, %s11, %s12, %s13, %s14
  %s16 = sld [smem:[#allocation0]]
  $region105: #{simple_vq_classifier.1} parent=0
    _
  %s18 = ssub.s32 1, %s16
  %s19 = scalar_select 0, %s18, %s16
  $region1: #{simple_vq_classifier.1} parent=0
    #allocation4 [shape = 'u8[1024]{0}', space=vmem, size = 0x400, scoped, tag = 'output window, operand 0']
    #allocation5 [shape = 's32[2]{0}', space=sflag, size = 0x8, scoped, tag = 'scoped memory for simple_vq_classifier.1']
    #allocation6 [shape = 'u8[16384]{0}', space=vmem, size = 0x4000, scoped, tag = 'output window, operand 1']
    #allocation7 [shape = 's32[2]{0}', space=sflag, size = 0x8, scoped, tag = 'scoped memory for simple_vq_classifier.1']
    #allocation8 [shape = 'u8[16384]{0}', space=vmem, size = 0x4000, scoped, tag = 'output window, operand 2']
    %20 = vsyncpa [#allocation5], 0
    %s21 = scalar_lea.sflag [#allocation5], 1
    %22 = vsyncpa %s21, 0
    %23 = vsyncpa [#allocation7], 0
    %s24 = scalar_lea.sflag [#allocation7], 1
    %25 = vsyncpa %s24, 0
    loop: start=0, step=1, limit=4
    $region2: #{simple_vq_classifier.1} parent=1 // loop_pre_header
      _
    $region3: #{simple_vq_classifier.1} parent=1 // loop_header
      %s27 = sphi 0, %s31
      %p28 = scmp.ge.s32.totalorder %s27, 4
      %s37 = sphi 0, %s39
      %s40 = sphi 0, %s37
      %s41 = sphi 0, %s40
      %s57 = sphi 0, %s41
      %s61 = sphi 0, %s61
      %s63 = sphi 0, %s61
      %s64 = sphi 0, %s63
      %s78 = sphi 0, %s64
      %s82 = sphi 0, %s82
      %s84 = sphi 0, %s82
      %s85 = sphi 0, %s84
      %s99 = sphi 0, %s85
      %s103 = sphi 0, %s103
      %s105 = sphi 0, %s103
      %s106 = sphi 0, %s105
      %s120 = sphi 0, %s106
      %s124 = sphi 0, %s124
      %s126 = sphi 0, %s124
      %s127 = sphi 0, %s126
      %s141 = sphi 0, %s127
      %s145 = sphi 0, %s145
      %s147 = sphi 0, %s145
      %s148 = sphi 0, %s147
      %s162 = sphi 0, %s148
      %s166 = sphi 0, %s166
      %s168 = sphi 0, %s166
      %s169 = sphi 0, %s168
      %s183 = sphi 0, %s169
      %s187 = sphi 0, %s187
      %s189 = sphi 0, %s187
      %s190 = sphi 0, %s189
      %s204 = sphi 0, %s190
      %s208 = sphi 0, %s208
      %s210 = sphi 0, %s208
      %s211 = sphi 0, %s210
      %s225 = sphi 0, %s211
      %s229 = sphi 0, %s229
      %s231 = sphi 0, %s229
      %s232 = sphi 0, %s231
      %s246 = sphi 0, %s232
      %s252 = sphi 0, %s254
      %s255 = sphi 0, %s252
      %s256 = sphi 0, %s255
      %s272 = sphi 0, %s256
      %s278 = sphi 0, %s280
      %s281 = sphi 0, %s278
      %s282 = sphi 0, %s281
      %s298 = sphi 0, %s282
      %s304 = sphi 0, %s306
      %s307 = sphi 0, %s304
      %s308 = sphi 0, %s307
      %s324 = sphi 0, %s308
      %s330 = sphi 0, %s332
      %s333 = sphi 0, %s330
      %s334 = sphi 0, %s333
      %s350 = sphi 0, %s334
      %s356 = sphi 0, %s358
      %s359 = sphi 0, %s356
      %s360 = sphi 0, %s359
      %s376 = sphi 0, %s360
    $region4: #{simple_vq_classifier.1} parent=1 // loop_header_branch
      %30 = sbr.rel (%p28) target = $region8
    $region5: #{simple_vq_classifier.1} parent=1 // loop_body
      %s32 = ssub.s32 %s27, 1
      %s33 = ssub.s32 %s27, 2
      %s34 = sadd.s32 %s27, 1
      %s35 = ssub.s32 %s27, %s34
      %p36 = scmp.eq.s32.totalorder %s35, 0
      %s38 = sadd.s32 %s37, 1
      %s39 = scalar_select %p36, %s37, %s38
      %p42 = pneg %p36
      %p43 = scmp.eq.s32.totalorder %s27, 1
      %p44 = por %p42, %p43
      %p45 = scmp.ne.s32.totalorder %s37, %s40
      %p46 = scmp.eq.s32.totalorder %s27, 0
      %p47 = por %p45, %p46
      %p48 = scmp.ne.s32.totalorder %s37, %s40
      %p49 = scmp.eq.s32.totalorder %s32, 1
      %p50 = por %p48, %p49
      %p51 = scmp.ne.s32.totalorder %s40, %s41
      %p52 = scmp.eq.s32.totalorder %s32, 0
      %p53 = por %p51, %p52
      %p54 = scmp.ne.s32.totalorder %s40, %s41
      %p55 = scmp.eq.s32.totalorder %s33, 1
      %p56 = por %p54, %p55
      %p58 = scmp.ne.s32.totalorder %s41, %s57
      %p59 = scmp.eq.s32.totalorder %s33, 0
      %p60 = por %p58, %p59
      %s62 = sadd.s32 %s61, 1
      %p65 = scmp.eq.s32.totalorder %s27, 1
      %p66 = scmp.ne.s32.totalorder %s61, %s63
      %p67 = scmp.eq.s32.totalorder %s27, 0
      %p68 = por %p66, %p67
      %p69 = scmp.ne.s32.totalorder %s61, %s63
      %p70 = scmp.eq.s32.totalorder %s32, 1
      %p71 = por %p69, %p70
      %p72 = scmp.ne.s32.totalorder %s63, %s64
      %p73 = scmp.eq.s32.totalorder %s32, 0
      %p74 = por %p72, %p73
      %p75 = scmp.ne.s32.totalorder %s63, %s64
      %p76 = scmp.eq.s32.totalorder %s33, 1
      %p77 = por %p75, %p76
      %p79 = scmp.ne.s32.totalorder %s64, %s78
      %p80 = scmp.eq.s32.totalorder %s33, 0
      %p81 = por %p79, %p80
      %s83 = sadd.s32 %s82, 1
      %p86 = scmp.eq.s32.totalorder %s27, 1
      %p87 = scmp.ne.s32.totalorder %s82, %s84
      %p88 = scmp.eq.s32.totalorder %s27, 0
      %p89 = por %p87, %p88
      %p90 = scmp.ne.s32.totalorder %s82, %s84
      %p91 = scmp.eq.s32.totalorder %s32, 1
      %p92 = por %p90, %p91
      %p93 = scmp.ne.s32.totalorder %s84, %s85
      %p94 = scmp.eq.s32.totalorder %s32, 0
      %p95 = por %p93, %p94
      %p96 = scmp.ne.s32.totalorder %s84, %s85
      %p97 = scmp.eq.s32.totalorder %s33, 1
      %p98 = por %p96, %p97
      %p100 = scmp.ne.s32.totalorder %s85, %s99
      %p101 = scmp.eq.s32.totalorder %s33, 0
      %p102 = por %p100, %p101
      %s104 = sadd.s32 %s103, 1
      %p107 = scmp.eq.s32.totalorder %s27, 1
      %p108 = scmp.ne.s32.totalorder %s103, %s105
      %p109 = scmp.eq.s32.totalorder %s27, 0
      %p110 = por %p108, %p109
      %p111 = scmp.ne.s32.totalorder %s103, %s105
      %p112 = scmp.eq.s32.totalorder %s32, 1
      %p113 = por %p111, %p112
      %p114 = scmp.ne.s32.totalorder %s105, %s106
      %p115 = scmp.eq.s32.totalorder %s32, 0
      %p116 = por %p114, %p115
      %p117 = scmp.ne.s32.totalorder %s105, %s106
      %p118 = scmp.eq.s32.totalorder %s33, 1
      %p119 = por %p117, %p118
      %p121 = scmp.ne.s32.totalorder %s106, %s120
      %p122 = scmp.eq.s32.totalorder %s33, 0
      %p123 = por %p121, %p122
      %s125 = sadd.s32 %s124, 1
      %p128 = scmp.eq.s32.totalorder %s27, 1
      %p129 = scmp.ne.s32.totalorder %s124, %s126
      %p130 = scmp.eq.s32.totalorder %s27, 0
      %p131 = por %p129, %p130
      %p132 = scmp.ne.s32.totalorder %s124, %s126
      %p133 = scmp.eq.s32.totalorder %s32, 1
      %p134 = por %p132, %p133
      %p135 = scmp.ne.s32.totalorder %s126, %s127
      %p136 = scmp.eq.s32.totalorder %s32, 0
      %p137 = por %p135, %p136
      %p138 = scmp.ne.s32.totalorder %s126, %s127
      %p139 = scmp.eq.s32.totalorder %s33, 1
      %p140 = por %p138, %p139
      %p142 = scmp.ne.s32.totalorder %s127, %s141
      %p143 = scmp.eq.s32.totalorder %s33, 0
      %p144 = por %p142, %p143
      %s146 = sadd.s32 %s145, 1
      %p149 = scmp.eq.s32.totalorder %s27, 1
      %p150 = scmp.ne.s32.totalorder %s145, %s147
      %p151 = scmp.eq.s32.totalorder %s27, 0
      %p152 = por %p150, %p151
      %p153 = scmp.ne.s32.totalorder %s145, %s147
      %p154 = scmp.eq.s32.totalorder %s32, 1
      %p155 = por %p153, %p154
      %p156 = scmp.ne.s32.totalorder %s147, %s148
      %p157 = scmp.eq.s32.totalorder %s32, 0
      %p158 = por %p156, %p157
      %p159 = scmp.ne.s32.totalorder %s147, %s148
      %p160 = scmp.eq.s32.totalorder %s33, 1
      %p161 = por %p159, %p160
      %p163 = scmp.ne.s32.totalorder %s148, %s162
      %p164 = scmp.eq.s32.totalorder %s33, 0
      %p165 = por %p163, %p164
      %s167 = sadd.s32 %s166, 1
      %p170 = scmp.eq.s32.totalorder %s27, 1
      %p171 = scmp.ne.s32.totalorder %s166, %s168
      %p172 = scmp.eq.s32.totalorder %s27, 0
      %p173 = por %p171, %p172
      %p174 = scmp.ne.s32.totalorder %s166, %s168
      %p175 = scmp.eq.s32.totalorder %s32, 1
      %p176 = por %p174, %p175
      %p177 = scmp.ne.s32.totalorder %s168, %s169
      %p178 = scmp.eq.s32.totalorder %s32, 0
      %p179 = por %p177, %p178
      %p180 = scmp.ne.s32.totalorder %s168, %s169
      %p181 = scmp.eq.s32.totalorder %s33, 1
      %p182 = por %p180, %p181
      %p184 = scmp.ne.s32.totalorder %s169, %s183
      %p185 = scmp.eq.s32.totalorder %s33, 0
      %p186 = por %p184, %p185
      %s188 = sadd.s32 %s187, 1
      %p191 = scmp.eq.s32.totalorder %s27, 1
      %p192 = scmp.ne.s32.totalorder %s187, %s189
      %p193 = scmp.eq.s32.totalorder %s27, 0
      %p194 = por %p192, %p193
      %p195 = scmp.ne.s32.totalorder %s187, %s189
      %p196 = scmp.eq.s32.totalorder %s32, 1
      %p197 = por %p195, %p196
      %p198 = scmp.ne.s32.totalorder %s189, %s190
      %p199 = scmp.eq.s32.totalorder %s32, 0
      %p200 = por %p198, %p199
      %p201 = scmp.ne.s32.totalorder %s189, %s190
      %p202 = scmp.eq.s32.totalorder %s33, 1
      %p203 = por %p201, %p202
      %p205 = scmp.ne.s32.totalorder %s190, %s204
      %p206 = scmp.eq.s32.totalorder %s33, 0
      %p207 = por %p205, %p206
      %s209 = sadd.s32 %s208, 1
      %p212 = scmp.eq.s32.totalorder %s27, 1
      %p213 = scmp.ne.s32.totalorder %s208, %s210
      %p214 = scmp.eq.s32.totalorder %s27, 0
      %p215 = por %p213, %p214
      %p216 = scmp.ne.s32.totalorder %s208, %s210
      %p217 = scmp.eq.s32.totalorder %s32, 1
      %p218 = por %p216, %p217
      %p219 = scmp.ne.s32.totalorder %s210, %s211
      %p220 = scmp.eq.s32.totalorder %s32, 0
      %p221 = por %p219, %p220
      %p222 = scmp.ne.s32.totalorder %s210, %s211
      %p223 = scmp.eq.s32.totalorder %s33, 1
      %p224 = por %p222, %p223
      %p226 = scmp.ne.s32.totalorder %s211, %s225
      %p227 = scmp.eq.s32.totalorder %s33, 0
      %p228 = por %p226, %p227
      %s230 = sadd.s32 %s229, 1
      %p233 = scmp.eq.s32.totalorder %s27, 1
      %p234 = scmp.ne.s32.totalorder %s229, %s231
      %p235 = scmp.eq.s32.totalorder %s27, 0
      %p236 = por %p234, %p235
      %p237 = scmp.ne.s32.totalorder %s229, %s231
      %p238 = scmp.eq.s32.totalorder %s32, 1
      %p239 = por %p237, %p238
      %p240 = scmp.ne.s32.totalorder %s231, %s232
      %p241 = scmp.eq.s32.totalorder %s32, 0
      %p242 = por %p240, %p241
      %p243 = scmp.ne.s32.totalorder %s231, %s232
      %p244 = scmp.eq.s32.totalorder %s33, 1
      %p245 = por %p243, %p244
      %p247 = scmp.ne.s32.totalorder %s232, %s246
      %p248 = scmp.eq.s32.totalorder %s33, 0
      %p249 = por %p247, %p248
      %s250 = ssub.s32 %s27, %s34
      %p251 = scmp.eq.s32.totalorder %s250, 0
      %s253 = sadd.s32 %s252, 1
      %s254 = scalar_select %p251, %s252, %s253
      %p257 = pneg %p251
      %p258 = scmp.eq.s32.totalorder %s27, 1
      %p259 = por %p257, %p258
      %p260 = scmp.ne.s32.totalorder %s252, %s255
      %p261 = scmp.eq.s32.totalorder %s27, 0
      %p262 = por %p260, %p261
      %p263 = scmp.ne.s32.totalorder %s252, %s255
      %p264 = scmp.eq.s32.totalorder %s32, 1
      %p265 = por %p263, %p264
      %p266 = scmp.ne.s32.totalorder %s255, %s256
      %p267 = scmp.eq.s32.totalorder %s32, 0
      %p268 = por %p266, %p267
      %p269 = scmp.ne.s32.totalorder %s255, %s256
      %p270 = scmp.eq.s32.totalorder %s33, 1
      %p271 = por %p269, %p270
      %p273 = scmp.ne.s32.totalorder %s256, %s272
      %p274 = scmp.eq.s32.totalorder %s33, 0
      %p275 = por %p273, %p274
      %s276 = ssub.s32 %s27, %s34
      %p277 = scmp.eq.s32.totalorder %s276, 0
      %s279 = sadd.s32 %s278, 1
      %s280 = scalar_select %p277, %s278, %s279
      %p283 = pneg %p277
      %p284 = scmp.eq.s32.totalorder %s27, 1
      %p285 = por %p283, %p284
      %p286 = scmp.ne.s32.totalorder %s278, %s281
      %p287 = scmp.eq.s32.totalorder %s27, 0
      %p288 = por %p286, %p287
      %p289 = scmp.ne.s32.totalorder %s278, %s281
      %p290 = scmp.eq.s32.totalorder %s32, 1
      %p291 = por %p289, %p290
      %p292 = scmp.ne.s32.totalorder %s281, %s282
      %p293 = scmp.eq.s32.totalorder %s32, 0
      %p294 = por %p292, %p293
      %p295 = scmp.ne.s32.totalorder %s281, %s282
      %p296 = scmp.eq.s32.totalorder %s33, 1
      %p297 = por %p295, %p296
      %p299 = scmp.ne.s32.totalorder %s282, %s298
      %p300 = scmp.eq.s32.totalorder %s33, 0
      %p301 = por %p299, %p300
      %s302 = ssub.s32 %s27, %s34
      %p303 = scmp.eq.s32.totalorder %s302, 0
      %s305 = sadd.s32 %s304, 1
      %s306 = scalar_select %p303, %s304, %s305
      %p309 = pneg %p303
      %p310 = scmp.eq.s32.totalorder %s27, 1
      %p311 = por %p309, %p310
      %p312 = scmp.ne.s32.totalorder %s304, %s307
      %p313 = scmp.eq.s32.totalorder %s27, 0
      %p314 = por %p312, %p313
      %p315 = scmp.ne.s32.totalorder %s304, %s307
      %p316 = scmp.eq.s32.totalorder %s32, 1
      %p317 = por %p315, %p316
      %p318 = scmp.ne.s32.totalorder %s307, %s308
      %p319 = scmp.eq.s32.totalorder %s32, 0
      %p320 = por %p318, %p319
      %p321 = scmp.ne.s32.totalorder %s307, %s308
      %p322 = scmp.eq.s32.totalorder %s33, 1
      %p323 = por %p321, %p322
      %p325 = scmp.ne.s32.totalorder %s308, %s324
      %p326 = scmp.eq.s32.totalorder %s33, 0
      %p327 = por %p325, %p326
      %s328 = ssub.s32 %s27, %s34
      %p329 = scmp.eq.s32.totalorder %s328, 0
      %s331 = sadd.s32 %s330, 1
      %s332 = scalar_select %p329, %s330, %s331
      %p335 = pneg %p329
      %p336 = scmp.eq.s32.totalorder %s27, 1
      %p337 = por %p335, %p336
      %p338 = scmp.ne.s32.totalorder %s330, %s333
      %p339 = scmp.eq.s32.totalorder %s27, 0
      %p340 = por %p338, %p339
      %p341 = scmp.ne.s32.totalorder %s330, %s333
      %p342 = scmp.eq.s32.totalorder %s32, 1
      %p343 = por %p341, %p342
      %p344 = scmp.ne.s32.totalorder %s333, %s334
      %p345 = scmp.eq.s32.totalorder %s32, 0
      %p346 = por %p344, %p345
      %p347 = scmp.ne.s32.totalorder %s333, %s334
      %p348 = scmp.eq.s32.totalorder %s33, 1
      %p349 = por %p347, %p348
      %p351 = scmp.ne.s32.totalorder %s334, %s350
      %p352 = scmp.eq.s32.totalorder %s33, 0
      %p353 = por %p351, %p352
      %s354 = ssub.s32 %s27, %s34
      %p355 = scmp.eq.s32.totalorder %s354, 0
      %s357 = sadd.s32 %s356, 1
      %s358 = scalar_select %p355, %s356, %s357
      %p361 = pneg %p355
      %p362 = scmp.eq.s32.totalorder %s27, 1
      %p363 = por %p361, %p362
      %p364 = scmp.ne.s32.totalorder %s356, %s359
      %p365 = scmp.eq.s32.totalorder %s27, 0
      %p366 = por %p364, %p365
      %p367 = scmp.ne.s32.totalorder %s356, %s359
      %p368 = scmp.eq.s32.totalorder %s32, 1
      %p369 = por %p367, %p368
      %p370 = scmp.ne.s32.totalorder %s359, %s360
      %p371 = scmp.eq.s32.totalorder %s32, 0
      %p372 = por %p370, %p371
      %p373 = scmp.ne.s32.totalorder %s359, %s360
      %p374 = scmp.eq.s32.totalorder %s33, 1
      %p375 = por %p373, %p374
      %p377 = scmp.ne.s32.totalorder %s360, %s376
      %p378 = scmp.eq.s32.totalorder %s33, 0
      %p379 = por %p377, %p378
      %p380 = scmp.le.s32.totalorder 1, %s27
      %p381 = scmp.lt.s32.totalorder %s27, 3
      %p382 = pnand %p380, %p381
      %p383 = pneg %p382
      // Predicated region
      $region9: #{simple_vq_classifier.1} parent=5 // pred_check
        _
      $region10: #{simple_vq_classifier.1} parent=5 // pred_check_branch
        %385 = sbr.rel (%p382) target = $region12
      $region11: #{simple_vq_classifier.1} parent=5 // pred_region
        %s386 = ssub.s32 %s27, 1
        // Predicated region
        $region13: #{simple_vq_classifier.1} parent=11 // pred_check
          %p387 = pneg %p74
        $region14: #{simple_vq_classifier.1} parent=11 // pred_check_branch
          %389 = sbr.rel (%p387) target = $region16
        $region15: #{simple_vq_classifier.1} parent=11 // pred_region
          _
        $region16: #{simple_vq_classifier.1} parent=11 // pred_fallthru
          _
        // Predicated region
        $region17: #{simple_vq_classifier.1} parent=11 // pred_check
          %p390 = pneg %p95
        $region18: #{simple_vq_classifier.1} parent=11 // pred_check_branch
          %392 = sbr.rel (%p390) target = $region20
        $region19: #{simple_vq_classifier.1} parent=11 // pred_region
          _
        $region20: #{simple_vq_classifier.1} parent=11 // pred_fallthru
          _
        // Predicated region
        $region21: #{simple_vq_classifier.1} parent=11 // pred_check
          %p393 = pneg %p116
        $region22: #{simple_vq_classifier.1} parent=11 // pred_check_branch
          %395 = sbr.rel (%p393) target = $region24
        $region23: #{simple_vq_classifier.1} parent=11 // pred_region
          _
        $region24: #{simple_vq_classifier.1} parent=11 // pred_fallthru
          _
        // Predicated region
        $region25: #{simple_vq_classifier.1} parent=11 // pred_check
          %p396 = pneg %p137
        $region26: #{simple_vq_classifier.1} parent=11 // pred_check_branch
          %398 = sbr.rel (%p396) target = $region28
        $region27: #{simple_vq_classifier.1} parent=11 // pred_region
          _
        $region28: #{simple_vq_classifier.1} parent=11 // pred_fallthru
          _
        // Predicated region
        $region29: #{simple_vq_classifier.1} parent=11 // pred_check
          %p399 = pneg %p158
        $region30: #{simple_vq_classifier.1} parent=11 // pred_check_branch
          %401 = sbr.rel (%p399) target = $region32
        $region31: #{simple_vq_classifier.1} parent=11 // pred_region
          _
        $region32: #{simple_vq_classifier.1} parent=11 // pred_fallthru
          _
        // Predicated region
        $region33: #{simple_vq_classifier.1} parent=11 // pred_check
          %p402 = pneg %p179
        $region34: #{simple_vq_classifier.1} parent=11 // pred_check_branch
          %404 = sbr.rel (%p402) target = $region36
        $region35: #{simple_vq_classifier.1} parent=11 // pred_region
          _
        $region36: #{simple_vq_classifier.1} parent=11 // pred_fallthru
          _
        // Predicated region
        $region37: #{simple_vq_classifier.1} parent=11 // pred_check
          %p405 = pneg %p200
        $region38: #{simple_vq_classifier.1} parent=11 // pred_check_branch
          %407 = sbr.rel (%p405) target = $region40
        $region39: #{simple_vq_classifier.1} parent=11 // pred_region
          _
        $region40: #{simple_vq_classifier.1} parent=11 // pred_fallthru
          _
        // Predicated region
        $region41: #{simple_vq_classifier.1} parent=11 // pred_check
          %p408 = pneg %p221
        $region42: #{simple_vq_classifier.1} parent=11 // pred_check_branch
          %410 = sbr.rel (%p408) target = $region44
        $region43: #{simple_vq_classifier.1} parent=11 // pred_region
          _
        $region44: #{simple_vq_classifier.1} parent=11 // pred_fallthru
          _
        // Predicated region
        $region45: #{simple_vq_classifier.1} parent=11 // pred_check
          %p411 = pneg %p242
        $region46: #{simple_vq_classifier.1} parent=11 // pred_check_branch
          %413 = sbr.rel (%p411) target = $region48
        $region47: #{simple_vq_classifier.1} parent=11 // pred_region
          _
        $region48: #{simple_vq_classifier.1} parent=11 // pred_fallthru
          _
      $region12: #{simple_vq_classifier.1} parent=5 // pred_fallthru
        _
      %p414 = scmp.lt.s32.totalorder %s27, 2
      // Predicated region
      $region49: #{simple_vq_classifier.1} parent=5 // pred_check
        %p415 = pneg %p414
      $region50: #{simple_vq_classifier.1} parent=5 // pred_check_branch
        %417 = sbr.rel (%p415) target = $region52
      $region51: #{simple_vq_classifier.1} parent=5 // pred_region
        // Predicated region
        $region53: #{simple_vq_classifier.1} parent=51 // pred_check
          %p418 = pneg %p47
        $region54: #{simple_vq_classifier.1} parent=51 // pred_check_branch
          %420 = sbr.rel (%p418) target = $region56
        $region55: #{simple_vq_classifier.1} parent=51 // pred_region
          %p421 = scmp.lt.s32.totalorder %s27, 1
          %s422 = scalar_select %p421, %s27, 1
          %s423 = smul.addr %s422, 40
          %s424 = smul.addr %s423, 8
          %s425 = scalar_lea.vmem %s0, %s424
        $region56: #{simple_vq_classifier.1} parent=51 // pred_fallthru
          _
      $region52: #{simple_vq_classifier.1} parent=5 // pred_fallthru
        _
      %p426 = scmp.le.s32.totalorder 1, %s27
      %p427 = scmp.lt.s32.totalorder %s27, 3
      %p428 = pnand %p426, %p427
      %p429 = pneg %p428
      // Predicated region
      $region57: #{simple_vq_classifier.1} parent=5 // pred_check
        _
      $region58: #{simple_vq_classifier.1} parent=5 // pred_check_branch
        %431 = sbr.rel (%p428) target = $region60
      $region59: #{simple_vq_classifier.1} parent=5 // pred_region
        %s432 = ssub.s32 %s27, 1
        %p433 = scmp.lt.s32.totalorder %s32, 1
        %s434 = scalar_select %p433, %s32, 1
        %s435 = smul.addr %s434, 40
        %s436 = smul.addr %s435, 8
        %s437 = scalar_lea.vmem %s0, %s436
        %p438 = pneg %p53
        %p439 = pneg %p50
        %p440 = pneg %p74
        %p441 = pneg %p71
        %p442 = pneg %p95
        %p443 = pneg %p92
        %p444 = pneg %p116
        %p445 = pneg %p113
        %p446 = pneg %p137
        %p447 = pneg %p134
        %p448 = pneg %p158
        %p449 = pneg %p155
        %p450 = pneg %p179
        %p451 = pneg %p176
        %p452 = pneg %p200
        %p453 = pneg %p197
        %p454 = pneg %p221
        %p455 = pneg %p218
        %p456 = pneg %p242
        %p457 = pneg %p239
        %p458 = pneg %p268
        %p459 = pneg %p265
        %s460 = sand.u32 %s255, 1
        %s461 = scalar_lea.sflag [#allocation5], %s460
        %s462 = sand.u32 %s255, 1
        %s463 = scalar_lea.vmem [#allocation4], %s462
        %p464 = pneg %p294
        %p465 = pneg %p291
        %s466 = sand.u32 %s32, 1
        %s467 = scalar_lea.sflag [#allocation7], %s466
        %s468 = sand.u32 %s281, 1
        %s469 = smul.addr %s468, 16
        %s470 = scalar_lea.vmem [#allocation6], %s469
        %p471 = pneg %p320
        %p472 = pneg %p317
        %s473 = sand.u32 %s32, 1
        %s474 = scalar_lea.sflag [#allocation7], %s473
        %s475 = sand.u32 %s307, 1
        %s476 = smul.addr %s475, 16
        %s477 = scalar_lea.vmem [#allocation8], %s476
        %p478 = pneg %p346
        %p479 = pneg %p343
        %p480 = scmp.lt.s32.totalorder %s32, 1
        %s481 = scalar_select %p480, %s32, 1
        %s482 = smul.addr %s481, 2
        %s483 = smul.addr %s482, 8
        %s484 = scalar_lea.vmem %s13, %s483
        %p485 = pneg %p372
        %p486 = pneg %p369
        %p487 = scmp.lt.s32.totalorder %s32, 1
        %s488 = scalar_select %p487, %s32, 1
        %s489 = smul.addr %s488, 2
        %s490 = smul.addr %s489, 8
        %s491 = scalar_lea.vmem %s14, %s490
        %p492 = scmp.lt.s32.totalorder %s32, 1
        %s493 = scalar_select %p492, %s32, 1
        %s494 = smul.addr %s493, 40
        %s495 = smul.addr %s494, 8
        %s496 = scalar_lea.vmem %s0, %s495
        %p497 = scmp.lt.s32.totalorder %s32, 1
        %s498 = scalar_select %p497, %s32, 1
        %s499 = smul.addr %s498, 2
        %s500 = smul.addr %s499, 8
        %s501 = scalar_lea.vmem %s13, %s500
        %p502 = scmp.lt.s32.totalorder %s32, 1
        %s503 = scalar_select %p502, %s32, 1
        %s504 = smul.addr %s503, 2
        %s505 = smul.addr %s504, 8
        %s506 = scalar_lea.vmem %s14, %s505
        %v507 = vlaneseq
        %v508 = vshrl.u32 %v507, 7
        %v509 = vadd.s32 %v508, 8
        %v510 = vadd.s32 %v508, 16
        %v511 = vadd.s32 %v508, 24
        %v512 = vadd.s32 %v508, 32
        %v513 = vadd.s32 %v508, 40
        %v514 = vadd.s32 %v508, 48
        %v515 = vadd.s32 %v508, 56
        %v516 = vadd.s32 %v508, 64
        %v517 = vadd.s32 %v508, 72
        %v518 = vadd.s32 %v508, 80
        %v519 = vadd.s32 %v508, 88
        %v520 = vadd.s32 %v508, 96
        %v521 = vadd.s32 %v508, 104
        %v522 = vadd.s32 %v508, 112
        %v523 = vadd.s32 %v508, 120
        %v524 = vadd.s32 %v508, 128
        %v525 = vadd.s32 %v508, 136
        %v526 = vadd.s32 %v508, 144
        %v527 = vadd.s32 %v508, 152
        %v528 = vadd.s32 %v508, 160
        %v529 = vadd.s32 %v508, 168
        %v530 = vadd.s32 %v508, 176
        %v531 = vadd.s32 %v508, 184
        %v532 = vadd.s32 %v508, 192
        %v533 = vadd.s32 %v508, 200
        %v534 = vadd.s32 %v508, 208
        %v535 = vadd.s32 %v508, 216
        %v536 = vadd.s32 %v508, 224
        %v537 = vadd.s32 %v508, 232
        %v538 = vadd.s32 %v508, 240
        %v539 = vadd.s32 %v508, 248
        %v540 = vand.u32 %v508, 15
        %v541 = vand.u32 %v509, 15
        %v542 = vand.u32 %v510, 15
        %v543 = vand.u32 %v511, 15
        %v544 = vand.u32 %v512, 15
        %v545 = vand.u32 %v513, 15
        %v546 = vand.u32 %v514, 15
        %v547 = vand.u32 %v515, 15
        %v548 = vand.u32 %v516, 15
        %v549 = vand.u32 %v517, 15
        %v550 = vand.u32 %v518, 15
        %v551 = vand.u32 %v519, 15
        %v552 = vand.u32 %v520, 15
        %v553 = vand.u32 %v521, 15
        %v554 = vand.u32 %v522, 15
        %v555 = vand.u32 %v523, 15
        %v556 = vand.u32 %v524, 15
        %v557 = vand.u32 %v525, 15
        %v558 = vand.u32 %v526, 15
        %v559 = vand.u32 %v527, 15
        %v560 = vand.u32 %v528, 15
        %v561 = vand.u32 %v529, 15
        %v562 = vand.u32 %v530, 15
        %v563 = vand.u32 %v531, 15
        %v564 = vand.u32 %v532, 15
        %v565 = vand.u32 %v533, 15
        %v566 = vand.u32 %v534, 15
        %v567 = vand.u32 %v535, 15
        %v568 = vand.u32 %v536, 15
        %v569 = vand.u32 %v537, 15
        %v570 = vand.u32 %v538, 15
        %v571 = vand.u32 %v539, 15
        %v572 = vld [vmem:[%s496 + $0xf] sm:$0xff]
        %v573 = vld [vmem:[%s496 + $0x17] sm:$0xff]
        %v574 = vld [vmem:[%s496 + $0x1f] sm:$0xff]
        %v575 = vld [vmem:[%s496 + $0x27] sm:$0xff]
        %v576 = vld [vmem:[%s496 + $0x2f] sm:$0xff]
        %v577 = vld [vmem:[%s496 + $0x37] sm:$0xff]
        %v578 = vld [vmem:[%s496 + $0x3f] sm:$0xff]
        %v579 = vld [vmem:[%s496 + $0x47] sm:$0xff]
        %v580 = vld [vmem:[%s496 + $0x4f] sm:$0xff]
        %v581 = vld [vmem:[%s496 + $0x57] sm:$0xff]
        %v582 = vld [vmem:[%s496 + $0x5f] sm:$0xff]
        %v583 = vld [vmem:[%s496 + $0x67] sm:$0xff]
        %v584 = vld [vmem:[%s496 + $0x6f] sm:$0xff]
        %v585 = vld [vmem:[%s496 + $0x77] sm:$0xff]
        %v586 = vld [vmem:[%s496 + $0x7f] sm:$0xff]
        %v587 = vld [vmem:[%s496 + $0x87] sm:$0xff]
        %v588 = vld [vmem:[%s496 + $0x8f] sm:$0xff]
        %v589 = vld [vmem:[%s496 + $0x97] sm:$0xff]
        %v590 = vld [vmem:[%s496 + $0x9f] sm:$0xff]
        %v591 = vld [vmem:[%s496 + $0xa7] sm:$0xff]
        %v592 = vld [vmem:[%s496 + $0xaf] sm:$0xff]
        %v593 = vld [vmem:[%s496 + $0xb7] sm:$0xff]
        %v594 = vld [vmem:[%s496 + $0xbf] sm:$0xff]
        %v595 = vld [vmem:[%s496 + $0xc7] sm:$0xff]
        %v596 = vld [vmem:[%s496 + $0xcf] sm:$0xff]
        %v597 = vld [vmem:[%s496 + $0xd7] sm:$0xff]
        %v598 = vld [vmem:[%s496 + $0xdf] sm:$0xff]
        %v599 = vld [vmem:[%s496 + $0xe7] sm:$0xff]
        %v600 = vld [vmem:[%s496 + $0xef] sm:$0xff]
        %v601 = vld [vmem:[%s496 + $0xf7] sm:$0xff]
        %v602 = vld [vmem:[%s496 + $0xff] sm:$0xff]
        %v603 = vld [vmem:[%s496 + $0x107] sm:$0xff]
        %vm604 = vcmp.eq.s32.totalorder %v540, 0
        %vm605 = vcmp.eq.s32.totalorder %v541, 0
        %vm606 = vcmp.eq.s32.totalorder %v542, 0
        %vm607 = vcmp.eq.s32.totalorder %v543, 0
        %vm608 = vcmp.eq.s32.totalorder %v544, 0
        %vm609 = vcmp.eq.s32.totalorder %v545, 0
        %vm610 = vcmp.eq.s32.totalorder %v546, 0
        %vm611 = vcmp.eq.s32.totalorder %v547, 0
        %vm612 = vcmp.eq.s32.totalorder %v548, 0
        %vm613 = vcmp.eq.s32.totalorder %v549, 0
        %vm614 = vcmp.eq.s32.totalorder %v550, 0
        %vm615 = vcmp.eq.s32.totalorder %v551, 0
        %vm616 = vcmp.eq.s32.totalorder %v552, 0
        %vm617 = vcmp.eq.s32.totalorder %v553, 0
        %vm618 = vcmp.eq.s32.totalorder %v554, 0
        %vm619 = vcmp.eq.s32.totalorder %v555, 0
        %vm620 = vcmp.eq.s32.totalorder %v556, 0
        %vm621 = vcmp.eq.s32.totalorder %v557, 0
        %vm622 = vcmp.eq.s32.totalorder %v558, 0
        %vm623 = vcmp.eq.s32.totalorder %v559, 0
        %vm624 = vcmp.eq.s32.totalorder %v560, 0
        %vm625 = vcmp.eq.s32.totalorder %v561, 0
        %vm626 = vcmp.eq.s32.totalorder %v562, 0
        %vm627 = vcmp.eq.s32.totalorder %v563, 0
        %vm628 = vcmp.eq.s32.totalorder %v564, 0
        %vm629 = vcmp.eq.s32.totalorder %v565, 0
        %vm630 = vcmp.eq.s32.totalorder %v566, 0
        %vm631 = vcmp.eq.s32.totalorder %v567, 0
        %vm632 = vcmp.eq.s32.totalorder %v568, 0
        %vm633 = vcmp.eq.s32.totalorder %v569, 0
        %vm634 = vcmp.eq.s32.totalorder %v570, 0
        %vm635 = vcmp.eq.s32.totalorder %v571, 0
        %v636 = vsel %vm604, 0.0, %v572
        %v637 = vsel %vm605, 0.0, %v573
        %v638 = vsel %vm606, 0.0, %v574
        %v639 = vsel %vm607, 0.0, %v575
        %v640 = vsel %vm608, 0.0, %v576
        %v641 = vsel %vm609, 0.0, %v577
        %v642 = vsel %vm610, 0.0, %v578
        %v643 = vsel %vm611, 0.0, %v579
        %v644 = vsel %vm612, 0.0, %v580
        %v645 = vsel %vm613, 0.0, %v581
        %v646 = vsel %vm614, 0.0, %v582
        %v647 = vsel %vm615, 0.0, %v583
        %v648 = vsel %vm616, 0.0, %v584
        %v649 = vsel %vm617, 0.0, %v585
        %v650 = vsel %vm618, 0.0, %v586
        %v651 = vsel %vm619, 0.0, %v587
        %v652 = vsel %vm620, 0.0, %v588
        %v653 = vsel %vm621, 0.0, %v589
        %v654 = vsel %vm622, 0.0, %v590
        %v655 = vsel %vm623, 0.0, %v591
        %v656 = vsel %vm624, 0.0, %v592
        %v657 = vsel %vm625, 0.0, %v593
        %v658 = vsel %vm626, 0.0, %v594
        %v659 = vsel %vm627, 0.0, %v595
        %v660 = vsel %vm628, 0.0, %v596
        %v661 = vsel %vm629, 0.0, %v597
        %v662 = vsel %vm630, 0.0, %v598
        %v663 = vsel %vm631, 0.0, %v599
        %v664 = vsel %vm632, 0.0, %v600
        %v665 = vsel %vm633, 0.0, %v601
        %v666 = vsel %vm634, 0.0, %v602
        %v667 = vsel %vm635, 0.0, %v603
        %v668 = vld [vmem:[%s1] sm:$0x1]
        %670 = vset.pattern.permute.xlu0 0
        %671 = vperm.xlu0 %670, %v636
        %v672 = vpop.permute.xlu0 %671
        %675 = vset.pattern.permute.xlu0 0
        %676 = vperm.xlu0 %675, %v637
        %v677 = vpop.permute.xlu0 %676
        %680 = vset.pattern.permute.xlu0 0
        %681 = vperm.xlu0 %680, %v638
        %v682 = vpop.permute.xlu0 %681
        %685 = vset.pattern.permute.xlu0 0
        %686 = vperm.xlu0 %685, %v639
        %v687 = vpop.permute.xlu0 %686
        %690 = vset.pattern.permute.xlu0 0
        %691 = vperm.xlu0 %690, %v640
        %v692 = vpop.permute.xlu0 %691
        %695 = vset.pattern.permute.xlu0 0
        %696 = vperm.xlu0 %695, %v641
        %v697 = vpop.permute.xlu0 %696
        %700 = vset.pattern.permute.xlu0 0
        %701 = vperm.xlu0 %700, %v642
        %v702 = vpop.permute.xlu0 %701
        %705 = vset.pattern.permute.xlu0 0
        %706 = vperm.xlu0 %705, %v643
        %v707 = vpop.permute.xlu0 %706
        %710 = vset.pattern.permute.xlu0 0
        %711 = vperm.xlu0 %710, %v644
        %v712 = vpop.permute.xlu0 %711
        %715 = vset.pattern.permute.xlu0 0
        %716 = vperm.xlu0 %715, %v645
        %v717 = vpop.permute.xlu0 %716
        %720 = vset.pattern.permute.xlu0 0
        %721 = vperm.xlu0 %720, %v646
        %v722 = vpop.permute.xlu0 %721
        %725 = vset.pattern.permute.xlu0 0
        %726 = vperm.xlu0 %725, %v647
        %v727 = vpop.permute.xlu0 %726
        %730 = vset.pattern.permute.xlu0 0
        %731 = vperm.xlu0 %730, %v648
        %v732 = vpop.permute.xlu0 %731
        %735 = vset.pattern.permute.xlu0 0
        %736 = vperm.xlu0 %735, %v649
        %v737 = vpop.permute.xlu0 %736
        %740 = vset.pattern.permute.xlu0 0
        %741 = vperm.xlu0 %740, %v650
        %v742 = vpop.permute.xlu0 %741
        %745 = vset.pattern.permute.xlu0 0
        %746 = vperm.xlu0 %745, %v651
        %v747 = vpop.permute.xlu0 %746
        %750 = vset.pattern.permute.xlu0 0
        %751 = vperm.xlu0 %750, %v652
        %v752 = vpop.permute.xlu0 %751
        %755 = vset.pattern.permute.xlu0 0
        %756 = vperm.xlu0 %755, %v653
        %v757 = vpop.permute.xlu0 %756
        %760 = vset.pattern.permute.xlu0 0
        %761 = vperm.xlu0 %760, %v654
        %v762 = vpop.permute.xlu0 %761
        %765 = vset.pattern.permute.xlu0 0
        %766 = vperm.xlu0 %765, %v655
        %v767 = vpop.permute.xlu0 %766
        %770 = vset.pattern.permute.xlu0 0
        %771 = vperm.xlu0 %770, %v656
        %v772 = vpop.permute.xlu0 %771
        %775 = vset.pattern.permute.xlu0 0
        %776 = vperm.xlu0 %775, %v657
        %v777 = vpop.permute.xlu0 %776
        %780 = vset.pattern.permute.xlu0 0
        %781 = vperm.xlu0 %780, %v658
        %v782 = vpop.permute.xlu0 %781
        %785 = vset.pattern.permute.xlu0 0
        %786 = vperm.xlu0 %785, %v659
        %v787 = vpop.permute.xlu0 %786
        %790 = vset.pattern.permute.xlu0 0
        %791 = vperm.xlu0 %790, %v660
        %v792 = vpop.permute.xlu0 %791
        %795 = vset.pattern.permute.xlu0 0
        %796 = vperm.xlu0 %795, %v661
        %v797 = vpop.permute.xlu0 %796
        %800 = vset.pattern.permute.xlu0 0
        %801 = vperm.xlu0 %800, %v662
        %v802 = vpop.permute.xlu0 %801
        %805 = vset.pattern.permute.xlu0 0
        %806 = vperm.xlu0 %805, %v663
        %v807 = vpop.permute.xlu0 %806
        %810 = vset.pattern.permute.xlu0 0
        %811 = vperm.xlu0 %810, %v664
        %v812 = vpop.permute.xlu0 %811
        %815 = vset.pattern.permute.xlu0 0
        %816 = vperm.xlu0 %815, %v665
        %v817 = vpop.permute.xlu0 %816
        %820 = vset.pattern.permute.xlu0 0
        %821 = vperm.xlu0 %820, %v666
        %v822 = vpop.permute.xlu0 %821
        %825 = vset.pattern.permute.xlu0 0
        %826 = vperm.xlu0 %825, %v667
        %v827 = vpop.permute.xlu0 %826
        %v830 = vlaneseq
        %v831 = vshrl.u32 %v830, 7
        %v832 = vsub.s32 0, %v831
        %v833 = vrot.slane %v668, %v832
        %v835 = vmul.f32 %v672, %v833
        %v836 = vmul.f32 %v677, %v833
        %v837 = vmul.f32 %v682, %v833
        %v838 = vmul.f32 %v687, %v833
        %v839 = vmul.f32 %v692, %v833
        %v840 = vmul.f32 %v697, %v833
        %v841 = vmul.f32 %v702, %v833
        %v842 = vmul.f32 %v707, %v833
        %v843 = vmul.f32 %v712, %v833
        %v844 = vmul.f32 %v717, %v833
        %v845 = vmul.f32 %v722, %v833
        %v846 = vmul.f32 %v727, %v833
        %v847 = vmul.f32 %v732, %v833
        %v848 = vmul.f32 %v737, %v833
        %v849 = vmul.f32 %v742, %v833
        %v850 = vmul.f32 %v747, %v833
        %v851 = vmul.f32 %v752, %v833
        %v852 = vmul.f32 %v757, %v833
        %v853 = vmul.f32 %v762, %v833
        %v854 = vmul.f32 %v767, %v833
        %v855 = vmul.f32 %v772, %v833
        %v856 = vmul.f32 %v777, %v833
        %v857 = vmul.f32 %v782, %v833
        %v858 = vmul.f32 %v787, %v833
        %v859 = vmul.f32 %v792, %v833
        %v860 = vmul.f32 %v797, %v833
        %v861 = vmul.f32 %v802, %v833
        %v862 = vmul.f32 %v807, %v833
        %v863 = vmul.f32 %v812, %v833
        %v864 = vmul.f32 %v817, %v833
        %v865 = vmul.f32 %v822, %v833
        %v866 = vmul.f32 %v827, %v833
        %v867 = vld [vmem:[%s496 + $0x10] sm:$0xff]
        %v868 = vld [vmem:[%s496 + $0x18] sm:$0xff]
        %v869 = vld [vmem:[%s496 + $0x20] sm:$0xff]
        %v870 = vld [vmem:[%s496 + $0x28] sm:$0xff]
        %v871 = vld [vmem:[%s496 + $0x30] sm:$0xff]
        %v872 = vld [vmem:[%s496 + $0x38] sm:$0xff]
        %v873 = vld [vmem:[%s496 + $0x40] sm:$0xff]
        %v874 = vld [vmem:[%s496 + $0x48] sm:$0xff]
        %v875 = vld [vmem:[%s496 + $0x50] sm:$0xff]
        %v876 = vld [vmem:[%s496 + $0x58] sm:$0xff]
        %v877 = vld [vmem:[%s496 + $0x60] sm:$0xff]
        %v878 = vld [vmem:[%s496 + $0x68] sm:$0xff]
        %v879 = vld [vmem:[%s496 + $0x70] sm:$0xff]
        %v880 = vld [vmem:[%s496 + $0x78] sm:$0xff]
        %v881 = vld [vmem:[%s496 + $0x80] sm:$0xff]
        %v882 = vld [vmem:[%s496 + $0x88] sm:$0xff]
        %v883 = vld [vmem:[%s496 + $0x90] sm:$0xff]
        %v884 = vld [vmem:[%s496 + $0x98] sm:$0xff]
        %v885 = vld [vmem:[%s496 + $0xa0] sm:$0xff]
        %v886 = vld [vmem:[%s496 + $0xa8] sm:$0xff]
        %v887 = vld [vmem:[%s496 + $0xb0] sm:$0xff]
        %v888 = vld [vmem:[%s496 + $0xb8] sm:$0xff]
        %v889 = vld [vmem:[%s496 + $0xc0] sm:$0xff]
        %v890 = vld [vmem:[%s496 + $0xc8] sm:$0xff]
        %v891 = vld [vmem:[%s496 + $0xd0] sm:$0xff]
        %v892 = vld [vmem:[%s496 + $0xd8] sm:$0xff]
        %v893 = vld [vmem:[%s496 + $0xe0] sm:$0xff]
        %v894 = vld [vmem:[%s496 + $0xe8] sm:$0xff]
        %v895 = vld [vmem:[%s496 + $0xf0] sm:$0xff]
        %v896 = vld [vmem:[%s496 + $0xf8] sm:$0xff]
        %v897 = vld [vmem:[%s496 + $0x100] sm:$0xff]
        %v898 = vld [vmem:[%s496 + $0x108] sm:$0xff]
        %s899 = scalar_lea.vmem %s1, 1
        %v900 = vld [vmem:[%s899] sm:$0x1]
        %902 = vset.pattern.permute.xlu0 0
        %903 = vperm.xlu0 %902, %v867
        %v904 = vpop.permute.xlu0 %903
        %907 = vset.pattern.permute.xlu0 0
        %908 = vperm.xlu0 %907, %v868
        %v909 = vpop.permute.xlu0 %908
        %912 = vset.pattern.permute.xlu0 0
        %913 = vperm.xlu0 %912, %v869
        %v914 = vpop.permute.xlu0 %913
        %917 = vset.pattern.permute.xlu0 0
        %918 = vperm.xlu0 %917, %v870
        %v919 = vpop.permute.xlu0 %918
        %922 = vset.pattern.permute.xlu0 0
        %923 = vperm.xlu0 %922, %v871
        %v924 = vpop.permute.xlu0 %923
        %927 = vset.pattern.permute.xlu0 0
        %928 = vperm.xlu0 %927, %v872
        %v929 = vpop.permute.xlu0 %928
        %932 = vset.pattern.permute.xlu0 0
        %933 = vperm.xlu0 %932, %v873
        %v934 = vpop.permute.xlu0 %933
        %937 = vset.pattern.permute.xlu0 0
        %938 = vperm.xlu0 %937, %v874
        %v939 = vpop.permute.xlu0 %938
        %942 = vset.pattern.permute.xlu0 0
        %943 = vperm.xlu0 %942, %v875
        %v944 = vpop.permute.xlu0 %943
        %947 = vset.pattern.permute.xlu0 0
        %948 = vperm.xlu0 %947, %v876
        %v949 = vpop.permute.xlu0 %948
        %952 = vset.pattern.permute.xlu0 0
        %953 = vperm.xlu0 %952, %v877
        %v954 = vpop.permute.xlu0 %953
        %957 = vset.pattern.permute.xlu0 0
        %958 = vperm.xlu0 %957, %v878
        %v959 = vpop.permute.xlu0 %958
        %962 = vset.pattern.permute.xlu0 0
        %963 = vperm.xlu0 %962, %v879
        %v964 = vpop.permute.xlu0 %963
        %967 = vset.pattern.permute.xlu0 0
        %968 = vperm.xlu0 %967, %v880
        %v969 = vpop.permute.xlu0 %968
        %972 = vset.pattern.permute.xlu0 0
        %973 = vperm.xlu0 %972, %v881
        %v974 = vpop.permute.xlu0 %973
        %977 = vset.pattern.permute.xlu0 0
        %978 = vperm.xlu0 %977, %v882
        %v979 = vpop.permute.xlu0 %978
        %982 = vset.pattern.permute.xlu0 0
        %983 = vperm.xlu0 %982, %v883
        %v984 = vpop.permute.xlu0 %983
        %987 = vset.pattern.permute.xlu0 0
        %988 = vperm.xlu0 %987, %v884
        %v989 = vpop.permute.xlu0 %988
        %992 = vset.pattern.permute.xlu0 0
        %993 = vperm.xlu0 %992, %v885
        %v994 = vpop.permute.xlu0 %993
        %997 = vset.pattern.permute.xlu0 0
        %998 = vperm.xlu0 %997, %v886
        %v999 = vpop.permute.xlu0 %998
        %1002 = vset.pattern.permute.xlu0 0
        %1003 = vperm.xlu0 %1002, %v887
        %v1004 = vpop.permute.xlu0 %1003
        %1007 = vset.pattern.permute.xlu0 0
        %1008 = vperm.xlu0 %1007, %v888
        %v1009 = vpop.permute.xlu0 %1008
        %1012 = vset.pattern.permute.xlu0 0
        %1013 = vperm.xlu0 %1012, %v889
        %v1014 = vpop.permute.xlu0 %1013
        %1017 = vset.pattern.permute.xlu0 0
        %1018 = vperm.xlu0 %1017, %v890
        %v1019 = vpop.permute.xlu0 %1018
        %1022 = vset.pattern.permute.xlu0 0
        %1023 = vperm.xlu0 %1022, %v891
        %v1024 = vpop.permute.xlu0 %1023
        %1027 = vset.pattern.permute.xlu0 0
        %1028 = vperm.xlu0 %1027, %v892
        %v1029 = vpop.permute.xlu0 %1028
        %1032 = vset.pattern.permute.xlu0 0
        %1033 = vperm.xlu0 %1032, %v893
        %v1034 = vpop.permute.xlu0 %1033
        %1037 = vset.pattern.permute.xlu0 0
        %1038 = vperm.xlu0 %1037, %v894
        %v1039 = vpop.permute.xlu0 %1038
        %1042 = vset.pattern.permute.xlu0 0
        %1043 = vperm.xlu0 %1042, %v895
        %v1044 = vpop.permute.xlu0 %1043
        %1047 = vset.pattern.permute.xlu0 0
        %1048 = vperm.xlu0 %1047, %v896
        %v1049 = vpop.permute.xlu0 %1048
        %1052 = vset.pattern.permute.xlu0 0
        %1053 = vperm.xlu0 %1052, %v897
        %v1054 = vpop.permute.xlu0 %1053
        %1057 = vset.pattern.permute.xlu0 0
        %1058 = vperm.xlu0 %1057, %v898
        %v1059 = vpop.permute.xlu0 %1058
        %v1062 = vlaneseq
        %v1063 = vshrl.u32 %v1062, 7
        %v1064 = vsub.s32 0, %v1063
        %v1065 = vrot.slane %v900, %v1064
        %v1067 = vmul.f32 %v904, %v1065
        %v1068 = vmul.f32 %v909, %v1065
        %v1069 = vmul.f32 %v914, %v1065
        %v1070 = vmul.f32 %v919, %v1065
        %v1071 = vmul.f32 %v924, %v1065
        %v1072 = vmul.f32 %v929, %v1065
        %v1073 = vmul.f32 %v934, %v1065
        %v1074 = vmul.f32 %v939, %v1065
        %v1075 = vmul.f32 %v944, %v1065
        %v1076 = vmul.f32 %v949, %v1065
        %v1077 = vmul.f32 %v954, %v1065
        %v1078 = vmul.f32 %v959, %v1065
        %v1079 = vmul.f32 %v964, %v1065
        %v1080 = vmul.f32 %v969, %v1065
        %v1081 = vmul.f32 %v974, %v1065
        %v1082 = vmul.f32 %v979, %v1065
        %v1083 = vmul.f32 %v984, %v1065
        %v1084 = vmul.f32 %v989, %v1065
        %v1085 = vmul.f32 %v994, %v1065
        %v1086 = vmul.f32 %v999, %v1065
        %v1087 = vmul.f32 %v1004, %v1065
        %v1088 = vmul.f32 %v1009, %v1065
        %v1089 = vmul.f32 %v1014, %v1065
        %v1090 = vmul.f32 %v1019, %v1065
        %v1091 = vmul.f32 %v1024, %v1065
        %v1092 = vmul.f32 %v1029, %v1065
        %v1093 = vmul.f32 %v1034, %v1065
        %v1094 = vmul.f32 %v1039, %v1065
        %v1095 = vmul.f32 %v1044, %v1065
        %v1096 = vmul.f32 %v1049, %v1065
        %v1097 = vmul.f32 %v1054, %v1065
        %v1098 = vmul.f32 %v1059, %v1065
        %v1099 = vadd.f32 %v835, %v1067
        %v1100 = vadd.f32 %v836, %v1068
        %v1101 = vadd.f32 %v837, %v1069
        %v1102 = vadd.f32 %v838, %v1070
        %v1103 = vadd.f32 %v839, %v1071
        %v1104 = vadd.f32 %v840, %v1072
        %v1105 = vadd.f32 %v841, %v1073
        %v1106 = vadd.f32 %v842, %v1074
        %v1107 = vadd.f32 %v843, %v1075
        %v1108 = vadd.f32 %v844, %v1076
        %v1109 = vadd.f32 %v845, %v1077
        %v1110 = vadd.f32 %v846, %v1078
        %v1111 = vadd.f32 %v847, %v1079
        %v1112 = vadd.f32 %v848, %v1080
        %v1113 = vadd.f32 %v849, %v1081
        %v1114 = vadd.f32 %v850, %v1082
        %v1115 = vadd.f32 %v851, %v1083
        %v1116 = vadd.f32 %v852, %v1084
        %v1117 = vadd.f32 %v853, %v1085
        %v1118 = vadd.f32 %v854, %v1086
        %v1119 = vadd.f32 %v855, %v1087
        %v1120 = vadd.f32 %v856, %v1088
        %v1121 = vadd.f32 %v857, %v1089
        %v1122 = vadd.f32 %v858, %v1090
        %v1123 = vadd.f32 %v859, %v1091
        %v1124 = vadd.f32 %v860, %v1092
        %v1125 = vadd.f32 %v861, %v1093
        %v1126 = vadd.f32 %v862, %v1094
        %v1127 = vadd.f32 %v863, %v1095
        %v1128 = vadd.f32 %v864, %v1096
        %v1129 = vadd.f32 %v865, %v1097
        %v1130 = vadd.f32 %v866, %v1098
        %v1131 = vld [vmem:[%s496 + $0x11] sm:$0xff]
        %v1132 = vld [vmem:[%s496 + $0x19] sm:$0xff]
        %v1133 = vld [vmem:[%s496 + $0x21] sm:$0xff]
        %v1134 = vld [vmem:[%s496 + $0x29] sm:$0xff]
        %v1135 = vld [vmem:[%s496 + $0x31] sm:$0xff]
        %v1136 = vld [vmem:[%s496 + $0x39] sm:$0xff]
        %v1137 = vld [vmem:[%s496 + $0x41] sm:$0xff]
        %v1138 = vld [vmem:[%s496 + $0x49] sm:$0xff]
        %v1139 = vld [vmem:[%s496 + $0x51] sm:$0xff]
        %v1140 = vld [vmem:[%s496 + $0x59] sm:$0xff]
        %v1141 = vld [vmem:[%s496 + $0x61] sm:$0xff]
        %v1142 = vld [vmem:[%s496 + $0x69] sm:$0xff]
        %v1143 = vld [vmem:[%s496 + $0x71] sm:$0xff]
        %v1144 = vld [vmem:[%s496 + $0x79] sm:$0xff]
        %v1145 = vld [vmem:[%s496 + $0x81] sm:$0xff]
        %v1146 = vld [vmem:[%s496 + $0x89] sm:$0xff]
        %v1147 = vld [vmem:[%s496 + $0x91] sm:$0xff]
        %v1148 = vld [vmem:[%s496 + $0x99] sm:$0xff]
        %v1149 = vld [vmem:[%s496 + $0xa1] sm:$0xff]
        %v1150 = vld [vmem:[%s496 + $0xa9] sm:$0xff]
        %v1151 = vld [vmem:[%s496 + $0xb1] sm:$0xff]
        %v1152 = vld [vmem:[%s496 + $0xb9] sm:$0xff]
        %v1153 = vld [vmem:[%s496 + $0xc1] sm:$0xff]
        %v1154 = vld [vmem:[%s496 + $0xc9] sm:$0xff]
        %v1155 = vld [vmem:[%s496 + $0xd1] sm:$0xff]
        %v1156 = vld [vmem:[%s496 + $0xd9] sm:$0xff]
        %v1157 = vld [vmem:[%s496 + $0xe1] sm:$0xff]
        %v1158 = vld [vmem:[%s496 + $0xe9] sm:$0xff]
        %v1159 = vld [vmem:[%s496 + $0xf1] sm:$0xff]
        %v1160 = vld [vmem:[%s496 + $0xf9] sm:$0xff]
        %v1161 = vld [vmem:[%s496 + $0x101] sm:$0xff]
        %v1162 = vld [vmem:[%s496 + $0x109] sm:$0xff]
        %vm1163 = vcmp.eq.s32.totalorder %v540, 15
        %vm1164 = vcmp.eq.s32.totalorder %v541, 15
        %vm1165 = vcmp.eq.s32.totalorder %v542, 15
        %vm1166 = vcmp.eq.s32.totalorder %v543, 15
        %vm1167 = vcmp.eq.s32.totalorder %v544, 15
        %vm1168 = vcmp.eq.s32.totalorder %v545, 15
        %vm1169 = vcmp.eq.s32.totalorder %v546, 15
        %vm1170 = vcmp.eq.s32.totalorder %v547, 15
        %vm1171 = vcmp.eq.s32.totalorder %v548, 15
        %vm1172 = vcmp.eq.s32.totalorder %v549, 15
        %vm1173 = vcmp.eq.s32.totalorder %v550, 15
        %vm1174 = vcmp.eq.s32.totalorder %v551, 15
        %vm1175 = vcmp.eq.s32.totalorder %v552, 15
        %vm1176 = vcmp.eq.s32.totalorder %v553, 15
        %vm1177 = vcmp.eq.s32.totalorder %v554, 15
        %vm1178 = vcmp.eq.s32.totalorder %v555, 15
        %vm1179 = vcmp.eq.s32.totalorder %v556, 15
        %vm1180 = vcmp.eq.s32.totalorder %v557, 15
        %vm1181 = vcmp.eq.s32.totalorder %v558, 15
        %vm1182 = vcmp.eq.s32.totalorder %v559, 15
        %vm1183 = vcmp.eq.s32.totalorder %v560, 15
        %vm1184 = vcmp.eq.s32.totalorder %v561, 15
        %vm1185 = vcmp.eq.s32.totalorder %v562, 15
        %vm1186 = vcmp.eq.s32.totalorder %v563, 15
        %vm1187 = vcmp.eq.s32.totalorder %v564, 15
        %vm1188 = vcmp.eq.s32.totalorder %v565, 15
        %vm1189 = vcmp.eq.s32.totalorder %v566, 15
        %vm1190 = vcmp.eq.s32.totalorder %v567, 15
        %vm1191 = vcmp.eq.s32.totalorder %v568, 15
        %vm1192 = vcmp.eq.s32.totalorder %v569, 15
        %vm1193 = vcmp.eq.s32.totalorder %v570, 15
        %vm1194 = vcmp.eq.s32.totalorder %v571, 15
        %v1195 = vsel %vm1163, 0.0, %v1131
        %v1196 = vsel %vm1164, 0.0, %v1132
        %v1197 = vsel %vm1165, 0.0, %v1133
        %v1198 = vsel %vm1166, 0.0, %v1134
        %v1199 = vsel %vm1167, 0.0, %v1135
        %v1200 = vsel %vm1168, 0.0, %v1136
        %v1201 = vsel %vm1169, 0.0, %v1137
        %v1202 = vsel %vm1170, 0.0, %v1138
        %v1203 = vsel %vm1171, 0.0, %v1139
        %v1204 = vsel %vm1172, 0.0, %v1140
        %v1205 = vsel %vm1173, 0.0, %v1141
        %v1206 = vsel %vm1174, 0.0, %v1142
        %v1207 = vsel %vm1175, 0.0, %v1143
        %v1208 = vsel %vm1176, 0.0, %v1144
        %v1209 = vsel %vm1177, 0.0, %v1145
        %v1210 = vsel %vm1178, 0.0, %v1146
        %v1211 = vsel %vm1179, 0.0, %v1147
        %v1212 = vsel %vm1180, 0.0, %v1148
        %v1213 = vsel %vm1181, 0.0, %v1149
        %v1214 = vsel %vm1182, 0.0, %v1150
        %v1215 = vsel %vm1183, 0.0, %v1151
        %v1216 = vsel %vm1184, 0.0, %v1152
        %v1217 = vsel %vm1185, 0.0, %v1153
        %v1218 = vsel %vm1186, 0.0, %v1154
        %v1219 = vsel %vm1187, 0.0, %v1155
        %v1220 = vsel %vm1188, 0.0, %v1156
        %v1221 = vsel %vm1189, 0.0, %v1157
        %v1222 = vsel %vm1190, 0.0, %v1158
        %v1223 = vsel %vm1191, 0.0, %v1159
        %v1224 = vsel %vm1192, 0.0, %v1160
        %v1225 = vsel %vm1193, 0.0, %v1161
        %v1226 = vsel %vm1194, 0.0, %v1162
        %s1227 = scalar_lea.vmem %s1, 2
        %v1228 = vld [vmem:[%s1227] sm:$0x1]
        %1230 = vset.pattern.permute.xlu0 0
        %1231 = vperm.xlu0 %1230, %v1195
        %v1232 = vpop.permute.xlu0 %1231
        %1235 = vset.pattern.permute.xlu0 0
        %1236 = vperm.xlu0 %1235, %v1196
        %v1237 = vpop.permute.xlu0 %1236
        %1240 = vset.pattern.permute.xlu0 0
        %1241 = vperm.xlu0 %1240, %v1197
        %v1242 = vpop.permute.xlu0 %1241
        %1245 = vset.pattern.permute.xlu0 0
        %1246 = vperm.xlu0 %1245, %v1198
        %v1247 = vpop.permute.xlu0 %1246
        %1250 = vset.pattern.permute.xlu0 0
        %1251 = vperm.xlu0 %1250, %v1199
        %v1252 = vpop.permute.xlu0 %1251
        %1255 = vset.pattern.permute.xlu0 0
        %1256 = vperm.xlu0 %1255, %v1200
        %v1257 = vpop.permute.xlu0 %1256
        %1260 = vset.pattern.permute.xlu0 0
        %1261 = vperm.xlu0 %1260, %v1201
        %v1262 = vpop.permute.xlu0 %1261
        %1265 = vset.pattern.permute.xlu0 0
        %1266 = vperm.xlu0 %1265, %v1202
        %v1267 = vpop.permute.xlu0 %1266
        %1270 = vset.pattern.permute.xlu0 0
        %1271 = vperm.xlu0 %1270, %v1203
        %v1272 = vpop.permute.xlu0 %1271
        %1275 = vset.pattern.permute.xlu0 0
        %1276 = vperm.xlu0 %1275, %v1204
        %v1277 = vpop.permute.xlu0 %1276
        %1280 = vset.pattern.permute.xlu0 0
        %1281 = vperm.xlu0 %1280, %v1205
        %v1282 = vpop.permute.xlu0 %1281
        %1285 = vset.pattern.permute.xlu0 0
        %1286 = vperm.xlu0 %1285, %v1206
        %v1287 = vpop.permute.xlu0 %1286
        %1290 = vset.pattern.permute.xlu0 0
        %1291 = vperm.xlu0 %1290, %v1207
        %v1292 = vpop.permute.xlu0 %1291
        %1295 = vset.pattern.permute.xlu0 0
        %1296 = vperm.xlu0 %1295, %v1208
        %v1297 = vpop.permute.xlu0 %1296
        %1300 = vset.pattern.permute.xlu0 0
        %1301 = vperm.xlu0 %1300, %v1209
        %v1302 = vpop.permute.xlu0 %1301
        %1305 = vset.pattern.permute.xlu0 0
        %1306 = vperm.xlu0 %1305, %v1210
        %v1307 = vpop.permute.xlu0 %1306
        %1310 = vset.pattern.permute.xlu0 0
        %1311 = vperm.xlu0 %1310, %v1211
        %v1312 = vpop.permute.xlu0 %1311
        %1315 = vset.pattern.permute.xlu0 0
        %1316 = vperm.xlu0 %1315, %v1212
        %v1317 = vpop.permute.xlu0 %1316
        %1320 = vset.pattern.permute.xlu0 0
        %1321 = vperm.xlu0 %1320, %v1213
        %v1322 = vpop.permute.xlu0 %1321
        %1325 = vset.pattern.permute.xlu0 0
        %1326 = vperm.xlu0 %1325, %v1214
        %v1327 = vpop.permute.xlu0 %1326
        %1330 = vset.pattern.permute.xlu0 0
        %1331 = vperm.xlu0 %1330, %v1215
        %v1332 = vpop.permute.xlu0 %1331
        %1335 = vset.pattern.permute.xlu0 0
        %1336 = vperm.xlu0 %1335, %v1216
        %v1337 = vpop.permute.xlu0 %1336
        %1340 = vset.pattern.permute.xlu0 0
        %1341 = vperm.xlu0 %1340, %v1217
        %v1342 = vpop.permute.xlu0 %1341
        %1345 = vset.pattern.permute.xlu0 0
        %1346 = vperm.xlu0 %1345, %v1218
        %v1347 = vpop.permute.xlu0 %1346
        %1350 = vset.pattern.permute.xlu0 0
        %1351 = vperm.xlu0 %1350, %v1219
        %v1352 = vpop.permute.xlu0 %1351
        %1355 = vset.pattern.permute.xlu0 0
        %1356 = vperm.xlu0 %1355, %v1220
        %v1357 = vpop.permute.xlu0 %1356
        %1360 = vset.pattern.permute.xlu0 0
        %1361 = vperm.xlu0 %1360, %v1221
        %v1362 = vpop.permute.xlu0 %1361
        %1365 = vset.pattern.permute.xlu0 0
        %1366 = vperm.xlu0 %1365, %v1222
        %v1367 = vpop.permute.xlu0 %1366
        %1370 = vset.pattern.permute.xlu0 0
        %1371 = vperm.xlu0 %1370, %v1223
        %v1372 = vpop.permute.xlu0 %1371
        %1375 = vset.pattern.permute.xlu0 0
        %1376 = vperm.xlu0 %1375, %v1224
        %v1377 = vpop.permute.xlu0 %1376
        %1380 = vset.pattern.permute.xlu0 0
        %1381 = vperm.xlu0 %1380, %v1225
        %v1382 = vpop.permute.xlu0 %1381
        %1385 = vset.pattern.permute.xlu0 0
        %1386 = vperm.xlu0 %1385, %v1226
        %v1387 = vpop.permute.xlu0 %1386
        %v1390 = vlaneseq
        %v1391 = vshrl.u32 %v1390, 7
        %v1392 = vsub.s32 0, %v1391
        %v1393 = vrot.slane %v1228, %v1392
        %v1395 = vmul.f32 %v1232, %v1393
        %v1396 = vmul.f32 %v1237, %v1393
        %v1397 = vmul.f32 %v1242, %v1393
        %v1398 = vmul.f32 %v1247, %v1393
        %v1399 = vmul.f32 %v1252, %v1393
        %v1400 = vmul.f32 %v1257, %v1393
        %v1401 = vmul.f32 %v1262, %v1393
        %v1402 = vmul.f32 %v1267, %v1393
        %v1403 = vmul.f32 %v1272, %v1393
        %v1404 = vmul.f32 %v1277, %v1393
        %v1405 = vmul.f32 %v1282, %v1393
        %v1406 = vmul.f32 %v1287, %v1393
        %v1407 = vmul.f32 %v1292, %v1393
        %v1408 = vmul.f32 %v1297, %v1393
        %v1409 = vmul.f32 %v1302, %v1393
        %v1410 = vmul.f32 %v1307, %v1393
        %v1411 = vmul.f32 %v1312, %v1393
        %v1412 = vmul.f32 %v1317, %v1393
        %v1413 = vmul.f32 %v1322, %v1393
        %v1414 = vmul.f32 %v1327, %v1393
        %v1415 = vmul.f32 %v1332, %v1393
        %v1416 = vmul.f32 %v1337, %v1393
        %v1417 = vmul.f32 %v1342, %v1393
        %v1418 = vmul.f32 %v1347, %v1393
        %v1419 = vmul.f32 %v1352, %v1393
        %v1420 = vmul.f32 %v1357, %v1393
        %v1421 = vmul.f32 %v1362, %v1393
        %v1422 = vmul.f32 %v1367, %v1393
        %v1423 = vmul.f32 %v1372, %v1393
        %v1424 = vmul.f32 %v1377, %v1393
        %v1425 = vmul.f32 %v1382, %v1393
        %v1426 = vmul.f32 %v1387, %v1393
        %v1427 = vadd.f32 %v1099, %v1395
        %v1428 = vadd.f32 %v1100, %v1396
        %v1429 = vadd.f32 %v1101, %v1397
        %v1430 = vadd.f32 %v1102, %v1398
        %v1431 = vadd.f32 %v1103, %v1399
        %v1432 = vadd.f32 %v1104, %v1400
        %v1433 = vadd.f32 %v1105, %v1401
        %v1434 = vadd.f32 %v1106, %v1402
        %v1435 = vadd.f32 %v1107, %v1403
        %v1436 = vadd.f32 %v1108, %v1404
        %v1437 = vadd.f32 %v1109, %v1405
        %v1438 = vadd.f32 %v1110, %v1406
        %v1439 = vadd.f32 %v1111, %v1407
        %v1440 = vadd.f32 %v1112, %v1408
        %v1441 = vadd.f32 %v1113, %v1409
        %v1442 = vadd.f32 %v1114, %v1410
        %v1443 = vadd.f32 %v1115, %v1411
        %v1444 = vadd.f32 %v1116, %v1412
        %v1445 = vadd.f32 %v1117, %v1413
        %v1446 = vadd.f32 %v1118, %v1414
        %v1447 = vadd.f32 %v1119, %v1415
        %v1448 = vadd.f32 %v1120, %v1416
        %v1449 = vadd.f32 %v1121, %v1417
        %v1450 = vadd.f32 %v1122, %v1418
        %v1451 = vadd.f32 %v1123, %v1419
        %v1452 = vadd.f32 %v1124, %v1420
        %v1453 = vadd.f32 %v1125, %v1421
        %v1454 = vadd.f32 %v1126, %v1422
        %v1455 = vadd.f32 %v1127, %v1423
        %v1456 = vadd.f32 %v1128, %v1424
        %v1457 = vadd.f32 %v1129, %v1425
        %v1458 = vadd.f32 %v1130, %v1426
        %v1459 = vld [vmem:[%s496 + $0x1f] sm:$0xff]
        %v1460 = vld [vmem:[%s496 + $0x27] sm:$0xff]
        %v1461 = vld [vmem:[%s496 + $0x2f] sm:$0xff]
        %v1462 = vld [vmem:[%s496 + $0x37] sm:$0xff]
        %v1463 = vld [vmem:[%s496 + $0x3f] sm:$0xff]
        %v1464 = vld [vmem:[%s496 + $0x47] sm:$0xff]
        %v1465 = vld [vmem:[%s496 + $0x4f] sm:$0xff]
        %v1466 = vld [vmem:[%s496 + $0x57] sm:$0xff]
        %v1467 = vld [vmem:[%s496 + $0x5f] sm:$0xff]
        %v1468 = vld [vmem:[%s496 + $0x67] sm:$0xff]
        %v1469 = vld [vmem:[%s496 + $0x6f] sm:$0xff]
        %v1470 = vld [vmem:[%s496 + $0x77] sm:$0xff]
        %v1471 = vld [vmem:[%s496 + $0x7f] sm:$0xff]
        %v1472 = vld [vmem:[%s496 + $0x87] sm:$0xff]
        %v1473 = vld [vmem:[%s496 + $0x8f] sm:$0xff]
        %v1474 = vld [vmem:[%s496 + $0x97] sm:$0xff]
        %v1475 = vld [vmem:[%s496 + $0x9f] sm:$0xff]
        %v1476 = vld [vmem:[%s496 + $0xa7] sm:$0xff]
        %v1477 = vld [vmem:[%s496 + $0xaf] sm:$0xff]
        %v1478 = vld [vmem:[%s496 + $0xb7] sm:$0xff]
        %v1479 = vld [vmem:[%s496 + $0xbf] sm:$0xff]
        %v1480 = vld [vmem:[%s496 + $0xc7] sm:$0xff]
        %v1481 = vld [vmem:[%s496 + $0xcf] sm:$0xff]
        %v1482 = vld [vmem:[%s496 + $0xd7] sm:$0xff]
        %v1483 = vld [vmem:[%s496 + $0xdf] sm:$0xff]
        %v1484 = vld [vmem:[%s496 + $0xe7] sm:$0xff]
        %v1485 = vld [vmem:[%s496 + $0xef] sm:$0xff]
        %v1486 = vld [vmem:[%s496 + $0xf7] sm:$0xff]
        %v1487 = vld [vmem:[%s496 + $0xff] sm:$0xff]
        %v1488 = vld [vmem:[%s496 + $0x107] sm:$0xff]
        %v1489 = vld [vmem:[%s496 + $0x10f] sm:$0xff]
        %v1490 = vld [vmem:[%s496 + $0x117] sm:$0xff]
        %v1491 = vsel %vm604, 0.0, %v1459
        %v1492 = vsel %vm605, 0.0, %v1460
        %v1493 = vsel %vm606, 0.0, %v1461
        %v1494 = vsel %vm607, 0.0, %v1462
        %v1495 = vsel %vm608, 0.0, %v1463
        %v1496 = vsel %vm609, 0.0, %v1464
        %v1497 = vsel %vm610, 0.0, %v1465
        %v1498 = vsel %vm611, 0.0, %v1466
        %v1499 = vsel %vm612, 0.0, %v1467
        %v1500 = vsel %vm613, 0.0, %v1468
        %v1501 = vsel %vm614, 0.0, %v1469
        %v1502 = vsel %vm615, 0.0, %v1470
        %v1503 = vsel %vm616, 0.0, %v1471
        %v1504 = vsel %vm617, 0.0, %v1472
        %v1505 = vsel %vm618, 0.0, %v1473
        %v1506 = vsel %vm619, 0.0, %v1474
        %v1507 = vsel %vm620, 0.0, %v1475
        %v1508 = vsel %vm621, 0.0, %v1476
        %v1509 = vsel %vm622, 0.0, %v1477
        %v1510 = vsel %vm623, 0.0, %v1478
        %v1511 = vsel %vm624, 0.0, %v1479
        %v1512 = vsel %vm625, 0.0, %v1480
        %v1513 = vsel %vm626, 0.0, %v1481
        %v1514 = vsel %vm627, 0.0, %v1482
        %v1515 = vsel %vm628, 0.0, %v1483
        %v1516 = vsel %vm629, 0.0, %v1484
        %v1517 = vsel %vm630, 0.0, %v1485
        %v1518 = vsel %vm631, 0.0, %v1486
        %v1519 = vsel %vm632, 0.0, %v1487
        %v1520 = vsel %vm633, 0.0, %v1488
        %v1521 = vsel %vm634, 0.0, %v1489
        %v1522 = vsel %vm635, 0.0, %v1490
        %s1523 = scalar_lea.vmem %s1, 3
        %v1524 = vld [vmem:[%s1523] sm:$0x1]
        %1526 = vset.pattern.permute.xlu0 0
        %1527 = vperm.xlu0 %1526, %v1491
        %v1528 = vpop.permute.xlu0 %1527
        %1531 = vset.pattern.permute.xlu0 0
        %1532 = vperm.xlu0 %1531, %v1492
        %v1533 = vpop.permute.xlu0 %1532
        %1536 = vset.pattern.permute.xlu0 0
        %1537 = vperm.xlu0 %1536, %v1493
        %v1538 = vpop.permute.xlu0 %1537
        %1541 = vset.pattern.permute.xlu0 0
        %1542 = vperm.xlu0 %1541, %v1494
        %v1543 = vpop.permute.xlu0 %1542
        %1546 = vset.pattern.permute.xlu0 0
        %1547 = vperm.xlu0 %1546, %v1495
        %v1548 = vpop.permute.xlu0 %1547
        %1551 = vset.pattern.permute.xlu0 0
        %1552 = vperm.xlu0 %1551, %v1496
        %v1553 = vpop.permute.xlu0 %1552
        %1556 = vset.pattern.permute.xlu0 0
        %1557 = vperm.xlu0 %1556, %v1497
        %v1558 = vpop.permute.xlu0 %1557
        %1561 = vset.pattern.permute.xlu0 0
        %1562 = vperm.xlu0 %1561, %v1498
        %v1563 = vpop.permute.xlu0 %1562
        %1566 = vset.pattern.permute.xlu0 0
        %1567 = vperm.xlu0 %1566, %v1499
        %v1568 = vpop.permute.xlu0 %1567
        %1571 = vset.pattern.permute.xlu0 0
        %1572 = vperm.xlu0 %1571, %v1500
        %v1573 = vpop.permute.xlu0 %1572
        %1576 = vset.pattern.permute.xlu0 0
        %1577 = vperm.xlu0 %1576, %v1501
        %v1578 = vpop.permute.xlu0 %1577
        %1581 = vset.pattern.permute.xlu0 0
        %1582 = vperm.xlu0 %1581, %v1502
        %v1583 = vpop.permute.xlu0 %1582
        %1586 = vset.pattern.permute.xlu0 0
        %1587 = vperm.xlu0 %1586, %v1503
        %v1588 = vpop.permute.xlu0 %1587
        %1591 = vset.pattern.permute.xlu0 0
        %1592 = vperm.xlu0 %1591, %v1504
        %v1593 = vpop.permute.xlu0 %1592
        %1596 = vset.pattern.permute.xlu0 0
        %1597 = vperm.xlu0 %1596, %v1505
        %v1598 = vpop.permute.xlu0 %1597
        %1601 = vset.pattern.permute.xlu0 0
        %1602 = vperm.xlu0 %1601, %v1506
        %v1603 = vpop.permute.xlu0 %1602
        %1606 = vset.pattern.permute.xlu0 0
        %1607 = vperm.xlu0 %1606, %v1507
        %v1608 = vpop.permute.xlu0 %1607
        %1611 = vset.pattern.permute.xlu0 0
        %1612 = vperm.xlu0 %1611, %v1508
        %v1613 = vpop.permute.xlu0 %1612
        %1616 = vset.pattern.permute.xlu0 0
        %1617 = vperm.xlu0 %1616, %v1509
        %v1618 = vpop.permute.xlu0 %1617
        %1621 = vset.pattern.permute.xlu0 0
        %1622 = vperm.xlu0 %1621, %v1510
        %v1623 = vpop.permute.xlu0 %1622
        %1626 = vset.pattern.permute.xlu0 0
        %1627 = vperm.xlu0 %1626, %v1511
        %v1628 = vpop.permute.xlu0 %1627
        %1631 = vset.pattern.permute.xlu0 0
        %1632 = vperm.xlu0 %1631, %v1512
        %v1633 = vpop.permute.xlu0 %1632
        %1636 = vset.pattern.permute.xlu0 0
        %1637 = vperm.xlu0 %1636, %v1513
        %v1638 = vpop.permute.xlu0 %1637
        %1641 = vset.pattern.permute.xlu0 0
        %1642 = vperm.xlu0 %1641, %v1514
        %v1643 = vpop.permute.xlu0 %1642
        %1646 = vset.pattern.permute.xlu0 0
        %1647 = vperm.xlu0 %1646, %v1515
        %v1648 = vpop.permute.xlu0 %1647
        %1651 = vset.pattern.permute.xlu0 0
        %1652 = vperm.xlu0 %1651, %v1516
        %v1653 = vpop.permute.xlu0 %1652
        %1656 = vset.pattern.permute.xlu0 0
        %1657 = vperm.xlu0 %1656, %v1517
        %v1658 = vpop.permute.xlu0 %1657
        %1661 = vset.pattern.permute.xlu0 0
        %1662 = vperm.xlu0 %1661, %v1518
        %v1663 = vpop.permute.xlu0 %1662
        %1666 = vset.pattern.permute.xlu0 0
        %1667 = vperm.xlu0 %1666, %v1519
        %v1668 = vpop.permute.xlu0 %1667
        %1671 = vset.pattern.permute.xlu0 0
        %1672 = vperm.xlu0 %1671, %v1520
        %v1673 = vpop.permute.xlu0 %1672
        %1676 = vset.pattern.permute.xlu0 0
        %1677 = vperm.xlu0 %1676, %v1521
        %v1678 = vpop.permute.xlu0 %1677
        %1681 = vset.pattern.permute.xlu0 0
        %1682 = vperm.xlu0 %1681, %v1522
        %v1683 = vpop.permute.xlu0 %1682
        %v1686 = vlaneseq
        %v1687 = vshrl.u32 %v1686, 7
        %v1688 = vsub.s32 0, %v1687
        %v1689 = vrot.slane %v1524, %v1688
        %v1691 = vmul.f32 %v1528, %v1689
        %v1692 = vmul.f32 %v1533, %v1689
        %v1693 = vmul.f32 %v1538, %v1689
        %v1694 = vmul.f32 %v1543, %v1689
        %v1695 = vmul.f32 %v1548, %v1689
        %v1696 = vmul.f32 %v1553, %v1689
        %v1697 = vmul.f32 %v1558, %v1689
        %v1698 = vmul.f32 %v1563, %v1689
        %v1699 = vmul.f32 %v1568, %v1689
        %v1700 = vmul.f32 %v1573, %v1689
        %v1701 = vmul.f32 %v1578, %v1689
        %v1702 = vmul.f32 %v1583, %v1689
        %v1703 = vmul.f32 %v1588, %v1689
        %v1704 = vmul.f32 %v1593, %v1689
        %v1705 = vmul.f32 %v1598, %v1689
        %v1706 = vmul.f32 %v1603, %v1689
        %v1707 = vmul.f32 %v1608, %v1689
        %v1708 = vmul.f32 %v1613, %v1689
        %v1709 = vmul.f32 %v1618, %v1689
        %v1710 = vmul.f32 %v1623, %v1689
        %v1711 = vmul.f32 %v1628, %v1689
        %v1712 = vmul.f32 %v1633, %v1689
        %v1713 = vmul.f32 %v1638, %v1689
        %v1714 = vmul.f32 %v1643, %v1689
        %v1715 = vmul.f32 %v1648, %v1689
        %v1716 = vmul.f32 %v1653, %v1689
        %v1717 = vmul.f32 %v1658, %v1689
        %v1718 = vmul.f32 %v1663, %v1689
        %v1719 = vmul.f32 %v1668, %v1689
        %v1720 = vmul.f32 %v1673, %v1689
        %v1721 = vmul.f32 %v1678, %v1689
        %v1722 = vmul.f32 %v1683, %v1689
        %v1723 = vadd.f32 %v1427, %v1691
        %v1724 = vadd.f32 %v1428, %v1692
        %v1725 = vadd.f32 %v1429, %v1693
        %v1726 = vadd.f32 %v1430, %v1694
        %v1727 = vadd.f32 %v1431, %v1695
        %v1728 = vadd.f32 %v1432, %v1696
        %v1729 = vadd.f32 %v1433, %v1697
        %v1730 = vadd.f32 %v1434, %v1698
        %v1731 = vadd.f32 %v1435, %v1699
        %v1732 = vadd.f32 %v1436, %v1700
        %v1733 = vadd.f32 %v1437, %v1701
        %v1734 = vadd.f32 %v1438, %v1702
        %v1735 = vadd.f32 %v1439, %v1703
        %v1736 = vadd.f32 %v1440, %v1704
        %v1737 = vadd.f32 %v1441, %v1705
        %v1738 = vadd.f32 %v1442, %v1706
        %v1739 = vadd.f32 %v1443, %v1707
        %v1740 = vadd.f32 %v1444, %v1708
        %v1741 = vadd.f32 %v1445, %v1709
        %v1742 = vadd.f32 %v1446, %v1710
        %v1743 = vadd.f32 %v1447, %v1711
        %v1744 = vadd.f32 %v1448, %v1712
        %v1745 = vadd.f32 %v1449, %v1713
        %v1746 = vadd.f32 %v1450, %v1714
        %v1747 = vadd.f32 %v1451, %v1715
        %v1748 = vadd.f32 %v1452, %v1716
        %v1749 = vadd.f32 %v1453, %v1717
        %v1750 = vadd.f32 %v1454, %v1718
        %v1751 = vadd.f32 %v1455, %v1719
        %v1752 = vadd.f32 %v1456, %v1720
        %v1753 = vadd.f32 %v1457, %v1721
        %v1754 = vadd.f32 %v1458, %v1722
        %v1755 = vld [vmem:[%s496 + $0x20] sm:$0xff]
        %v1756 = vld [vmem:[%s496 + $0x28] sm:$0xff]
        %v1757 = vld [vmem:[%s496 + $0x30] sm:$0xff]
        %v1758 = vld [vmem:[%s496 + $0x38] sm:$0xff]
        %v1759 = vld [vmem:[%s496 + $0x40] sm:$0xff]
        %v1760 = vld [vmem:[%s496 + $0x48] sm:$0xff]
        %v1761 = vld [vmem:[%s496 + $0x50] sm:$0xff]
        %v1762 = vld [vmem:[%s496 + $0x58] sm:$0xff]
        %v1763 = vld [vmem:[%s496 + $0x60] sm:$0xff]
        %v1764 = vld [vmem:[%s496 + $0x68] sm:$0xff]
        %v1765 = vld [vmem:[%s496 + $0x70] sm:$0xff]
        %v1766 = vld [vmem:[%s496 + $0x78] sm:$0xff]
        %v1767 = vld [vmem:[%s496 + $0x80] sm:$0xff]
        %v1768 = vld [vmem:[%s496 + $0x88] sm:$0xff]
        %v1769 = vld [vmem:[%s496 + $0x90] sm:$0xff]
        %v1770 = vld [vmem:[%s496 + $0x98] sm:$0xff]
        %v1771 = vld [vmem:[%s496 + $0xa0] sm:$0xff]
        %v1772 = vld [vmem:[%s496 + $0xa8] sm:$0xff]
        %v1773 = vld [vmem:[%s496 + $0xb0] sm:$0xff]
        %v1774 = vld [vmem:[%s496 + $0xb8] sm:$0xff]
        %v1775 = vld [vmem:[%s496 + $0xc0] sm:$0xff]
        %v1776 = vld [vmem:[%s496 + $0xc8] sm:$0xff]
        %v1777 = vld [vmem:[%s496 + $0xd0] sm:$0xff]
        %v1778 = vld [vmem:[%s496 + $0xd8] sm:$0xff]
        %v1779 = vld [vmem:[%s496 + $0xe0] sm:$0xff]
        %v1780 = vld [vmem:[%s496 + $0xe8] sm:$0xff]
        %v1781 = vld [vmem:[%s496 + $0xf0] sm:$0xff]
        %v1782 = vld [vmem:[%s496 + $0xf8] sm:$0xff]
        %v1783 = vld [vmem:[%s496 + $0x100] sm:$0xff]
        %v1784 = vld [vmem:[%s496 + $0x108] sm:$0xff]
        %v1785 = vld [vmem:[%s496 + $0x110] sm:$0xff]
        %v1786 = vld [vmem:[%s496 + $0x118] sm:$0xff]
        %s1787 = scalar_lea.vmem %s1, 4
        %v1788 = vld [vmem:[%s1787] sm:$0x1]
        %1790 = vset.pattern.permute.xlu0 0
        %1791 = vperm.xlu0 %1790, %v1755
        %v1792 = vpop.permute.xlu0 %1791
        %1795 = vset.pattern.permute.xlu0 0
        %1796 = vperm.xlu0 %1795, %v1756
        %v1797 = vpop.permute.xlu0 %1796
        %1800 = vset.pattern.permute.xlu0 0
        %1801 = vperm.xlu0 %1800, %v1757
        %v1802 = vpop.permute.xlu0 %1801
        %1805 = vset.pattern.permute.xlu0 0
        %1806 = vperm.xlu0 %1805, %v1758
        %v1807 = vpop.permute.xlu0 %1806
        %1810 = vset.pattern.permute.xlu0 0
        %1811 = vperm.xlu0 %1810, %v1759
        %v1812 = vpop.permute.xlu0 %1811
        %1815 = vset.pattern.permute.xlu0 0
        %1816 = vperm.xlu0 %1815, %v1760
        %v1817 = vpop.permute.xlu0 %1816
        %1820 = vset.pattern.permute.xlu0 0
        %1821 = vperm.xlu0 %1820, %v1761
        %v1822 = vpop.permute.xlu0 %1821
        %1825 = vset.pattern.permute.xlu0 0
        %1826 = vperm.xlu0 %1825, %v1762
        %v1827 = vpop.permute.xlu0 %1826
        %1830 = vset.pattern.permute.xlu0 0
        %1831 = vperm.xlu0 %1830, %v1763
        %v1832 = vpop.permute.xlu0 %1831
        %1835 = vset.pattern.permute.xlu0 0
        %1836 = vperm.xlu0 %1835, %v1764
        %v1837 = vpop.permute.xlu0 %1836
        %1840 = vset.pattern.permute.xlu0 0
        %1841 = vperm.xlu0 %1840, %v1765
        %v1842 = vpop.permute.xlu0 %1841
        %1845 = vset.pattern.permute.xlu0 0
        %1846 = vperm.xlu0 %1845, %v1766
        %v1847 = vpop.permute.xlu0 %1846
        %1850 = vset.pattern.permute.xlu0 0
        %1851 = vperm.xlu0 %1850, %v1767
        %v1852 = vpop.permute.xlu0 %1851
        %1855 = vset.pattern.permute.xlu0 0
        %1856 = vperm.xlu0 %1855, %v1768
        %v1857 = vpop.permute.xlu0 %1856
        %1860 = vset.pattern.permute.xlu0 0
        %1861 = vperm.xlu0 %1860, %v1769
        %v1862 = vpop.permute.xlu0 %1861
        %1865 = vset.pattern.permute.xlu0 0
        %1866 = vperm.xlu0 %1865, %v1770
        %v1867 = vpop.permute.xlu0 %1866
        %1870 = vset.pattern.permute.xlu0 0
        %1871 = vperm.xlu0 %1870, %v1771
        %v1872 = vpop.permute.xlu0 %1871
        %1875 = vset.pattern.permute.xlu0 0
        %1876 = vperm.xlu0 %1875, %v1772
        %v1877 = vpop.permute.xlu0 %1876
        %1880 = vset.pattern.permute.xlu0 0
        %1881 = vperm.xlu0 %1880, %v1773
        %v1882 = vpop.permute.xlu0 %1881
        %1885 = vset.pattern.permute.xlu0 0
        %1886 = vperm.xlu0 %1885, %v1774
        %v1887 = vpop.permute.xlu0 %1886
        %1890 = vset.pattern.permute.xlu0 0
        %1891 = vperm.xlu0 %1890, %v1775
        %v1892 = vpop.permute.xlu0 %1891
        %1895 = vset.pattern.permute.xlu0 0
        %1896 = vperm.xlu0 %1895, %v1776
        %v1897 = vpop.permute.xlu0 %1896
        %1900 = vset.pattern.permute.xlu0 0
        %1901 = vperm.xlu0 %1900, %v1777
        %v1902 = vpop.permute.xlu0 %1901
        %1905 = vset.pattern.permute.xlu0 0
        %1906 = vperm.xlu0 %1905, %v1778
        %v1907 = vpop.permute.xlu0 %1906
        %1910 = vset.pattern.permute.xlu0 0
        %1911 = vperm.xlu0 %1910, %v1779
        %v1912 = vpop.permute.xlu0 %1911
        %1915 = vset.pattern.permute.xlu0 0
        %1916 = vperm.xlu0 %1915, %v1780
        %v1917 = vpop.permute.xlu0 %1916
        %1920 = vset.pattern.permute.xlu0 0
        %1921 = vperm.xlu0 %1920, %v1781
        %v1922 = vpop.permute.xlu0 %1921
        %1925 = vset.pattern.permute.xlu0 0
        %1926 = vperm.xlu0 %1925, %v1782
        %v1927 = vpop.permute.xlu0 %1926
        %1930 = vset.pattern.permute.xlu0 0
        %1931 = vperm.xlu0 %1930, %v1783
        %v1932 = vpop.permute.xlu0 %1931
        %1935 = vset.pattern.permute.xlu0 0
        %1936 = vperm.xlu0 %1935, %v1784
        %v1937 = vpop.permute.xlu0 %1936
        %1940 = vset.pattern.permute.xlu0 0
        %1941 = vperm.xlu0 %1940, %v1785
        %v1942 = vpop.permute.xlu0 %1941
        %1945 = vset.pattern.permute.xlu0 0
        %1946 = vperm.xlu0 %1945, %v1786
        %v1947 = vpop.permute.xlu0 %1946
        %v1950 = vlaneseq
        %v1951 = vshrl.u32 %v1950, 7
        %v1952 = vsub.s32 0, %v1951
        %v1953 = vrot.slane %v1788, %v1952
        %v1955 = vmul.f32 %v1792, %v1953
        %v1956 = vmul.f32 %v1797, %v1953
        %v1957 = vmul.f32 %v1802, %v1953
        %v1958 = vmul.f32 %v1807, %v1953
        %v1959 = vmul.f32 %v1812, %v1953
        %v1960 = vmul.f32 %v1817, %v1953
        %v1961 = vmul.f32 %v1822, %v1953
        %v1962 = vmul.f32 %v1827, %v1953
        %v1963 = vmul.f32 %v1832, %v1953
        %v1964 = vmul.f32 %v1837, %v1953
        %v1965 = vmul.f32 %v1842, %v1953
        %v1966 = vmul.f32 %v1847, %v1953
        %v1967 = vmul.f32 %v1852, %v1953
        %v1968 = vmul.f32 %v1857, %v1953
        %v1969 = vmul.f32 %v1862, %v1953
        %v1970 = vmul.f32 %v1867, %v1953
        %v1971 = vmul.f32 %v1872, %v1953
        %v1972 = vmul.f32 %v1877, %v1953
        %v1973 = vmul.f32 %v1882, %v1953
        %v1974 = vmul.f32 %v1887, %v1953
        %v1975 = vmul.f32 %v1892, %v1953
        %v1976 = vmul.f32 %v1897, %v1953
        %v1977 = vmul.f32 %v1902, %v1953
        %v1978 = vmul.f32 %v1907, %v1953
        %v1979 = vmul.f32 %v1912, %v1953
        %v1980 = vmul.f32 %v1917, %v1953
        %v1981 = vmul.f32 %v1922, %v1953
        %v1982 = vmul.f32 %v1927, %v1953
        %v1983 = vmul.f32 %v1932, %v1953
        %v1984 = vmul.f32 %v1937, %v1953
        %v1985 = vmul.f32 %v1942, %v1953
        %v1986 = vmul.f32 %v1947, %v1953
        %v1987 = vadd.f32 %v1723, %v1955
        %v1988 = vadd.f32 %v1724, %v1956
        %v1989 = vadd.f32 %v1725, %v1957
        %v1990 = vadd.f32 %v1726, %v1958
        %v1991 = vadd.f32 %v1727, %v1959
        %v1992 = vadd.f32 %v1728, %v1960
        %v1993 = vadd.f32 %v1729, %v1961
        %v1994 = vadd.f32 %v1730, %v1962
        %v1995 = vadd.f32 %v1731, %v1963
        %v1996 = vadd.f32 %v1732, %v1964
        %v1997 = vadd.f32 %v1733, %v1965
        %v1998 = vadd.f32 %v1734, %v1966
        %v1999 = vadd.f32 %v1735, %v1967
        %v2000 = vadd.f32 %v1736, %v1968
        %v2001 = vadd.f32 %v1737, %v1969
        %v2002 = vadd.f32 %v1738, %v1970
        %v2003 = vadd.f32 %v1739, %v1971
        %v2004 = vadd.f32 %v1740, %v1972
        %v2005 = vadd.f32 %v1741, %v1973
        %v2006 = vadd.f32 %v1742, %v1974
        %v2007 = vadd.f32 %v1743, %v1975
        %v2008 = vadd.f32 %v1744, %v1976
        %v2009 = vadd.f32 %v1745, %v1977
        %v2010 = vadd.f32 %v1746, %v1978
        %v2011 = vadd.f32 %v1747, %v1979
        %v2012 = vadd.f32 %v1748, %v1980
        %v2013 = vadd.f32 %v1749, %v1981
        %v2014 = vadd.f32 %v1750, %v1982
        %v2015 = vadd.f32 %v1751, %v1983
        %v2016 = vadd.f32 %v1752, %v1984
        %v2017 = vadd.f32 %v1753, %v1985
        %v2018 = vadd.f32 %v1754, %v1986
        %v2019 = vld [vmem:[%s496 + $0x21] sm:$0xff]
        %v2020 = vld [vmem:[%s496 + $0x29] sm:$0xff]
        %v2021 = vld [vmem:[%s496 + $0x31] sm:$0xff]
        %v2022 = vld [vmem:[%s496 + $0x39] sm:$0xff]
        %v2023 = vld [vmem:[%s496 + $0x41] sm:$0xff]
        %v2024 = vld [vmem:[%s496 + $0x49] sm:$0xff]
        %v2025 = vld [vmem:[%s496 + $0x51] sm:$0xff]
        %v2026 = vld [vmem:[%s496 + $0x59] sm:$0xff]
        %v2027 = vld [vmem:[%s496 + $0x61] sm:$0xff]
        %v2028 = vld [vmem:[%s496 + $0x69] sm:$0xff]
        %v2029 = vld [vmem:[%s496 + $0x71] sm:$0xff]
        %v2030 = vld [vmem:[%s496 + $0x79] sm:$0xff]
        %v2031 = vld [vmem:[%s496 + $0x81] sm:$0xff]
        %v2032 = vld [vmem:[%s496 + $0x89] sm:$0xff]
        %v2033 = vld [vmem:[%s496 + $0x91] sm:$0xff]
        %v2034 = vld [vmem:[%s496 + $0x99] sm:$0xff]
        %v2035 = vld [vmem:[%s496 + $0xa1] sm:$0xff]
        %v2036 = vld [vmem:[%s496 + $0xa9] sm:$0xff]
        %v2037 = vld [vmem:[%s496 + $0xb1] sm:$0xff]
        %v2038 = vld [vmem:[%s496 + $0xb9] sm:$0xff]
        %v2039 = vld [vmem:[%s496 + $0xc1] sm:$0xff]
        %v2040 = vld [vmem:[%s496 + $0xc9] sm:$0xff]
        %v2041 = vld [vmem:[%s496 + $0xd1] sm:$0xff]
        %v2042 = vld [vmem:[%s496 + $0xd9] sm:$0xff]
        %v2043 = vld [vmem:[%s496 + $0xe1] sm:$0xff]
        %v2044 = vld [vmem:[%s496 + $0xe9] sm:$0xff]
        %v2045 = vld [vmem:[%s496 + $0xf1] sm:$0xff]
        %v2046 = vld [vmem:[%s496 + $0xf9] sm:$0xff]
        %v2047 = vld [vmem:[%s496 + $0x101] sm:$0xff]
        %v2048 = vld [vmem:[%s496 + $0x109] sm:$0xff]
        %v2049 = vld [vmem:[%s496 + $0x111] sm:$0xff]
        %v2050 = vld [vmem:[%s496 + $0x119] sm:$0xff]
        %v2051 = vsel %vm1163, 0.0, %v2019
        %v2052 = vsel %vm1164, 0.0, %v2020
        %v2053 = vsel %vm1165, 0.0, %v2021
        %v2054 = vsel %vm1166, 0.0, %v2022
        %v2055 = vsel %vm1167, 0.0, %v2023
        %v2056 = vsel %vm1168, 0.0, %v2024
        %v2057 = vsel %vm1169, 0.0, %v2025
        %v2058 = vsel %vm1170, 0.0, %v2026
        %v2059 = vsel %vm1171, 0.0, %v2027
        %v2060 = vsel %vm1172, 0.0, %v2028
        %v2061 = vsel %vm1173, 0.0, %v2029
        %v2062 = vsel %vm1174, 0.0, %v2030
        %v2063 = vsel %vm1175, 0.0, %v2031
        %v2064 = vsel %vm1176, 0.0, %v2032
        %v2065 = vsel %vm1177, 0.0, %v2033
        %v2066 = vsel %vm1178, 0.0, %v2034
        %v2067 = vsel %vm1179, 0.0, %v2035
        %v2068 = vsel %vm1180, 0.0, %v2036
        %v2069 = vsel %vm1181, 0.0, %v2037
        %v2070 = vsel %vm1182, 0.0, %v2038
        %v2071 = vsel %vm1183, 0.0, %v2039
        %v2072 = vsel %vm1184, 0.0, %v2040
        %v2073 = vsel %vm1185, 0.0, %v2041
        %v2074 = vsel %vm1186, 0.0, %v2042
        %v2075 = vsel %vm1187, 0.0, %v2043
        %v2076 = vsel %vm1188, 0.0, %v2044
        %v2077 = vsel %vm1189, 0.0, %v2045
        %v2078 = vsel %vm1190, 0.0, %v2046
        %v2079 = vsel %vm1191, 0.0, %v2047
        %v2080 = vsel %vm1192, 0.0, %v2048
        %v2081 = vsel %vm1193, 0.0, %v2049
        %v2082 = vsel %vm1194, 0.0, %v2050
        %s2083 = scalar_lea.vmem %s1, 5
        %v2084 = vld [vmem:[%s2083] sm:$0x1]
        %2086 = vset.pattern.permute.xlu0 0
        %2087 = vperm.xlu0 %2086, %v2051
        %v2088 = vpop.permute.xlu0 %2087
        %2091 = vset.pattern.permute.xlu0 0
        %2092 = vperm.xlu0 %2091, %v2052
        %v2093 = vpop.permute.xlu0 %2092
        %2096 = vset.pattern.permute.xlu0 0
        %2097 = vperm.xlu0 %2096, %v2053
        %v2098 = vpop.permute.xlu0 %2097
        %2101 = vset.pattern.permute.xlu0 0
        %2102 = vperm.xlu0 %2101, %v2054
        %v2103 = vpop.permute.xlu0 %2102
        %2106 = vset.pattern.permute.xlu0 0
        %2107 = vperm.xlu0 %2106, %v2055
        %v2108 = vpop.permute.xlu0 %2107
        %2111 = vset.pattern.permute.xlu0 0
        %2112 = vperm.xlu0 %2111, %v2056
        %v2113 = vpop.permute.xlu0 %2112
        %2116 = vset.pattern.permute.xlu0 0
        %2117 = vperm.xlu0 %2116, %v2057
        %v2118 = vpop.permute.xlu0 %2117
        %2121 = vset.pattern.permute.xlu0 0
        %2122 = vperm.xlu0 %2121, %v2058
        %v2123 = vpop.permute.xlu0 %2122
        %2126 = vset.pattern.permute.xlu0 0
        %2127 = vperm.xlu0 %2126, %v2059
        %v2128 = vpop.permute.xlu0 %2127
        %2131 = vset.pattern.permute.xlu0 0
        %2132 = vperm.xlu0 %2131, %v2060
        %v2133 = vpop.permute.xlu0 %2132
        %2136 = vset.pattern.permute.xlu0 0
        %2137 = vperm.xlu0 %2136, %v2061
        %v2138 = vpop.permute.xlu0 %2137
        %2141 = vset.pattern.permute.xlu0 0
        %2142 = vperm.xlu0 %2141, %v2062
        %v2143 = vpop.permute.xlu0 %2142
        %2146 = vset.pattern.permute.xlu0 0
        %2147 = vperm.xlu0 %2146, %v2063
        %v2148 = vpop.permute.xlu0 %2147
        %2151 = vset.pattern.permute.xlu0 0
        %2152 = vperm.xlu0 %2151, %v2064
        %v2153 = vpop.permute.xlu0 %2152
        %2156 = vset.pattern.permute.xlu0 0
        %2157 = vperm.xlu0 %2156, %v2065
        %v2158 = vpop.permute.xlu0 %2157
        %2161 = vset.pattern.permute.xlu0 0
        %2162 = vperm.xlu0 %2161, %v2066
        %v2163 = vpop.permute.xlu0 %2162
        %2166 = vset.pattern.permute.xlu0 0
        %2167 = vperm.xlu0 %2166, %v2067
        %v2168 = vpop.permute.xlu0 %2167
        %2171 = vset.pattern.permute.xlu0 0
        %2172 = vperm.xlu0 %2171, %v2068
        %v2173 = vpop.permute.xlu0 %2172
        %2176 = vset.pattern.permute.xlu0 0
        %2177 = vperm.xlu0 %2176, %v2069
        %v2178 = vpop.permute.xlu0 %2177
        %2181 = vset.pattern.permute.xlu0 0
        %2182 = vperm.xlu0 %2181, %v2070
        %v2183 = vpop.permute.xlu0 %2182
        %2186 = vset.pattern.permute.xlu0 0
        %2187 = vperm.xlu0 %2186, %v2071
        %v2188 = vpop.permute.xlu0 %2187
        %2191 = vset.pattern.permute.xlu0 0
        %2192 = vperm.xlu0 %2191, %v2072
        %v2193 = vpop.permute.xlu0 %2192
        %2196 = vset.pattern.permute.xlu0 0
        %2197 = vperm.xlu0 %2196, %v2073
        %v2198 = vpop.permute.xlu0 %2197
        %2201 = vset.pattern.permute.xlu0 0
        %2202 = vperm.xlu0 %2201, %v2074
        %v2203 = vpop.permute.xlu0 %2202
        %2206 = vset.pattern.permute.xlu0 0
        %2207 = vperm.xlu0 %2206, %v2075
        %v2208 = vpop.permute.xlu0 %2207
        %2211 = vset.pattern.permute.xlu0 0
        %2212 = vperm.xlu0 %2211, %v2076
        %v2213 = vpop.permute.xlu0 %2212
        %2216 = vset.pattern.permute.xlu0 0
        %2217 = vperm.xlu0 %2216, %v2077
        %v2218 = vpop.permute.xlu0 %2217
        %2221 = vset.pattern.permute.xlu0 0
        %2222 = vperm.xlu0 %2221, %v2078
        %v2223 = vpop.permute.xlu0 %2222
        %2226 = vset.pattern.permute.xlu0 0
        %2227 = vperm.xlu0 %2226, %v2079
        %v2228 = vpop.permute.xlu0 %2227
        %2231 = vset.pattern.permute.xlu0 0
        %2232 = vperm.xlu0 %2231, %v2080
        %v2233 = vpop.permute.xlu0 %2232
        %2236 = vset.pattern.permute.xlu0 0
        %2237 = vperm.xlu0 %2236, %v2081
        %v2238 = vpop.permute.xlu0 %2237
        %2241 = vset.pattern.permute.xlu0 0
        %2242 = vperm.xlu0 %2241, %v2082
        %v2243 = vpop.permute.xlu0 %2242
        %v2246 = vlaneseq
        %v2247 = vshrl.u32 %v2246, 7
        %v2248 = vsub.s32 0, %v2247
        %v2249 = vrot.slane %v2084, %v2248
        %v2251 = vmul.f32 %v2088, %v2249
        %v2252 = vmul.f32 %v2093, %v2249
        %v2253 = vmul.f32 %v2098, %v2249
        %v2254 = vmul.f32 %v2103, %v2249
        %v2255 = vmul.f32 %v2108, %v2249
        %v2256 = vmul.f32 %v2113, %v2249
        %v2257 = vmul.f32 %v2118, %v2249
        %v2258 = vmul.f32 %v2123, %v2249
        %v2259 = vmul.f32 %v2128, %v2249
        %v2260 = vmul.f32 %v2133, %v2249
        %v2261 = vmul.f32 %v2138, %v2249
        %v2262 = vmul.f32 %v2143, %v2249
        %v2263 = vmul.f32 %v2148, %v2249
        %v2264 = vmul.f32 %v2153, %v2249
        %v2265 = vmul.f32 %v2158, %v2249
        %v2266 = vmul.f32 %v2163, %v2249
        %v2267 = vmul.f32 %v2168, %v2249
        %v2268 = vmul.f32 %v2173, %v2249
        %v2269 = vmul.f32 %v2178, %v2249
        %v2270 = vmul.f32 %v2183, %v2249
        %v2271 = vmul.f32 %v2188, %v2249
        %v2272 = vmul.f32 %v2193, %v2249
        %v2273 = vmul.f32 %v2198, %v2249
        %v2274 = vmul.f32 %v2203, %v2249
        %v2275 = vmul.f32 %v2208, %v2249
        %v2276 = vmul.f32 %v2213, %v2249
        %v2277 = vmul.f32 %v2218, %v2249
        %v2278 = vmul.f32 %v2223, %v2249
        %v2279 = vmul.f32 %v2228, %v2249
        %v2280 = vmul.f32 %v2233, %v2249
        %v2281 = vmul.f32 %v2238, %v2249
        %v2282 = vmul.f32 %v2243, %v2249
        %v2283 = vadd.f32 %v1987, %v2251
        %v2284 = vadd.f32 %v1988, %v2252
        %v2285 = vadd.f32 %v1989, %v2253
        %v2286 = vadd.f32 %v1990, %v2254
        %v2287 = vadd.f32 %v1991, %v2255
        %v2288 = vadd.f32 %v1992, %v2256
        %v2289 = vadd.f32 %v1993, %v2257
        %v2290 = vadd.f32 %v1994, %v2258
        %v2291 = vadd.f32 %v1995, %v2259
        %v2292 = vadd.f32 %v1996, %v2260
        %v2293 = vadd.f32 %v1997, %v2261
        %v2294 = vadd.f32 %v1998, %v2262
        %v2295 = vadd.f32 %v1999, %v2263
        %v2296 = vadd.f32 %v2000, %v2264
        %v2297 = vadd.f32 %v2001, %v2265
        %v2298 = vadd.f32 %v2002, %v2266
        %v2299 = vadd.f32 %v2003, %v2267
        %v2300 = vadd.f32 %v2004, %v2268
        %v2301 = vadd.f32 %v2005, %v2269
        %v2302 = vadd.f32 %v2006, %v2270
        %v2303 = vadd.f32 %v2007, %v2271
        %v2304 = vadd.f32 %v2008, %v2272
        %v2305 = vadd.f32 %v2009, %v2273
        %v2306 = vadd.f32 %v2010, %v2274
        %v2307 = vadd.f32 %v2011, %v2275
        %v2308 = vadd.f32 %v2012, %v2276
        %v2309 = vadd.f32 %v2013, %v2277
        %v2310 = vadd.f32 %v2014, %v2278
        %v2311 = vadd.f32 %v2015, %v2279
        %v2312 = vadd.f32 %v2016, %v2280
        %v2313 = vadd.f32 %v2017, %v2281
        %v2314 = vadd.f32 %v2018, %v2282
        %v2315 = vld [vmem:[%s496 + $0x2f] sm:$0xff]
        %v2316 = vld [vmem:[%s496 + $0x37] sm:$0xff]
        %v2317 = vld [vmem:[%s496 + $0x3f] sm:$0xff]
        %v2318 = vld [vmem:[%s496 + $0x47] sm:$0xff]
        %v2319 = vld [vmem:[%s496 + $0x4f] sm:$0xff]
        %v2320 = vld [vmem:[%s496 + $0x57] sm:$0xff]
        %v2321 = vld [vmem:[%s496 + $0x5f] sm:$0xff]
        %v2322 = vld [vmem:[%s496 + $0x67] sm:$0xff]
        %v2323 = vld [vmem:[%s496 + $0x6f] sm:$0xff]
        %v2324 = vld [vmem:[%s496 + $0x77] sm:$0xff]
        %v2325 = vld [vmem:[%s496 + $0x7f] sm:$0xff]
        %v2326 = vld [vmem:[%s496 + $0x87] sm:$0xff]
        %v2327 = vld [vmem:[%s496 + $0x8f] sm:$0xff]
        %v2328 = vld [vmem:[%s496 + $0x97] sm:$0xff]
        %v2329 = vld [vmem:[%s496 + $0x9f] sm:$0xff]
        %v2330 = vld [vmem:[%s496 + $0xa7] sm:$0xff]
        %v2331 = vld [vmem:[%s496 + $0xaf] sm:$0xff]
        %v2332 = vld [vmem:[%s496 + $0xb7] sm:$0xff]
        %v2333 = vld [vmem:[%s496 + $0xbf] sm:$0xff]
        %v2334 = vld [vmem:[%s496 + $0xc7] sm:$0xff]
        %v2335 = vld [vmem:[%s496 + $0xcf] sm:$0xff]
        %v2336 = vld [vmem:[%s496 + $0xd7] sm:$0xff]
        %v2337 = vld [vmem:[%s496 + $0xdf] sm:$0xff]
        %v2338 = vld [vmem:[%s496 + $0xe7] sm:$0xff]
        %v2339 = vld [vmem:[%s496 + $0xef] sm:$0xff]
        %v2340 = vld [vmem:[%s496 + $0xf7] sm:$0xff]
        %v2341 = vld [vmem:[%s496 + $0xff] sm:$0xff]
        %v2342 = vld [vmem:[%s496 + $0x107] sm:$0xff]
        %v2343 = vld [vmem:[%s496 + $0x10f] sm:$0xff]
        %v2344 = vld [vmem:[%s496 + $0x117] sm:$0xff]
        %v2345 = vld [vmem:[%s496 + $0x11f] sm:$0xff]
        %v2346 = vld [vmem:[%s496 + $0x127] sm:$0xff]
        %v2347 = vsel %vm604, 0.0, %v2315
        %v2348 = vsel %vm605, 0.0, %v2316
        %v2349 = vsel %vm606, 0.0, %v2317
        %v2350 = vsel %vm607, 0.0, %v2318
        %v2351 = vsel %vm608, 0.0, %v2319
        %v2352 = vsel %vm609, 0.0, %v2320
        %v2353 = vsel %vm610, 0.0, %v2321
        %v2354 = vsel %vm611, 0.0, %v2322
        %v2355 = vsel %vm612, 0.0, %v2323
        %v2356 = vsel %vm613, 0.0, %v2324
        %v2357 = vsel %vm614, 0.0, %v2325
        %v2358 = vsel %vm615, 0.0, %v2326
        %v2359 = vsel %vm616, 0.0, %v2327
        %v2360 = vsel %vm617, 0.0, %v2328
        %v2361 = vsel %vm618, 0.0, %v2329
        %v2362 = vsel %vm619, 0.0, %v2330
        %v2363 = vsel %vm620, 0.0, %v2331
        %v2364 = vsel %vm621, 0.0, %v2332
        %v2365 = vsel %vm622, 0.0, %v2333
        %v2366 = vsel %vm623, 0.0, %v2334
        %v2367 = vsel %vm624, 0.0, %v2335
        %v2368 = vsel %vm625, 0.0, %v2336
        %v2369 = vsel %vm626, 0.0, %v2337
        %v2370 = vsel %vm627, 0.0, %v2338
        %v2371 = vsel %vm628, 0.0, %v2339
        %v2372 = vsel %vm629, 0.0, %v2340
        %v2373 = vsel %vm630, 0.0, %v2341
        %v2374 = vsel %vm631, 0.0, %v2342
        %v2375 = vsel %vm632, 0.0, %v2343
        %v2376 = vsel %vm633, 0.0, %v2344
        %v2377 = vsel %vm634, 0.0, %v2345
        %v2378 = vsel %vm635, 0.0, %v2346
        %s2379 = scalar_lea.vmem %s1, 6
        %v2380 = vld [vmem:[%s2379] sm:$0x1]
        %2382 = vset.pattern.permute.xlu0 0
        %2383 = vperm.xlu0 %2382, %v2347
        %v2384 = vpop.permute.xlu0 %2383
        %2387 = vset.pattern.permute.xlu0 0
        %2388 = vperm.xlu0 %2387, %v2348
        %v2389 = vpop.permute.xlu0 %2388
        %2392 = vset.pattern.permute.xlu0 0
        %2393 = vperm.xlu0 %2392, %v2349
        %v2394 = vpop.permute.xlu0 %2393
        %2397 = vset.pattern.permute.xlu0 0
        %2398 = vperm.xlu0 %2397, %v2350
        %v2399 = vpop.permute.xlu0 %2398
        %2402 = vset.pattern.permute.xlu0 0
        %2403 = vperm.xlu0 %2402, %v2351
        %v2404 = vpop.permute.xlu0 %2403
        %2407 = vset.pattern.permute.xlu0 0
        %2408 = vperm.xlu0 %2407, %v2352
        %v2409 = vpop.permute.xlu0 %2408
        %2412 = vset.pattern.permute.xlu0 0
        %2413 = vperm.xlu0 %2412, %v2353
        %v2414 = vpop.permute.xlu0 %2413
        %2417 = vset.pattern.permute.xlu0 0
        %2418 = vperm.xlu0 %2417, %v2354
        %v2419 = vpop.permute.xlu0 %2418
        %2422 = vset.pattern.permute.xlu0 0
        %2423 = vperm.xlu0 %2422, %v2355
        %v2424 = vpop.permute.xlu0 %2423
        %2427 = vset.pattern.permute.xlu0 0
        %2428 = vperm.xlu0 %2427, %v2356
        %v2429 = vpop.permute.xlu0 %2428
        %2432 = vset.pattern.permute.xlu0 0
        %2433 = vperm.xlu0 %2432, %v2357
        %v2434 = vpop.permute.xlu0 %2433
        %2437 = vset.pattern.permute.xlu0 0
        %2438 = vperm.xlu0 %2437, %v2358
        %v2439 = vpop.permute.xlu0 %2438
        %2442 = vset.pattern.permute.xlu0 0
        %2443 = vperm.xlu0 %2442, %v2359
        %v2444 = vpop.permute.xlu0 %2443
        %2447 = vset.pattern.permute.xlu0 0
        %2448 = vperm.xlu0 %2447, %v2360
        %v2449 = vpop.permute.xlu0 %2448
        %2452 = vset.pattern.permute.xlu0 0
        %2453 = vperm.xlu0 %2452, %v2361
        %v2454 = vpop.permute.xlu0 %2453
        %2457 = vset.pattern.permute.xlu0 0
        %2458 = vperm.xlu0 %2457, %v2362
        %v2459 = vpop.permute.xlu0 %2458
        %2462 = vset.pattern.permute.xlu0 0
        %2463 = vperm.xlu0 %2462, %v2363
        %v2464 = vpop.permute.xlu0 %2463
        %2467 = vset.pattern.permute.xlu0 0
        %2468 = vperm.xlu0 %2467, %v2364
        %v2469 = vpop.permute.xlu0 %2468
        %2472 = vset.pattern.permute.xlu0 0
        %2473 = vperm.xlu0 %2472, %v2365
        %v2474 = vpop.permute.xlu0 %2473
        %2477 = vset.pattern.permute.xlu0 0
        %2478 = vperm.xlu0 %2477, %v2366
        %v2479 = vpop.permute.xlu0 %2478
        %2482 = vset.pattern.permute.xlu0 0
        %2483 = vperm.xlu0 %2482, %v2367
        %v2484 = vpop.permute.xlu0 %2483
        %2487 = vset.pattern.permute.xlu0 0
        %2488 = vperm.xlu0 %2487, %v2368
        %v2489 = vpop.permute.xlu0 %2488
        %2492 = vset.pattern.permute.xlu0 0
        %2493 = vperm.xlu0 %2492, %v2369
        %v2494 = vpop.permute.xlu0 %2493
        %2497 = vset.pattern.permute.xlu0 0
        %2498 = vperm.xlu0 %2497, %v2370
        %v2499 = vpop.permute.xlu0 %2498
        %2502 = vset.pattern.permute.xlu0 0
        %2503 = vperm.xlu0 %2502, %v2371
        %v2504 = vpop.permute.xlu0 %2503
        %2507 = vset.pattern.permute.xlu0 0
        %2508 = vperm.xlu0 %2507, %v2372
        %v2509 = vpop.permute.xlu0 %2508
        %2512 = vset.pattern.permute.xlu0 0
        %2513 = vperm.xlu0 %2512, %v2373
        %v2514 = vpop.permute.xlu0 %2513
        %2517 = vset.pattern.permute.xlu0 0
        %2518 = vperm.xlu0 %2517, %v2374
        %v2519 = vpop.permute.xlu0 %2518
        %2522 = vset.pattern.permute.xlu0 0
        %2523 = vperm.xlu0 %2522, %v2375
        %v2524 = vpop.permute.xlu0 %2523
        %2527 = vset.pattern.permute.xlu0 0
        %2528 = vperm.xlu0 %2527, %v2376
        %v2529 = vpop.permute.xlu0 %2528
        %2532 = vset.pattern.permute.xlu0 0
        %2533 = vperm.xlu0 %2532, %v2377
        %v2534 = vpop.permute.xlu0 %2533
        %2537 = vset.pattern.permute.xlu0 0
        %2538 = vperm.xlu0 %2537, %v2378
        %v2539 = vpop.permute.xlu0 %2538
        %v2542 = vlaneseq
        %v2543 = vshrl.u32 %v2542, 7
        %v2544 = vsub.s32 0, %v2543
        %v2545 = vrot.slane %v2380, %v2544
        %v2547 = vmul.f32 %v2384, %v2545
        %v2548 = vmul.f32 %v2389, %v2545
        %v2549 = vmul.f32 %v2394, %v2545
        %v2550 = vmul.f32 %v2399, %v2545
        %v2551 = vmul.f32 %v2404, %v2545
        %v2552 = vmul.f32 %v2409, %v2545
        %v2553 = vmul.f32 %v2414, %v2545
        %v2554 = vmul.f32 %v2419, %v2545
        %v2555 = vmul.f32 %v2424, %v2545
        %v2556 = vmul.f32 %v2429, %v2545
        %v2557 = vmul.f32 %v2434, %v2545
        %v2558 = vmul.f32 %v2439, %v2545
        %v2559 = vmul.f32 %v2444, %v2545
        %v2560 = vmul.f32 %v2449, %v2545
        %v2561 = vmul.f32 %v2454, %v2545
        %v2562 = vmul.f32 %v2459, %v2545
        %v2563 = vmul.f32 %v2464, %v2545
        %v2564 = vmul.f32 %v2469, %v2545
        %v2565 = vmul.f32 %v2474, %v2545
        %v2566 = vmul.f32 %v2479, %v2545
        %v2567 = vmul.f32 %v2484, %v2545
        %v2568 = vmul.f32 %v2489, %v2545
        %v2569 = vmul.f32 %v2494, %v2545
        %v2570 = vmul.f32 %v2499, %v2545
        %v2571 = vmul.f32 %v2504, %v2545
        %v2572 = vmul.f32 %v2509, %v2545
        %v2573 = vmul.f32 %v2514, %v2545
        %v2574 = vmul.f32 %v2519, %v2545
        %v2575 = vmul.f32 %v2524, %v2545
        %v2576 = vmul.f32 %v2529, %v2545
        %v2577 = vmul.f32 %v2534, %v2545
        %v2578 = vmul.f32 %v2539, %v2545
        %v2579 = vadd.f32 %v2283, %v2547
        %v2580 = vadd.f32 %v2284, %v2548
        %v2581 = vadd.f32 %v2285, %v2549
        %v2582 = vadd.f32 %v2286, %v2550
        %v2583 = vadd.f32 %v2287, %v2551
        %v2584 = vadd.f32 %v2288, %v2552
        %v2585 = vadd.f32 %v2289, %v2553
        %v2586 = vadd.f32 %v2290, %v2554
        %v2587 = vadd.f32 %v2291, %v2555
        %v2588 = vadd.f32 %v2292, %v2556
        %v2589 = vadd.f32 %v2293, %v2557
        %v2590 = vadd.f32 %v2294, %v2558
        %v2591 = vadd.f32 %v2295, %v2559
        %v2592 = vadd.f32 %v2296, %v2560
        %v2593 = vadd.f32 %v2297, %v2561
        %v2594 = vadd.f32 %v2298, %v2562
        %v2595 = vadd.f32 %v2299, %v2563
        %v2596 = vadd.f32 %v2300, %v2564
        %v2597 = vadd.f32 %v2301, %v2565
        %v2598 = vadd.f32 %v2302, %v2566
        %v2599 = vadd.f32 %v2303, %v2567
        %v2600 = vadd.f32 %v2304, %v2568
        %v2601 = vadd.f32 %v2305, %v2569
        %v2602 = vadd.f32 %v2306, %v2570
        %v2603 = vadd.f32 %v2307, %v2571
        %v2604 = vadd.f32 %v2308, %v2572
        %v2605 = vadd.f32 %v2309, %v2573
        %v2606 = vadd.f32 %v2310, %v2574
        %v2607 = vadd.f32 %v2311, %v2575
        %v2608 = vadd.f32 %v2312, %v2576
        %v2609 = vadd.f32 %v2313, %v2577
        %v2610 = vadd.f32 %v2314, %v2578
        %v2611 = vld [vmem:[%s496 + $0x30] sm:$0xff]
        %v2612 = vld [vmem:[%s496 + $0x38] sm:$0xff]
        %v2613 = vld [vmem:[%s496 + $0x40] sm:$0xff]
        %v2614 = vld [vmem:[%s496 + $0x48] sm:$0xff]
        %v2615 = vld [vmem:[%s496 + $0x50] sm:$0xff]
        %v2616 = vld [vmem:[%s496 + $0x58] sm:$0xff]
        %v2617 = vld [vmem:[%s496 + $0x60] sm:$0xff]
        %v2618 = vld [vmem:[%s496 + $0x68] sm:$0xff]
        %v2619 = vld [vmem:[%s496 + $0x70] sm:$0xff]
        %v2620 = vld [vmem:[%s496 + $0x78] sm:$0xff]
        %v2621 = vld [vmem:[%s496 + $0x80] sm:$0xff]
        %v2622 = vld [vmem:[%s496 + $0x88] sm:$0xff]
        %v2623 = vld [vmem:[%s496 + $0x90] sm:$0xff]
        %v2624 = vld [vmem:[%s496 + $0x98] sm:$0xff]
        %v2625 = vld [vmem:[%s496 + $0xa0] sm:$0xff]
        %v2626 = vld [vmem:[%s496 + $0xa8] sm:$0xff]
        %v2627 = vld [vmem:[%s496 + $0xb0] sm:$0xff]
        %v2628 = vld [vmem:[%s496 + $0xb8] sm:$0xff]
        %v2629 = vld [vmem:[%s496 + $0xc0] sm:$0xff]
        %v2630 = vld [vmem:[%s496 + $0xc8] sm:$0xff]
        %v2631 = vld [vmem:[%s496 + $0xd0] sm:$0xff]
        %v2632 = vld [vmem:[%s496 + $0xd8] sm:$0xff]
        %v2633 = vld [vmem:[%s496 + $0xe0] sm:$0xff]
        %v2634 = vld [vmem:[%s496 + $0xe8] sm:$0xff]
        %v2635 = vld [vmem:[%s496 + $0xf0] sm:$0xff]
        %v2636 = vld [vmem:[%s496 + $0xf8] sm:$0xff]
        %v2637 = vld [vmem:[%s496 + $0x100] sm:$0xff]
        %v2638 = vld [vmem:[%s496 + $0x108] sm:$0xff]
        %v2639 = vld [vmem:[%s496 + $0x110] sm:$0xff]
        %v2640 = vld [vmem:[%s496 + $0x118] sm:$0xff]
        %v2641 = vld [vmem:[%s496 + $0x120] sm:$0xff]
        %v2642 = vld [vmem:[%s496 + $0x128] sm:$0xff]
        %s2643 = scalar_lea.vmem %s1, 7
        %v2644 = vld [vmem:[%s2643] sm:$0x1]
        %2646 = vset.pattern.permute.xlu0 0
        %2647 = vperm.xlu0 %2646, %v2611
        %v2648 = vpop.permute.xlu0 %2647
        %2651 = vset.pattern.permute.xlu0 0
        %2652 = vperm.xlu0 %2651, %v2612
        %v2653 = vpop.permute.xlu0 %2652
        %2656 = vset.pattern.permute.xlu0 0
        %2657 = vperm.xlu0 %2656, %v2613
        %v2658 = vpop.permute.xlu0 %2657
        %2661 = vset.pattern.permute.xlu0 0
        %2662 = vperm.xlu0 %2661, %v2614
        %v2663 = vpop.permute.xlu0 %2662
        %2666 = vset.pattern.permute.xlu0 0
        %2667 = vperm.xlu0 %2666, %v2615
        %v2668 = vpop.permute.xlu0 %2667
        %2671 = vset.pattern.permute.xlu0 0
        %2672 = vperm.xlu0 %2671, %v2616
        %v2673 = vpop.permute.xlu0 %2672
        %2676 = vset.pattern.permute.xlu0 0
        %2677 = vperm.xlu0 %2676, %v2617
        %v2678 = vpop.permute.xlu0 %2677
        %2681 = vset.pattern.permute.xlu0 0
        %2682 = vperm.xlu0 %2681, %v2618
        %v2683 = vpop.permute.xlu0 %2682
        %2686 = vset.pattern.permute.xlu0 0
        %2687 = vperm.xlu0 %2686, %v2619
        %v2688 = vpop.permute.xlu0 %2687
        %2691 = vset.pattern.permute.xlu0 0
        %2692 = vperm.xlu0 %2691, %v2620
        %v2693 = vpop.permute.xlu0 %2692
        %2696 = vset.pattern.permute.xlu0 0
        %2697 = vperm.xlu0 %2696, %v2621
        %v2698 = vpop.permute.xlu0 %2697
        %2701 = vset.pattern.permute.xlu0 0
        %2702 = vperm.xlu0 %2701, %v2622
        %v2703 = vpop.permute.xlu0 %2702
        %2706 = vset.pattern.permute.xlu0 0
        %2707 = vperm.xlu0 %2706, %v2623
        %v2708 = vpop.permute.xlu0 %2707
        %2711 = vset.pattern.permute.xlu0 0
        %2712 = vperm.xlu0 %2711, %v2624
        %v2713 = vpop.permute.xlu0 %2712
        %2716 = vset.pattern.permute.xlu0 0
        %2717 = vperm.xlu0 %2716, %v2625
        %v2718 = vpop.permute.xlu0 %2717
        %2721 = vset.pattern.permute.xlu0 0
        %2722 = vperm.xlu0 %2721, %v2626
        %v2723 = vpop.permute.xlu0 %2722
        %2726 = vset.pattern.permute.xlu0 0
        %2727 = vperm.xlu0 %2726, %v2627
        %v2728 = vpop.permute.xlu0 %2727
        %2731 = vset.pattern.permute.xlu0 0
        %2732 = vperm.xlu0 %2731, %v2628
        %v2733 = vpop.permute.xlu0 %2732
        %2736 = vset.pattern.permute.xlu0 0
        %2737 = vperm.xlu0 %2736, %v2629
        %v2738 = vpop.permute.xlu0 %2737
        %2741 = vset.pattern.permute.xlu0 0
        %2742 = vperm.xlu0 %2741, %v2630
        %v2743 = vpop.permute.xlu0 %2742
        %2746 = vset.pattern.permute.xlu0 0
        %2747 = vperm.xlu0 %2746, %v2631
        %v2748 = vpop.permute.xlu0 %2747
        %2751 = vset.pattern.permute.xlu0 0
        %2752 = vperm.xlu0 %2751, %v2632
        %v2753 = vpop.permute.xlu0 %2752
        %2756 = vset.pattern.permute.xlu0 0
        %2757 = vperm.xlu0 %2756, %v2633
        %v2758 = vpop.permute.xlu0 %2757
        %2761 = vset.pattern.permute.xlu0 0
        %2762 = vperm.xlu0 %2761, %v2634
        %v2763 = vpop.permute.xlu0 %2762
        %2766 = vset.pattern.permute.xlu0 0
        %2767 = vperm.xlu0 %2766, %v2635
        %v2768 = vpop.permute.xlu0 %2767
        %2771 = vset.pattern.permute.xlu0 0
        %2772 = vperm.xlu0 %2771, %v2636
        %v2773 = vpop.permute.xlu0 %2772
        %2776 = vset.pattern.permute.xlu0 0
        %2777 = vperm.xlu0 %2776, %v2637
        %v2778 = vpop.permute.xlu0 %2777
        %2781 = vset.pattern.permute.xlu0 0
        %2782 = vperm.xlu0 %2781, %v2638
        %v2783 = vpop.permute.xlu0 %2782
        %2786 = vset.pattern.permute.xlu0 0
        %2787 = vperm.xlu0 %2786, %v2639
        %v2788 = vpop.permute.xlu0 %2787
        %2791 = vset.pattern.permute.xlu0 0
        %2792 = vperm.xlu0 %2791, %v2640
        %v2793 = vpop.permute.xlu0 %2792
        %2796 = vset.pattern.permute.xlu0 0
        %2797 = vperm.xlu0 %2796, %v2641
        %v2798 = vpop.permute.xlu0 %2797
        %2801 = vset.pattern.permute.xlu0 0
        %2802 = vperm.xlu0 %2801, %v2642
        %v2803 = vpop.permute.xlu0 %2802
        %v2806 = vlaneseq
        %v2807 = vshrl.u32 %v2806, 7
        %v2808 = vsub.s32 0, %v2807
        %v2809 = vrot.slane %v2644, %v2808
        %v2811 = vmul.f32 %v2648, %v2809
        %v2812 = vmul.f32 %v2653, %v2809
        %v2813 = vmul.f32 %v2658, %v2809
        %v2814 = vmul.f32 %v2663, %v2809
        %v2815 = vmul.f32 %v2668, %v2809
        %v2816 = vmul.f32 %v2673, %v2809
        %v2817 = vmul.f32 %v2678, %v2809
        %v2818 = vmul.f32 %v2683, %v2809
        %v2819 = vmul.f32 %v2688, %v2809
        %v2820 = vmul.f32 %v2693, %v2809
        %v2821 = vmul.f32 %v2698, %v2809
        %v2822 = vmul.f32 %v2703, %v2809
        %v2823 = vmul.f32 %v2708, %v2809
        %v2824 = vmul.f32 %v2713, %v2809
        %v2825 = vmul.f32 %v2718, %v2809
        %v2826 = vmul.f32 %v2723, %v2809
        %v2827 = vmul.f32 %v2728, %v2809
        %v2828 = vmul.f32 %v2733, %v2809
        %v2829 = vmul.f32 %v2738, %v2809
        %v2830 = vmul.f32 %v2743, %v2809
        %v2831 = vmul.f32 %v2748, %v2809
        %v2832 = vmul.f32 %v2753, %v2809
        %v2833 = vmul.f32 %v2758, %v2809
        %v2834 = vmul.f32 %v2763, %v2809
        %v2835 = vmul.f32 %v2768, %v2809
        %v2836 = vmul.f32 %v2773, %v2809
        %v2837 = vmul.f32 %v2778, %v2809
        %v2838 = vmul.f32 %v2783, %v2809
        %v2839 = vmul.f32 %v2788, %v2809
        %v2840 = vmul.f32 %v2793, %v2809
        %v2841 = vmul.f32 %v2798, %v2809
        %v2842 = vmul.f32 %v2803, %v2809
        %v2843 = vadd.f32 %v2579, %v2811
        %v2844 = vadd.f32 %v2580, %v2812
        %v2845 = vadd.f32 %v2581, %v2813
        %v2846 = vadd.f32 %v2582, %v2814
        %v2847 = vadd.f32 %v2583, %v2815
        %v2848 = vadd.f32 %v2584, %v2816
        %v2849 = vadd.f32 %v2585, %v2817
        %v2850 = vadd.f32 %v2586, %v2818
        %v2851 = vadd.f32 %v2587, %v2819
        %v2852 = vadd.f32 %v2588, %v2820
        %v2853 = vadd.f32 %v2589, %v2821
        %v2854 = vadd.f32 %v2590, %v2822
        %v2855 = vadd.f32 %v2591, %v2823
        %v2856 = vadd.f32 %v2592, %v2824
        %v2857 = vadd.f32 %v2593, %v2825
        %v2858 = vadd.f32 %v2594, %v2826
        %v2859 = vadd.f32 %v2595, %v2827
        %v2860 = vadd.f32 %v2596, %v2828
        %v2861 = vadd.f32 %v2597, %v2829
        %v2862 = vadd.f32 %v2598, %v2830
        %v2863 = vadd.f32 %v2599, %v2831
        %v2864 = vadd.f32 %v2600, %v2832
        %v2865 = vadd.f32 %v2601, %v2833
        %v2866 = vadd.f32 %v2602, %v2834
        %v2867 = vadd.f32 %v2603, %v2835
        %v2868 = vadd.f32 %v2604, %v2836
        %v2869 = vadd.f32 %v2605, %v2837
        %v2870 = vadd.f32 %v2606, %v2838
        %v2871 = vadd.f32 %v2607, %v2839
        %v2872 = vadd.f32 %v2608, %v2840
        %v2873 = vadd.f32 %v2609, %v2841
        %v2874 = vadd.f32 %v2610, %v2842
        %v2875 = vld [vmem:[%s496 + $0x31] sm:$0xff]
        %v2876 = vld [vmem:[%s496 + $0x39] sm:$0xff]
        %v2877 = vld [vmem:[%s496 + $0x41] sm:$0xff]
        %v2878 = vld [vmem:[%s496 + $0x49] sm:$0xff]
        %v2879 = vld [vmem:[%s496 + $0x51] sm:$0xff]
        %v2880 = vld [vmem:[%s496 + $0x59] sm:$0xff]
        %v2881 = vld [vmem:[%s496 + $0x61] sm:$0xff]
        %v2882 = vld [vmem:[%s496 + $0x69] sm:$0xff]
        %v2883 = vld [vmem:[%s496 + $0x71] sm:$0xff]
        %v2884 = vld [vmem:[%s496 + $0x79] sm:$0xff]
        %v2885 = vld [vmem:[%s496 + $0x81] sm:$0xff]
        %v2886 = vld [vmem:[%s496 + $0x89] sm:$0xff]
        %v2887 = vld [vmem:[%s496 + $0x91] sm:$0xff]
        %v2888 = vld [vmem:[%s496 + $0x99] sm:$0xff]
        %v2889 = vld [vmem:[%s496 + $0xa1] sm:$0xff]
        %v2890 = vld [vmem:[%s496 + $0xa9] sm:$0xff]
        %v2891 = vld [vmem:[%s496 + $0xb1] sm:$0xff]
        %v2892 = vld [vmem:[%s496 + $0xb9] sm:$0xff]
        %v2893 = vld [vmem:[%s496 + $0xc1] sm:$0xff]
        %v2894 = vld [vmem:[%s496 + $0xc9] sm:$0xff]
        %v2895 = vld [vmem:[%s496 + $0xd1] sm:$0xff]
        %v2896 = vld [vmem:[%s496 + $0xd9] sm:$0xff]
        %v2897 = vld [vmem:[%s496 + $0xe1] sm:$0xff]
        %v2898 = vld [vmem:[%s496 + $0xe9] sm:$0xff]
        %v2899 = vld [vmem:[%s496 + $0xf1] sm:$0xff]
        %v2900 = vld [vmem:[%s496 + $0xf9] sm:$0xff]
        %v2901 = vld [vmem:[%s496 + $0x101] sm:$0xff]
        %v2902 = vld [vmem:[%s496 + $0x109] sm:$0xff]
        %v2903 = vld [vmem:[%s496 + $0x111] sm:$0xff]
        %v2904 = vld [vmem:[%s496 + $0x119] sm:$0xff]
        %v2905 = vld [vmem:[%s496 + $0x121] sm:$0xff]
        %v2906 = vld [vmem:[%s496 + $0x129] sm:$0xff]
        %v2907 = vsel %vm1163, 0.0, %v2875
        %v2908 = vsel %vm1164, 0.0, %v2876
        %v2909 = vsel %vm1165, 0.0, %v2877
        %v2910 = vsel %vm1166, 0.0, %v2878
        %v2911 = vsel %vm1167, 0.0, %v2879
        %v2912 = vsel %vm1168, 0.0, %v2880
        %v2913 = vsel %vm1169, 0.0, %v2881
        %v2914 = vsel %vm1170, 0.0, %v2882
        %v2915 = vsel %vm1171, 0.0, %v2883
        %v2916 = vsel %vm1172, 0.0, %v2884
        %v2917 = vsel %vm1173, 0.0, %v2885
        %v2918 = vsel %vm1174, 0.0, %v2886
        %v2919 = vsel %vm1175, 0.0, %v2887
        %v2920 = vsel %vm1176, 0.0, %v2888
        %v2921 = vsel %vm1177, 0.0, %v2889
        %v2922 = vsel %vm1178, 0.0, %v2890
        %v2923 = vsel %vm1179, 0.0, %v2891
        %v2924 = vsel %vm1180, 0.0, %v2892
        %v2925 = vsel %vm1181, 0.0, %v2893
        %v2926 = vsel %vm1182, 0.0, %v2894
        %v2927 = vsel %vm1183, 0.0, %v2895
        %v2928 = vsel %vm1184, 0.0, %v2896
        %v2929 = vsel %vm1185, 0.0, %v2897
        %v2930 = vsel %vm1186, 0.0, %v2898
        %v2931 = vsel %vm1187, 0.0, %v2899
        %v2932 = vsel %vm1188, 0.0, %v2900
        %v2933 = vsel %vm1189, 0.0, %v2901
        %v2934 = vsel %vm1190, 0.0, %v2902
        %v2935 = vsel %vm1191, 0.0, %v2903
        %v2936 = vsel %vm1192, 0.0, %v2904
        %v2937 = vsel %vm1193, 0.0, %v2905
        %v2938 = vsel %vm1194, 0.0, %v2906
        %s2939 = scalar_lea.vmem %s1, 8
        %v2940 = vld [vmem:[%s2939] sm:$0x1]
        %2942 = vset.pattern.permute.xlu0 0
        %2943 = vperm.xlu0 %2942, %v2907
        %v2944 = vpop.permute.xlu0 %2943
        %2947 = vset.pattern.permute.xlu0 0
        %2948 = vperm.xlu0 %2947, %v2908
        %v2949 = vpop.permute.xlu0 %2948
        %2952 = vset.pattern.permute.xlu0 0
        %2953 = vperm.xlu0 %2952, %v2909
        %v2954 = vpop.permute.xlu0 %2953
        %2957 = vset.pattern.permute.xlu0 0
        %2958 = vperm.xlu0 %2957, %v2910
        %v2959 = vpop.permute.xlu0 %2958
        %2962 = vset.pattern.permute.xlu0 0
        %2963 = vperm.xlu0 %2962, %v2911
        %v2964 = vpop.permute.xlu0 %2963
        %2967 = vset.pattern.permute.xlu0 0
        %2968 = vperm.xlu0 %2967, %v2912
        %v2969 = vpop.permute.xlu0 %2968
        %2972 = vset.pattern.permute.xlu0 0
        %2973 = vperm.xlu0 %2972, %v2913
        %v2974 = vpop.permute.xlu0 %2973
        %2977 = vset.pattern.permute.xlu0 0
        %2978 = vperm.xlu0 %2977, %v2914
        %v2979 = vpop.permute.xlu0 %2978
        %2982 = vset.pattern.permute.xlu0 0
        %2983 = vperm.xlu0 %2982, %v2915
        %v2984 = vpop.permute.xlu0 %2983
        %2987 = vset.pattern.permute.xlu0 0
        %2988 = vperm.xlu0 %2987, %v2916
        %v2989 = vpop.permute.xlu0 %2988
        %2992 = vset.pattern.permute.xlu0 0
        %2993 = vperm.xlu0 %2992, %v2917
        %v2994 = vpop.permute.xlu0 %2993
        %2997 = vset.pattern.permute.xlu0 0
        %2998 = vperm.xlu0 %2997, %v2918
        %v2999 = vpop.permute.xlu0 %2998
        %3002 = vset.pattern.permute.xlu0 0
        %3003 = vperm.xlu0 %3002, %v2919
        %v3004 = vpop.permute.xlu0 %3003
        %3007 = vset.pattern.permute.xlu0 0
        %3008 = vperm.xlu0 %3007, %v2920
        %v3009 = vpop.permute.xlu0 %3008
        %3012 = vset.pattern.permute.xlu0 0
        %3013 = vperm.xlu0 %3012, %v2921
        %v3014 = vpop.permute.xlu0 %3013
        %3017 = vset.pattern.permute.xlu0 0
        %3018 = vperm.xlu0 %3017, %v2922
        %v3019 = vpop.permute.xlu0 %3018
        %3022 = vset.pattern.permute.xlu0 0
        %3023 = vperm.xlu0 %3022, %v2923
        %v3024 = vpop.permute.xlu0 %3023
        %3027 = vset.pattern.permute.xlu0 0
        %3028 = vperm.xlu0 %3027, %v2924
        %v3029 = vpop.permute.xlu0 %3028
        %3032 = vset.pattern.permute.xlu0 0
        %3033 = vperm.xlu0 %3032, %v2925
        %v3034 = vpop.permute.xlu0 %3033
        %3037 = vset.pattern.permute.xlu0 0
        %3038 = vperm.xlu0 %3037, %v2926
        %v3039 = vpop.permute.xlu0 %3038
        %3042 = vset.pattern.permute.xlu0 0
        %3043 = vperm.xlu0 %3042, %v2927
        %v3044 = vpop.permute.xlu0 %3043
        %3047 = vset.pattern.permute.xlu0 0
        %3048 = vperm.xlu0 %3047, %v2928
        %v3049 = vpop.permute.xlu0 %3048
        %3052 = vset.pattern.permute.xlu0 0
        %3053 = vperm.xlu0 %3052, %v2929
        %v3054 = vpop.permute.xlu0 %3053
        %3057 = vset.pattern.permute.xlu0 0
        %3058 = vperm.xlu0 %3057, %v2930
        %v3059 = vpop.permute.xlu0 %3058
        %3062 = vset.pattern.permute.xlu0 0
        %3063 = vperm.xlu0 %3062, %v2931
        %v3064 = vpop.permute.xlu0 %3063
        %3067 = vset.pattern.permute.xlu0 0
        %3068 = vperm.xlu0 %3067, %v2932
        %v3069 = vpop.permute.xlu0 %3068
        %3072 = vset.pattern.permute.xlu0 0
        %3073 = vperm.xlu0 %3072, %v2933
        %v3074 = vpop.permute.xlu0 %3073
        %3077 = vset.pattern.permute.xlu0 0
        %3078 = vperm.xlu0 %3077, %v2934
        %v3079 = vpop.permute.xlu0 %3078
        %3082 = vset.pattern.permute.xlu0 0
        %3083 = vperm.xlu0 %3082, %v2935
        %v3084 = vpop.permute.xlu0 %3083
        %3087 = vset.pattern.permute.xlu0 0
        %3088 = vperm.xlu0 %3087, %v2936
        %v3089 = vpop.permute.xlu0 %3088
        %3092 = vset.pattern.permute.xlu0 0
        %3093 = vperm.xlu0 %3092, %v2937
        %v3094 = vpop.permute.xlu0 %3093
        %3097 = vset.pattern.permute.xlu0 0
        %3098 = vperm.xlu0 %3097, %v2938
        %v3099 = vpop.permute.xlu0 %3098
        %v3102 = vlaneseq
        %v3103 = vshrl.u32 %v3102, 7
        %v3104 = vsub.s32 0, %v3103
        %v3105 = vrot.slane %v2940, %v3104
        %v3107 = vmul.f32 %v2944, %v3105
        %v3108 = vmul.f32 %v2949, %v3105
        %v3109 = vmul.f32 %v2954, %v3105
        %v3110 = vmul.f32 %v2959, %v3105
        %v3111 = vmul.f32 %v2964, %v3105
        %v3112 = vmul.f32 %v2969, %v3105
        %v3113 = vmul.f32 %v2974, %v3105
        %v3114 = vmul.f32 %v2979, %v3105
        %v3115 = vmul.f32 %v2984, %v3105
        %v3116 = vmul.f32 %v2989, %v3105
        %v3117 = vmul.f32 %v2994, %v3105
        %v3118 = vmul.f32 %v2999, %v3105
        %v3119 = vmul.f32 %v3004, %v3105
        %v3120 = vmul.f32 %v3009, %v3105
        %v3121 = vmul.f32 %v3014, %v3105
        %v3122 = vmul.f32 %v3019, %v3105
        %v3123 = vmul.f32 %v3024, %v3105
        %v3124 = vmul.f32 %v3029, %v3105
        %v3125 = vmul.f32 %v3034, %v3105
        %v3126 = vmul.f32 %v3039, %v3105
        %v3127 = vmul.f32 %v3044, %v3105
        %v3128 = vmul.f32 %v3049, %v3105
        %v3129 = vmul.f32 %v3054, %v3105
        %v3130 = vmul.f32 %v3059, %v3105
        %v3131 = vmul.f32 %v3064, %v3105
        %v3132 = vmul.f32 %v3069, %v3105
        %v3133 = vmul.f32 %v3074, %v3105
        %v3134 = vmul.f32 %v3079, %v3105
        %v3135 = vmul.f32 %v3084, %v3105
        %v3136 = vmul.f32 %v3089, %v3105
        %v3137 = vmul.f32 %v3094, %v3105
        %v3138 = vmul.f32 %v3099, %v3105
        %v3139 = vadd.f32 %v2843, %v3107
        %v3140 = vadd.f32 %v2844, %v3108
        %v3141 = vadd.f32 %v2845, %v3109
        %v3142 = vadd.f32 %v2846, %v3110
        %v3143 = vadd.f32 %v2847, %v3111
        %v3144 = vadd.f32 %v2848, %v3112
        %v3145 = vadd.f32 %v2849, %v3113
        %v3146 = vadd.f32 %v2850, %v3114
        %v3147 = vadd.f32 %v2851, %v3115
        %v3148 = vadd.f32 %v2852, %v3116
        %v3149 = vadd.f32 %v2853, %v3117
        %v3150 = vadd.f32 %v2854, %v3118
        %v3151 = vadd.f32 %v2855, %v3119
        %v3152 = vadd.f32 %v2856, %v3120
        %v3153 = vadd.f32 %v2857, %v3121
        %v3154 = vadd.f32 %v2858, %v3122
        %v3155 = vadd.f32 %v2859, %v3123
        %v3156 = vadd.f32 %v2860, %v3124
        %v3157 = vadd.f32 %v2861, %v3125
        %v3158 = vadd.f32 %v2862, %v3126
        %v3159 = vadd.f32 %v2863, %v3127
        %v3160 = vadd.f32 %v2864, %v3128
        %v3161 = vadd.f32 %v2865, %v3129
        %v3162 = vadd.f32 %v2866, %v3130
        %v3163 = vadd.f32 %v2867, %v3131
        %v3164 = vadd.f32 %v2868, %v3132
        %v3165 = vadd.f32 %v2869, %v3133
        %v3166 = vadd.f32 %v2870, %v3134
        %v3167 = vadd.f32 %v2871, %v3135
        %v3168 = vadd.f32 %v2872, %v3136
        %v3169 = vadd.f32 %v2873, %v3137
        %v3170 = vadd.f32 %v2874, %v3138
        %v3171 = vld [vmem:[%s2] sm:$0x1]
        %v3173 = vlaneseq
        %v3174 = vshrl.u32 %v3173, 7
        %v3175 = vsub.s32 0, %v3174
        %v3176 = vrot.slane %v3171, %v3175
        %v3178 = vadd.f32 %v3139, %v3176
        %v3179 = vadd.f32 %v3140, %v3176
        %v3180 = vadd.f32 %v3141, %v3176
        %v3181 = vadd.f32 %v3142, %v3176
        %v3182 = vadd.f32 %v3143, %v3176
        %v3183 = vadd.f32 %v3144, %v3176
        %v3184 = vadd.f32 %v3145, %v3176
        %v3185 = vadd.f32 %v3146, %v3176
        %v3186 = vadd.f32 %v3147, %v3176
        %v3187 = vadd.f32 %v3148, %v3176
        %v3188 = vadd.f32 %v3149, %v3176
        %v3189 = vadd.f32 %v3150, %v3176
        %v3190 = vadd.f32 %v3151, %v3176
        %v3191 = vadd.f32 %v3152, %v3176
        %v3192 = vadd.f32 %v3153, %v3176
        %v3193 = vadd.f32 %v3154, %v3176
        %v3194 = vadd.f32 %v3155, %v3176
        %v3195 = vadd.f32 %v3156, %v3176
        %v3196 = vadd.f32 %v3157, %v3176
        %v3197 = vadd.f32 %v3158, %v3176
        %v3198 = vadd.f32 %v3159, %v3176
        %v3199 = vadd.f32 %v3160, %v3176
        %v3200 = vadd.f32 %v3161, %v3176
        %v3201 = vadd.f32 %v3162, %v3176
        %v3202 = vadd.f32 %v3163, %v3176
        %v3203 = vadd.f32 %v3164, %v3176
        %v3204 = vadd.f32 %v3165, %v3176
        %v3205 = vadd.f32 %v3166, %v3176
        %v3206 = vadd.f32 %v3167, %v3176
        %v3207 = vadd.f32 %v3168, %v3176
        %v3208 = vadd.f32 %v3169, %v3176
        %v3209 = vadd.f32 %v3170, %v3176
        %v3210 = vlaneseq
        %v3211 = vand.u32 %v3210, 127
        %v3212 = vadd.s32 %v3211, 128
        %v3213 = vshra.s32 %v508, 3
        %v3214 = vshra.s32 %v509, 3
        %v3215 = vshra.s32 %v510, 3
        %v3216 = vshra.s32 %v511, 3
        %v3217 = vshra.s32 %v512, 3
        %v3218 = vshra.s32 %v513, 3
        %v3219 = vshra.s32 %v514, 3
        %v3220 = vshra.s32 %v515, 3
        %v3221 = vmul.u32 %v3213, 32
        %v3222 = vmul.u32 %v3214, 32
        %v3223 = vmul.u32 %v3215, 32
        %v3224 = vmul.u32 %v3216, 32
        %v3225 = vmul.u32 %v3217, 32
        %v3226 = vmul.u32 %v3218, 32
        %v3227 = vmul.u32 %v3219, 32
        %v3228 = vmul.u32 %v3220, 32
        %v3229 = vand.u32 %v508, 7
        %v3230 = vand.u32 %v509, 7
        %v3231 = vand.u32 %v510, 7
        %v3232 = vand.u32 %v511, 7
        %v3233 = vand.u32 %v512, 7
        %v3234 = vand.u32 %v513, 7
        %v3235 = vand.u32 %v514, 7
        %v3236 = vand.u32 %v515, 7
        %v3237 = vmul.u32 %v3229, 2
        %v3238 = vmul.u32 %v3230, 2
        %v3239 = vmul.u32 %v3231, 2
        %v3240 = vmul.u32 %v3232, 2
        %v3241 = vmul.u32 %v3233, 2
        %v3242 = vmul.u32 %v3234, 2
        %v3243 = vmul.u32 %v3235, 2
        %v3244 = vmul.u32 %v3236, 2
        %v3245 = vadd.s32 %v3221, %v3237
        %v3246 = vadd.s32 %v3222, %v3238
        %v3247 = vadd.s32 %v3223, %v3239
        %v3248 = vadd.s32 %v3224, %v3240
        %v3249 = vadd.s32 %v3225, %v3241
        %v3250 = vadd.s32 %v3226, %v3242
        %v3251 = vadd.s32 %v3227, %v3243
        %v3252 = vadd.s32 %v3228, %v3244
        %vm3253 = vcmp.eq.s32.totalorder %v3211, %v3245
        %vm3254 = vcmp.eq.s32.totalorder %v3212, %v3245
        %vm3255 = vcmp.eq.s32.totalorder %v3211, %v3246
        %vm3256 = vcmp.eq.s32.totalorder %v3212, %v3246
        %vm3257 = vcmp.eq.s32.totalorder %v3211, %v3247
        %vm3258 = vcmp.eq.s32.totalorder %v3212, %v3247
        %vm3259 = vcmp.eq.s32.totalorder %v3211, %v3248
        %vm3260 = vcmp.eq.s32.totalorder %v3212, %v3248
        %vm3261 = vcmp.eq.s32.totalorder %v3211, %v3249
        %vm3262 = vcmp.eq.s32.totalorder %v3212, %v3249
        %vm3263 = vcmp.eq.s32.totalorder %v3211, %v3250
        %vm3264 = vcmp.eq.s32.totalorder %v3212, %v3250
        %vm3265 = vcmp.eq.s32.totalorder %v3211, %v3251
        %vm3266 = vcmp.eq.s32.totalorder %v3212, %v3251
        %vm3267 = vcmp.eq.s32.totalorder %v3211, %v3252
        %vm3268 = vcmp.eq.s32.totalorder %v3212, %v3252
        %v3269 = vsel %vm3253, 1.0, 0.0
        %v3270 = vsel %vm3254, 1.0, 0.0
        %v3271 = vsel %vm3255, 1.0, 0.0
        %v3272 = vsel %vm3256, 1.0, 0.0
        %v3273 = vsel %vm3257, 1.0, 0.0
        %v3274 = vsel %vm3258, 1.0, 0.0
        %v3275 = vsel %vm3259, 1.0, 0.0
        %v3276 = vsel %vm3260, 1.0, 0.0
        %v3277 = vsel %vm3261, 1.0, 0.0
        %v3278 = vsel %vm3262, 1.0, 0.0
        %v3279 = vsel %vm3263, 1.0, 0.0
        %v3280 = vsel %vm3264, 1.0, 0.0
        %v3281 = vsel %vm3265, 1.0, 0.0
        %v3282 = vsel %vm3266, 1.0, 0.0
        %v3283 = vsel %vm3267, 1.0, 0.0
        %v3284 = vsel %vm3268, 1.0, 0.0
        %3285 = vmatprep.subr.mxu0 0.0
        %3286 = vmatpush1.msra.mxu0 %v3193
        %3287 = vmatprep.subr.mxu0 0.0
        %3288 = vmatpush1.msra.mxu0 %v3192
        %3289 = vmatprep.subr.mxu0 0.0
        %3290 = vmatpush1.msra.mxu0 %v3191
        %3291 = vmatprep.subr.mxu0 0.0
        %3292 = vmatpush1.msra.mxu0 %v3190
        %3293 = vmatprep.subr.mxu0 0.0
        %3294 = vmatpush1.msra.mxu0 %v3189
        %3295 = vmatprep.subr.mxu0 0.0
        %3296 = vmatpush1.msra.mxu0 %v3188
        %3297 = vmatprep.subr.mxu0 0.0
        %3298 = vmatpush1.msra.mxu0 %v3187
        %3299 = vmatprep.subr.mxu0 0.0
        %3300 = vmatpush1.msra.mxu0 %v3186
        %3301 = vmatprep.subr.mxu0 0.0
        %3302 = vmatpush1.msra.mxu0 %v3185
        %3303 = vmatprep.subr.mxu0 0.0
        %3304 = vmatpush1.msra.mxu0 %v3184
        %3305 = vmatprep.subr.mxu0 0.0
        %3306 = vmatpush1.msra.mxu0 %v3183
        %3307 = vmatprep.subr.mxu0 0.0
        %3308 = vmatpush1.msra.mxu0 %v3182
        %3309 = vmatprep.subr.mxu0 0.0
        %3310 = vmatpush1.msra.mxu0 %v3181
        %3311 = vmatprep.subr.mxu0 0.0
        %3312 = vmatpush1.msra.mxu0 %v3180
        %3313 = vmatprep.subr.mxu0 0.0
        %3314 = vmatpush1.msra.mxu0 %v3179
        %3315 = vmatprep.subr.mxu0 0.0
        %3316 = vmatpush1.msra.mxu0 %v3178
        %3317 = vmatprep.subr.mxu0 0.0
        %3318 = vmatpush2.msra.mxu0 %v3209
        %3319 = vmatprep.subr.mxu0 0.0
        %3320 = vmatpush2.msra.mxu0 %v3208
        %3321 = vmatprep.subr.mxu0 0.0
        %3322 = vmatpush2.msra.mxu0 %v3207
        %3323 = vmatprep.subr.mxu0 0.0
        %3324 = vmatpush2.msra.mxu0 %v3206
        %3325 = vmatprep.subr.mxu0 0.0
        %3326 = vmatpush2.msra.mxu0 %v3205
        %3327 = vmatprep.subr.mxu0 0.0
        %3328 = vmatpush2.msra.mxu0 %v3204
        %3329 = vmatprep.subr.mxu0 0.0
        %3330 = vmatpush2.msra.mxu0 %v3203
        %3331 = vmatprep.subr.mxu0 0.0
        %3332 = vmatpush2.msra.mxu0 %v3202
        %3333 = vmatprep.subr.mxu0 0.0
        %3334 = vmatpush2.msra.mxu0 %v3201
        %3335 = vmatprep.subr.mxu0 0.0
        %3336 = vmatpush2.msra.mxu0 %v3200
        %3337 = vmatprep.subr.mxu0 0.0
        %3338 = vmatpush2.msra.mxu0 %v3199
        %3339 = vmatprep.subr.mxu0 0.0
        %3340 = vmatpush2.msra.mxu0 %v3198
        %3341 = vmatprep.subr.mxu0 0.0
        %3342 = vmatpush2.msra.mxu0 %v3197
        %3343 = vmatprep.subr.mxu0 0.0
        %3344 = vmatpush2.msra.mxu0 %v3196
        %3345 = vmatprep.subr.mxu0 0.0
        %3346 = vmatpush2.msra.mxu0 %v3195
        %3347 = vmatprep.subr.mxu0 0.0
        %3348 = vmatpush2.msra.mxu0 %v3194
        %3349 = vmatprep.mubr.f32.mxu0 %v3270
        %3350 = vmatmul.mubr.f32.gmra.mxu0 %v3269
        %v3351 = vpop.f32.mrf.mxu0
        %v3352 = vadd.f32 0.0, %v3351
        %v3353 = vpop.f32.mrf.mxu0
        %3354 = vmatprep.mubr.f32.mxu0 %v3272
        %3355 = vmatmul.mubr.f32.gmra.mxu0 %v3271
        %v3356 = vpop.f32.mrf.mxu0
        %v3357 = vadd.f32 0.0, %v3356
        %v3358 = vpop.f32.mrf.mxu0
        %3359 = vmatprep.mubr.f32.mxu0 %v3274
        %3360 = vmatmul.mubr.f32.gmra.mxu0 %v3273
        %v3361 = vpop.f32.mrf.mxu0
        %v3362 = vadd.f32 0.0, %v3361
        %v3363 = vpop.f32.mrf.mxu0
        %3364 = vmatprep.mubr.f32.mxu0 %v3276
        %3365 = vmatmul.mubr.f32.gmra.mxu0 %v3275
        %v3366 = vpop.f32.mrf.mxu0
        %v3367 = vadd.f32 0.0, %v3366
        %v3368 = vpop.f32.mrf.mxu0
        %3369 = vmatprep.mubr.f32.mxu0 %v3278
        %3370 = vmatmul.mubr.f32.gmra.mxu0 %v3277
        %v3371 = vpop.f32.mrf.mxu0
        %v3372 = vadd.f32 0.0, %v3371
        %v3373 = vpop.f32.mrf.mxu0
        %3374 = vmatprep.mubr.f32.mxu0 %v3280
        %3375 = vmatmul.mubr.f32.gmra.mxu0 %v3279
        %v3376 = vpop.f32.mrf.mxu0
        %v3377 = vadd.f32 0.0, %v3376
        %v3378 = vpop.f32.mrf.mxu0
        %3379 = vmatprep.mubr.f32.mxu0 %v3282
        %3380 = vmatmul.mubr.f32.gmra.mxu0 %v3281
        %v3381 = vpop.f32.mrf.mxu0
        %v3382 = vadd.f32 0.0, %v3381
        %v3383 = vpop.f32.mrf.mxu0
        %3384 = vmatprep.mubr.f32.mxu0 %v3284
        %3385 = vmatmul.mubr.f32.gmra.mxu0 %v3283
        %v3386 = vpop.f32.mrf.mxu0
        %v3387 = vadd.f32 0.0, %v3386
        %v3388 = vpop.f32.mrf.mxu0
        %3389 = vdwg.mxu0
        %v3390 = vadd.s32 %v3245, 1
        %v3391 = vadd.s32 %v3246, 1
        %v3392 = vadd.s32 %v3247, 1
        %v3393 = vadd.s32 %v3248, 1
        %v3394 = vadd.s32 %v3249, 1
        %v3395 = vadd.s32 %v3250, 1
        %v3396 = vadd.s32 %v3251, 1
        %v3397 = vadd.s32 %v3252, 1
        %vm3398 = vcmp.eq.s32.totalorder %v3211, %v3390
        %vm3399 = vcmp.eq.s32.totalorder %v3212, %v3390
        %vm3400 = vcmp.eq.s32.totalorder %v3211, %v3391
        %vm3401 = vcmp.eq.s32.totalorder %v3212, %v3391
        %vm3402 = vcmp.eq.s32.totalorder %v3211, %v3392
        %vm3403 = vcmp.eq.s32.totalorder %v3212, %v3392
        %vm3404 = vcmp.eq.s32.totalorder %v3211, %v3393
        %vm3405 = vcmp.eq.s32.totalorder %v3212, %v3393
        %vm3406 = vcmp.eq.s32.totalorder %v3211, %v3394
        %vm3407 = vcmp.eq.s32.totalorder %v3212, %v3394
        %vm3408 = vcmp.eq.s32.totalorder %v3211, %v3395
        %vm3409 = vcmp.eq.s32.totalorder %v3212, %v3395
        %vm3410 = vcmp.eq.s32.totalorder %v3211, %v3396
        %vm3411 = vcmp.eq.s32.totalorder %v3212, %v3396
        %vm3412 = vcmp.eq.s32.totalorder %v3211, %v3397
        %vm3413 = vcmp.eq.s32.totalorder %v3212, %v3397
        %v3414 = vsel %vm3398, 1.0, 0.0
        %v3415 = vsel %vm3399, 1.0, 0.0
        %v3416 = vsel %vm3400, 1.0, 0.0
        %v3417 = vsel %vm3401, 1.0, 0.0
        %v3418 = vsel %vm3402, 1.0, 0.0
        %v3419 = vsel %vm3403, 1.0, 0.0
        %v3420 = vsel %vm3404, 1.0, 0.0
        %v3421 = vsel %vm3405, 1.0, 0.0
        %v3422 = vsel %vm3406, 1.0, 0.0
        %v3423 = vsel %vm3407, 1.0, 0.0
        %v3424 = vsel %vm3408, 1.0, 0.0
        %v3425 = vsel %vm3409, 1.0, 0.0
        %v3426 = vsel %vm3410, 1.0, 0.0
        %v3427 = vsel %vm3411, 1.0, 0.0
        %v3428 = vsel %vm3412, 1.0, 0.0
        %v3429 = vsel %vm3413, 1.0, 0.0
        %3430 = vmatprep.subr.mxu0 0.0
        %3431 = vmatpush1.msra.mxu0 %v3193
        %3432 = vmatprep.subr.mxu0 0.0
        %3433 = vmatpush1.msra.mxu0 %v3192
        %3434 = vmatprep.subr.mxu0 0.0
        %3435 = vmatpush1.msra.mxu0 %v3191
        %3436 = vmatprep.subr.mxu0 0.0
        %3437 = vmatpush1.msra.mxu0 %v3190
        %3438 = vmatprep.subr.mxu0 0.0
        %3439 = vmatpush1.msra.mxu0 %v3189
        %3440 = vmatprep.subr.mxu0 0.0
        %3441 = vmatpush1.msra.mxu0 %v3188
        %3442 = vmatprep.subr.mxu0 0.0
        %3443 = vmatpush1.msra.mxu0 %v3187
        %3444 = vmatprep.subr.mxu0 0.0
        %3445 = vmatpush1.msra.mxu0 %v3186
        %3446 = vmatprep.subr.mxu0 0.0
        %3447 = vmatpush1.msra.mxu0 %v3185
        %3448 = vmatprep.subr.mxu0 0.0
        %3449 = vmatpush1.msra.mxu0 %v3184
        %3450 = vmatprep.subr.mxu0 0.0
        %3451 = vmatpush1.msra.mxu0 %v3183
        %3452 = vmatprep.subr.mxu0 0.0
        %3453 = vmatpush1.msra.mxu0 %v3182
        %3454 = vmatprep.subr.mxu0 0.0
        %3455 = vmatpush1.msra.mxu0 %v3181
        %3456 = vmatprep.subr.mxu0 0.0
        %3457 = vmatpush1.msra.mxu0 %v3180
        %3458 = vmatprep.subr.mxu0 0.0
        %3459 = vmatpush1.msra.mxu0 %v3179
        %3460 = vmatprep.subr.mxu0 0.0
        %3461 = vmatpush1.msra.mxu0 %v3178
        %3462 = vmatprep.subr.mxu0 0.0
        %3463 = vmatpush2.msra.mxu0 %v3209
        %3464 = vmatprep.subr.mxu0 0.0
        %3465 = vmatpush2.msra.mxu0 %v3208
        %3466 = vmatprep.subr.mxu0 0.0
        %3467 = vmatpush2.msra.mxu0 %v3207
        %3468 = vmatprep.subr.mxu0 0.0
        %3469 = vmatpush2.msra.mxu0 %v3206
        %3470 = vmatprep.subr.mxu0 0.0
        %3471 = vmatpush2.msra.mxu0 %v3205
        %3472 = vmatprep.subr.mxu0 0.0
        %3473 = vmatpush2.msra.mxu0 %v3204
        %3474 = vmatprep.subr.mxu0 0.0
        %3475 = vmatpush2.msra.mxu0 %v3203
        %3476 = vmatprep.subr.mxu0 0.0
        %3477 = vmatpush2.msra.mxu0 %v3202
        %3478 = vmatprep.subr.mxu0 0.0
        %3479 = vmatpush2.msra.mxu0 %v3201
        %3480 = vmatprep.subr.mxu0 0.0
        %3481 = vmatpush2.msra.mxu0 %v3200
        %3482 = vmatprep.subr.mxu0 0.0
        %3483 = vmatpush2.msra.mxu0 %v3199
        %3484 = vmatprep.subr.mxu0 0.0
        %3485 = vmatpush2.msra.mxu0 %v3198
        %3486 = vmatprep.subr.mxu0 0.0
        %3487 = vmatpush2.msra.mxu0 %v3197
        %3488 = vmatprep.subr.mxu0 0.0
        %3489 = vmatpush2.msra.mxu0 %v3196
        %3490 = vmatprep.subr.mxu0 0.0
        %3491 = vmatpush2.msra.mxu0 %v3195
        %3492 = vmatprep.subr.mxu0 0.0
        %3493 = vmatpush2.msra.mxu0 %v3194
        %3494 = vmatprep.mubr.f32.mxu0 %v3415
        %3495 = vmatmul.mubr.f32.gmra.mxu0 %v3414
        %v3496 = vpop.f32.mrf.mxu0
        %v3497 = vadd.f32 0.0, %v3496
        %v3498 = vpop.f32.mrf.mxu0
        %3499 = vmatprep.mubr.f32.mxu0 %v3417
        %3500 = vmatmul.mubr.f32.gmra.mxu0 %v3416
        %v3501 = vpop.f32.mrf.mxu0
        %v3502 = vadd.f32 0.0, %v3501
        %v3503 = vpop.f32.mrf.mxu0
        %3504 = vmatprep.mubr.f32.mxu0 %v3419
        %3505 = vmatmul.mubr.f32.gmra.mxu0 %v3418
        %v3506 = vpop.f32.mrf.mxu0
        %v3507 = vadd.f32 0.0, %v3506
        %v3508 = vpop.f32.mrf.mxu0
        %3509 = vmatprep.mubr.f32.mxu0 %v3421
        %3510 = vmatmul.mubr.f32.gmra.mxu0 %v3420
        %v3511 = vpop.f32.mrf.mxu0
        %v3512 = vadd.f32 0.0, %v3511
        %v3513 = vpop.f32.mrf.mxu0
        %3514 = vmatprep.mubr.f32.mxu0 %v3423
        %3515 = vmatmul.mubr.f32.gmra.mxu0 %v3422
        %v3516 = vpop.f32.mrf.mxu0
        %v3517 = vadd.f32 0.0, %v3516
        %v3518 = vpop.f32.mrf.mxu0
        %3519 = vmatprep.mubr.f32.mxu0 %v3425
        %3520 = vmatmul.mubr.f32.gmra.mxu0 %v3424
        %v3521 = vpop.f32.mrf.mxu0
        %v3522 = vadd.f32 0.0, %v3521
        %v3523 = vpop.f32.mrf.mxu0
        %3524 = vmatprep.mubr.f32.mxu0 %v3427
        %3525 = vmatmul.mubr.f32.gmra.mxu0 %v3426
        %v3526 = vpop.f32.mrf.mxu0
        %v3527 = vadd.f32 0.0, %v3526
        %v3528 = vpop.f32.mrf.mxu0
        %3529 = vmatprep.mubr.f32.mxu0 %v3429
        %3530 = vmatmul.mubr.f32.gmra.mxu0 %v3428
        %v3531 = vpop.f32.mrf.mxu0
        %v3532 = vadd.f32 0.0, %v3531
        %v3533 = vpop.f32.mrf.mxu0
        %3534 = vdwg.mxu0
        %v3535 = vmax.f32 %v3352, %v3497
        %v3536 = vmax.f32 %v3357, %v3502
        %v3537 = vmax.f32 %v3362, %v3507
        %v3538 = vmax.f32 %v3367, %v3512
        %v3539 = vmax.f32 %v3372, %v3517
        %v3540 = vmax.f32 %v3377, %v3522
        %v3541 = vmax.f32 %v3382, %v3527
        %v3542 = vmax.f32 %v3387, %v3532
        %v3543 = vadd.s32 %v3245, 16
        %v3544 = vadd.s32 %v3246, 16
        %v3545 = vadd.s32 %v3247, 16
        %v3546 = vadd.s32 %v3248, 16
        %v3547 = vadd.s32 %v3249, 16
        %v3548 = vadd.s32 %v3250, 16
        %v3549 = vadd.s32 %v3251, 16
        %v3550 = vadd.s32 %v3252, 16
        %vm3551 = vcmp.eq.s32.totalorder %v3211, %v3543
        %vm3552 = vcmp.eq.s32.totalorder %v3212, %v3543
        %vm3553 = vcmp.eq.s32.totalorder %v3211, %v3544
        %vm3554 = vcmp.eq.s32.totalorder %v3212, %v3544
        %vm3555 = vcmp.eq.s32.totalorder %v3211, %v3545
        %vm3556 = vcmp.eq.s32.totalorder %v3212, %v3545
        %vm3557 = vcmp.eq.s32.totalorder %v3211, %v3546
        %vm3558 = vcmp.eq.s32.totalorder %v3212, %v3546
        %vm3559 = vcmp.eq.s32.totalorder %v3211, %v3547
        %vm3560 = vcmp.eq.s32.totalorder %v3212, %v3547
        %vm3561 = vcmp.eq.s32.totalorder %v3211, %v3548
        %vm3562 = vcmp.eq.s32.totalorder %v3212, %v3548
        %vm3563 = vcmp.eq.s32.totalorder %v3211, %v3549
        %vm3564 = vcmp.eq.s32.totalorder %v3212, %v3549
        %vm3565 = vcmp.eq.s32.totalorder %v3211, %v3550
        %vm3566 = vcmp.eq.s32.totalorder %v3212, %v3550
        %v3567 = vsel %vm3551, 1.0, 0.0
        %v3568 = vsel %vm3552, 1.0, 0.0
        %v3569 = vsel %vm3553, 1.0, 0.0
        %v3570 = vsel %vm3554, 1.0, 0.0
        %v3571 = vsel %vm3555, 1.0, 0.0
        %v3572 = vsel %vm3556, 1.0, 0.0
        %v3573 = vsel %vm3557, 1.0, 0.0
        %v3574 = vsel %vm3558, 1.0, 0.0
        %v3575 = vsel %vm3559, 1.0, 0.0
        %v3576 = vsel %vm3560, 1.0, 0.0
        %v3577 = vsel %vm3561, 1.0, 0.0
        %v3578 = vsel %vm3562, 1.0, 0.0
        %v3579 = vsel %vm3563, 1.0, 0.0
        %v3580 = vsel %vm3564, 1.0, 0.0
        %v3581 = vsel %vm3565, 1.0, 0.0
        %v3582 = vsel %vm3566, 1.0, 0.0
        %3583 = vmatprep.subr.mxu0 0.0
        %3584 = vmatpush1.msra.mxu0 %v3193
        %3585 = vmatprep.subr.mxu0 0.0
        %3586 = vmatpush1.msra.mxu0 %v3192
        %3587 = vmatprep.subr.mxu0 0.0
        %3588 = vmatpush1.msra.mxu0 %v3191
        %3589 = vmatprep.subr.mxu0 0.0
        %3590 = vmatpush1.msra.mxu0 %v3190
        %3591 = vmatprep.subr.mxu0 0.0
        %3592 = vmatpush1.msra.mxu0 %v3189
        %3593 = vmatprep.subr.mxu0 0.0
        %3594 = vmatpush1.msra.mxu0 %v3188
        %3595 = vmatprep.subr.mxu0 0.0
        %3596 = vmatpush1.msra.mxu0 %v3187
        %3597 = vmatprep.subr.mxu0 0.0
        %3598 = vmatpush1.msra.mxu0 %v3186
        %3599 = vmatprep.subr.mxu0 0.0
        %3600 = vmatpush1.msra.mxu0 %v3185
        %3601 = vmatprep.subr.mxu0 0.0
        %3602 = vmatpush1.msra.mxu0 %v3184
        %3603 = vmatprep.subr.mxu0 0.0
        %3604 = vmatpush1.msra.mxu0 %v3183
        %3605 = vmatprep.subr.mxu0 0.0
        %3606 = vmatpush1.msra.mxu0 %v3182
        %3607 = vmatprep.subr.mxu0 0.0
        %3608 = vmatpush1.msra.mxu0 %v3181
        %3609 = vmatprep.subr.mxu0 0.0
        %3610 = vmatpush1.msra.mxu0 %v3180
        %3611 = vmatprep.subr.mxu0 0.0
        %3612 = vmatpush1.msra.mxu0 %v3179
        %3613 = vmatprep.subr.mxu0 0.0
        %3614 = vmatpush1.msra.mxu0 %v3178
        %3615 = vmatprep.subr.mxu0 0.0
        %3616 = vmatpush2.msra.mxu0 %v3209
        %3617 = vmatprep.subr.mxu0 0.0
        %3618 = vmatpush2.msra.mxu0 %v3208
        %3619 = vmatprep.subr.mxu0 0.0
        %3620 = vmatpush2.msra.mxu0 %v3207
        %3621 = vmatprep.subr.mxu0 0.0
        %3622 = vmatpush2.msra.mxu0 %v3206
        %3623 = vmatprep.subr.mxu0 0.0
        %3624 = vmatpush2.msra.mxu0 %v3205
        %3625 = vmatprep.subr.mxu0 0.0
        %3626 = vmatpush2.msra.mxu0 %v3204
        %3627 = vmatprep.subr.mxu0 0.0
        %3628 = vmatpush2.msra.mxu0 %v3203
        %3629 = vmatprep.subr.mxu0 0.0
        %3630 = vmatpush2.msra.mxu0 %v3202
        %3631 = vmatprep.subr.mxu0 0.0
        %3632 = vmatpush2.msra.mxu0 %v3201
        %3633 = vmatprep.subr.mxu0 0.0
        %3634 = vmatpush2.msra.mxu0 %v3200
        %3635 = vmatprep.subr.mxu0 0.0
        %3636 = vmatpush2.msra.mxu0 %v3199
        %3637 = vmatprep.subr.mxu0 0.0
        %3638 = vmatpush2.msra.mxu0 %v3198
        %3639 = vmatprep.subr.mxu0 0.0
        %3640 = vmatpush2.msra.mxu0 %v3197
        %3641 = vmatprep.subr.mxu0 0.0
        %3642 = vmatpush2.msra.mxu0 %v3196
        %3643 = vmatprep.subr.mxu0 0.0
        %3644 = vmatpush2.msra.mxu0 %v3195
        %3645 = vmatprep.subr.mxu0 0.0
        %3646 = vmatpush2.msra.mxu0 %v3194
        %3647 = vmatprep.mubr.f32.mxu0 %v3568
        %3648 = vmatmul.mubr.f32.gmra.mxu0 %v3567
        %v3649 = vpop.f32.mrf.mxu0
        %v3650 = vadd.f32 0.0, %v3649
        %v3651 = vpop.f32.mrf.mxu0
        %3652 = vmatprep.mubr.f32.mxu0 %v3570
        %3653 = vmatmul.mubr.f32.gmra.mxu0 %v3569
        %v3654 = vpop.f32.mrf.mxu0
        %v3655 = vadd.f32 0.0, %v3654
        %v3656 = vpop.f32.mrf.mxu0
        %3657 = vmatprep.mubr.f32.mxu0 %v3572
        %3658 = vmatmul.mubr.f32.gmra.mxu0 %v3571
        %v3659 = vpop.f32.mrf.mxu0
        %v3660 = vadd.f32 0.0, %v3659
        %v3661 = vpop.f32.mrf.mxu0
        %3662 = vmatprep.mubr.f32.mxu0 %v3574
        %3663 = vmatmul.mubr.f32.gmra.mxu0 %v3573
        %v3664 = vpop.f32.mrf.mxu0
        %v3665 = vadd.f32 0.0, %v3664
        %v3666 = vpop.f32.mrf.mxu0
        %3667 = vmatprep.mubr.f32.mxu0 %v3576
        %3668 = vmatmul.mubr.f32.gmra.mxu0 %v3575
        %v3669 = vpop.f32.mrf.mxu0
        %v3670 = vadd.f32 0.0, %v3669
        %v3671 = vpop.f32.mrf.mxu0
        %3672 = vmatprep.mubr.f32.mxu0 %v3578
        %3673 = vmatmul.mubr.f32.gmra.mxu0 %v3577
        %v3674 = vpop.f32.mrf.mxu0
        %v3675 = vadd.f32 0.0, %v3674
        %v3676 = vpop.f32.mrf.mxu0
        %3677 = vmatprep.mubr.f32.mxu0 %v3580
        %3678 = vmatmul.mubr.f32.gmra.mxu0 %v3579
        %v3679 = vpop.f32.mrf.mxu0
        %v3680 = vadd.f32 0.0, %v3679
        %v3681 = vpop.f32.mrf.mxu0
        %3682 = vmatprep.mubr.f32.mxu0 %v3582
        %3683 = vmatmul.mubr.f32.gmra.mxu0 %v3581
        %v3684 = vpop.f32.mrf.mxu0
        %v3685 = vadd.f32 0.0, %v3684
        %v3686 = vpop.f32.mrf.mxu0
        %3687 = vdwg.mxu0
        %v3688 = vmax.f32 %v3535, %v3650
        %v3689 = vmax.f32 %v3536, %v3655
        %v3690 = vmax.f32 %v3537, %v3660
        %v3691 = vmax.f32 %v3538, %v3665
        %v3692 = vmax.f32 %v3539, %v3670
        %v3693 = vmax.f32 %v3540, %v3675
        %v3694 = vmax.f32 %v3541, %v3680
        %v3695 = vmax.f32 %v3542, %v3685
        %v3696 = vadd.s32 %v3245, 17
        %v3697 = vadd.s32 %v3246, 17
        %v3698 = vadd.s32 %v3247, 17
        %v3699 = vadd.s32 %v3248, 17
        %v3700 = vadd.s32 %v3249, 17
        %v3701 = vadd.s32 %v3250, 17
        %v3702 = vadd.s32 %v3251, 17
        %v3703 = vadd.s32 %v3252, 17
        %vm3704 = vcmp.eq.s32.totalorder %v3211, %v3696
        %vm3705 = vcmp.eq.s32.totalorder %v3212, %v3696
        %vm3706 = vcmp.eq.s32.totalorder %v3211, %v3697
        %vm3707 = vcmp.eq.s32.totalorder %v3212, %v3697
        %vm3708 = vcmp.eq.s32.totalorder %v3211, %v3698
        %vm3709 = vcmp.eq.s32.totalorder %v3212, %v3698
        %vm3710 = vcmp.eq.s32.totalorder %v3211, %v3699
        %vm3711 = vcmp.eq.s32.totalorder %v3212, %v3699
        %vm3712 = vcmp.eq.s32.totalorder %v3211, %v3700
        %vm3713 = vcmp.eq.s32.totalorder %v3212, %v3700
        %vm3714 = vcmp.eq.s32.totalorder %v3211, %v3701
        %vm3715 = vcmp.eq.s32.totalorder %v3212, %v3701
        %vm3716 = vcmp.eq.s32.totalorder %v3211, %v3702
        %vm3717 = vcmp.eq.s32.totalorder %v3212, %v3702
        %vm3718 = vcmp.eq.s32.totalorder %v3211, %v3703
        %vm3719 = vcmp.eq.s32.totalorder %v3212, %v3703
        %v3720 = vsel %vm3704, 1.0, 0.0
        %v3721 = vsel %vm3705, 1.0, 0.0
        %v3722 = vsel %vm3706, 1.0, 0.0
        %v3723 = vsel %vm3707, 1.0, 0.0
        %v3724 = vsel %vm3708, 1.0, 0.0
        %v3725 = vsel %vm3709, 1.0, 0.0
        %v3726 = vsel %vm3710, 1.0, 0.0
        %v3727 = vsel %vm3711, 1.0, 0.0
        %v3728 = vsel %vm3712, 1.0, 0.0
        %v3729 = vsel %vm3713, 1.0, 0.0
        %v3730 = vsel %vm3714, 1.0, 0.0
        %v3731 = vsel %vm3715, 1.0, 0.0
        %v3732 = vsel %vm3716, 1.0, 0.0
        %v3733 = vsel %vm3717, 1.0, 0.0
        %v3734 = vsel %vm3718, 1.0, 0.0
        %v3735 = vsel %vm3719, 1.0, 0.0
        %3736 = vmatprep.subr.mxu0 0.0
        %3737 = vmatpush1.msra.mxu0 %v3193
        %3738 = vmatprep.subr.mxu0 0.0
        %3739 = vmatpush1.msra.mxu0 %v3192
        %3740 = vmatprep.subr.mxu0 0.0
        %3741 = vmatpush1.msra.mxu0 %v3191
        %3742 = vmatprep.subr.mxu0 0.0
        %3743 = vmatpush1.msra.mxu0 %v3190
        %3744 = vmatprep.subr.mxu0 0.0
        %3745 = vmatpush1.msra.mxu0 %v3189
        %3746 = vmatprep.subr.mxu0 0.0
        %3747 = vmatpush1.msra.mxu0 %v3188
        %3748 = vmatprep.subr.mxu0 0.0
        %3749 = vmatpush1.msra.mxu0 %v3187
        %3750 = vmatprep.subr.mxu0 0.0
        %3751 = vmatpush1.msra.mxu0 %v3186
        %3752 = vmatprep.subr.mxu0 0.0
        %3753 = vmatpush1.msra.mxu0 %v3185
        %3754 = vmatprep.subr.mxu0 0.0
        %3755 = vmatpush1.msra.mxu0 %v3184
        %3756 = vmatprep.subr.mxu0 0.0
        %3757 = vmatpush1.msra.mxu0 %v3183
        %3758 = vmatprep.subr.mxu0 0.0
        %3759 = vmatpush1.msra.mxu0 %v3182
        %3760 = vmatprep.subr.mxu0 0.0
        %3761 = vmatpush1.msra.mxu0 %v3181
        %3762 = vmatprep.subr.mxu0 0.0
        %3763 = vmatpush1.msra.mxu0 %v3180
        %3764 = vmatprep.subr.mxu0 0.0
        %3765 = vmatpush1.msra.mxu0 %v3179
        %3766 = vmatprep.subr.mxu0 0.0
        %3767 = vmatpush1.msra.mxu0 %v3178
        %3768 = vmatprep.subr.mxu0 0.0
        %3769 = vmatpush2.msra.mxu0 %v3209
        %3770 = vmatprep.subr.mxu0 0.0
        %3771 = vmatpush2.msra.mxu0 %v3208
        %3772 = vmatprep.subr.mxu0 0.0
        %3773 = vmatpush2.msra.mxu0 %v3207
        %3774 = vmatprep.subr.mxu0 0.0
        %3775 = vmatpush2.msra.mxu0 %v3206
        %3776 = vmatprep.subr.mxu0 0.0
        %3777 = vmatpush2.msra.mxu0 %v3205
        %3778 = vmatprep.subr.mxu0 0.0
        %3779 = vmatpush2.msra.mxu0 %v3204
        %3780 = vmatprep.subr.mxu0 0.0
        %3781 = vmatpush2.msra.mxu0 %v3203
        %3782 = vmatprep.subr.mxu0 0.0
        %3783 = vmatpush2.msra.mxu0 %v3202
        %3784 = vmatprep.subr.mxu0 0.0
        %3785 = vmatpush2.msra.mxu0 %v3201
        %3786 = vmatprep.subr.mxu0 0.0
        %3787 = vmatpush2.msra.mxu0 %v3200
        %3788 = vmatprep.subr.mxu0 0.0
        %3789 = vmatpush2.msra.mxu0 %v3199
        %3790 = vmatprep.subr.mxu0 0.0
        %3791 = vmatpush2.msra.mxu0 %v3198
        %3792 = vmatprep.subr.mxu0 0.0
        %3793 = vmatpush2.msra.mxu0 %v3197
        %3794 = vmatprep.subr.mxu0 0.0
        %3795 = vmatpush2.msra.mxu0 %v3196
        %3796 = vmatprep.subr.mxu0 0.0
        %3797 = vmatpush2.msra.mxu0 %v3195
        %3798 = vmatprep.subr.mxu0 0.0
        %3799 = vmatpush2.msra.mxu0 %v3194
        %3800 = vmatprep.mubr.f32.mxu0 %v3721
        %3801 = vmatmul.mubr.f32.gmra.mxu0 %v3720
        %v3802 = vpop.f32.mrf.mxu0
        %v3803 = vadd.f32 0.0, %v3802
        %v3804 = vpop.f32.mrf.mxu0
        %3805 = vmatprep.mubr.f32.mxu0 %v3723
        %3806 = vmatmul.mubr.f32.gmra.mxu0 %v3722
        %v3807 = vpop.f32.mrf.mxu0
        %v3808 = vadd.f32 0.0, %v3807
        %v3809 = vpop.f32.mrf.mxu0
        %3810 = vmatprep.mubr.f32.mxu0 %v3725
        %3811 = vmatmul.mubr.f32.gmra.mxu0 %v3724
        %v3812 = vpop.f32.mrf.mxu0
        %v3813 = vadd.f32 0.0, %v3812
        %v3814 = vpop.f32.mrf.mxu0
        %3815 = vmatprep.mubr.f32.mxu0 %v3727
        %3816 = vmatmul.mubr.f32.gmra.mxu0 %v3726
        %v3817 = vpop.f32.mrf.mxu0
        %v3818 = vadd.f32 0.0, %v3817
        %v3819 = vpop.f32.mrf.mxu0
        %3820 = vmatprep.mubr.f32.mxu0 %v3729
        %3821 = vmatmul.mubr.f32.gmra.mxu0 %v3728
        %v3822 = vpop.f32.mrf.mxu0
        %v3823 = vadd.f32 0.0, %v3822
        %v3824 = vpop.f32.mrf.mxu0
        %3825 = vmatprep.mubr.f32.mxu0 %v3731
        %3826 = vmatmul.mubr.f32.gmra.mxu0 %v3730
        %v3827 = vpop.f32.mrf.mxu0
        %v3828 = vadd.f32 0.0, %v3827
        %v3829 = vpop.f32.mrf.mxu0
        %3830 = vmatprep.mubr.f32.mxu0 %v3733
        %3831 = vmatmul.mubr.f32.gmra.mxu0 %v3732
        %v3832 = vpop.f32.mrf.mxu0
        %v3833 = vadd.f32 0.0, %v3832
        %v3834 = vpop.f32.mrf.mxu0
        %3835 = vmatprep.mubr.f32.mxu0 %v3735
        %3836 = vmatmul.mubr.f32.gmra.mxu0 %v3734
        %v3837 = vpop.f32.mrf.mxu0
        %v3838 = vadd.f32 0.0, %v3837
        %v3839 = vpop.f32.mrf.mxu0
        %3840 = vdwg.mxu0
        %v3841 = vmax.f32 %v3688, %v3803
        %v3842 = vmax.f32 %v3689, %v3808
        %v3843 = vmax.f32 %v3690, %v3813
        %v3844 = vmax.f32 %v3691, %v3818
        %v3845 = vmax.f32 %v3692, %v3823
        %v3846 = vmax.f32 %v3693, %v3828
        %v3847 = vmax.f32 %v3694, %v3833
        %v3848 = vmax.f32 %v3695, %v3838
        %v3849 = vmul.f32 %v3841, 0.5
        %v3850 = vmul.f32 %v3842, 0.5
        %v3851 = vmul.f32 %v3843, 0.5
        %v3852 = vmul.f32 %v3844, 0.5
        %v3853 = vmul.f32 %v3845, 0.5
        %v3854 = vmul.f32 %v3846, 0.5
        %v3855 = vmul.f32 %v3847, 0.5
        %v3856 = vmul.f32 %v3848, 0.5
        %v3857 = vmul.f32 %v3841, 0.70710677
        %v3858 = vmul.f32 %v3842, 0.70710677
        %v3859 = vmul.f32 %v3843, 0.70710677
        %v3860 = vmul.f32 %v3844, 0.70710677
        %v3861 = vmul.f32 %v3845, 0.70710677
        %v3862 = vmul.f32 %v3846, 0.70710677
        %v3863 = vmul.f32 %v3847, 0.70710677
        %v3864 = vmul.f32 %v3848, 0.70710677
        %vm3865 = vcmp.lt.f32.partialorder %v3857, 0.0
        %vm3866 = vcmp.lt.f32.partialorder %v3858, 0.0
        %vm3867 = vcmp.lt.f32.partialorder %v3859, 0.0
        %vm3868 = vcmp.lt.f32.partialorder %v3860, 0.0
        %vm3869 = vcmp.lt.f32.partialorder %v3861, 0.0
        %vm3870 = vcmp.lt.f32.partialorder %v3862, 0.0
        %vm3871 = vcmp.lt.f32.partialorder %v3863, 0.0
        %vm3872 = vcmp.lt.f32.partialorder %v3864, 0.0
        %v3873 = vsel %vm3865, -1.0, 1.0
        %v3874 = vsel %vm3866, -1.0, 1.0
        %v3875 = vsel %vm3867, -1.0, 1.0
        %v3876 = vsel %vm3868, -1.0, 1.0
        %v3877 = vsel %vm3869, -1.0, 1.0
        %v3878 = vsel %vm3870, -1.0, 1.0
        %v3879 = vsel %vm3871, -1.0, 1.0
        %v3880 = vsel %vm3872, -1.0, 1.0
        %v3881 = vand.u32 2147483647, %v3857
        %v3882 = vand.u32 2147483647, %v3858
        %v3883 = vand.u32 2147483647, %v3859
        %v3884 = vand.u32 2147483647, %v3860
        %v3885 = vand.u32 2147483647, %v3861
        %v3886 = vand.u32 2147483647, %v3862
        %v3887 = vand.u32 2147483647, %v3863
        %v3888 = vand.u32 2147483647, %v3864
        %v3889 = vmul.f32 %v3881, 0.3275911
        %v3890 = vmul.f32 %v3882, 0.3275911
        %v3891 = vmul.f32 %v3883, 0.3275911
        %v3892 = vmul.f32 %v3884, 0.3275911
        %v3893 = vmul.f32 %v3885, 0.3275911
        %v3894 = vmul.f32 %v3886, 0.3275911
        %v3895 = vmul.f32 %v3887, 0.3275911
        %v3896 = vmul.f32 %v3888, 0.3275911
        %v3897 = vadd.f32 %v3889, 1.0
        %v3898 = vadd.f32 %v3890, 1.0
        %v3899 = vadd.f32 %v3891, 1.0
        %v3900 = vadd.f32 %v3892, 1.0
        %v3901 = vadd.f32 %v3893, 1.0
        %v3902 = vadd.f32 %v3894, 1.0
        %v3903 = vadd.f32 %v3895, 1.0
        %v3904 = vadd.f32 %v3896, 1.0
        %v3905 = vrcp.pop %v3897
        %v3906 = vmul.f32 1.0, %v3905
        %v3907 = vrcp.pop %v3898
        %v3908 = vmul.f32 1.0, %v3907
        %v3909 = vrcp.pop %v3899
        %v3910 = vmul.f32 1.0, %v3909
        %v3911 = vrcp.pop %v3900
        %v3912 = vmul.f32 1.0, %v3911
        %v3913 = vrcp.pop %v3901
        %v3914 = vmul.f32 1.0, %v3913
        %v3915 = vrcp.pop %v3902
        %v3916 = vmul.f32 1.0, %v3915
        %v3917 = vrcp.pop %v3903
        %v3918 = vmul.f32 1.0, %v3917
        %v3919 = vrcp.pop %v3904
        %v3920 = vmul.f32 1.0, %v3919
        %v3921 = vmul.f32 %v3906, 1.0614054
        %v3922 = vmul.f32 %v3908, 1.0614054
        %v3923 = vmul.f32 %v3910, 1.0614054
        %v3924 = vmul.f32 %v3912, 1.0614054
        %v3925 = vmul.f32 %v3914, 1.0614054
        %v3926 = vmul.f32 %v3916, 1.0614054
        %v3927 = vmul.f32 %v3918, 1.0614054
        %v3928 = vmul.f32 %v3920, 1.0614054
        %v3929 = vadd.f32 %v3921, -1.4531521
        %v3930 = vadd.f32 %v3922, -1.4531521
        %v3931 = vadd.f32 %v3923, -1.4531521
        %v3932 = vadd.f32 %v3924, -1.4531521
        %v3933 = vadd.f32 %v3925, -1.4531521
        %v3934 = vadd.f32 %v3926, -1.4531521
        %v3935 = vadd.f32 %v3927, -1.4531521
        %v3936 = vadd.f32 %v3928, -1.4531521
        %v3937 = vmul.f32 %v3929, %v3906
        %v3938 = vmul.f32 %v3930, %v3908
        %v3939 = vmul.f32 %v3931, %v3910
        %v3940 = vmul.f32 %v3932, %v3912
        %v3941 = vmul.f32 %v3933, %v3914
        %v3942 = vmul.f32 %v3934, %v3916
        %v3943 = vmul.f32 %v3935, %v3918
        %v3944 = vmul.f32 %v3936, %v3920
        %v3945 = vadd.f32 %v3937, 1.4214138
        %v3946 = vadd.f32 %v3938, 1.4214138
        %v3947 = vadd.f32 %v3939, 1.4214138
        %v3948 = vadd.f32 %v3940, 1.4214138
        %v3949 = vadd.f32 %v3941, 1.4214138
        %v3950 = vadd.f32 %v3942, 1.4214138
        %v3951 = vadd.f32 %v3943, 1.4214138
        %v3952 = vadd.f32 %v3944, 1.4214138
        %v3953 = vmul.f32 %v3945, %v3906
        %v3954 = vmul.f32 %v3946, %v3908
        %v3955 = vmul.f32 %v3947, %v3910
        %v3956 = vmul.f32 %v3948, %v3912
        %v3957 = vmul.f32 %v3949, %v3914
        %v3958 = vmul.f32 %v3950, %v3916
        %v3959 = vmul.f32 %v3951, %v3918
        %v3960 = vmul.f32 %v3952, %v3920
        %v3961 = vadd.f32 %v3953, -0.28449672
        %v3962 = vadd.f32 %v3954, -0.28449672
        %v3963 = vadd.f32 %v3955, -0.28449672
        %v3964 = vadd.f32 %v3956, -0.28449672
        %v3965 = vadd.f32 %v3957, -0.28449672
        %v3966 = vadd.f32 %v3958, -0.28449672
        %v3967 = vadd.f32 %v3959, -0.28449672
        %v3968 = vadd.f32 %v3960, -0.28449672
        %v3969 = vmul.f32 %v3961, %v3906
        %v3970 = vmul.f32 %v3962, %v3908
        %v3971 = vmul.f32 %v3963, %v3910
        %v3972 = vmul.f32 %v3964, %v3912
        %v3973 = vmul.f32 %v3965, %v3914
        %v3974 = vmul.f32 %v3966, %v3916
        %v3975 = vmul.f32 %v3967, %v3918
        %v3976 = vmul.f32 %v3968, %v3920
        %v3977 = vadd.f32 %v3969, 0.2548296
        %v3978 = vadd.f32 %v3970, 0.2548296
        %v3979 = vadd.f32 %v3971, 0.2548296
        %v3980 = vadd.f32 %v3972, 0.2548296
        %v3981 = vadd.f32 %v3973, 0.2548296
        %v3982 = vadd.f32 %v3974, 0.2548296
        %v3983 = vadd.f32 %v3975, 0.2548296
        %v3984 = vadd.f32 %v3976, 0.2548296
        %v3985 = vmul.f32 %v3977, %v3906
        %v3986 = vmul.f32 %v3978, %v3908
        %v3987 = vmul.f32 %v3979, %v3910
        %v3988 = vmul.f32 %v3980, %v3912
        %v3989 = vmul.f32 %v3981, %v3914
        %v3990 = vmul.f32 %v3982, %v3916
        %v3991 = vmul.f32 %v3983, %v3918
        %v3992 = vmul.f32 %v3984, %v3920
        %v3993 = vsub.f32 0.0, %v3881
        %v3994 = vsub.f32 0.0, %v3882
        %v3995 = vsub.f32 0.0, %v3883
        %v3996 = vsub.f32 0.0, %v3884
        %v3997 = vsub.f32 0.0, %v3885
        %v3998 = vsub.f32 0.0, %v3886
        %v3999 = vsub.f32 0.0, %v3887
        %v4000 = vsub.f32 0.0, %v3888
        %v4001 = vmul.f32 %v3993, %v3881
        %v4002 = vmul.f32 %v3994, %v3882
        %v4003 = vmul.f32 %v3995, %v3883
        %v4004 = vmul.f32 %v3996, %v3884
        %v4005 = vmul.f32 %v3997, %v3885
        %v4006 = vmul.f32 %v3998, %v3886
        %v4007 = vmul.f32 %v3999, %v3887
        %v4008 = vmul.f32 %v4000, %v3888
        %v4009 = vmul.f32 %v4001, 1.442695
        %v4010 = vpow.pop %v4009
        %v4011 = vmul.f32 %v4002, 1.442695
        %v4012 = vpow.pop %v4011
        %v4013 = vmul.f32 %v4003, 1.442695
        %v4014 = vpow.pop %v4013
        %v4015 = vmul.f32 %v4004, 1.442695
        %v4016 = vpow.pop %v4015
        %v4017 = vmul.f32 %v4005, 1.442695
        %v4018 = vpow.pop %v4017
        %v4019 = vmul.f32 %v4006, 1.442695
        %v4020 = vpow.pop %v4019
        %v4021 = vmul.f32 %v4007, 1.442695
        %v4022 = vpow.pop %v4021
        %v4023 = vmul.f32 %v4008, 1.442695
        %v4024 = vpow.pop %v4023
        %v4025 = vmul.f32 %v3985, %v4010
        %v4026 = vmul.f32 %v3986, %v4012
        %v4027 = vmul.f32 %v3987, %v4014
        %v4028 = vmul.f32 %v3988, %v4016
        %v4029 = vmul.f32 %v3989, %v4018
        %v4030 = vmul.f32 %v3990, %v4020
        %v4031 = vmul.f32 %v3991, %v4022
        %v4032 = vmul.f32 %v3992, %v4024
        %v4033 = vsub.f32 1.0, %v4025
        %v4034 = vsub.f32 1.0, %v4026
        %v4035 = vsub.f32 1.0, %v4027
        %v4036 = vsub.f32 1.0, %v4028
        %v4037 = vsub.f32 1.0, %v4029
        %v4038 = vsub.f32 1.0, %v4030
        %v4039 = vsub.f32 1.0, %v4031
        %v4040 = vsub.f32 1.0, %v4032
        %v4041 = vmul.f32 %v3873, %v4033
        %v4042 = vmul.f32 %v3874, %v4034
        %v4043 = vmul.f32 %v3875, %v4035
        %v4044 = vmul.f32 %v3876, %v4036
        %v4045 = vmul.f32 %v3877, %v4037
        %v4046 = vmul.f32 %v3878, %v4038
        %v4047 = vmul.f32 %v3879, %v4039
        %v4048 = vmul.f32 %v3880, %v4040
        %v4049 = vadd.f32 %v4041, 1.0
        %v4050 = vadd.f32 %v4042, 1.0
        %v4051 = vadd.f32 %v4043, 1.0
        %v4052 = vadd.f32 %v4044, 1.0
        %v4053 = vadd.f32 %v4045, 1.0
        %v4054 = vadd.f32 %v4046, 1.0
        %v4055 = vadd.f32 %v4047, 1.0
        %v4056 = vadd.f32 %v4048, 1.0
        %v4057 = vmul.f32 %v3849, %v4049
        %v4058 = vmul.f32 %v3850, %v4050
        %v4059 = vmul.f32 %v3851, %v4051
        %v4060 = vmul.f32 %v3852, %v4052
        %v4061 = vmul.f32 %v3853, %v4053
        %v4062 = vmul.f32 %v3854, %v4054
        %v4063 = vmul.f32 %v3855, %v4055
        %v4064 = vmul.f32 %v3856, %v4056
        %vm4065 = vcmask 130048
        %4066 = vst.msk [vmem:[#allocation2] sm:$0xff] %vm4065, 0.0
        %4067 = vst.msk [vmem:[#allocation2 + $0x8] sm:$0xff] %vm4065, 0.0
        %4068 = vst.msk [vmem:[#allocation2 + $0x10] sm:$0xff] %vm4065, 0.0
        %4069 = vst.msk [vmem:[#allocation2 + $0x18] sm:$0xff] %vm4065, 0.0
        %4070 = vst.msk [vmem:[#allocation2 + $0x20] sm:$0xff] %vm4065, 0.0
        %4071 = vst.msk [vmem:[#allocation2 + $0x28] sm:$0xff] %vm4065, 0.0
        %4072 = vst.msk [vmem:[#allocation2 + $0x30] sm:$0xff] %vm4065, 0.0
        %4073 = vst.msk [vmem:[#allocation2 + $0x38] sm:$0xff] %vm4065, 0.0
        %4074 = vst.msk [vmem:[#allocation2 + $0x40] sm:$0xff] %vm4065, 0.0
        %4075 = vst.msk [vmem:[#allocation2 + $0x48] sm:$0xff] %vm4065, 0.0
        %4076 = vst.msk [vmem:[#allocation2 + $0x50] sm:$0xff] %vm4065, 0.0
        %4077 = vst.msk [vmem:[#allocation2 + $0x58] sm:$0xff] %vm4065, 0.0
        %4078 = vst.msk [vmem:[#allocation2 + $0x10] sm:$0xff] %vm4065, %v4057
        %4079 = vst.msk [vmem:[#allocation2 + $0x18] sm:$0xff] %vm4065, %v4058
        %4080 = vst.msk [vmem:[#allocation2 + $0x20] sm:$0xff] %vm4065, %v4059
        %4081 = vst.msk [vmem:[#allocation2 + $0x28] sm:$0xff] %vm4065, %v4060
        %4082 = vst.msk [vmem:[#allocation2 + $0x30] sm:$0xff] %vm4065, %v4061
        %4083 = vst.msk [vmem:[#allocation2 + $0x38] sm:$0xff] %vm4065, %v4062
        %4084 = vst.msk [vmem:[#allocation2 + $0x40] sm:$0xff] %vm4065, %v4063
        %4085 = vst.msk [vmem:[#allocation2 + $0x48] sm:$0xff] %vm4065, %v4064
        %v4086 = vld [vmem:[#allocation2 + $0x7] sm:$0xff]
        %v4087 = vld [vmem:[#allocation2 + $0xf] sm:$0xff]
        %v4088 = vld [vmem:[#allocation2 + $0x17] sm:$0xff]
        %v4089 = vld [vmem:[#allocation2 + $0x1f] sm:$0xff]
        %v4090 = vld [vmem:[#allocation2 + $0x27] sm:$0xff]
        %v4091 = vld [vmem:[#allocation2 + $0x2f] sm:$0xff]
        %v4092 = vld [vmem:[#allocation2 + $0x37] sm:$0xff]
        %v4093 = vld [vmem:[#allocation2 + $0x3f] sm:$0xff]
        %vm4094 = vcmp.eq.s32.totalorder %v3229, 0
        %vm4095 = vcmp.eq.s32.totalorder %v3230, 0
        %vm4096 = vcmp.eq.s32.totalorder %v3231, 0
        %vm4097 = vcmp.eq.s32.totalorder %v3232, 0
        %vm4098 = vcmp.eq.s32.totalorder %v3233, 0
        %vm4099 = vcmp.eq.s32.totalorder %v3234, 0
        %vm4100 = vcmp.eq.s32.totalorder %v3235, 0
        %vm4101 = vcmp.eq.s32.totalorder %v3236, 0
        %v4102 = vsel %vm4094, 0.0, %v4086
        %v4103 = vsel %vm4095, 0.0, %v4087
        %v4104 = vsel %vm4096, 0.0, %v4088
        %v4105 = vsel %vm4097, 0.0, %v4089
        %v4106 = vsel %vm4098, 0.0, %v4090
        %v4107 = vsel %vm4099, 0.0, %v4091
        %v4108 = vsel %vm4100, 0.0, %v4092
        %v4109 = vsel %vm4101, 0.0, %v4093
        %v4110 = vld [vmem:[%s3] sm:$0xff]
        %v4111 = vld [vmem:[%s3 + $0x8] sm:$0xff]
        %v4112 = vld [vmem:[#allocation2 + $0x8] sm:$0xff]
        %v4113 = vld [vmem:[#allocation2 + $0x10] sm:$0xff]
        %v4114 = vld [vmem:[#allocation2 + $0x18] sm:$0xff]
        %v4115 = vld [vmem:[#allocation2 + $0x20] sm:$0xff]
        %v4116 = vld [vmem:[#allocation2 + $0x28] sm:$0xff]
        %v4117 = vld [vmem:[#allocation2 + $0x30] sm:$0xff]
        %v4118 = vld [vmem:[#allocation2 + $0x38] sm:$0xff]
        %v4119 = vld [vmem:[#allocation2 + $0x40] sm:$0xff]
        %s4120 = scalar_lea.vmem %s3, 16
        %v4121 = vld [vmem:[%s4120] sm:$0xff]
        %v4122 = vld [vmem:[%s4120 + $0x8] sm:$0xff]
        %v4124 = vsel %vm4065, %v4112, 0
        %v4127 = vsel %vm4065, %v4113, 0
        %v4130 = vsel %vm4065, %v4114, 0
        %v4133 = vsel %vm4065, %v4115, 0
        %v4136 = vsel %vm4065, %v4116, 0
        %v4139 = vsel %vm4065, %v4117, 0
        %v4142 = vsel %vm4065, %v4118, 0
        %v4145 = vsel %vm4065, %v4119, 0
        %4147 = vmatprep.subr.mxu0 0.0
        %4148 = vmatpush1.msra.mxu0 0.0
        %4149 = vmatprep.subr.mxu0 0.0
        %4150 = vmatpush1.msra.mxu0 0.0
        %4151 = vmatprep.subr.mxu0 0.0
        %4152 = vmatpush1.msra.mxu0 0.0
        %4153 = vmatprep.subr.mxu0 0.0
        %4154 = vmatpush1.msra.mxu0 0.0
        %4155 = vmatprep.subr.mxu0 0.0
        %4156 = vmatpush1.msra.mxu0 0.0
        %4157 = vmatprep.subr.mxu0 0.0
        %4158 = vmatpush1.msra.mxu0 0.0
        %4159 = vmatprep.subr.mxu0 0.0
        %4160 = vmatpush1.msra.mxu0 0.0
        %4161 = vmatprep.subr.mxu0 0.0
        %4162 = vmatpush1.msra.mxu0 0.0
        %4163 = vmatprep.subr.mxu0 0.0
        %4164 = vmatpush1.msra.mxu0 0.0
        %4165 = vmatprep.subr.mxu0 0.0
        %4166 = vmatpush1.msra.mxu0 0.0
        %4167 = vmatprep.subr.mxu0 0.0
        %4168 = vmatpush1.msra.mxu0 0.0
        %4169 = vmatprep.subr.mxu0 0.0
        %4170 = vmatpush1.msra.mxu0 0.0
        %4171 = vmatprep.subr.mxu0 0.0
        %4172 = vmatpush1.msra.mxu0 0.0
        %4173 = vmatprep.subr.mxu0 0.0
        %4174 = vmatpush1.msra.mxu0 0.0
        %4175 = vmatprep.subr.mxu0 0.0
        %4176 = vmatpush1.msra.mxu0 %v4122
        %4177 = vmatprep.subr.mxu0 0.0
        %4178 = vmatpush1.msra.mxu0 %v4121
        %4179 = vmatprep.subr.mxu0 0.0
        %4180 = vmatpush2.msra.mxu0 0.0
        %4181 = vmatprep.subr.mxu0 0.0
        %4182 = vmatpush2.msra.mxu0 0.0
        %4183 = vmatprep.subr.mxu0 0.0
        %4184 = vmatpush2.msra.mxu0 0.0
        %4185 = vmatprep.subr.mxu0 0.0
        %4186 = vmatpush2.msra.mxu0 0.0
        %4187 = vmatprep.subr.mxu0 0.0
        %4188 = vmatpush2.msra.mxu0 0.0
        %4189 = vmatprep.subr.mxu0 0.0
        %4190 = vmatpush2.msra.mxu0 0.0
        %4191 = vmatprep.subr.mxu0 0.0
        %4192 = vmatpush2.msra.mxu0 0.0
        %4193 = vmatprep.subr.mxu0 0.0
        %4194 = vmatpush2.msra.mxu0 0.0
        %4195 = vmatprep.subr.mxu0 0.0
        %4196 = vmatpush2.msra.mxu0 0.0
        %4197 = vmatprep.subr.mxu0 0.0
        %4198 = vmatpush2.msra.mxu0 0.0
        %4199 = vmatprep.subr.mxu0 0.0
        %4200 = vmatpush2.msra.mxu0 0.0
        %4201 = vmatprep.subr.mxu0 0.0
        %4202 = vmatpush2.msra.mxu0 0.0
        %4203 = vmatprep.subr.mxu0 0.0
        %4204 = vmatpush2.msra.mxu0 0.0
        %4205 = vmatprep.subr.mxu0 0.0
        %4206 = vmatpush2.msra.mxu0 0.0
        %4207 = vmatprep.subr.mxu0 0.0
        %4208 = vmatpush2.msra.mxu0 0.0
        %4209 = vmatprep.subr.mxu0 0.0
        %4210 = vmatpush2.msra.mxu0 0.0
        %4211 = vmatprep.mubr.f32.mxu0 0.0
        %4212 = vmatmul.mubr.f32.gmra.mxu0 %v4124
        %v4213 = vpop.f32.mrf.mxu0
        %v4214 = vadd.f32 0.0, %v4213
        %v4215 = vpop.f32.mrf.mxu0
        %4216 = vmatprep.mubr.f32.mxu0 0.0
        %4217 = vmatmul.mubr.f32.gmra.mxu0 %v4127
        %v4218 = vpop.f32.mrf.mxu0
        %v4219 = vadd.f32 0.0, %v4218
        %v4220 = vpop.f32.mrf.mxu0
        %4221 = vmatprep.mubr.f32.mxu0 0.0
        %4222 = vmatmul.mubr.f32.gmra.mxu0 %v4130
        %v4223 = vpop.f32.mrf.mxu0
        %v4224 = vadd.f32 0.0, %v4223
        %v4225 = vpop.f32.mrf.mxu0
        %4226 = vmatprep.mubr.f32.mxu0 0.0
        %4227 = vmatmul.mubr.f32.gmra.mxu0 %v4133
        %v4228 = vpop.f32.mrf.mxu0
        %v4229 = vadd.f32 0.0, %v4228
        %v4230 = vpop.f32.mrf.mxu0
        %4231 = vmatprep.mubr.f32.mxu0 0.0
        %4232 = vmatmul.mubr.f32.gmra.mxu0 %v4136
        %v4233 = vpop.f32.mrf.mxu0
        %v4234 = vadd.f32 0.0, %v4233
        %v4235 = vpop.f32.mrf.mxu0
        %4236 = vmatprep.mubr.f32.mxu0 0.0
        %4237 = vmatmul.mubr.f32.gmra.mxu0 %v4139
        %v4238 = vpop.f32.mrf.mxu0
        %v4239 = vadd.f32 0.0, %v4238
        %v4240 = vpop.f32.mrf.mxu0
        %4241 = vmatprep.mubr.f32.mxu0 0.0
        %4242 = vmatmul.mubr.f32.gmra.mxu0 %v4142
        %v4243 = vpop.f32.mrf.mxu0
        %v4244 = vadd.f32 0.0, %v4243
        %v4245 = vpop.f32.mrf.mxu0
        %4246 = vmatprep.mubr.f32.mxu0 0.0
        %4247 = vmatmul.mubr.f32.gmra.mxu0 %v4145
        %v4248 = vpop.f32.mrf.mxu0
        %v4249 = vadd.f32 0.0, %v4248
        %v4250 = vpop.f32.mrf.mxu0
        %4251 = vdwg.mxu0
        %v4253 = vsel %vm4065, %v4102, 0
        %v4256 = vsel %vm4065, %v4103, 0
        %v4259 = vsel %vm4065, %v4104, 0
        %v4262 = vsel %vm4065, %v4105, 0
        %v4265 = vsel %vm4065, %v4106, 0
        %v4268 = vsel %vm4065, %v4107, 0
        %v4271 = vsel %vm4065, %v4108, 0
        %v4274 = vsel %vm4065, %v4109, 0
        %4276 = vmatprep.subr.mxu0 0.0
        %4277 = vmatpush1.msra.mxu0 0.0
        %4278 = vmatprep.subr.mxu0 0.0
        %4279 = vmatpush1.msra.mxu0 0.0
        %4280 = vmatprep.subr.mxu0 0.0
        %4281 = vmatpush1.msra.mxu0 0.0
        %4282 = vmatprep.subr.mxu0 0.0
        %4283 = vmatpush1.msra.mxu0 0.0
        %4284 = vmatprep.subr.mxu0 0.0
        %4285 = vmatpush1.msra.mxu0 0.0
        %4286 = vmatprep.subr.mxu0 0.0
        %4287 = vmatpush1.msra.mxu0 0.0
        %4288 = vmatprep.subr.mxu0 0.0
        %4289 = vmatpush1.msra.mxu0 0.0
        %4290 = vmatprep.subr.mxu0 0.0
        %4291 = vmatpush1.msra.mxu0 0.0
        %4292 = vmatprep.subr.mxu0 0.0
        %4293 = vmatpush1.msra.mxu0 0.0
        %4294 = vmatprep.subr.mxu0 0.0
        %4295 = vmatpush1.msra.mxu0 0.0
        %4296 = vmatprep.subr.mxu0 0.0
        %4297 = vmatpush1.msra.mxu0 0.0
        %4298 = vmatprep.subr.mxu0 0.0
        %4299 = vmatpush1.msra.mxu0 0.0
        %4300 = vmatprep.subr.mxu0 0.0
        %4301 = vmatpush1.msra.mxu0 0.0
        %4302 = vmatprep.subr.mxu0 0.0
        %4303 = vmatpush1.msra.mxu0 0.0
        %4304 = vmatprep.subr.mxu0 0.0
        %4305 = vmatpush1.msra.mxu0 %v4111
        %4306 = vmatprep.subr.mxu0 0.0
        %4307 = vmatpush1.msra.mxu0 %v4110
        %4308 = vmatprep.subr.mxu0 0.0
        %4309 = vmatpush2.msra.mxu0 0.0
        %4310 = vmatprep.subr.mxu0 0.0
        %4311 = vmatpush2.msra.mxu0 0.0
        %4312 = vmatprep.subr.mxu0 0.0
        %4313 = vmatpush2.msra.mxu0 0.0
        %4314 = vmatprep.subr.mxu0 0.0
        %4315 = vmatpush2.msra.mxu0 0.0
        %4316 = vmatprep.subr.mxu0 0.0
        %4317 = vmatpush2.msra.mxu0 0.0
        %4318 = vmatprep.subr.mxu0 0.0
        %4319 = vmatpush2.msra.mxu0 0.0
        %4320 = vmatprep.subr.mxu0 0.0
        %4321 = vmatpush2.msra.mxu0 0.0
        %4322 = vmatprep.subr.mxu0 0.0
        %4323 = vmatpush2.msra.mxu0 0.0
        %4324 = vmatprep.subr.mxu0 0.0
        %4325 = vmatpush2.msra.mxu0 0.0
        %4326 = vmatprep.subr.mxu0 0.0
        %4327 = vmatpush2.msra.mxu0 0.0
        %4328 = vmatprep.subr.mxu0 0.0
        %4329 = vmatpush2.msra.mxu0 0.0
        %4330 = vmatprep.subr.mxu0 0.0
        %4331 = vmatpush2.msra.mxu0 0.0
        %4332 = vmatprep.subr.mxu0 0.0
        %4333 = vmatpush2.msra.mxu0 0.0
        %4334 = vmatprep.subr.mxu0 0.0
        %4335 = vmatpush2.msra.mxu0 0.0
        %4336 = vmatprep.subr.mxu0 0.0
        %4337 = vmatpush2.msra.mxu0 0.0
        %4338 = vmatprep.subr.mxu0 0.0
        %4339 = vmatpush2.msra.mxu0 0.0
        %4340 = vmatprep.mubr.f32.mxu0 0.0
        %4341 = vmatmul.mubr.f32.gmra.mxu0 %v4253
        %v4342 = vpop.f32.mrf.mxu0
        %v4343 = vadd.f32 %v4214, %v4342
        %v4344 = vpop.f32.mrf.mxu0
        %4345 = vmatprep.mubr.f32.mxu0 0.0
        %4346 = vmatmul.mubr.f32.gmra.mxu0 %v4256
        %v4347 = vpop.f32.mrf.mxu0
        %v4348 = vadd.f32 %v4219, %v4347
        %v4349 = vpop.f32.mrf.mxu0
        %4350 = vmatprep.mubr.f32.mxu0 0.0
        %4351 = vmatmul.mubr.f32.gmra.mxu0 %v4259
        %v4352 = vpop.f32.mrf.mxu0
        %v4353 = vadd.f32 %v4224, %v4352
        %v4354 = vpop.f32.mrf.mxu0
        %4355 = vmatprep.mubr.f32.mxu0 0.0
        %4356 = vmatmul.mubr.f32.gmra.mxu0 %v4262
        %v4357 = vpop.f32.mrf.mxu0
        %v4358 = vadd.f32 %v4229, %v4357
        %v4359 = vpop.f32.mrf.mxu0
        %4360 = vmatprep.mubr.f32.mxu0 0.0
        %4361 = vmatmul.mubr.f32.gmra.mxu0 %v4265
        %v4362 = vpop.f32.mrf.mxu0
        %v4363 = vadd.f32 %v4234, %v4362
        %v4364 = vpop.f32.mrf.mxu0
        %4365 = vmatprep.mubr.f32.mxu0 0.0
        %4366 = vmatmul.mubr.f32.gmra.mxu0 %v4268
        %v4367 = vpop.f32.mrf.mxu0
        %v4368 = vadd.f32 %v4239, %v4367
        %v4369 = vpop.f32.mrf.mxu0
        %4370 = vmatprep.mubr.f32.mxu0 0.0
        %4371 = vmatmul.mubr.f32.gmra.mxu0 %v4271
        %v4372 = vpop.f32.mrf.mxu0
        %v4373 = vadd.f32 %v4244, %v4372
        %v4374 = vpop.f32.mrf.mxu0
        %4375 = vmatprep.mubr.f32.mxu0 0.0
        %4376 = vmatmul.mubr.f32.gmra.mxu0 %v4274
        %v4377 = vpop.f32.mrf.mxu0
        %v4378 = vadd.f32 %v4249, %v4377
        %v4379 = vpop.f32.mrf.mxu0
        %4380 = vdwg.mxu0
        %v4381 = vld [vmem:[#allocation2 + $0x9] sm:$0xff]
        %v4382 = vld [vmem:[#allocation2 + $0x11] sm:$0xff]
        %v4383 = vld [vmem:[#allocation2 + $0x19] sm:$0xff]
        %v4384 = vld [vmem:[#allocation2 + $0x21] sm:$0xff]
        %v4385 = vld [vmem:[#allocation2 + $0x29] sm:$0xff]
        %v4386 = vld [vmem:[#allocation2 + $0x31] sm:$0xff]
        %v4387 = vld [vmem:[#allocation2 + $0x39] sm:$0xff]
        %v4388 = vld [vmem:[#allocation2 + $0x41] sm:$0xff]
        %vm4389 = vcmp.eq.s32.totalorder %v3229, 7
        %vm4390 = vcmp.eq.s32.totalorder %v3230, 7
        %vm4391 = vcmp.eq.s32.totalorder %v3231, 7
        %vm4392 = vcmp.eq.s32.totalorder %v3232, 7
        %vm4393 = vcmp.eq.s32.totalorder %v3233, 7
        %vm4394 = vcmp.eq.s32.totalorder %v3234, 7
        %vm4395 = vcmp.eq.s32.totalorder %v3235, 7
        %vm4396 = vcmp.eq.s32.totalorder %v3236, 7
        %v4397 = vsel %vm4389, 0.0, %v4381
        %v4398 = vsel %vm4390, 0.0, %v4382
        %v4399 = vsel %vm4391, 0.0, %v4383
        %v4400 = vsel %vm4392, 0.0, %v4384
        %v4401 = vsel %vm4393, 0.0, %v4385
        %v4402 = vsel %vm4394, 0.0, %v4386
        %v4403 = vsel %vm4395, 0.0, %v4387
        %v4404 = vsel %vm4396, 0.0, %v4388
        %s4405 = scalar_lea.vmem %s3, 32
        %v4406 = vld [vmem:[%s4405] sm:$0xff]
        %v4407 = vld [vmem:[%s4405 + $0x8] sm:$0xff]
        %v4409 = vsel %vm4065, %v4397, 0
        %v4412 = vsel %vm4065, %v4398, 0
        %v4415 = vsel %vm4065, %v4399, 0
        %v4418 = vsel %vm4065, %v4400, 0
        %v4421 = vsel %vm4065, %v4401, 0
        %v4424 = vsel %vm4065, %v4402, 0
        %v4427 = vsel %vm4065, %v4403, 0
        %v4430 = vsel %vm4065, %v4404, 0
        %4432 = vmatprep.subr.mxu0 0.0
        %4433 = vmatpush1.msra.mxu0 0.0
        %4434 = vmatprep.subr.mxu0 0.0
        %4435 = vmatpush1.msra.mxu0 0.0
        %4436 = vmatprep.subr.mxu0 0.0
        %4437 = vmatpush1.msra.mxu0 0.0
        %4438 = vmatprep.subr.mxu0 0.0
        %4439 = vmatpush1.msra.mxu0 0.0
        %4440 = vmatprep.subr.mxu0 0.0
        %4441 = vmatpush1.msra.mxu0 0.0
        %4442 = vmatprep.subr.mxu0 0.0
        %4443 = vmatpush1.msra.mxu0 0.0
        %4444 = vmatprep.subr.mxu0 0.0
        %4445 = vmatpush1.msra.mxu0 0.0
        %4446 = vmatprep.subr.mxu0 0.0
        %4447 = vmatpush1.msra.mxu0 0.0
        %4448 = vmatprep.subr.mxu0 0.0
        %4449 = vmatpush1.msra.mxu0 0.0
        %4450 = vmatprep.subr.mxu0 0.0
        %4451 = vmatpush1.msra.mxu0 0.0
        %4452 = vmatprep.subr.mxu0 0.0
        %4453 = vmatpush1.msra.mxu0 0.0
        %4454 = vmatprep.subr.mxu0 0.0
        %4455 = vmatpush1.msra.mxu0 0.0
        %4456 = vmatprep.subr.mxu0 0.0
        %4457 = vmatpush1.msra.mxu0 0.0
        %4458 = vmatprep.subr.mxu0 0.0
        %4459 = vmatpush1.msra.mxu0 0.0
        %4460 = vmatprep.subr.mxu0 0.0
        %4461 = vmatpush1.msra.mxu0 %v4407
        %4462 = vmatprep.subr.mxu0 0.0
        %4463 = vmatpush1.msra.mxu0 %v4406
        %4464 = vmatprep.subr.mxu0 0.0
        %4465 = vmatpush2.msra.mxu0 0.0
        %4466 = vmatprep.subr.mxu0 0.0
        %4467 = vmatpush2.msra.mxu0 0.0
        %4468 = vmatprep.subr.mxu0 0.0
        %4469 = vmatpush2.msra.mxu0 0.0
        %4470 = vmatprep.subr.mxu0 0.0
        %4471 = vmatpush2.msra.mxu0 0.0
        %4472 = vmatprep.subr.mxu0 0.0
        %4473 = vmatpush2.msra.mxu0 0.0
        %4474 = vmatprep.subr.mxu0 0.0
        %4475 = vmatpush2.msra.mxu0 0.0
        %4476 = vmatprep.subr.mxu0 0.0
        %4477 = vmatpush2.msra.mxu0 0.0
        %4478 = vmatprep.subr.mxu0 0.0
        %4479 = vmatpush2.msra.mxu0 0.0
        %4480 = vmatprep.subr.mxu0 0.0
        %4481 = vmatpush2.msra.mxu0 0.0
        %4482 = vmatprep.subr.mxu0 0.0
        %4483 = vmatpush2.msra.mxu0 0.0
        %4484 = vmatprep.subr.mxu0 0.0
        %4485 = vmatpush2.msra.mxu0 0.0
        %4486 = vmatprep.subr.mxu0 0.0
        %4487 = vmatpush2.msra.mxu0 0.0
        %4488 = vmatprep.subr.mxu0 0.0
        %4489 = vmatpush2.msra.mxu0 0.0
        %4490 = vmatprep.subr.mxu0 0.0
        %4491 = vmatpush2.msra.mxu0 0.0
        %4492 = vmatprep.subr.mxu0 0.0
        %4493 = vmatpush2.msra.mxu0 0.0
        %4494 = vmatprep.subr.mxu0 0.0
        %4495 = vmatpush2.msra.mxu0 0.0
        %4496 = vmatprep.mubr.f32.mxu0 0.0
        %4497 = vmatmul.mubr.f32.gmra.mxu0 %v4409
        %v4498 = vpop.f32.mrf.mxu0
        %v4499 = vadd.f32 0.0, %v4498
        %v4500 = vpop.f32.mrf.mxu0
        %4501 = vmatprep.mubr.f32.mxu0 0.0
        %4502 = vmatmul.mubr.f32.gmra.mxu0 %v4412
        %v4503 = vpop.f32.mrf.mxu0
        %v4504 = vadd.f32 0.0, %v4503
        %v4505 = vpop.f32.mrf.mxu0
        %4506 = vmatprep.mubr.f32.mxu0 0.0
        %4507 = vmatmul.mubr.f32.gmra.mxu0 %v4415
        %v4508 = vpop.f32.mrf.mxu0
        %v4509 = vadd.f32 0.0, %v4508
        %v4510 = vpop.f32.mrf.mxu0
        %4511 = vmatprep.mubr.f32.mxu0 0.0
        %4512 = vmatmul.mubr.f32.gmra.mxu0 %v4418
        %v4513 = vpop.f32.mrf.mxu0
        %v4514 = vadd.f32 0.0, %v4513
        %v4515 = vpop.f32.mrf.mxu0
        %4516 = vmatprep.mubr.f32.mxu0 0.0
        %4517 = vmatmul.mubr.f32.gmra.mxu0 %v4421
        %v4518 = vpop.f32.mrf.mxu0
        %v4519 = vadd.f32 0.0, %v4518
        %v4520 = vpop.f32.mrf.mxu0
        %4521 = vmatprep.mubr.f32.mxu0 0.0
        %4522 = vmatmul.mubr.f32.gmra.mxu0 %v4424
        %v4523 = vpop.f32.mrf.mxu0
        %v4524 = vadd.f32 0.0, %v4523
        %v4525 = vpop.f32.mrf.mxu0
        %4526 = vmatprep.mubr.f32.mxu0 0.0
        %4527 = vmatmul.mubr.f32.gmra.mxu0 %v4427
        %v4528 = vpop.f32.mrf.mxu0
        %v4529 = vadd.f32 0.0, %v4528
        %v4530 = vpop.f32.mrf.mxu0
        %4531 = vmatprep.mubr.f32.mxu0 0.0
        %4532 = vmatmul.mubr.f32.gmra.mxu0 %v4430
        %v4533 = vpop.f32.mrf.mxu0
        %v4534 = vadd.f32 0.0, %v4533
        %v4535 = vpop.f32.mrf.mxu0
        %4536 = vdwg.mxu0
        %v4537 = vadd.f32 %v4343, %v4499
        %v4538 = vadd.f32 %v4348, %v4504
        %v4539 = vadd.f32 %v4353, %v4509
        %v4540 = vadd.f32 %v4358, %v4514
        %v4541 = vadd.f32 %v4363, %v4519
        %v4542 = vadd.f32 %v4368, %v4524
        %v4543 = vadd.f32 %v4373, %v4529
        %v4544 = vadd.f32 %v4378, %v4534
        %v4545 = vld [vmem:[#allocation2 + $0xf] sm:$0xff]
        %v4546 = vld [vmem:[#allocation2 + $0x17] sm:$0xff]
        %v4547 = vld [vmem:[#allocation2 + $0x1f] sm:$0xff]
        %v4548 = vld [vmem:[#allocation2 + $0x27] sm:$0xff]
        %v4549 = vld [vmem:[#allocation2 + $0x2f] sm:$0xff]
        %v4550 = vld [vmem:[#allocation2 + $0x37] sm:$0xff]
        %v4551 = vld [vmem:[#allocation2 + $0x3f] sm:$0xff]
        %v4552 = vld [vmem:[#allocation2 + $0x47] sm:$0xff]
        %v4553 = vsel %vm4094, 0.0, %v4545
        %v4554 = vsel %vm4095, 0.0, %v4546
        %v4555 = vsel %vm4096, 0.0, %v4547
        %v4556 = vsel %vm4097, 0.0, %v4548
        %v4557 = vsel %vm4098, 0.0, %v4549
        %v4558 = vsel %vm4099, 0.0, %v4550
        %v4559 = vsel %vm4100, 0.0, %v4551
        %v4560 = vsel %vm4101, 0.0, %v4552
        %s4561 = scalar_lea.vmem %s3, 48
        %v4562 = vld [vmem:[%s4561] sm:$0xff]
        %v4563 = vld [vmem:[%s4561 + $0x8] sm:$0xff]
        %v4565 = vsel %vm4065, %v4553, 0
        %v4568 = vsel %vm4065, %v4554, 0
        %v4571 = vsel %vm4065, %v4555, 0
        %v4574 = vsel %vm4065, %v4556, 0
        %v4577 = vsel %vm4065, %v4557, 0
        %v4580 = vsel %vm4065, %v4558, 0
        %v4583 = vsel %vm4065, %v4559, 0
        %v4586 = vsel %vm4065, %v4560, 0
        %4588 = vmatprep.subr.mxu0 0.0
        %4589 = vmatpush1.msra.mxu0 0.0
        %4590 = vmatprep.subr.mxu0 0.0
        %4591 = vmatpush1.msra.mxu0 0.0
        %4592 = vmatprep.subr.mxu0 0.0
        %4593 = vmatpush1.msra.mxu0 0.0
        %4594 = vmatprep.subr.mxu0 0.0
        %4595 = vmatpush1.msra.mxu0 0.0
        %4596 = vmatprep.subr.mxu0 0.0
        %4597 = vmatpush1.msra.mxu0 0.0
        %4598 = vmatprep.subr.mxu0 0.0
        %4599 = vmatpush1.msra.mxu0 0.0
        %4600 = vmatprep.subr.mxu0 0.0
        %4601 = vmatpush1.msra.mxu0 0.0
        %4602 = vmatprep.subr.mxu0 0.0
        %4603 = vmatpush1.msra.mxu0 0.0
        %4604 = vmatprep.subr.mxu0 0.0
        %4605 = vmatpush1.msra.mxu0 0.0
        %4606 = vmatprep.subr.mxu0 0.0
        %4607 = vmatpush1.msra.mxu0 0.0
        %4608 = vmatprep.subr.mxu0 0.0
        %4609 = vmatpush1.msra.mxu0 0.0
        %4610 = vmatprep.subr.mxu0 0.0
        %4611 = vmatpush1.msra.mxu0 0.0
        %4612 = vmatprep.subr.mxu0 0.0
        %4613 = vmatpush1.msra.mxu0 0.0
        %4614 = vmatprep.subr.mxu0 0.0
        %4615 = vmatpush1.msra.mxu0 0.0
        %4616 = vmatprep.subr.mxu0 0.0
        %4617 = vmatpush1.msra.mxu0 %v4563
        %4618 = vmatprep.subr.mxu0 0.0
        %4619 = vmatpush1.msra.mxu0 %v4562
        %4620 = vmatprep.subr.mxu0 0.0
        %4621 = vmatpush2.msra.mxu0 0.0
        %4622 = vmatprep.subr.mxu0 0.0
        %4623 = vmatpush2.msra.mxu0 0.0
        %4624 = vmatprep.subr.mxu0 0.0
        %4625 = vmatpush2.msra.mxu0 0.0
        %4626 = vmatprep.subr.mxu0 0.0
        %4627 = vmatpush2.msra.mxu0 0.0
        %4628 = vmatprep.subr.mxu0 0.0
        %4629 = vmatpush2.msra.mxu0 0.0
        %4630 = vmatprep.subr.mxu0 0.0
        %4631 = vmatpush2.msra.mxu0 0.0
        %4632 = vmatprep.subr.mxu0 0.0
        %4633 = vmatpush2.msra.mxu0 0.0
        %4634 = vmatprep.subr.mxu0 0.0
        %4635 = vmatpush2.msra.mxu0 0.0
        %4636 = vmatprep.subr.mxu0 0.0
        %4637 = vmatpush2.msra.mxu0 0.0
        %4638 = vmatprep.subr.mxu0 0.0
        %4639 = vmatpush2.msra.mxu0 0.0
        %4640 = vmatprep.subr.mxu0 0.0
        %4641 = vmatpush2.msra.mxu0 0.0
        %4642 = vmatprep.subr.mxu0 0.0
        %4643 = vmatpush2.msra.mxu0 0.0
        %4644 = vmatprep.subr.mxu0 0.0
        %4645 = vmatpush2.msra.mxu0 0.0
        %4646 = vmatprep.subr.mxu0 0.0
        %4647 = vmatpush2.msra.mxu0 0.0
        %4648 = vmatprep.subr.mxu0 0.0
        %4649 = vmatpush2.msra.mxu0 0.0
        %4650 = vmatprep.subr.mxu0 0.0
        %4651 = vmatpush2.msra.mxu0 0.0
        %4652 = vmatprep.mubr.f32.mxu0 0.0
        %4653 = vmatmul.mubr.f32.gmra.mxu0 %v4565
        %v4654 = vpop.f32.mrf.mxu0
        %v4655 = vadd.f32 0.0, %v4654
        %v4656 = vpop.f32.mrf.mxu0
        %4657 = vmatprep.mubr.f32.mxu0 0.0
        %4658 = vmatmul.mubr.f32.gmra.mxu0 %v4568
        %v4659 = vpop.f32.mrf.mxu0
        %v4660 = vadd.f32 0.0, %v4659
        %v4661 = vpop.f32.mrf.mxu0
        %4662 = vmatprep.mubr.f32.mxu0 0.0
        %4663 = vmatmul.mubr.f32.gmra.mxu0 %v4571
        %v4664 = vpop.f32.mrf.mxu0
        %v4665 = vadd.f32 0.0, %v4664
        %v4666 = vpop.f32.mrf.mxu0
        %4667 = vmatprep.mubr.f32.mxu0 0.0
        %4668 = vmatmul.mubr.f32.gmra.mxu0 %v4574
        %v4669 = vpop.f32.mrf.mxu0
        %v4670 = vadd.f32 0.0, %v4669
        %v4671 = vpop.f32.mrf.mxu0
        %4672 = vmatprep.mubr.f32.mxu0 0.0
        %4673 = vmatmul.mubr.f32.gmra.mxu0 %v4577
        %v4674 = vpop.f32.mrf.mxu0
        %v4675 = vadd.f32 0.0, %v4674
        %v4676 = vpop.f32.mrf.mxu0
        %4677 = vmatprep.mubr.f32.mxu0 0.0
        %4678 = vmatmul.mubr.f32.gmra.mxu0 %v4580
        %v4679 = vpop.f32.mrf.mxu0
        %v4680 = vadd.f32 0.0, %v4679
        %v4681 = vpop.f32.mrf.mxu0
        %4682 = vmatprep.mubr.f32.mxu0 0.0
        %4683 = vmatmul.mubr.f32.gmra.mxu0 %v4583
        %v4684 = vpop.f32.mrf.mxu0
        %v4685 = vadd.f32 0.0, %v4684
        %v4686 = vpop.f32.mrf.mxu0
        %4687 = vmatprep.mubr.f32.mxu0 0.0
        %4688 = vmatmul.mubr.f32.gmra.mxu0 %v4586
        %v4689 = vpop.f32.mrf.mxu0
        %v4690 = vadd.f32 0.0, %v4689
        %v4691 = vpop.f32.mrf.mxu0
        %4692 = vdwg.mxu0
        %v4693 = vadd.f32 %v4537, %v4655
        %v4694 = vadd.f32 %v4538, %v4660
        %v4695 = vadd.f32 %v4539, %v4665
        %v4696 = vadd.f32 %v4540, %v4670
        %v4697 = vadd.f32 %v4541, %v4675
        %v4698 = vadd.f32 %v4542, %v4680
        %v4699 = vadd.f32 %v4543, %v4685
        %v4700 = vadd.f32 %v4544, %v4690
        %v4701 = vld [vmem:[#allocation2 + $0x10] sm:$0xff]
        %v4702 = vld [vmem:[#allocation2 + $0x18] sm:$0xff]
        %v4703 = vld [vmem:[#allocation2 + $0x20] sm:$0xff]
        %v4704 = vld [vmem:[#allocation2 + $0x28] sm:$0xff]
        %v4705 = vld [vmem:[#allocation2 + $0x30] sm:$0xff]
        %v4706 = vld [vmem:[#allocation2 + $0x38] sm:$0xff]
        %v4707 = vld [vmem:[#allocation2 + $0x40] sm:$0xff]
        %v4708 = vld [vmem:[#allocation2 + $0x48] sm:$0xff]
        %s4709 = scalar_lea.vmem %s3, 64
        %v4710 = vld [vmem:[%s4709] sm:$0xff]
        %v4711 = vld [vmem:[%s4709 + $0x8] sm:$0xff]
        %v4713 = vsel %vm4065, %v4701, 0
        %v4716 = vsel %vm4065, %v4702, 0
        %v4719 = vsel %vm4065, %v4703, 0
        %v4722 = vsel %vm4065, %v4704, 0
        %v4725 = vsel %vm4065, %v4705, 0
        %v4728 = vsel %vm4065, %v4706, 0
        %v4731 = vsel %vm4065, %v4707, 0
        %v4734 = vsel %vm4065, %v4708, 0
        %4736 = vmatprep.subr.mxu0 0.0
        %4737 = vmatpush1.msra.mxu0 0.0
        %4738 = vmatprep.subr.mxu0 0.0
        %4739 = vmatpush1.msra.mxu0 0.0
        %4740 = vmatprep.subr.mxu0 0.0
        %4741 = vmatpush1.msra.mxu0 0.0
        %4742 = vmatprep.subr.mxu0 0.0
        %4743 = vmatpush1.msra.mxu0 0.0
        %4744 = vmatprep.subr.mxu0 0.0
        %4745 = vmatpush1.msra.mxu0 0.0
        %4746 = vmatprep.subr.mxu0 0.0
        %4747 = vmatpush1.msra.mxu0 0.0
        %4748 = vmatprep.subr.mxu0 0.0
        %4749 = vmatpush1.msra.mxu0 0.0
        %4750 = vmatprep.subr.mxu0 0.0
        %4751 = vmatpush1.msra.mxu0 0.0
        %4752 = vmatprep.subr.mxu0 0.0
        %4753 = vmatpush1.msra.mxu0 0.0
        %4754 = vmatprep.subr.mxu0 0.0
        %4755 = vmatpush1.msra.mxu0 0.0
        %4756 = vmatprep.subr.mxu0 0.0
        %4757 = vmatpush1.msra.mxu0 0.0
        %4758 = vmatprep.subr.mxu0 0.0
        %4759 = vmatpush1.msra.mxu0 0.0
        %4760 = vmatprep.subr.mxu0 0.0
        %4761 = vmatpush1.msra.mxu0 0.0
        %4762 = vmatprep.subr.mxu0 0.0
        %4763 = vmatpush1.msra.mxu0 0.0
        %4764 = vmatprep.subr.mxu0 0.0
        %4765 = vmatpush1.msra.mxu0 %v4711
        %4766 = vmatprep.subr.mxu0 0.0
        %4767 = vmatpush1.msra.mxu0 %v4710
        %4768 = vmatprep.subr.mxu0 0.0
        %4769 = vmatpush2.msra.mxu0 0.0
        %4770 = vmatprep.subr.mxu0 0.0
        %4771 = vmatpush2.msra.mxu0 0.0
        %4772 = vmatprep.subr.mxu0 0.0
        %4773 = vmatpush2.msra.mxu0 0.0
        %4774 = vmatprep.subr.mxu0 0.0
        %4775 = vmatpush2.msra.mxu0 0.0
        %4776 = vmatprep.subr.mxu0 0.0
        %4777 = vmatpush2.msra.mxu0 0.0
        %4778 = vmatprep.subr.mxu0 0.0
        %4779 = vmatpush2.msra.mxu0 0.0
        %4780 = vmatprep.subr.mxu0 0.0
        %4781 = vmatpush2.msra.mxu0 0.0
        %4782 = vmatprep.subr.mxu0 0.0
        %4783 = vmatpush2.msra.mxu0 0.0
        %4784 = vmatprep.subr.mxu0 0.0
        %4785 = vmatpush2.msra.mxu0 0.0
        %4786 = vmatprep.subr.mxu0 0.0
        %4787 = vmatpush2.msra.mxu0 0.0
        %4788 = vmatprep.subr.mxu0 0.0
        %4789 = vmatpush2.msra.mxu0 0.0
        %4790 = vmatprep.subr.mxu0 0.0
        %4791 = vmatpush2.msra.mxu0 0.0
        %4792 = vmatprep.subr.mxu0 0.0
        %4793 = vmatpush2.msra.mxu0 0.0
        %4794 = vmatprep.subr.mxu0 0.0
        %4795 = vmatpush2.msra.mxu0 0.0
        %4796 = vmatprep.subr.mxu0 0.0
        %4797 = vmatpush2.msra.mxu0 0.0
        %4798 = vmatprep.subr.mxu0 0.0
        %4799 = vmatpush2.msra.mxu0 0.0
        %4800 = vmatprep.mubr.f32.mxu0 0.0
        %4801 = vmatmul.mubr.f32.gmra.mxu0 %v4713
        %v4802 = vpop.f32.mrf.mxu0
        %v4803 = vadd.f32 0.0, %v4802
        %v4804 = vpop.f32.mrf.mxu0
        %4805 = vmatprep.mubr.f32.mxu0 0.0
        %4806 = vmatmul.mubr.f32.gmra.mxu0 %v4716
        %v4807 = vpop.f32.mrf.mxu0
        %v4808 = vadd.f32 0.0, %v4807
        %v4809 = vpop.f32.mrf.mxu0
        %4810 = vmatprep.mubr.f32.mxu0 0.0
        %4811 = vmatmul.mubr.f32.gmra.mxu0 %v4719
        %v4812 = vpop.f32.mrf.mxu0
        %v4813 = vadd.f32 0.0, %v4812
        %v4814 = vpop.f32.mrf.mxu0
        %4815 = vmatprep.mubr.f32.mxu0 0.0
        %4816 = vmatmul.mubr.f32.gmra.mxu0 %v4722
        %v4817 = vpop.f32.mrf.mxu0
        %v4818 = vadd.f32 0.0, %v4817
        %v4819 = vpop.f32.mrf.mxu0
        %4820 = vmatprep.mubr.f32.mxu0 0.0
        %4821 = vmatmul.mubr.f32.gmra.mxu0 %v4725
        %v4822 = vpop.f32.mrf.mxu0
        %v4823 = vadd.f32 0.0, %v4822
        %v4824 = vpop.f32.mrf.mxu0
        %4825 = vmatprep.mubr.f32.mxu0 0.0
        %4826 = vmatmul.mubr.f32.gmra.mxu0 %v4728
        %v4827 = vpop.f32.mrf.mxu0
        %v4828 = vadd.f32 0.0, %v4827
        %v4829 = vpop.f32.mrf.mxu0
        %4830 = vmatprep.mubr.f32.mxu0 0.0
        %4831 = vmatmul.mubr.f32.gmra.mxu0 %v4731
        %v4832 = vpop.f32.mrf.mxu0
        %v4833 = vadd.f32 0.0, %v4832
        %v4834 = vpop.f32.mrf.mxu0
        %4835 = vmatprep.mubr.f32.mxu0 0.0
        %4836 = vmatmul.mubr.f32.gmra.mxu0 %v4734
        %v4837 = vpop.f32.mrf.mxu0
        %v4838 = vadd.f32 0.0, %v4837
        %v4839 = vpop.f32.mrf.mxu0
        %4840 = vdwg.mxu0
        %v4841 = vadd.f32 %v4693, %v4803
        %v4842 = vadd.f32 %v4694, %v4808
        %v4843 = vadd.f32 %v4695, %v4813
        %v4844 = vadd.f32 %v4696, %v4818
        %v4845 = vadd.f32 %v4697, %v4823
        %v4846 = vadd.f32 %v4698, %v4828
        %v4847 = vadd.f32 %v4699, %v4833
        %v4848 = vadd.f32 %v4700, %v4838
        %v4849 = vld [vmem:[#allocation2 + $0x11] sm:$0xff]
        %v4850 = vld [vmem:[#allocation2 + $0x19] sm:$0xff]
        %v4851 = vld [vmem:[#allocation2 + $0x21] sm:$0xff]
        %v4852 = vld [vmem:[#allocation2 + $0x29] sm:$0xff]
        %v4853 = vld [vmem:[#allocation2 + $0x31] sm:$0xff]
        %v4854 = vld [vmem:[#allocation2 + $0x39] sm:$0xff]
        %v4855 = vld [vmem:[#allocation2 + $0x41] sm:$0xff]
        %v4856 = vld [vmem:[#allocation2 + $0x49] sm:$0xff]
        %v4857 = vsel %vm4389, 0.0, %v4849
        %v4858 = vsel %vm4390, 0.0, %v4850
        %v4859 = vsel %vm4391, 0.0, %v4851
        %v4860 = vsel %vm4392, 0.0, %v4852
        %v4861 = vsel %vm4393, 0.0, %v4853
        %v4862 = vsel %vm4394, 0.0, %v4854
        %v4863 = vsel %vm4395, 0.0, %v4855
        %v4864 = vsel %vm4396, 0.0, %v4856
        %s4865 = scalar_lea.vmem %s3, 80
        %v4866 = vld [vmem:[%s4865] sm:$0xff]
        %v4867 = vld [vmem:[%s4865 + $0x8] sm:$0xff]
        %v4869 = vsel %vm4065, %v4857, 0
        %v4872 = vsel %vm4065, %v4858, 0
        %v4875 = vsel %vm4065, %v4859, 0
        %v4878 = vsel %vm4065, %v4860, 0
        %v4881 = vsel %vm4065, %v4861, 0
        %v4884 = vsel %vm4065, %v4862, 0
        %v4887 = vsel %vm4065, %v4863, 0
        %v4890 = vsel %vm4065, %v4864, 0
        %4892 = vmatprep.subr.mxu0 0.0
        %4893 = vmatpush1.msra.mxu0 0.0
        %4894 = vmatprep.subr.mxu0 0.0
        %4895 = vmatpush1.msra.mxu0 0.0
        %4896 = vmatprep.subr.mxu0 0.0
        %4897 = vmatpush1.msra.mxu0 0.0
        %4898 = vmatprep.subr.mxu0 0.0
        %4899 = vmatpush1.msra.mxu0 0.0
        %4900 = vmatprep.subr.mxu0 0.0
        %4901 = vmatpush1.msra.mxu0 0.0
        %4902 = vmatprep.subr.mxu0 0.0
        %4903 = vmatpush1.msra.mxu0 0.0
        %4904 = vmatprep.subr.mxu0 0.0
        %4905 = vmatpush1.msra.mxu0 0.0
        %4906 = vmatprep.subr.mxu0 0.0
        %4907 = vmatpush1.msra.mxu0 0.0
        %4908 = vmatprep.subr.mxu0 0.0
        %4909 = vmatpush1.msra.mxu0 0.0
        %4910 = vmatprep.subr.mxu0 0.0
        %4911 = vmatpush1.msra.mxu0 0.0
        %4912 = vmatprep.subr.mxu0 0.0
        %4913 = vmatpush1.msra.mxu0 0.0
        %4914 = vmatprep.subr.mxu0 0.0
        %4915 = vmatpush1.msra.mxu0 0.0
        %4916 = vmatprep.subr.mxu0 0.0
        %4917 = vmatpush1.msra.mxu0 0.0
        %4918 = vmatprep.subr.mxu0 0.0
        %4919 = vmatpush1.msra.mxu0 0.0
        %4920 = vmatprep.subr.mxu0 0.0
        %4921 = vmatpush1.msra.mxu0 %v4867
        %4922 = vmatprep.subr.mxu0 0.0
        %4923 = vmatpush1.msra.mxu0 %v4866
        %4924 = vmatprep.subr.mxu0 0.0
        %4925 = vmatpush2.msra.mxu0 0.0
        %4926 = vmatprep.subr.mxu0 0.0
        %4927 = vmatpush2.msra.mxu0 0.0
        %4928 = vmatprep.subr.mxu0 0.0
        %4929 = vmatpush2.msra.mxu0 0.0
        %4930 = vmatprep.subr.mxu0 0.0
        %4931 = vmatpush2.msra.mxu0 0.0
        %4932 = vmatprep.subr.mxu0 0.0
        %4933 = vmatpush2.msra.mxu0 0.0
        %4934 = vmatprep.subr.mxu0 0.0
        %4935 = vmatpush2.msra.mxu0 0.0
        %4936 = vmatprep.subr.mxu0 0.0
        %4937 = vmatpush2.msra.mxu0 0.0
        %4938 = vmatprep.subr.mxu0 0.0
        %4939 = vmatpush2.msra.mxu0 0.0
        %4940 = vmatprep.subr.mxu0 0.0
        %4941 = vmatpush2.msra.mxu0 0.0
        %4942 = vmatprep.subr.mxu0 0.0
        %4943 = vmatpush2.msra.mxu0 0.0
        %4944 = vmatprep.subr.mxu0 0.0
        %4945 = vmatpush2.msra.mxu0 0.0
        %4946 = vmatprep.subr.mxu0 0.0
        %4947 = vmatpush2.msra.mxu0 0.0
        %4948 = vmatprep.subr.mxu0 0.0
        %4949 = vmatpush2.msra.mxu0 0.0
        %4950 = vmatprep.subr.mxu0 0.0
        %4951 = vmatpush2.msra.mxu0 0.0
        %4952 = vmatprep.subr.mxu0 0.0
        %4953 = vmatpush2.msra.mxu0 0.0
        %4954 = vmatprep.subr.mxu0 0.0
        %4955 = vmatpush2.msra.mxu0 0.0
        %4956 = vmatprep.mubr.f32.mxu0 0.0
        %4957 = vmatmul.mubr.f32.gmra.mxu0 %v4869
        %v4958 = vpop.f32.mrf.mxu0
        %v4959 = vadd.f32 0.0, %v4958
        %v4960 = vpop.f32.mrf.mxu0
        %4961 = vmatprep.mubr.f32.mxu0 0.0
        %4962 = vmatmul.mubr.f32.gmra.mxu0 %v4872
        %v4963 = vpop.f32.mrf.mxu0
        %v4964 = vadd.f32 0.0, %v4963
        %v4965 = vpop.f32.mrf.mxu0
        %4966 = vmatprep.mubr.f32.mxu0 0.0
        %4967 = vmatmul.mubr.f32.gmra.mxu0 %v4875
        %v4968 = vpop.f32.mrf.mxu0
        %v4969 = vadd.f32 0.0, %v4968
        %v4970 = vpop.f32.mrf.mxu0
        %4971 = vmatprep.mubr.f32.mxu0 0.0
        %4972 = vmatmul.mubr.f32.gmra.mxu0 %v4878
        %v4973 = vpop.f32.mrf.mxu0
        %v4974 = vadd.f32 0.0, %v4973
        %v4975 = vpop.f32.mrf.mxu0
        %4976 = vmatprep.mubr.f32.mxu0 0.0
        %4977 = vmatmul.mubr.f32.gmra.mxu0 %v4881
        %v4978 = vpop.f32.mrf.mxu0
        %v4979 = vadd.f32 0.0, %v4978
        %v4980 = vpop.f32.mrf.mxu0
        %4981 = vmatprep.mubr.f32.mxu0 0.0
        %4982 = vmatmul.mubr.f32.gmra.mxu0 %v4884
        %v4983 = vpop.f32.mrf.mxu0
        %v4984 = vadd.f32 0.0, %v4983
        %v4985 = vpop.f32.mrf.mxu0
        %4986 = vmatprep.mubr.f32.mxu0 0.0
        %4987 = vmatmul.mubr.f32.gmra.mxu0 %v4887
        %v4988 = vpop.f32.mrf.mxu0
        %v4989 = vadd.f32 0.0, %v4988
        %v4990 = vpop.f32.mrf.mxu0
        %4991 = vmatprep.mubr.f32.mxu0 0.0
        %4992 = vmatmul.mubr.f32.gmra.mxu0 %v4890
        %v4993 = vpop.f32.mrf.mxu0
        %v4994 = vadd.f32 0.0, %v4993
        %v4995 = vpop.f32.mrf.mxu0
        %4996 = vdwg.mxu0
        %v4997 = vadd.f32 %v4841, %v4959
        %v4998 = vadd.f32 %v4842, %v4964
        %v4999 = vadd.f32 %v4843, %v4969
        %v5000 = vadd.f32 %v4844, %v4974
        %v5001 = vadd.f32 %v4845, %v4979
        %v5002 = vadd.f32 %v4846, %v4984
        %v5003 = vadd.f32 %v4847, %v4989
        %v5004 = vadd.f32 %v4848, %v4994
        %v5005 = vld [vmem:[#allocation2 + $0x17] sm:$0xff]
        %v5006 = vld [vmem:[#allocation2 + $0x1f] sm:$0xff]
        %v5007 = vld [vmem:[#allocation2 + $0x27] sm:$0xff]
        %v5008 = vld [vmem:[#allocation2 + $0x2f] sm:$0xff]
        %v5009 = vld [vmem:[#allocation2 + $0x37] sm:$0xff]
        %v5010 = vld [vmem:[#allocation2 + $0x3f] sm:$0xff]
        %v5011 = vld [vmem:[#allocation2 + $0x47] sm:$0xff]
        %v5012 = vld [vmem:[#allocation2 + $0x4f] sm:$0xff]
        %v5013 = vsel %vm4094, 0.0, %v5005
        %v5014 = vsel %vm4095, 0.0, %v5006
        %v5015 = vsel %vm4096, 0.0, %v5007
        %v5016 = vsel %vm4097, 0.0, %v5008
        %v5017 = vsel %vm4098, 0.0, %v5009
        %v5018 = vsel %vm4099, 0.0, %v5010
        %v5019 = vsel %vm4100, 0.0, %v5011
        %v5020 = vsel %vm4101, 0.0, %v5012
        %s5021 = scalar_lea.vmem %s3, 96
        %v5022 = vld [vmem:[%s5021] sm:$0xff]
        %v5023 = vld [vmem:[%s5021 + $0x8] sm:$0xff]
        %v5025 = vsel %vm4065, %v5013, 0
        %v5028 = vsel %vm4065, %v5014, 0
        %v5031 = vsel %vm4065, %v5015, 0
        %v5034 = vsel %vm4065, %v5016, 0
        %v5037 = vsel %vm4065, %v5017, 0
        %v5040 = vsel %vm4065, %v5018, 0
        %v5043 = vsel %vm4065, %v5019, 0
        %v5046 = vsel %vm4065, %v5020, 0
        %5048 = vmatprep.subr.mxu0 0.0
        %5049 = vmatpush1.msra.mxu0 0.0
        %5050 = vmatprep.subr.mxu0 0.0
        %5051 = vmatpush1.msra.mxu0 0.0
        %5052 = vmatprep.subr.mxu0 0.0
        %5053 = vmatpush1.msra.mxu0 0.0
        %5054 = vmatprep.subr.mxu0 0.0
        %5055 = vmatpush1.msra.mxu0 0.0
        %5056 = vmatprep.subr.mxu0 0.0
        %5057 = vmatpush1.msra.mxu0 0.0
        %5058 = vmatprep.subr.mxu0 0.0
        %5059 = vmatpush1.msra.mxu0 0.0
        %5060 = vmatprep.subr.mxu0 0.0
        %5061 = vmatpush1.msra.mxu0 0.0
        %5062 = vmatprep.subr.mxu0 0.0
        %5063 = vmatpush1.msra.mxu0 0.0
        %5064 = vmatprep.subr.mxu0 0.0
        %5065 = vmatpush1.msra.mxu0 0.0
        %5066 = vmatprep.subr.mxu0 0.0
        %5067 = vmatpush1.msra.mxu0 0.0
        %5068 = vmatprep.subr.mxu0 0.0
        %5069 = vmatpush1.msra.mxu0 0.0
        %5070 = vmatprep.subr.mxu0 0.0
        %5071 = vmatpush1.msra.mxu0 0.0
        %5072 = vmatprep.subr.mxu0 0.0
        %5073 = vmatpush1.msra.mxu0 0.0
        %5074 = vmatprep.subr.mxu0 0.0
        %5075 = vmatpush1.msra.mxu0 0.0
        %5076 = vmatprep.subr.mxu0 0.0
        %5077 = vmatpush1.msra.mxu0 %v5023
        %5078 = vmatprep.subr.mxu0 0.0
        %5079 = vmatpush1.msra.mxu0 %v5022
        %5080 = vmatprep.subr.mxu0 0.0
        %5081 = vmatpush2.msra.mxu0 0.0
        %5082 = vmatprep.subr.mxu0 0.0
        %5083 = vmatpush2.msra.mxu0 0.0
        %5084 = vmatprep.subr.mxu0 0.0
        %5085 = vmatpush2.msra.mxu0 0.0
        %5086 = vmatprep.subr.mxu0 0.0
        %5087 = vmatpush2.msra.mxu0 0.0
        %5088 = vmatprep.subr.mxu0 0.0
        %5089 = vmatpush2.msra.mxu0 0.0
        %5090 = vmatprep.subr.mxu0 0.0
        %5091 = vmatpush2.msra.mxu0 0.0
        %5092 = vmatprep.subr.mxu0 0.0
        %5093 = vmatpush2.msra.mxu0 0.0
        %5094 = vmatprep.subr.mxu0 0.0
        %5095 = vmatpush2.msra.mxu0 0.0
        %5096 = vmatprep.subr.mxu0 0.0
        %5097 = vmatpush2.msra.mxu0 0.0
        %5098 = vmatprep.subr.mxu0 0.0
        %5099 = vmatpush2.msra.mxu0 0.0
        %5100 = vmatprep.subr.mxu0 0.0
        %5101 = vmatpush2.msra.mxu0 0.0
        %5102 = vmatprep.subr.mxu0 0.0
        %5103 = vmatpush2.msra.mxu0 0.0
        %5104 = vmatprep.subr.mxu0 0.0
        %5105 = vmatpush2.msra.mxu0 0.0
        %5106 = vmatprep.subr.mxu0 0.0
        %5107 = vmatpush2.msra.mxu0 0.0
        %5108 = vmatprep.subr.mxu0 0.0
        %5109 = vmatpush2.msra.mxu0 0.0
        %5110 = vmatprep.subr.mxu0 0.0
        %5111 = vmatpush2.msra.mxu0 0.0
        %5112 = vmatprep.mubr.f32.mxu0 0.0
        %5113 = vmatmul.mubr.f32.gmra.mxu0 %v5025
        %v5114 = vpop.f32.mrf.mxu0
        %v5115 = vadd.f32 0.0, %v5114
        %v5116 = vpop.f32.mrf.mxu0
        %5117 = vmatprep.mubr.f32.mxu0 0.0
        %5118 = vmatmul.mubr.f32.gmra.mxu0 %v5028
        %v5119 = vpop.f32.mrf.mxu0
        %v5120 = vadd.f32 0.0, %v5119
        %v5121 = vpop.f32.mrf.mxu0
        %5122 = vmatprep.mubr.f32.mxu0 0.0
        %5123 = vmatmul.mubr.f32.gmra.mxu0 %v5031
        %v5124 = vpop.f32.mrf.mxu0
        %v5125 = vadd.f32 0.0, %v5124
        %v5126 = vpop.f32.mrf.mxu0
        %5127 = vmatprep.mubr.f32.mxu0 0.0
        %5128 = vmatmul.mubr.f32.gmra.mxu0 %v5034
        %v5129 = vpop.f32.mrf.mxu0
        %v5130 = vadd.f32 0.0, %v5129
        %v5131 = vpop.f32.mrf.mxu0
        %5132 = vmatprep.mubr.f32.mxu0 0.0
        %5133 = vmatmul.mubr.f32.gmra.mxu0 %v5037
        %v5134 = vpop.f32.mrf.mxu0
        %v5135 = vadd.f32 0.0, %v5134
        %v5136 = vpop.f32.mrf.mxu0
        %5137 = vmatprep.mubr.f32.mxu0 0.0
        %5138 = vmatmul.mubr.f32.gmra.mxu0 %v5040
        %v5139 = vpop.f32.mrf.mxu0
        %v5140 = vadd.f32 0.0, %v5139
        %v5141 = vpop.f32.mrf.mxu0
        %5142 = vmatprep.mubr.f32.mxu0 0.0
        %5143 = vmatmul.mubr.f32.gmra.mxu0 %v5043
        %v5144 = vpop.f32.mrf.mxu0
        %v5145 = vadd.f32 0.0, %v5144
        %v5146 = vpop.f32.mrf.mxu0
        %5147 = vmatprep.mubr.f32.mxu0 0.0
        %5148 = vmatmul.mubr.f32.gmra.mxu0 %v5046
        %v5149 = vpop.f32.mrf.mxu0
        %v5150 = vadd.f32 0.0, %v5149
        %v5151 = vpop.f32.mrf.mxu0
        %5152 = vdwg.mxu0
        %v5153 = vadd.f32 %v4997, %v5115
        %v5154 = vadd.f32 %v4998, %v5120
        %v5155 = vadd.f32 %v4999, %v5125
        %v5156 = vadd.f32 %v5000, %v5130
        %v5157 = vadd.f32 %v5001, %v5135
        %v5158 = vadd.f32 %v5002, %v5140
        %v5159 = vadd.f32 %v5003, %v5145
        %v5160 = vadd.f32 %v5004, %v5150
        %v5161 = vld [vmem:[#allocation2 + $0x18] sm:$0xff]
        %v5162 = vld [vmem:[#allocation2 + $0x20] sm:$0xff]
        %v5163 = vld [vmem:[#allocation2 + $0x28] sm:$0xff]
        %v5164 = vld [vmem:[#allocation2 + $0x30] sm:$0xff]
        %v5165 = vld [vmem:[#allocation2 + $0x38] sm:$0xff]
        %v5166 = vld [vmem:[#allocation2 + $0x40] sm:$0xff]
        %v5167 = vld [vmem:[#allocation2 + $0x48] sm:$0xff]
        %v5168 = vld [vmem:[#allocation2 + $0x50] sm:$0xff]
        %s5169 = scalar_lea.vmem %s3, 112
        %v5170 = vld [vmem:[%s5169] sm:$0xff]
        %v5171 = vld [vmem:[%s5169 + $0x8] sm:$0xff]
        %v5173 = vsel %vm4065, %v5161, 0
        %v5176 = vsel %vm4065, %v5162, 0
        %v5179 = vsel %vm4065, %v5163, 0
        %v5182 = vsel %vm4065, %v5164, 0
        %v5185 = vsel %vm4065, %v5165, 0
        %v5188 = vsel %vm4065, %v5166, 0
        %v5191 = vsel %vm4065, %v5167, 0
        %v5194 = vsel %vm4065, %v5168, 0
        %5196 = vmatprep.subr.mxu0 0.0
        %5197 = vmatpush1.msra.mxu0 0.0
        %5198 = vmatprep.subr.mxu0 0.0
        %5199 = vmatpush1.msra.mxu0 0.0
        %5200 = vmatprep.subr.mxu0 0.0
        %5201 = vmatpush1.msra.mxu0 0.0
        %5202 = vmatprep.subr.mxu0 0.0
        %5203 = vmatpush1.msra.mxu0 0.0
        %5204 = vmatprep.subr.mxu0 0.0
        %5205 = vmatpush1.msra.mxu0 0.0
        %5206 = vmatprep.subr.mxu0 0.0
        %5207 = vmatpush1.msra.mxu0 0.0
        %5208 = vmatprep.subr.mxu0 0.0
        %5209 = vmatpush1.msra.mxu0 0.0
        %5210 = vmatprep.subr.mxu0 0.0
        %5211 = vmatpush1.msra.mxu0 0.0
        %5212 = vmatprep.subr.mxu0 0.0
        %5213 = vmatpush1.msra.mxu0 0.0
        %5214 = vmatprep.subr.mxu0 0.0
        %5215 = vmatpush1.msra.mxu0 0.0
        %5216 = vmatprep.subr.mxu0 0.0
        %5217 = vmatpush1.msra.mxu0 0.0
        %5218 = vmatprep.subr.mxu0 0.0
        %5219 = vmatpush1.msra.mxu0 0.0
        %5220 = vmatprep.subr.mxu0 0.0
        %5221 = vmatpush1.msra.mxu0 0.0
        %5222 = vmatprep.subr.mxu0 0.0
        %5223 = vmatpush1.msra.mxu0 0.0
        %5224 = vmatprep.subr.mxu0 0.0
        %5225 = vmatpush1.msra.mxu0 %v5171
        %5226 = vmatprep.subr.mxu0 0.0
        %5227 = vmatpush1.msra.mxu0 %v5170
        %5228 = vmatprep.subr.mxu0 0.0
        %5229 = vmatpush2.msra.mxu0 0.0
        %5230 = vmatprep.subr.mxu0 0.0
        %5231 = vmatpush2.msra.mxu0 0.0
        %5232 = vmatprep.subr.mxu0 0.0
        %5233 = vmatpush2.msra.mxu0 0.0
        %5234 = vmatprep.subr.mxu0 0.0
        %5235 = vmatpush2.msra.mxu0 0.0
        %5236 = vmatprep.subr.mxu0 0.0
        %5237 = vmatpush2.msra.mxu0 0.0
        %5238 = vmatprep.subr.mxu0 0.0
        %5239 = vmatpush2.msra.mxu0 0.0
        %5240 = vmatprep.subr.mxu0 0.0
        %5241 = vmatpush2.msra.mxu0 0.0
        %5242 = vmatprep.subr.mxu0 0.0
        %5243 = vmatpush2.msra.mxu0 0.0
        %5244 = vmatprep.subr.mxu0 0.0
        %5245 = vmatpush2.msra.mxu0 0.0
        %5246 = vmatprep.subr.mxu0 0.0
        %5247 = vmatpush2.msra.mxu0 0.0
        %5248 = vmatprep.subr.mxu0 0.0
        %5249 = vmatpush2.msra.mxu0 0.0
        %5250 = vmatprep.subr.mxu0 0.0
        %5251 = vmatpush2.msra.mxu0 0.0
        %5252 = vmatprep.subr.mxu0 0.0
        %5253 = vmatpush2.msra.mxu0 0.0
        %5254 = vmatprep.subr.mxu0 0.0
        %5255 = vmatpush2.msra.mxu0 0.0
        %5256 = vmatprep.subr.mxu0 0.0
        %5257 = vmatpush2.msra.mxu0 0.0
        %5258 = vmatprep.subr.mxu0 0.0
        %5259 = vmatpush2.msra.mxu0 0.0
        %5260 = vmatprep.mubr.f32.mxu0 0.0
        %5261 = vmatmul.mubr.f32.gmra.mxu0 %v5173
        %v5262 = vpop.f32.mrf.mxu0
        %v5263 = vadd.f32 0.0, %v5262
        %v5264 = vpop.f32.mrf.mxu0
        %5265 = vmatprep.mubr.f32.mxu0 0.0
        %5266 = vmatmul.mubr.f32.gmra.mxu0 %v5176
        %v5267 = vpop.f32.mrf.mxu0
        %v5268 = vadd.f32 0.0, %v5267
        %v5269 = vpop.f32.mrf.mxu0
        %5270 = vmatprep.mubr.f32.mxu0 0.0
        %5271 = vmatmul.mubr.f32.gmra.mxu0 %v5179
        %v5272 = vpop.f32.mrf.mxu0
        %v5273 = vadd.f32 0.0, %v5272
        %v5274 = vpop.f32.mrf.mxu0
        %5275 = vmatprep.mubr.f32.mxu0 0.0
        %5276 = vmatmul.mubr.f32.gmra.mxu0 %v5182
        %v5277 = vpop.f32.mrf.mxu0
        %v5278 = vadd.f32 0.0, %v5277
        %v5279 = vpop.f32.mrf.mxu0
        %5280 = vmatprep.mubr.f32.mxu0 0.0
        %5281 = vmatmul.mubr.f32.gmra.mxu0 %v5185
        %v5282 = vpop.f32.mrf.mxu0
        %v5283 = vadd.f32 0.0, %v5282
        %v5284 = vpop.f32.mrf.mxu0
        %5285 = vmatprep.mubr.f32.mxu0 0.0
        %5286 = vmatmul.mubr.f32.gmra.mxu0 %v5188
        %v5287 = vpop.f32.mrf.mxu0
        %v5288 = vadd.f32 0.0, %v5287
        %v5289 = vpop.f32.mrf.mxu0
        %5290 = vmatprep.mubr.f32.mxu0 0.0
        %5291 = vmatmul.mubr.f32.gmra.mxu0 %v5191
        %v5292 = vpop.f32.mrf.mxu0
        %v5293 = vadd.f32 0.0, %v5292
        %v5294 = vpop.f32.mrf.mxu0
        %5295 = vmatprep.mubr.f32.mxu0 0.0
        %5296 = vmatmul.mubr.f32.gmra.mxu0 %v5194
        %v5297 = vpop.f32.mrf.mxu0
        %v5298 = vadd.f32 0.0, %v5297
        %v5299 = vpop.f32.mrf.mxu0
        %5300 = vdwg.mxu0
        %v5301 = vadd.f32 %v5153, %v5263
        %v5302 = vadd.f32 %v5154, %v5268
        %v5303 = vadd.f32 %v5155, %v5273
        %v5304 = vadd.f32 %v5156, %v5278
        %v5305 = vadd.f32 %v5157, %v5283
        %v5306 = vadd.f32 %v5158, %v5288
        %v5307 = vadd.f32 %v5159, %v5293
        %v5308 = vadd.f32 %v5160, %v5298
        %v5309 = vld [vmem:[#allocation2 + $0x19] sm:$0xff]
        %v5310 = vld [vmem:[#allocation2 + $0x21] sm:$0xff]
        %v5311 = vld [vmem:[#allocation2 + $0x29] sm:$0xff]
        %v5312 = vld [vmem:[#allocation2 + $0x31] sm:$0xff]
        %v5313 = vld [vmem:[#allocation2 + $0x39] sm:$0xff]
        %v5314 = vld [vmem:[#allocation2 + $0x41] sm:$0xff]
        %v5315 = vld [vmem:[#allocation2 + $0x49] sm:$0xff]
        %v5316 = vld [vmem:[#allocation2 + $0x51] sm:$0xff]
        %v5317 = vsel %vm4389, 0.0, %v5309
        %v5318 = vsel %vm4390, 0.0, %v5310
        %v5319 = vsel %vm4391, 0.0, %v5311
        %v5320 = vsel %vm4392, 0.0, %v5312
        %v5321 = vsel %vm4393, 0.0, %v5313
        %v5322 = vsel %vm4394, 0.0, %v5314
        %v5323 = vsel %vm4395, 0.0, %v5315
        %v5324 = vsel %vm4396, 0.0, %v5316
        %s5325 = scalar_lea.vmem %s3, 128
        %v5326 = vld [vmem:[%s5325] sm:$0xff]
        %v5327 = vld [vmem:[%s5325 + $0x8] sm:$0xff]
        %v5329 = vsel %vm4065, %v5317, 0
        %v5332 = vsel %vm4065, %v5318, 0
        %v5335 = vsel %vm4065, %v5319, 0
        %v5338 = vsel %vm4065, %v5320, 0
        %v5341 = vsel %vm4065, %v5321, 0
        %v5344 = vsel %vm4065, %v5322, 0
        %v5347 = vsel %vm4065, %v5323, 0
        %v5350 = vsel %vm4065, %v5324, 0
        %5352 = vmatprep.subr.mxu0 0.0
        %5353 = vmatpush1.msra.mxu0 0.0
        %5354 = vmatprep.subr.mxu0 0.0
        %5355 = vmatpush1.msra.mxu0 0.0
        %5356 = vmatprep.subr.mxu0 0.0
        %5357 = vmatpush1.msra.mxu0 0.0
        %5358 = vmatprep.subr.mxu0 0.0
        %5359 = vmatpush1.msra.mxu0 0.0
        %5360 = vmatprep.subr.mxu0 0.0
        %5361 = vmatpush1.msra.mxu0 0.0
        %5362 = vmatprep.subr.mxu0 0.0
        %5363 = vmatpush1.msra.mxu0 0.0
        %5364 = vmatprep.subr.mxu0 0.0
        %5365 = vmatpush1.msra.mxu0 0.0
        %5366 = vmatprep.subr.mxu0 0.0
        %5367 = vmatpush1.msra.mxu0 0.0
        %5368 = vmatprep.subr.mxu0 0.0
        %5369 = vmatpush1.msra.mxu0 0.0
        %5370 = vmatprep.subr.mxu0 0.0
        %5371 = vmatpush1.msra.mxu0 0.0
        %5372 = vmatprep.subr.mxu0 0.0
        %5373 = vmatpush1.msra.mxu0 0.0
        %5374 = vmatprep.subr.mxu0 0.0
        %5375 = vmatpush1.msra.mxu0 0.0
        %5376 = vmatprep.subr.mxu0 0.0
        %5377 = vmatpush1.msra.mxu0 0.0
        %5378 = vmatprep.subr.mxu0 0.0
        %5379 = vmatpush1.msra.mxu0 0.0
        %5380 = vmatprep.subr.mxu0 0.0
        %5381 = vmatpush1.msra.mxu0 %v5327
        %5382 = vmatprep.subr.mxu0 0.0
        %5383 = vmatpush1.msra.mxu0 %v5326
        %5384 = vmatprep.subr.mxu0 0.0
        %5385 = vmatpush2.msra.mxu0 0.0
        %5386 = vmatprep.subr.mxu0 0.0
        %5387 = vmatpush2.msra.mxu0 0.0
        %5388 = vmatprep.subr.mxu0 0.0
        %5389 = vmatpush2.msra.mxu0 0.0
        %5390 = vmatprep.subr.mxu0 0.0
        %5391 = vmatpush2.msra.mxu0 0.0
        %5392 = vmatprep.subr.mxu0 0.0
        %5393 = vmatpush2.msra.mxu0 0.0
        %5394 = vmatprep.subr.mxu0 0.0
        %5395 = vmatpush2.msra.mxu0 0.0
        %5396 = vmatprep.subr.mxu0 0.0
        %5397 = vmatpush2.msra.mxu0 0.0
        %5398 = vmatprep.subr.mxu0 0.0
        %5399 = vmatpush2.msra.mxu0 0.0
        %5400 = vmatprep.subr.mxu0 0.0
        %5401 = vmatpush2.msra.mxu0 0.0
        %5402 = vmatprep.subr.mxu0 0.0
        %5403 = vmatpush2.msra.mxu0 0.0
        %5404 = vmatprep.subr.mxu0 0.0
        %5405 = vmatpush2.msra.mxu0 0.0
        %5406 = vmatprep.subr.mxu0 0.0
        %5407 = vmatpush2.msra.mxu0 0.0
        %5408 = vmatprep.subr.mxu0 0.0
        %5409 = vmatpush2.msra.mxu0 0.0
        %5410 = vmatprep.subr.mxu0 0.0
        %5411 = vmatpush2.msra.mxu0 0.0
        %5412 = vmatprep.subr.mxu0 0.0
        %5413 = vmatpush2.msra.mxu0 0.0
        %5414 = vmatprep.subr.mxu0 0.0
        %5415 = vmatpush2.msra.mxu0 0.0
        %5416 = vmatprep.mubr.f32.mxu0 0.0
        %5417 = vmatmul.mubr.f32.gmra.mxu0 %v5329
        %v5418 = vpop.f32.mrf.mxu0
        %v5419 = vadd.f32 0.0, %v5418
        %v5420 = vpop.f32.mrf.mxu0
        %5421 = vmatprep.mubr.f32.mxu0 0.0
        %5422 = vmatmul.mubr.f32.gmra.mxu0 %v5332
        %v5423 = vpop.f32.mrf.mxu0
        %v5424 = vadd.f32 0.0, %v5423
        %v5425 = vpop.f32.mrf.mxu0
        %5426 = vmatprep.mubr.f32.mxu0 0.0
        %5427 = vmatmul.mubr.f32.gmra.mxu0 %v5335
        %v5428 = vpop.f32.mrf.mxu0
        %v5429 = vadd.f32 0.0, %v5428
        %v5430 = vpop.f32.mrf.mxu0
        %5431 = vmatprep.mubr.f32.mxu0 0.0
        %5432 = vmatmul.mubr.f32.gmra.mxu0 %v5338
        %v5433 = vpop.f32.mrf.mxu0
        %v5434 = vadd.f32 0.0, %v5433
        %v5435 = vpop.f32.mrf.mxu0
        %5436 = vmatprep.mubr.f32.mxu0 0.0
        %5437 = vmatmul.mubr.f32.gmra.mxu0 %v5341
        %v5438 = vpop.f32.mrf.mxu0
        %v5439 = vadd.f32 0.0, %v5438
        %v5440 = vpop.f32.mrf.mxu0
        %5441 = vmatprep.mubr.f32.mxu0 0.0
        %5442 = vmatmul.mubr.f32.gmra.mxu0 %v5344
        %v5443 = vpop.f32.mrf.mxu0
        %v5444 = vadd.f32 0.0, %v5443
        %v5445 = vpop.f32.mrf.mxu0
        %5446 = vmatprep.mubr.f32.mxu0 0.0
        %5447 = vmatmul.mubr.f32.gmra.mxu0 %v5347
        %v5448 = vpop.f32.mrf.mxu0
        %v5449 = vadd.f32 0.0, %v5448
        %v5450 = vpop.f32.mrf.mxu0
        %5451 = vmatprep.mubr.f32.mxu0 0.0
        %5452 = vmatmul.mubr.f32.gmra.mxu0 %v5350
        %v5453 = vpop.f32.mrf.mxu0
        %v5454 = vadd.f32 0.0, %v5453
        %v5455 = vpop.f32.mrf.mxu0
        %5456 = vdwg.mxu0
        %v5457 = vadd.f32 %v5301, %v5419
        %v5458 = vadd.f32 %v5302, %v5424
        %v5459 = vadd.f32 %v5303, %v5429
        %v5460 = vadd.f32 %v5304, %v5434
        %v5461 = vadd.f32 %v5305, %v5439
        %v5462 = vadd.f32 %v5306, %v5444
        %v5463 = vadd.f32 %v5307, %v5449
        %v5464 = vadd.f32 %v5308, %v5454
        %v5465 = vld [vmem:[%s4] sm:$0x1]
        %v5467 = vlaneseq
        %v5468 = vshrl.u32 %v5467, 7
        %v5469 = vsub.s32 0, %v5468
        %v5470 = vrot.slane %v5465, %v5469
        %v5472 = vadd.f32 %v5457, %v5470
        %v5473 = vadd.f32 %v5458, %v5470
        %v5474 = vadd.f32 %v5459, %v5470
        %v5475 = vadd.f32 %v5460, %v5470
        %v5476 = vadd.f32 %v5461, %v5470
        %v5477 = vadd.f32 %v5462, %v5470
        %v5478 = vadd.f32 %v5463, %v5470
        %v5479 = vadd.f32 %v5464, %v5470
        %v5480 = vshra.s32 %v508, 2
        %v5481 = vshra.s32 %v509, 2
        %v5482 = vmul.u32 %v5480, 16
        %v5483 = vmul.u32 %v5481, 16
        %v5484 = vand.u32 %v508, 3
        %v5485 = vand.u32 %v509, 3
        %v5486 = vmul.u32 %v5484, 2
        %v5487 = vmul.u32 %v5485, 2
        %v5488 = vadd.s32 %v5482, %v5486
        %v5489 = vadd.s32 %v5483, %v5487
        %vm5490 = vcmp.eq.s32.totalorder %v3211, %v5488
        %vm5491 = vcmp.eq.s32.totalorder %v3211, %v5489
        %v5492 = vsel %vm5490, 1.0, 0.0
        %v5493 = vsel %vm5491, 1.0, 0.0
        %vm5494 = vcmask 523264
        %v5496 = vsel %vm5494, %v5492, 0
        %v5499 = vsel %vm5494, %v5493, 0
        %5501 = vmatprep.subr.mxu0 0.0
        %5502 = vmatpush1.msra.mxu0 0.0
        %5503 = vmatprep.subr.mxu0 0.0
        %5504 = vmatpush1.msra.mxu0 0.0
        %5505 = vmatprep.subr.mxu0 0.0
        %5506 = vmatpush1.msra.mxu0 0.0
        %5507 = vmatprep.subr.mxu0 0.0
        %5508 = vmatpush1.msra.mxu0 0.0
        %5509 = vmatprep.subr.mxu0 0.0
        %5510 = vmatpush1.msra.mxu0 0.0
        %5511 = vmatprep.subr.mxu0 0.0
        %5512 = vmatpush1.msra.mxu0 0.0
        %5513 = vmatprep.subr.mxu0 0.0
        %5514 = vmatpush1.msra.mxu0 0.0
        %5515 = vmatprep.subr.mxu0 0.0
        %5516 = vmatpush1.msra.mxu0 0.0
        %5517 = vmatprep.subr.mxu0 0.0
        %5518 = vmatpush1.msra.mxu0 %v5479
        %5519 = vmatprep.subr.mxu0 0.0
        %5520 = vmatpush1.msra.mxu0 %v5478
        %5521 = vmatprep.subr.mxu0 0.0
        %5522 = vmatpush1.msra.mxu0 %v5477
        %5523 = vmatprep.subr.mxu0 0.0
        %5524 = vmatpush1.msra.mxu0 %v5476
        %5525 = vmatprep.subr.mxu0 0.0
        %5526 = vmatpush1.msra.mxu0 %v5475
        %5527 = vmatprep.subr.mxu0 0.0
        %5528 = vmatpush1.msra.mxu0 %v5474
        %5529 = vmatprep.subr.mxu0 0.0
        %5530 = vmatpush1.msra.mxu0 %v5473
        %5531 = vmatprep.subr.mxu0 0.0
        %5532 = vmatpush1.msra.mxu0 %v5472
        %5533 = vmatprep.subr.mxu0 0.0
        %5534 = vmatpush2.msra.mxu0 0.0
        %5535 = vmatprep.subr.mxu0 0.0
        %5536 = vmatpush2.msra.mxu0 0.0
        %5537 = vmatprep.subr.mxu0 0.0
        %5538 = vmatpush2.msra.mxu0 0.0
        %5539 = vmatprep.subr.mxu0 0.0
        %5540 = vmatpush2.msra.mxu0 0.0
        %5541 = vmatprep.subr.mxu0 0.0
        %5542 = vmatpush2.msra.mxu0 0.0
        %5543 = vmatprep.subr.mxu0 0.0
        %5544 = vmatpush2.msra.mxu0 0.0
        %5545 = vmatprep.subr.mxu0 0.0
        %5546 = vmatpush2.msra.mxu0 0.0
        %5547 = vmatprep.subr.mxu0 0.0
        %5548 = vmatpush2.msra.mxu0 0.0
        %5549 = vmatprep.subr.mxu0 0.0
        %5550 = vmatpush2.msra.mxu0 0.0
        %5551 = vmatprep.subr.mxu0 0.0
        %5552 = vmatpush2.msra.mxu0 0.0
        %5553 = vmatprep.subr.mxu0 0.0
        %5554 = vmatpush2.msra.mxu0 0.0
        %5555 = vmatprep.subr.mxu0 0.0
        %5556 = vmatpush2.msra.mxu0 0.0
        %5557 = vmatprep.subr.mxu0 0.0
        %5558 = vmatpush2.msra.mxu0 0.0
        %5559 = vmatprep.subr.mxu0 0.0
        %5560 = vmatpush2.msra.mxu0 0.0
        %5561 = vmatprep.subr.mxu0 0.0
        %5562 = vmatpush2.msra.mxu0 0.0
        %5563 = vmatprep.subr.mxu0 0.0
        %5564 = vmatpush2.msra.mxu0 0.0
        %5565 = vmatprep.mubr.f32.mxu0 0.0
        %5566 = vmatmul.mubr.f32.gmra.mxu0 %v5496
        %v5567 = vpop.f32.mrf.mxu0
        %v5568 = vadd.f32 0.0, %v5567
        %v5569 = vpop.f32.mrf.mxu0
        %5570 = vmatprep.mubr.f32.mxu0 0.0
        %5571 = vmatmul.mubr.f32.gmra.mxu0 %v5499
        %v5572 = vpop.f32.mrf.mxu0
        %v5573 = vadd.f32 0.0, %v5572
        %v5574 = vpop.f32.mrf.mxu0
        %5575 = vdwg.mxu0
        %v5576 = vadd.s32 %v5488, 1
        %v5577 = vadd.s32 %v5489, 1
        %vm5578 = vcmp.eq.s32.totalorder %v3211, %v5576
        %vm5579 = vcmp.eq.s32.totalorder %v3211, %v5577
        %v5580 = vsel %vm5578, 1.0, 0.0
        %v5581 = vsel %vm5579, 1.0, 0.0
        %v5583 = vsel %vm5494, %v5580, 0
        %v5586 = vsel %vm5494, %v5581, 0
        %5588 = vmatprep.subr.mxu0 0.0
        %5589 = vmatpush1.msra.mxu0 0.0
        %5590 = vmatprep.subr.mxu0 0.0
        %5591 = vmatpush1.msra.mxu0 0.0
        %5592 = vmatprep.subr.mxu0 0.0
        %5593 = vmatpush1.msra.mxu0 0.0
        %5594 = vmatprep.subr.mxu0 0.0
        %5595 = vmatpush1.msra.mxu0 0.0
        %5596 = vmatprep.subr.mxu0 0.0
        %5597 = vmatpush1.msra.mxu0 0.0
        %5598 = vmatprep.subr.mxu0 0.0
        %5599 = vmatpush1.msra.mxu0 0.0
        %5600 = vmatprep.subr.mxu0 0.0
        %5601 = vmatpush1.msra.mxu0 0.0
        %5602 = vmatprep.subr.mxu0 0.0
        %5603 = vmatpush1.msra.mxu0 0.0
        %5604 = vmatprep.subr.mxu0 0.0
        %5605 = vmatpush1.msra.mxu0 %v5479
        %5606 = vmatprep.subr.mxu0 0.0
        %5607 = vmatpush1.msra.mxu0 %v5478
        %5608 = vmatprep.subr.mxu0 0.0
        %5609 = vmatpush1.msra.mxu0 %v5477
        %5610 = vmatprep.subr.mxu0 0.0
        %5611 = vmatpush1.msra.mxu0 %v5476
        %5612 = vmatprep.subr.mxu0 0.0
        %5613 = vmatpush1.msra.mxu0 %v5475
        %5614 = vmatprep.subr.mxu0 0.0
        %5615 = vmatpush1.msra.mxu0 %v5474
        %5616 = vmatprep.subr.mxu0 0.0
        %5617 = vmatpush1.msra.mxu0 %v5473
        %5618 = vmatprep.subr.mxu0 0.0
        %5619 = vmatpush1.msra.mxu0 %v5472
        %5620 = vmatprep.subr.mxu0 0.0
        %5621 = vmatpush2.msra.mxu0 0.0
        %5622 = vmatprep.subr.mxu0 0.0
        %5623 = vmatpush2.msra.mxu0 0.0
        %5624 = vmatprep.subr.mxu0 0.0
        %5625 = vmatpush2.msra.mxu0 0.0
        %5626 = vmatprep.subr.mxu0 0.0
        %5627 = vmatpush2.msra.mxu0 0.0
        %5628 = vmatprep.subr.mxu0 0.0
        %5629 = vmatpush2.msra.mxu0 0.0
        %5630 = vmatprep.subr.mxu0 0.0
        %5631 = vmatpush2.msra.mxu0 0.0
        %5632 = vmatprep.subr.mxu0 0.0
        %5633 = vmatpush2.msra.mxu0 0.0
        %5634 = vmatprep.subr.mxu0 0.0
        %5635 = vmatpush2.msra.mxu0 0.0
        %5636 = vmatprep.subr.mxu0 0.0
        %5637 = vmatpush2.msra.mxu0 0.0
        %5638 = vmatprep.subr.mxu0 0.0
        %5639 = vmatpush2.msra.mxu0 0.0
        %5640 = vmatprep.subr.mxu0 0.0
        %5641 = vmatpush2.msra.mxu0 0.0
        %5642 = vmatprep.subr.mxu0 0.0
        %5643 = vmatpush2.msra.mxu0 0.0
        %5644 = vmatprep.subr.mxu0 0.0
        %5645 = vmatpush2.msra.mxu0 0.0
        %5646 = vmatprep.subr.mxu0 0.0
        %5647 = vmatpush2.msra.mxu0 0.0
        %5648 = vmatprep.subr.mxu0 0.0
        %5649 = vmatpush2.msra.mxu0 0.0
        %5650 = vmatprep.subr.mxu0 0.0
        %5651 = vmatpush2.msra.mxu0 0.0
        %5652 = vmatprep.mubr.f32.mxu0 0.0
        %5653 = vmatmul.mubr.f32.gmra.mxu0 %v5583
        %v5654 = vpop.f32.mrf.mxu0
        %v5655 = vadd.f32 0.0, %v5654
        %v5656 = vpop.f32.mrf.mxu0
        %5657 = vmatprep.mubr.f32.mxu0 0.0
        %5658 = vmatmul.mubr.f32.gmra.mxu0 %v5586
        %v5659 = vpop.f32.mrf.mxu0
        %v5660 = vadd.f32 0.0, %v5659
        %v5661 = vpop.f32.mrf.mxu0
        %5662 = vdwg.mxu0
        %v5663 = vmax.f32 %v5568, %v5655
        %v5664 = vmax.f32 %v5573, %v5660
        %v5665 = vadd.s32 %v5488, 8
        %v5666 = vadd.s32 %v5489, 8
        %vm5667 = vcmp.eq.s32.totalorder %v3211, %v5665
        %vm5668 = vcmp.eq.s32.totalorder %v3211, %v5666
        %v5669 = vsel %vm5667, 1.0, 0.0
        %v5670 = vsel %vm5668, 1.0, 0.0
        %v5672 = vsel %vm5494, %v5669, 0
        %v5675 = vsel %vm5494, %v5670, 0
        %5677 = vmatprep.subr.mxu0 0.0
        %5678 = vmatpush1.msra.mxu0 0.0
        %5679 = vmatprep.subr.mxu0 0.0
        %5680 = vmatpush1.msra.mxu0 0.0
        %5681 = vmatprep.subr.mxu0 0.0
        %5682 = vmatpush1.msra.mxu0 0.0
        %5683 = vmatprep.subr.mxu0 0.0
        %5684 = vmatpush1.msra.mxu0 0.0
        %5685 = vmatprep.subr.mxu0 0.0
        %5686 = vmatpush1.msra.mxu0 0.0
        %5687 = vmatprep.subr.mxu0 0.0
        %5688 = vmatpush1.msra.mxu0 0.0
        %5689 = vmatprep.subr.mxu0 0.0
        %5690 = vmatpush1.msra.mxu0 0.0
        %5691 = vmatprep.subr.mxu0 0.0
        %5692 = vmatpush1.msra.mxu0 0.0
        %5693 = vmatprep.subr.mxu0 0.0
        %5694 = vmatpush1.msra.mxu0 %v5479
        %5695 = vmatprep.subr.mxu0 0.0
        %5696 = vmatpush1.msra.mxu0 %v5478
        %5697 = vmatprep.subr.mxu0 0.0
        %5698 = vmatpush1.msra.mxu0 %v5477
        %5699 = vmatprep.subr.mxu0 0.0
        %5700 = vmatpush1.msra.mxu0 %v5476
        %5701 = vmatprep.subr.mxu0 0.0
        %5702 = vmatpush1.msra.mxu0 %v5475
        %5703 = vmatprep.subr.mxu0 0.0
        %5704 = vmatpush1.msra.mxu0 %v5474
        %5705 = vmatprep.subr.mxu0 0.0
        %5706 = vmatpush1.msra.mxu0 %v5473
        %5707 = vmatprep.subr.mxu0 0.0
        %5708 = vmatpush1.msra.mxu0 %v5472
        %5709 = vmatprep.subr.mxu0 0.0
        %5710 = vmatpush2.msra.mxu0 0.0
        %5711 = vmatprep.subr.mxu0 0.0
        %5712 = vmatpush2.msra.mxu0 0.0
        %5713 = vmatprep.subr.mxu0 0.0
        %5714 = vmatpush2.msra.mxu0 0.0
        %5715 = vmatprep.subr.mxu0 0.0
        %5716 = vmatpush2.msra.mxu0 0.0
        %5717 = vmatprep.subr.mxu0 0.0
        %5718 = vmatpush2.msra.mxu0 0.0
        %5719 = vmatprep.subr.mxu0 0.0
        %5720 = vmatpush2.msra.mxu0 0.0
        %5721 = vmatprep.subr.mxu0 0.0
        %5722 = vmatpush2.msra.mxu0 0.0
        %5723 = vmatprep.subr.mxu0 0.0
        %5724 = vmatpush2.msra.mxu0 0.0
        %5725 = vmatprep.subr.mxu0 0.0
        %5726 = vmatpush2.msra.mxu0 0.0
        %5727 = vmatprep.subr.mxu0 0.0
        %5728 = vmatpush2.msra.mxu0 0.0
        %5729 = vmatprep.subr.mxu0 0.0
        %5730 = vmatpush2.msra.mxu0 0.0
        %5731 = vmatprep.subr.mxu0 0.0
        %5732 = vmatpush2.msra.mxu0 0.0
        %5733 = vmatprep.subr.mxu0 0.0
        %5734 = vmatpush2.msra.mxu0 0.0
        %5735 = vmatprep.subr.mxu0 0.0
        %5736 = vmatpush2.msra.mxu0 0.0
        %5737 = vmatprep.subr.mxu0 0.0
        %5738 = vmatpush2.msra.mxu0 0.0
        %5739 = vmatprep.subr.mxu0 0.0
        %5740 = vmatpush2.msra.mxu0 0.0
        %5741 = vmatprep.mubr.f32.mxu0 0.0
        %5742 = vmatmul.mubr.f32.gmra.mxu0 %v5672
        %v5743 = vpop.f32.mrf.mxu0
        %v5744 = vadd.f32 0.0, %v5743
        %v5745 = vpop.f32.mrf.mxu0
        %5746 = vmatprep.mubr.f32.mxu0 0.0
        %5747 = vmatmul.mubr.f32.gmra.mxu0 %v5675
        %v5748 = vpop.f32.mrf.mxu0
        %v5749 = vadd.f32 0.0, %v5748
        %v5750 = vpop.f32.mrf.mxu0
        %5751 = vdwg.mxu0
        %v5752 = vmax.f32 %v5663, %v5744
        %v5753 = vmax.f32 %v5664, %v5749
        %v5754 = vadd.s32 %v5488, 9
        %v5755 = vadd.s32 %v5489, 9
        %vm5756 = vcmp.eq.s32.totalorder %v3211, %v5754
        %vm5757 = vcmp.eq.s32.totalorder %v3211, %v5755
        %v5758 = vsel %vm5756, 1.0, 0.0
        %v5759 = vsel %vm5757, 1.0, 0.0
        %v5761 = vsel %vm5494, %v5758, 0
        %v5764 = vsel %vm5494, %v5759, 0
        %5766 = vmatprep.subr.mxu0 0.0
        %5767 = vmatpush1.msra.mxu0 0.0
        %5768 = vmatprep.subr.mxu0 0.0
        %5769 = vmatpush1.msra.mxu0 0.0
        %5770 = vmatprep.subr.mxu0 0.0
        %5771 = vmatpush1.msra.mxu0 0.0
        %5772 = vmatprep.subr.mxu0 0.0
        %5773 = vmatpush1.msra.mxu0 0.0
        %5774 = vmatprep.subr.mxu0 0.0
        %5775 = vmatpush1.msra.mxu0 0.0
        %5776 = vmatprep.subr.mxu0 0.0
        %5777 = vmatpush1.msra.mxu0 0.0
        %5778 = vmatprep.subr.mxu0 0.0
        %5779 = vmatpush1.msra.mxu0 0.0
        %5780 = vmatprep.subr.mxu0 0.0
        %5781 = vmatpush1.msra.mxu0 0.0
        %5782 = vmatprep.subr.mxu0 0.0
        %5783 = vmatpush1.msra.mxu0 %v5479
        %5784 = vmatprep.subr.mxu0 0.0
        %5785 = vmatpush1.msra.mxu0 %v5478
        %5786 = vmatprep.subr.mxu0 0.0
        %5787 = vmatpush1.msra.mxu0 %v5477
        %5788 = vmatprep.subr.mxu0 0.0
        %5789 = vmatpush1.msra.mxu0 %v5476
        %5790 = vmatprep.subr.mxu0 0.0
        %5791 = vmatpush1.msra.mxu0 %v5475
        %5792 = vmatprep.subr.mxu0 0.0
        %5793 = vmatpush1.msra.mxu0 %v5474
        %5794 = vmatprep.subr.mxu0 0.0
        %5795 = vmatpush1.msra.mxu0 %v5473
        %5796 = vmatprep.subr.mxu0 0.0
        %5797 = vmatpush1.msra.mxu0 %v5472
        %5798 = vmatprep.subr.mxu0 0.0
        %5799 = vmatpush2.msra.mxu0 0.0
        %5800 = vmatprep.subr.mxu0 0.0
        %5801 = vmatpush2.msra.mxu0 0.0
        %5802 = vmatprep.subr.mxu0 0.0
        %5803 = vmatpush2.msra.mxu0 0.0
        %5804 = vmatprep.subr.mxu0 0.0
        %5805 = vmatpush2.msra.mxu0 0.0
        %5806 = vmatprep.subr.mxu0 0.0
        %5807 = vmatpush2.msra.mxu0 0.0
        %5808 = vmatprep.subr.mxu0 0.0
        %5809 = vmatpush2.msra.mxu0 0.0
        %5810 = vmatprep.subr.mxu0 0.0
        %5811 = vmatpush2.msra.mxu0 0.0
        %5812 = vmatprep.subr.mxu0 0.0
        %5813 = vmatpush2.msra.mxu0 0.0
        %5814 = vmatprep.subr.mxu0 0.0
        %5815 = vmatpush2.msra.mxu0 0.0
        %5816 = vmatprep.subr.mxu0 0.0
        %5817 = vmatpush2.msra.mxu0 0.0
        %5818 = vmatprep.subr.mxu0 0.0
        %5819 = vmatpush2.msra.mxu0 0.0
        %5820 = vmatprep.subr.mxu0 0.0
        %5821 = vmatpush2.msra.mxu0 0.0
        %5822 = vmatprep.subr.mxu0 0.0
        %5823 = vmatpush2.msra.mxu0 0.0
        %5824 = vmatprep.subr.mxu0 0.0
        %5825 = vmatpush2.msra.mxu0 0.0
        %5826 = vmatprep.subr.mxu0 0.0
        %5827 = vmatpush2.msra.mxu0 0.0
        %5828 = vmatprep.subr.mxu0 0.0
        %5829 = vmatpush2.msra.mxu0 0.0
        %5830 = vmatprep.mubr.f32.mxu0 0.0
        %5831 = vmatmul.mubr.f32.gmra.mxu0 %v5761
        %v5832 = vpop.f32.mrf.mxu0
        %v5833 = vadd.f32 0.0, %v5832
        %v5834 = vpop.f32.mrf.mxu0
        %5835 = vmatprep.mubr.f32.mxu0 0.0
        %5836 = vmatmul.mubr.f32.gmra.mxu0 %v5764
        %v5837 = vpop.f32.mrf.mxu0
        %v5838 = vadd.f32 0.0, %v5837
        %v5839 = vpop.f32.mrf.mxu0
        %5840 = vdwg.mxu0
        %v5841 = vmax.f32 %v5752, %v5833
        %v5842 = vmax.f32 %v5753, %v5838
        %v5843 = vld [vmem:[%s5] sm:$0xff]
        %v5844 = vld [vmem:[%s5 + $0x8] sm:$0xff]
        %v5845 = vld [vmem:[%s5 + $0x10] sm:$0xff]
        %v5846 = vld [vmem:[%s5 + $0x18] sm:$0xff]
        %v5847 = vld [vmem:[%s5 + $0x20] sm:$0xff]
        %v5848 = vld [vmem:[%s5 + $0x28] sm:$0xff]
        %v5849 = vld [vmem:[%s5 + $0x30] sm:$0xff]
        %v5850 = vld [vmem:[%s5 + $0x38] sm:$0xff]
        %v5851 = vmul.f32 %v5841, %v5841
        %v5852 = vmul.f32 %v5842, %v5842
        %vm5853 = vcmask 261120
        %v5854 = vsel %vm5853, %v5851, 0.0
        %5855 = vadd.xlane.f32.xlu0 %v5854
        %v5856 = vpop.xlane.xlu0 %5855
        %v5857 = vsel %vm5853, %v5852, 0.0
        %5858 = vadd.xlane.f32.xlu0 %v5857
        %v5859 = vpop.xlane.xlu0 %5858
        %v5860 = vmul.f32 %v5843, %v5843
        %v5861 = vmul.f32 %v5844, %v5844
        %v5862 = vmul.f32 %v5845, %v5845
        %v5863 = vmul.f32 %v5846, %v5846
        %v5864 = vmul.f32 %v5847, %v5847
        %v5865 = vmul.f32 %v5848, %v5848
        %v5866 = vmul.f32 %v5849, %v5849
        %v5867 = vmul.f32 %v5850, %v5850
        %v5869 = vsel %vm5853, 1.0, 0
        %v5872 = vsel %vm5853, %v5860, 0
        %v5875 = vsel %vm5853, %v5861, 0
        %v5878 = vsel %vm5853, %v5862, 0
        %v5881 = vsel %vm5853, %v5863, 0
        %v5884 = vsel %vm5853, %v5864, 0
        %v5887 = vsel %vm5853, %v5865, 0
        %v5890 = vsel %vm5853, %v5866, 0
        %v5893 = vsel %vm5853, %v5867, 0
        %5895 = vmatprep.subr.mxu0 0.0
        %5896 = vmatpush1.xpose.msra.mxu0 0.0
        %5897 = vmatprep.subr.mxu0 0.0
        %5898 = vmatpush1.xpose.msra.mxu0 0.0
        %5899 = vmatprep.subr.mxu0 0.0
        %5900 = vmatpush1.xpose.msra.mxu0 0.0
        %5901 = vmatprep.subr.mxu0 0.0
        %5902 = vmatpush1.xpose.msra.mxu0 0.0
        %5903 = vmatprep.subr.mxu0 0.0
        %5904 = vmatpush1.xpose.msra.mxu0 0.0
        %5905 = vmatprep.subr.mxu0 0.0
        %5906 = vmatpush1.xpose.msra.mxu0 0.0
        %5907 = vmatprep.subr.mxu0 0.0
        %5908 = vmatpush1.xpose.msra.mxu0 0.0
        %5909 = vmatprep.subr.mxu0 0.0
        %5910 = vmatpush1.xpose.msra.mxu0 0.0
        %5911 = vmatprep.subr.mxu0 0.0
        %5912 = vmatpush1.xpose.msra.mxu0 %v5893
        %5913 = vmatprep.subr.mxu0 0.0
        %5914 = vmatpush1.xpose.msra.mxu0 %v5890
        %5915 = vmatprep.subr.mxu0 0.0
        %5916 = vmatpush1.xpose.msra.mxu0 %v5887
        %5917 = vmatprep.subr.mxu0 0.0
        %5918 = vmatpush1.xpose.msra.mxu0 %v5884
        %5919 = vmatprep.subr.mxu0 0.0
        %5920 = vmatpush1.xpose.msra.mxu0 %v5881
        %5921 = vmatprep.subr.mxu0 0.0
        %5922 = vmatpush1.xpose.msra.mxu0 %v5878
        %5923 = vmatprep.subr.mxu0 0.0
        %5924 = vmatpush1.xpose.msra.mxu0 %v5875
        %5925 = vmatprep.subr.mxu0 0.0
        %5926 = vmatpush1.xpose.msra.mxu0 %v5872
        %5927 = vmatprep.subr.mxu0 0.0
        %5928 = vmatpush2.xpose.msra.mxu0 0.0
        %5929 = vmatprep.subr.mxu0 0.0
        %5930 = vmatpush2.xpose.msra.mxu0 0.0
        %5931 = vmatprep.subr.mxu0 0.0
        %5932 = vmatpush2.xpose.msra.mxu0 0.0
        %5933 = vmatprep.subr.mxu0 0.0
        %5934 = vmatpush2.xpose.msra.mxu0 0.0
        %5935 = vmatprep.subr.mxu0 0.0
        %5936 = vmatpush2.xpose.msra.mxu0 0.0
        %5937 = vmatprep.subr.mxu0 0.0
        %5938 = vmatpush2.xpose.msra.mxu0 0.0
        %5939 = vmatprep.subr.mxu0 0.0
        %5940 = vmatpush2.xpose.msra.mxu0 0.0
        %5941 = vmatprep.subr.mxu0 0.0
        %5942 = vmatpush2.xpose.msra.mxu0 0.0
        %5943 = vmatprep.subr.mxu0 0.0
        %5944 = vmatpush2.xpose.msra.mxu0 0.0
        %5945 = vmatprep.subr.mxu0 0.0
        %5946 = vmatpush2.xpose.msra.mxu0 0.0
        %5947 = vmatprep.subr.mxu0 0.0
        %5948 = vmatpush2.xpose.msra.mxu0 0.0
        %5949 = vmatprep.subr.mxu0 0.0
        %5950 = vmatpush2.xpose.msra.mxu0 0.0
        %5951 = vmatprep.subr.mxu0 0.0
        %5952 = vmatpush2.xpose.msra.mxu0 0.0
        %5953 = vmatprep.subr.mxu0 0.0
        %5954 = vmatpush2.xpose.msra.mxu0 0.0
        %5955 = vmatprep.subr.mxu0 0.0
        %5956 = vmatpush2.xpose.msra.mxu0 0.0
        %5957 = vmatprep.subr.mxu0 0.0
        %5958 = vmatpush2.xpose.msra.mxu0 0.0
        %5959 = vmatprep.mubr.f32.mxu0 0.0
        %5960 = vmatmul.mubr.f32.gmra.mxu0 %v5869
        %v5961 = vpop.f32.mrf.mxu0
        %v5962 = vadd.f32 0.0, %v5961
        %v5963 = vpop.f32.mrf.mxu0
        %5964 = vdwg.mxu0
        %v5966 = vsel %vm5853, %v5841, 0
        %v5969 = vsel %vm5853, %v5842, 0
        %v5972 = vsel %vm5853, %v5843, 0
        %v5975 = vsel %vm5853, %v5844, 0
        %v5978 = vsel %vm5853, %v5845, 0
        %v5981 = vsel %vm5853, %v5846, 0
        %v5984 = vsel %vm5853, %v5847, 0
        %v5987 = vsel %vm5853, %v5848, 0
        %v5990 = vsel %vm5853, %v5849, 0
        %v5993 = vsel %vm5853, %v5850, 0
        %5995 = vmatprep.subr.mxu0 0.0
        %5996 = vmatpush1.xpose.msra.mxu0 0.0
        %5997 = vmatprep.subr.mxu0 0.0
        %5998 = vmatpush1.xpose.msra.mxu0 0.0
        %5999 = vmatprep.subr.mxu0 0.0
        %6000 = vmatpush1.xpose.msra.mxu0 0.0
        %6001 = vmatprep.subr.mxu0 0.0
        %6002 = vmatpush1.xpose.msra.mxu0 0.0
        %6003 = vmatprep.subr.mxu0 0.0
        %6004 = vmatpush1.xpose.msra.mxu0 0.0
        %6005 = vmatprep.subr.mxu0 0.0
        %6006 = vmatpush1.xpose.msra.mxu0 0.0
        %6007 = vmatprep.subr.mxu0 0.0
        %6008 = vmatpush1.xpose.msra.mxu0 0.0
        %6009 = vmatprep.subr.mxu0 0.0
        %6010 = vmatpush1.xpose.msra.mxu0 0.0
        %6011 = vmatprep.subr.mxu0 0.0
        %6012 = vmatpush1.xpose.msra.mxu0 %v5993
        %6013 = vmatprep.subr.mxu0 0.0
        %6014 = vmatpush1.xpose.msra.mxu0 %v5990
        %6015 = vmatprep.subr.mxu0 0.0
        %6016 = vmatpush1.xpose.msra.mxu0 %v5987
        %6017 = vmatprep.subr.mxu0 0.0
        %6018 = vmatpush1.xpose.msra.mxu0 %v5984
        %6019 = vmatprep.subr.mxu0 0.0
        %6020 = vmatpush1.xpose.msra.mxu0 %v5981
        %6021 = vmatprep.subr.mxu0 0.0
        %6022 = vmatpush1.xpose.msra.mxu0 %v5978
        %6023 = vmatprep.subr.mxu0 0.0
        %6024 = vmatpush1.xpose.msra.mxu0 %v5975
        %6025 = vmatprep.subr.mxu0 0.0
        %6026 = vmatpush1.xpose.msra.mxu0 %v5972
        %6027 = vmatprep.subr.mxu0 0.0
        %6028 = vmatpush2.xpose.msra.mxu0 0.0
        %6029 = vmatprep.subr.mxu0 0.0
        %6030 = vmatpush2.xpose.msra.mxu0 0.0
        %6031 = vmatprep.subr.mxu0 0.0
        %6032 = vmatpush2.xpose.msra.mxu0 0.0
        %6033 = vmatprep.subr.mxu0 0.0
        %6034 = vmatpush2.xpose.msra.mxu0 0.0
        %6035 = vmatprep.subr.mxu0 0.0
        %6036 = vmatpush2.xpose.msra.mxu0 0.0
        %6037 = vmatprep.subr.mxu0 0.0
        %6038 = vmatpush2.xpose.msra.mxu0 0.0
        %6039 = vmatprep.subr.mxu0 0.0
        %6040 = vmatpush2.xpose.msra.mxu0 0.0
        %6041 = vmatprep.subr.mxu0 0.0
        %6042 = vmatpush2.xpose.msra.mxu0 0.0
        %6043 = vmatprep.subr.mxu0 0.0
        %6044 = vmatpush2.xpose.msra.mxu0 0.0
        %6045 = vmatprep.subr.mxu0 0.0
        %6046 = vmatpush2.xpose.msra.mxu0 0.0
        %6047 = vmatprep.subr.mxu0 0.0
        %6048 = vmatpush2.xpose.msra.mxu0 0.0
        %6049 = vmatprep.subr.mxu0 0.0
        %6050 = vmatpush2.xpose.msra.mxu0 0.0
        %6051 = vmatprep.subr.mxu0 0.0
        %6052 = vmatpush2.xpose.msra.mxu0 0.0
        %6053 = vmatprep.subr.mxu0 0.0
        %6054 = vmatpush2.xpose.msra.mxu0 0.0
        %6055 = vmatprep.subr.mxu0 0.0
        %6056 = vmatpush2.xpose.msra.mxu0 0.0
        %6057 = vmatprep.subr.mxu0 0.0
        %6058 = vmatpush2.xpose.msra.mxu0 0.0
        %6059 = vmatprep.mubr.f32.mxu0 0.0
        %6060 = vmatmul.mubr.f32.gmra.mxu0 %v5966
        %v6061 = vpop.f32.mrf.mxu0
        %v6062 = vadd.f32 0.0, %v6061
        %v6063 = vpop.f32.mrf.mxu0
        %6064 = vmatprep.mubr.f32.mxu0 0.0
        %6065 = vmatmul.mubr.f32.gmra.mxu0 %v5969
        %v6066 = vpop.f32.mrf.mxu0
        %v6067 = vadd.f32 0.0, %v6066
        %v6068 = vpop.f32.mrf.mxu0
        %6069 = vdwg.mxu0
        %v6070 = vmul.f32 %v6062, 2.0
        %v6071 = vmul.f32 %v6067, 2.0
        %v6072 = vsub.f32 %v5856, %v6070
        %v6073 = vsub.f32 %v5859, %v6071
        %v6074 = vlaneseq
        %v6075 = vshrl.u32 %v6074, 7
        %v6076 = vsub.s32 0, %v6075
        %v6077 = vrot.slane %v5962, %v6076
        %v6078 = vadd.f32 %v6072, %v6077
        %v6079 = vadd.f32 %v6073, %v6077
        %v6080 = vmul.f32 %v6078, -1.0
        %v6081 = vmul.f32 %v6079, -1.0
        %v6082 = vsel %vm5494, %v6080, -inf
        %6083 = vmax.xlane.f32.xlu0 %v6082
        %v6084 = vpop.xlane.xlu0 %6083
        %v6085 = vsel %vm5494, %v6081, -inf
        %6086 = vmax.xlane.f32.xlu0 %v6085
        %v6087 = vpop.xlane.xlu0 %6086
        %v6088 = vsub.f32 %v6080, %v6084
        %v6089 = vsub.f32 %v6081, %v6087
        %v6090 = vmul.f32 %v6088, 1.442695
        %v6091 = vpow.pop %v6090
        %v6092 = vmul.f32 %v6089, 1.442695
        %v6093 = vpow.pop %v6092
        %v6094 = vsel %vm5494, %v6091, 0.0
        %6095 = vadd.xlane.f32.xlu0 %v6094
        %v6096 = vpop.xlane.xlu0 %6095
        %v6097 = vsel %vm5494, %v6093, 0.0
        %6098 = vadd.xlane.f32.xlu0 %v6097
        %v6099 = vpop.xlane.xlu0 %6098
        %v6100 = vrcp.pop %v6096
        %v6101 = vrcp.pop %v6099
        %v6102 = vmul.f32 %v6091, %v6100
        %v6103 = vmul.f32 %v6093, %v6101
        %v6105 = vsel %vm5494, %v6102, 0
        %v6108 = vsel %vm5494, %v6103, 0
        %6110 = vmatprep.subr.mxu0 0.0
        %6111 = vmatpush1.msra.mxu0 0.0
        %6112 = vmatprep.subr.mxu0 0.0
        %6113 = vmatpush1.msra.mxu0 0.0
        %6114 = vmatprep.subr.mxu0 0.0
        %6115 = vmatpush1.msra.mxu0 0.0
        %6116 = vmatprep.subr.mxu0 0.0
        %6117 = vmatpush1.msra.mxu0 0.0
        %6118 = vmatprep.subr.mxu0 0.0
        %6119 = vmatpush1.msra.mxu0 0.0
        %6120 = vmatprep.subr.mxu0 0.0
        %6121 = vmatpush1.msra.mxu0 0.0
        %6122 = vmatprep.subr.mxu0 0.0
        %6123 = vmatpush1.msra.mxu0 0.0
        %6124 = vmatprep.subr.mxu0 0.0
        %6125 = vmatpush1.msra.mxu0 0.0
        %6126 = vmatprep.subr.mxu0 0.0
        %6127 = vmatpush1.msra.mxu0 %v5850
        %6128 = vmatprep.subr.mxu0 0.0
        %6129 = vmatpush1.msra.mxu0 %v5849
        %6130 = vmatprep.subr.mxu0 0.0
        %6131 = vmatpush1.msra.mxu0 %v5848
        %6132 = vmatprep.subr.mxu0 0.0
        %6133 = vmatpush1.msra.mxu0 %v5847
        %6134 = vmatprep.subr.mxu0 0.0
        %6135 = vmatpush1.msra.mxu0 %v5846
        %6136 = vmatprep.subr.mxu0 0.0
        %6137 = vmatpush1.msra.mxu0 %v5845
        %6138 = vmatprep.subr.mxu0 0.0
        %6139 = vmatpush1.msra.mxu0 %v5844
        %6140 = vmatprep.subr.mxu0 0.0
        %6141 = vmatpush1.msra.mxu0 %v5843
        %6142 = vmatprep.subr.mxu0 0.0
        %6143 = vmatpush2.msra.mxu0 0.0
        %6144 = vmatprep.subr.mxu0 0.0
        %6145 = vmatpush2.msra.mxu0 0.0
        %6146 = vmatprep.subr.mxu0 0.0
        %6147 = vmatpush2.msra.mxu0 0.0
        %6148 = vmatprep.subr.mxu0 0.0
        %6149 = vmatpush2.msra.mxu0 0.0
        %6150 = vmatprep.subr.mxu0 0.0
        %6151 = vmatpush2.msra.mxu0 0.0
        %6152 = vmatprep.subr.mxu0 0.0
        %6153 = vmatpush2.msra.mxu0 0.0
        %6154 = vmatprep.subr.mxu0 0.0
        %6155 = vmatpush2.msra.mxu0 0.0
        %6156 = vmatprep.subr.mxu0 0.0
        %6157 = vmatpush2.msra.mxu0 0.0
        %6158 = vmatprep.subr.mxu0 0.0
        %6159 = vmatpush2.msra.mxu0 0.0
        %6160 = vmatprep.subr.mxu0 0.0
        %6161 = vmatpush2.msra.mxu0 0.0
        %6162 = vmatprep.subr.mxu0 0.0
        %6163 = vmatpush2.msra.mxu0 0.0
        %6164 = vmatprep.subr.mxu0 0.0
        %6165 = vmatpush2.msra.mxu0 0.0
        %6166 = vmatprep.subr.mxu0 0.0
        %6167 = vmatpush2.msra.mxu0 0.0
        %6168 = vmatprep.subr.mxu0 0.0
        %6169 = vmatpush2.msra.mxu0 0.0
        %6170 = vmatprep.subr.mxu0 0.0
        %6171 = vmatpush2.msra.mxu0 0.0
        %6172 = vmatprep.subr.mxu0 0.0
        %6173 = vmatpush2.msra.mxu0 0.0
        %6174 = vmatprep.mubr.f32.mxu0 0.0
        %6175 = vmatmul.mubr.f32.gmra.mxu0 %v6105
        %v6176 = vpop.f32.mrf.mxu0
        %v6177 = vadd.f32 0.0, %v6176
        %v6178 = vpop.f32.mrf.mxu0
        %6179 = vmatprep.mubr.f32.mxu0 0.0
        %6180 = vmatmul.mubr.f32.gmra.mxu0 %v6108
        %v6181 = vpop.f32.mrf.mxu0
        %v6182 = vadd.f32 0.0, %v6181
        %v6183 = vpop.f32.mrf.mxu0
        %6184 = vdwg.mxu0
        %6185 = vst.msk [vmem:[%s470] sm:$0xff] %vm5853, %v5841
        %6186 = vst.msk [vmem:[%s470 + $0x8] sm:$0xff] %vm5853, %v5842
        %6187 = vst.msk [vmem:[%s477] sm:$0xff] %vm5853, %v6177
        %6188 = vst.msk [vmem:[%s477 + $0x8] sm:$0xff] %vm5853, %v6182
        %6189 = vst.msk [vmem:[%s501] sm:$0xff] %vm5494, %v6078
        %6190 = vst.msk [vmem:[%s501 + $0x8] sm:$0xff] %vm5494, %v6079
        %6191 = vst.msk [vmem:[%s506] sm:$0xff] %vm5494, %v6102
        %6192 = vst.msk [vmem:[%s506 + $0x8] sm:$0xff] %vm5494, %v6103
        %6193 = vst.msk [vmem:[#allocation3] sm:$0xff] %vm5853, 0.0
        %6194 = vst.msk [vmem:[#allocation3 + $0x8] sm:$0xff] %vm5853, 0.0
        %6195 = vst.msk [vmem:[#allocation3 + $0x10] sm:$0xff] %vm5853, 0.0
        %6196 = vst.msk [vmem:[#allocation3 + $0x18] sm:$0xff] %vm5853, 0.0
        %6197 = vst.msk [vmem:[#allocation3 + $0x8] sm:$0xff] %vm5853, %v6177
        %6198 = vst.msk [vmem:[#allocation3 + $0x10] sm:$0xff] %vm5853, %v6182
        %v6199 = vld [vmem:[#allocation3 + $0x3] sm:$0xff]
        %v6200 = vld [vmem:[#allocation3 + $0xb] sm:$0xff]
        %vm6201 = vcmp.eq.s32.totalorder %v5484, 0
        %vm6202 = vcmp.eq.s32.totalorder %v5485, 0
        %v6203 = vsel %vm6201, 0.0, %v6199
        %v6204 = vsel %vm6202, 0.0, %v6200
        %v6205 = vld [vmem:[%s6] sm:$0xff]
        %v6206 = vld [vmem:[%s6 + $0x8] sm:$0xff]
        %v6207 = vld [vmem:[%s6 + $0x10] sm:$0xff]
        %v6208 = vld [vmem:[%s6 + $0x18] sm:$0xff]
        %v6209 = vld [vmem:[#allocation3 + $0x4] sm:$0xff]
        %v6210 = vld [vmem:[#allocation3 + $0xc] sm:$0xff]
        %s6211 = scalar_lea.vmem %s6, 32
        %v6212 = vld [vmem:[%s6211] sm:$0xff]
        %v6213 = vld [vmem:[%s6211 + $0x8] sm:$0xff]
        %v6214 = vld [vmem:[%s6211 + $0x10] sm:$0xff]
        %v6215 = vld [vmem:[%s6211 + $0x18] sm:$0xff]
        %v6217 = vsel %vm5853, %v6209, 0
        %v6220 = vsel %vm5853, %v6210, 0
        %6222 = vmatprep.subr.mxu0 0.0
        %6223 = vmatpush1.msra.mxu0 0.0
        %6224 = vmatprep.subr.mxu0 0.0
        %6225 = vmatpush1.msra.mxu0 0.0
        %6226 = vmatprep.subr.mxu0 0.0
        %6227 = vmatpush1.msra.mxu0 0.0
        %6228 = vmatprep.subr.mxu0 0.0
        %6229 = vmatpush1.msra.mxu0 0.0
        %6230 = vmatprep.subr.mxu0 0.0
        %6231 = vmatpush1.msra.mxu0 0.0
        %6232 = vmatprep.subr.mxu0 0.0
        %6233 = vmatpush1.msra.mxu0 0.0
        %6234 = vmatprep.subr.mxu0 0.0
        %6235 = vmatpush1.msra.mxu0 0.0
        %6236 = vmatprep.subr.mxu0 0.0
        %6237 = vmatpush1.msra.mxu0 0.0
        %6238 = vmatprep.subr.mxu0 0.0
        %6239 = vmatpush1.msra.mxu0 0.0
        %6240 = vmatprep.subr.mxu0 0.0
        %6241 = vmatpush1.msra.mxu0 0.0
        %6242 = vmatprep.subr.mxu0 0.0
        %6243 = vmatpush1.msra.mxu0 0.0
        %6244 = vmatprep.subr.mxu0 0.0
        %6245 = vmatpush1.msra.mxu0 0.0
        %6246 = vmatprep.subr.mxu0 0.0
        %6247 = vmatpush1.msra.mxu0 %v6215
        %6248 = vmatprep.subr.mxu0 0.0
        %6249 = vmatpush1.msra.mxu0 %v6214
        %6250 = vmatprep.subr.mxu0 0.0
        %6251 = vmatpush1.msra.mxu0 %v6213
        %6252 = vmatprep.subr.mxu0 0.0
        %6253 = vmatpush1.msra.mxu0 %v6212
        %6254 = vmatprep.subr.mxu0 0.0
        %6255 = vmatpush2.msra.mxu0 0.0
        %6256 = vmatprep.subr.mxu0 0.0
        %6257 = vmatpush2.msra.mxu0 0.0
        %6258 = vmatprep.subr.mxu0 0.0
        %6259 = vmatpush2.msra.mxu0 0.0
        %6260 = vmatprep.subr.mxu0 0.0
        %6261 = vmatpush2.msra.mxu0 0.0
        %6262 = vmatprep.subr.mxu0 0.0
        %6263 = vmatpush2.msra.mxu0 0.0
        %6264 = vmatprep.subr.mxu0 0.0
        %6265 = vmatpush2.msra.mxu0 0.0
        %6266 = vmatprep.subr.mxu0 0.0
        %6267 = vmatpush2.msra.mxu0 0.0
        %6268 = vmatprep.subr.mxu0 0.0
        %6269 = vmatpush2.msra.mxu0 0.0
        %6270 = vmatprep.subr.mxu0 0.0
        %6271 = vmatpush2.msra.mxu0 0.0
        %6272 = vmatprep.subr.mxu0 0.0
        %6273 = vmatpush2.msra.mxu0 0.0
        %6274 = vmatprep.subr.mxu0 0.0
        %6275 = vmatpush2.msra.mxu0 0.0
        %6276 = vmatprep.subr.mxu0 0.0
        %6277 = vmatpush2.msra.mxu0 0.0
        %6278 = vmatprep.subr.mxu0 0.0
        %6279 = vmatpush2.msra.mxu0 0.0
        %6280 = vmatprep.subr.mxu0 0.0
        %6281 = vmatpush2.msra.mxu0 0.0
        %6282 = vmatprep.subr.mxu0 0.0
        %6283 = vmatpush2.msra.mxu0 0.0
        %6284 = vmatprep.subr.mxu0 0.0
        %6285 = vmatpush2.msra.mxu0 0.0
        %6286 = vmatprep.mubr.f32.mxu0 0.0
        %6287 = vmatmul.mubr.f32.gmra.mxu0 %v6217
        %v6288 = vpop.f32.mrf.mxu0
        %v6289 = vadd.f32 0.0, %v6288
        %v6290 = vpop.f32.mrf.mxu0
        %6291 = vmatprep.mubr.f32.mxu0 0.0
        %6292 = vmatmul.mubr.f32.gmra.mxu0 %v6220
        %v6293 = vpop.f32.mrf.mxu0
        %v6294 = vadd.f32 0.0, %v6293
        %v6295 = vpop.f32.mrf.mxu0
        %6296 = vdwg.mxu0
        %v6298 = vsel %vm5853, %v6203, 0
        %v6301 = vsel %vm5853, %v6204, 0
        %6303 = vmatprep.subr.mxu0 0.0
        %6304 = vmatpush1.msra.mxu0 0.0
        %6305 = vmatprep.subr.mxu0 0.0
        %6306 = vmatpush1.msra.mxu0 0.0
        %6307 = vmatprep.subr.mxu0 0.0
        %6308 = vmatpush1.msra.mxu0 0.0
        %6309 = vmatprep.subr.mxu0 0.0
        %6310 = vmatpush1.msra.mxu0 0.0
        %6311 = vmatprep.subr.mxu0 0.0
        %6312 = vmatpush1.msra.mxu0 0.0
        %6313 = vmatprep.subr.mxu0 0.0
        %6314 = vmatpush1.msra.mxu0 0.0
        %6315 = vmatprep.subr.mxu0 0.0
        %6316 = vmatpush1.msra.mxu0 0.0
        %6317 = vmatprep.subr.mxu0 0.0
        %6318 = vmatpush1.msra.mxu0 0.0
        %6319 = vmatprep.subr.mxu0 0.0
        %6320 = vmatpush1.msra.mxu0 0.0
        %6321 = vmatprep.subr.mxu0 0.0
        %6322 = vmatpush1.msra.mxu0 0.0
        %6323 = vmatprep.subr.mxu0 0.0
        %6324 = vmatpush1.msra.mxu0 0.0
        %6325 = vmatprep.subr.mxu0 0.0
        %6326 = vmatpush1.msra.mxu0 0.0
        %6327 = vmatprep.subr.mxu0 0.0
        %6328 = vmatpush1.msra.mxu0 %v6208
        %6329 = vmatprep.subr.mxu0 0.0
        %6330 = vmatpush1.msra.mxu0 %v6207
        %6331 = vmatprep.subr.mxu0 0.0
        %6332 = vmatpush1.msra.mxu0 %v6206
        %6333 = vmatprep.subr.mxu0 0.0
        %6334 = vmatpush1.msra.mxu0 %v6205
        %6335 = vmatprep.subr.mxu0 0.0
        %6336 = vmatpush2.msra.mxu0 0.0
        %6337 = vmatprep.subr.mxu0 0.0
        %6338 = vmatpush2.msra.mxu0 0.0
        %6339 = vmatprep.subr.mxu0 0.0
        %6340 = vmatpush2.msra.mxu0 0.0
        %6341 = vmatprep.subr.mxu0 0.0
        %6342 = vmatpush2.msra.mxu0 0.0
        %6343 = vmatprep.subr.mxu0 0.0
        %6344 = vmatpush2.msra.mxu0 0.0
        %6345 = vmatprep.subr.mxu0 0.0
        %6346 = vmatpush2.msra.mxu0 0.0
        %6347 = vmatprep.subr.mxu0 0.0
        %6348 = vmatpush2.msra.mxu0 0.0
        %6349 = vmatprep.subr.mxu0 0.0
        %6350 = vmatpush2.msra.mxu0 0.0
        %6351 = vmatprep.subr.mxu0 0.0
        %6352 = vmatpush2.msra.mxu0 0.0
        %6353 = vmatprep.subr.mxu0 0.0
        %6354 = vmatpush2.msra.mxu0 0.0
        %6355 = vmatprep.subr.mxu0 0.0
        %6356 = vmatpush2.msra.mxu0 0.0
        %6357 = vmatprep.subr.mxu0 0.0
        %6358 = vmatpush2.msra.mxu0 0.0
        %6359 = vmatprep.subr.mxu0 0.0
        %6360 = vmatpush2.msra.mxu0 0.0
        %6361 = vmatprep.subr.mxu0 0.0
        %6362 = vmatpush2.msra.mxu0 0.0
        %6363 = vmatprep.subr.mxu0 0.0
        %6364 = vmatpush2.msra.mxu0 0.0
        %6365 = vmatprep.subr.mxu0 0.0
        %6366 = vmatpush2.msra.mxu0 0.0
        %6367 = vmatprep.mubr.f32.mxu0 0.0
        %6368 = vmatmul.mubr.f32.gmra.mxu0 %v6298
        %v6369 = vpop.f32.mrf.mxu0
        %v6370 = vadd.f32 %v6289, %v6369
        %v6371 = vpop.f32.mrf.mxu0
        %6372 = vmatprep.mubr.f32.mxu0 0.0
        %6373 = vmatmul.mubr.f32.gmra.mxu0 %v6301
        %v6374 = vpop.f32.mrf.mxu0
        %v6375 = vadd.f32 %v6294, %v6374
        %v6376 = vpop.f32.mrf.mxu0
        %6377 = vdwg.mxu0
        %v6378 = vld [vmem:[#allocation3 + $0x5] sm:$0xff]
        %v6379 = vld [vmem:[#allocation3 + $0xd] sm:$0xff]
        %vm6380 = vcmp.eq.s32.totalorder %v5484, 3
        %vm6381 = vcmp.eq.s32.totalorder %v5485, 3
        %v6382 = vsel %vm6380, 0.0, %v6378
        %v6383 = vsel %vm6381, 0.0, %v6379
        %s6384 = scalar_lea.vmem %s6, 64
        %v6385 = vld [vmem:[%s6384] sm:$0xff]
        %v6386 = vld [vmem:[%s6384 + $0x8] sm:$0xff]
        %v6387 = vld [vmem:[%s6384 + $0x10] sm:$0xff]
        %v6388 = vld [vmem:[%s6384 + $0x18] sm:$0xff]
        %v6390 = vsel %vm5853, %v6382, 0
        %v6393 = vsel %vm5853, %v6383, 0
        %6395 = vmatprep.subr.mxu0 0.0
        %6396 = vmatpush1.msra.mxu0 0.0
        %6397 = vmatprep.subr.mxu0 0.0
        %6398 = vmatpush1.msra.mxu0 0.0
        %6399 = vmatprep.subr.mxu0 0.0
        %6400 = vmatpush1.msra.mxu0 0.0
        %6401 = vmatprep.subr.mxu0 0.0
        %6402 = vmatpush1.msra.mxu0 0.0
        %6403 = vmatprep.subr.mxu0 0.0
        %6404 = vmatpush1.msra.mxu0 0.0
        %6405 = vmatprep.subr.mxu0 0.0
        %6406 = vmatpush1.msra.mxu0 0.0
        %6407 = vmatprep.subr.mxu0 0.0
        %6408 = vmatpush1.msra.mxu0 0.0
        %6409 = vmatprep.subr.mxu0 0.0
        %6410 = vmatpush1.msra.mxu0 0.0
        %6411 = vmatprep.subr.mxu0 0.0
        %6412 = vmatpush1.msra.mxu0 0.0
        %6413 = vmatprep.subr.mxu0 0.0
        %6414 = vmatpush1.msra.mxu0 0.0
        %6415 = vmatprep.subr.mxu0 0.0
        %6416 = vmatpush1.msra.mxu0 0.0
        %6417 = vmatprep.subr.mxu0 0.0
        %6418 = vmatpush1.msra.mxu0 0.0
        %6419 = vmatprep.subr.mxu0 0.0
        %6420 = vmatpush1.msra.mxu0 %v6388
        %6421 = vmatprep.subr.mxu0 0.0
        %6422 = vmatpush1.msra.mxu0 %v6387
        %6423 = vmatprep.subr.mxu0 0.0
        %6424 = vmatpush1.msra.mxu0 %v6386
        %6425 = vmatprep.subr.mxu0 0.0
        %6426 = vmatpush1.msra.mxu0 %v6385
        %6427 = vmatprep.subr.mxu0 0.0
        %6428 = vmatpush2.msra.mxu0 0.0
        %6429 = vmatprep.subr.mxu0 0.0
        %6430 = vmatpush2.msra.mxu0 0.0
        %6431 = vmatprep.subr.mxu0 0.0
        %6432 = vmatpush2.msra.mxu0 0.0
        %6433 = vmatprep.subr.mxu0 0.0
        %6434 = vmatpush2.msra.mxu0 0.0
        %6435 = vmatprep.subr.mxu0 0.0
        %6436 = vmatpush2.msra.mxu0 0.0
        %6437 = vmatprep.subr.mxu0 0.0
        %6438 = vmatpush2.msra.mxu0 0.0
        %6439 = vmatprep.subr.mxu0 0.0
        %6440 = vmatpush2.msra.mxu0 0.0
        %6441 = vmatprep.subr.mxu0 0.0
        %6442 = vmatpush2.msra.mxu0 0.0
        %6443 = vmatprep.subr.mxu0 0.0
        %6444 = vmatpush2.msra.mxu0 0.0
        %6445 = vmatprep.subr.mxu0 0.0
        %6446 = vmatpush2.msra.mxu0 0.0
        %6447 = vmatprep.subr.mxu0 0.0
        %6448 = vmatpush2.msra.mxu0 0.0
        %6449 = vmatprep.subr.mxu0 0.0
        %6450 = vmatpush2.msra.mxu0 0.0
        %6451 = vmatprep.subr.mxu0 0.0
        %6452 = vmatpush2.msra.mxu0 0.0
        %6453 = vmatprep.subr.mxu0 0.0
        %6454 = vmatpush2.msra.mxu0 0.0
        %6455 = vmatprep.subr.mxu0 0.0
        %6456 = vmatpush2.msra.mxu0 0.0
        %6457 = vmatprep.subr.mxu0 0.0
        %6458 = vmatpush2.msra.mxu0 0.0
        %6459 = vmatprep.mubr.f32.mxu0 0.0
        %6460 = vmatmul.mubr.f32.gmra.mxu0 %v6390
        %v6461 = vpop.f32.mrf.mxu0
        %v6462 = vadd.f32 0.0, %v6461
        %v6463 = vpop.f32.mrf.mxu0
        %6464 = vmatprep.mubr.f32.mxu0 0.0
        %6465 = vmatmul.mubr.f32.gmra.mxu0 %v6393
        %v6466 = vpop.f32.mrf.mxu0
        %v6467 = vadd.f32 0.0, %v6466
        %v6468 = vpop.f32.mrf.mxu0
        %6469 = vdwg.mxu0
        %v6470 = vadd.f32 %v6370, %v6462
        %v6471 = vadd.f32 %v6375, %v6467
        %v6472 = vld [vmem:[#allocation3 + $0x7] sm:$0xff]
        %v6473 = vld [vmem:[#allocation3 + $0xf] sm:$0xff]
        %v6474 = vsel %vm6201, 0.0, %v6472
        %v6475 = vsel %vm6202, 0.0, %v6473
        %s6476 = scalar_lea.vmem %s6, 96
        %v6477 = vld [vmem:[%s6476] sm:$0xff]
        %v6478 = vld [vmem:[%s6476 + $0x8] sm:$0xff]
        %v6479 = vld [vmem:[%s6476 + $0x10] sm:$0xff]
        %v6480 = vld [vmem:[%s6476 + $0x18] sm:$0xff]
        %v6482 = vsel %vm5853, %v6474, 0
        %v6485 = vsel %vm5853, %v6475, 0
        %6487 = vmatprep.subr.mxu0 0.0
        %6488 = vmatpush1.msra.mxu0 0.0
        %6489 = vmatprep.subr.mxu0 0.0
        %6490 = vmatpush1.msra.mxu0 0.0
        %6491 = vmatprep.subr.mxu0 0.0
        %6492 = vmatpush1.msra.mxu0 0.0
        %6493 = vmatprep.subr.mxu0 0.0
        %6494 = vmatpush1.msra.mxu0 0.0
        %6495 = vmatprep.subr.mxu0 0.0
        %6496 = vmatpush1.msra.mxu0 0.0
        %6497 = vmatprep.subr.mxu0 0.0
        %6498 = vmatpush1.msra.mxu0 0.0
        %6499 = vmatprep.subr.mxu0 0.0
        %6500 = vmatpush1.msra.mxu0 0.0
        %6501 = vmatprep.subr.mxu0 0.0
        %6502 = vmatpush1.msra.mxu0 0.0
        %6503 = vmatprep.subr.mxu0 0.0
        %6504 = vmatpush1.msra.mxu0 0.0
        %6505 = vmatprep.subr.mxu0 0.0
        %6506 = vmatpush1.msra.mxu0 0.0
        %6507 = vmatprep.subr.mxu0 0.0
        %6508 = vmatpush1.msra.mxu0 0.0
        %6509 = vmatprep.subr.mxu0 0.0
        %6510 = vmatpush1.msra.mxu0 0.0
        %6511 = vmatprep.subr.mxu0 0.0
        %6512 = vmatpush1.msra.mxu0 %v6480
        %6513 = vmatprep.subr.mxu0 0.0
        %6514 = vmatpush1.msra.mxu0 %v6479
        %6515 = vmatprep.subr.mxu0 0.0
        %6516 = vmatpush1.msra.mxu0 %v6478
        %6517 = vmatprep.subr.mxu0 0.0
        %6518 = vmatpush1.msra.mxu0 %v6477
        %6519 = vmatprep.subr.mxu0 0.0
        %6520 = vmatpush2.msra.mxu0 0.0
        %6521 = vmatprep.subr.mxu0 0.0
        %6522 = vmatpush2.msra.mxu0 0.0
        %6523 = vmatprep.subr.mxu0 0.0
        %6524 = vmatpush2.msra.mxu0 0.0
        %6525 = vmatprep.subr.mxu0 0.0
        %6526 = vmatpush2.msra.mxu0 0.0
        %6527 = vmatprep.subr.mxu0 0.0
        %6528 = vmatpush2.msra.mxu0 0.0
        %6529 = vmatprep.subr.mxu0 0.0
        %6530 = vmatpush2.msra.mxu0 0.0
        %6531 = vmatprep.subr.mxu0 0.0
        %6532 = vmatpush2.msra.mxu0 0.0
        %6533 = vmatprep.subr.mxu0 0.0
        %6534 = vmatpush2.msra.mxu0 0.0
        %6535 = vmatprep.subr.mxu0 0.0
        %6536 = vmatpush2.msra.mxu0 0.0
        %6537 = vmatprep.subr.mxu0 0.0
        %6538 = vmatpush2.msra.mxu0 0.0
        %6539 = vmatprep.subr.mxu0 0.0
        %6540 = vmatpush2.msra.mxu0 0.0
        %6541 = vmatprep.subr.mxu0 0.0
        %6542 = vmatpush2.msra.mxu0 0.0
        %6543 = vmatprep.subr.mxu0 0.0
        %6544 = vmatpush2.msra.mxu0 0.0
        %6545 = vmatprep.subr.mxu0 0.0
        %6546 = vmatpush2.msra.mxu0 0.0
        %6547 = vmatprep.subr.mxu0 0.0
        %6548 = vmatpush2.msra.mxu0 0.0
        %6549 = vmatprep.subr.mxu0 0.0
        %6550 = vmatpush2.msra.mxu0 0.0
        %6551 = vmatprep.mubr.f32.mxu0 0.0
        %6552 = vmatmul.mubr.f32.gmra.mxu0 %v6482
        %v6553 = vpop.f32.mrf.mxu0
        %v6554 = vadd.f32 0.0, %v6553
        %v6555 = vpop.f32.mrf.mxu0
        %6556 = vmatprep.mubr.f32.mxu0 0.0
        %6557 = vmatmul.mubr.f32.gmra.mxu0 %v6485
        %v6558 = vpop.f32.mrf.mxu0
        %v6559 = vadd.f32 0.0, %v6558
        %v6560 = vpop.f32.mrf.mxu0
        %6561 = vdwg.mxu0
        %v6562 = vadd.f32 %v6470, %v6554
        %v6563 = vadd.f32 %v6471, %v6559
        %v6564 = vld [vmem:[#allocation3 + $0x8] sm:$0xff]
        %v6565 = vld [vmem:[#allocation3 + $0x10] sm:$0xff]
        %s6566 = scalar_lea.vmem %s6, 128
        %v6567 = vld [vmem:[%s6566] sm:$0xff]
        %v6568 = vld [vmem:[%s6566 + $0x8] sm:$0xff]
        %v6569 = vld [vmem:[%s6566 + $0x10] sm:$0xff]
        %v6570 = vld [vmem:[%s6566 + $0x18] sm:$0xff]
        %v6572 = vsel %vm5853, %v6564, 0
        %v6575 = vsel %vm5853, %v6565, 0
        %6577 = vmatprep.subr.mxu0 0.0
        %6578 = vmatpush1.msra.mxu0 0.0
        %6579 = vmatprep.subr.mxu0 0.0
        %6580 = vmatpush1.msra.mxu0 0.0
        %6581 = vmatprep.subr.mxu0 0.0
        %6582 = vmatpush1.msra.mxu0 0.0
        %6583 = vmatprep.subr.mxu0 0.0
        %6584 = vmatpush1.msra.mxu0 0.0
        %6585 = vmatprep.subr.mxu0 0.0
        %6586 = vmatpush1.msra.mxu0 0.0
        %6587 = vmatprep.subr.mxu0 0.0
        %6588 = vmatpush1.msra.mxu0 0.0
        %6589 = vmatprep.subr.mxu0 0.0
        %6590 = vmatpush1.msra.mxu0 0.0
        %6591 = vmatprep.subr.mxu0 0.0
        %6592 = vmatpush1.msra.mxu0 0.0
        %6593 = vmatprep.subr.mxu0 0.0
        %6594 = vmatpush1.msra.mxu0 0.0
        %6595 = vmatprep.subr.mxu0 0.0
        %6596 = vmatpush1.msra.mxu0 0.0
        %6597 = vmatprep.subr.mxu0 0.0
        %6598 = vmatpush1.msra.mxu0 0.0
        %6599 = vmatprep.subr.mxu0 0.0
        %6600 = vmatpush1.msra.mxu0 0.0
        %6601 = vmatprep.subr.mxu0 0.0
        %6602 = vmatpush1.msra.mxu0 %v6570
        %6603 = vmatprep.subr.mxu0 0.0
        %6604 = vmatpush1.msra.mxu0 %v6569
        %6605 = vmatprep.subr.mxu0 0.0
        %6606 = vmatpush1.msra.mxu0 %v6568
        %6607 = vmatprep.subr.mxu0 0.0
        %6608 = vmatpush1.msra.mxu0 %v6567
        %6609 = vmatprep.subr.mxu0 0.0
        %6610 = vmatpush2.msra.mxu0 0.0
        %6611 = vmatprep.subr.mxu0 0.0
        %6612 = vmatpush2.msra.mxu0 0.0
        %6613 = vmatprep.subr.mxu0 0.0
        %6614 = vmatpush2.msra.mxu0 0.0
        %6615 = vmatprep.subr.mxu0 0.0
        %6616 = vmatpush2.msra.mxu0 0.0
        %6617 = vmatprep.subr.mxu0 0.0
        %6618 = vmatpush2.msra.mxu0 0.0
        %6619 = vmatprep.subr.mxu0 0.0
        %6620 = vmatpush2.msra.mxu0 0.0
        %6621 = vmatprep.subr.mxu0 0.0
        %6622 = vmatpush2.msra.mxu0 0.0
        %6623 = vmatprep.subr.mxu0 0.0
        %6624 = vmatpush2.msra.mxu0 0.0
        %6625 = vmatprep.subr.mxu0 0.0
        %6626 = vmatpush2.msra.mxu0 0.0
        %6627 = vmatprep.subr.mxu0 0.0
        %6628 = vmatpush2.msra.mxu0 0.0
        %6629 = vmatprep.subr.mxu0 0.0
        %6630 = vmatpush2.msra.mxu0 0.0
        %6631 = vmatprep.subr.mxu0 0.0
        %6632 = vmatpush2.msra.mxu0 0.0
        %6633 = vmatprep.subr.mxu0 0.0
        %6634 = vmatpush2.msra.mxu0 0.0
        %6635 = vmatprep.subr.mxu0 0.0
        %6636 = vmatpush2.msra.mxu0 0.0
        %6637 = vmatprep.subr.mxu0 0.0
        %6638 = vmatpush2.msra.mxu0 0.0
        %6639 = vmatprep.subr.mxu0 0.0
        %6640 = vmatpush2.msra.mxu0 0.0
        %6641 = vmatprep.mubr.f32.mxu0 0.0
        %6642 = vmatmul.mubr.f32.gmra.mxu0 %v6572
        %v6643 = vpop.f32.mrf.mxu0
        %v6644 = vadd.f32 0.0, %v6643
        %v6645 = vpop.f32.mrf.mxu0
        %6646 = vmatprep.mubr.f32.mxu0 0.0
        %6647 = vmatmul.mubr.f32.gmra.mxu0 %v6575
        %v6648 = vpop.f32.mrf.mxu0
        %v6649 = vadd.f32 0.0, %v6648
        %v6650 = vpop.f32.mrf.mxu0
        %6651 = vdwg.mxu0
        %v6652 = vadd.f32 %v6562, %v6644
        %v6653 = vadd.f32 %v6563, %v6649
        %v6654 = vld [vmem:[#allocation3 + $0x9] sm:$0xff]
        %v6655 = vld [vmem:[#allocation3 + $0x11] sm:$0xff]
        %v6656 = vsel %vm6380, 0.0, %v6654
        %v6657 = vsel %vm6381, 0.0, %v6655
        %s6658 = scalar_lea.vmem %s6, 160
        %v6659 = vld [vmem:[%s6658] sm:$0xff]
        %v6660 = vld [vmem:[%s6658 + $0x8] sm:$0xff]
        %v6661 = vld [vmem:[%s6658 + $0x10] sm:$0xff]
        %v6662 = vld [vmem:[%s6658 + $0x18] sm:$0xff]
        %v6664 = vsel %vm5853, %v6656, 0
        %v6667 = vsel %vm5853, %v6657, 0
        %6669 = vmatprep.subr.mxu0 0.0
        %6670 = vmatpush1.msra.mxu0 0.0
        %6671 = vmatprep.subr.mxu0 0.0
        %6672 = vmatpush1.msra.mxu0 0.0
        %6673 = vmatprep.subr.mxu0 0.0
        %6674 = vmatpush1.msra.mxu0 0.0
        %6675 = vmatprep.subr.mxu0 0.0
        %6676 = vmatpush1.msra.mxu0 0.0
        %6677 = vmatprep.subr.mxu0 0.0
        %6678 = vmatpush1.msra.mxu0 0.0
        %6679 = vmatprep.subr.mxu0 0.0
        %6680 = vmatpush1.msra.mxu0 0.0
        %6681 = vmatprep.subr.mxu0 0.0
        %6682 = vmatpush1.msra.mxu0 0.0
        %6683 = vmatprep.subr.mxu0 0.0
        %6684 = vmatpush1.msra.mxu0 0.0
        %6685 = vmatprep.subr.mxu0 0.0
        %6686 = vmatpush1.msra.mxu0 0.0
        %6687 = vmatprep.subr.mxu0 0.0
        %6688 = vmatpush1.msra.mxu0 0.0
        %6689 = vmatprep.subr.mxu0 0.0
        %6690 = vmatpush1.msra.mxu0 0.0
        %6691 = vmatprep.subr.mxu0 0.0
        %6692 = vmatpush1.msra.mxu0 0.0
        %6693 = vmatprep.subr.mxu0 0.0
        %6694 = vmatpush1.msra.mxu0 %v6662
        %6695 = vmatprep.subr.mxu0 0.0
        %6696 = vmatpush1.msra.mxu0 %v6661
        %6697 = vmatprep.subr.mxu0 0.0
        %6698 = vmatpush1.msra.mxu0 %v6660
        %6699 = vmatprep.subr.mxu0 0.0
        %6700 = vmatpush1.msra.mxu0 %v6659
        %6701 = vmatprep.subr.mxu0 0.0
        %6702 = vmatpush2.msra.mxu0 0.0
        %6703 = vmatprep.subr.mxu0 0.0
        %6704 = vmatpush2.msra.mxu0 0.0
        %6705 = vmatprep.subr.mxu0 0.0
        %6706 = vmatpush2.msra.mxu0 0.0
        %6707 = vmatprep.subr.mxu0 0.0
        %6708 = vmatpush2.msra.mxu0 0.0
        %6709 = vmatprep.subr.mxu0 0.0
        %6710 = vmatpush2.msra.mxu0 0.0
        %6711 = vmatprep.subr.mxu0 0.0
        %6712 = vmatpush2.msra.mxu0 0.0
        %6713 = vmatprep.subr.mxu0 0.0
        %6714 = vmatpush2.msra.mxu0 0.0
        %6715 = vmatprep.subr.mxu0 0.0
        %6716 = vmatpush2.msra.mxu0 0.0
        %6717 = vmatprep.subr.mxu0 0.0
        %6718 = vmatpush2.msra.mxu0 0.0
        %6719 = vmatprep.subr.mxu0 0.0
        %6720 = vmatpush2.msra.mxu0 0.0
        %6721 = vmatprep.subr.mxu0 0.0
        %6722 = vmatpush2.msra.mxu0 0.0
        %6723 = vmatprep.subr.mxu0 0.0
        %6724 = vmatpush2.msra.mxu0 0.0
        %6725 = vmatprep.subr.mxu0 0.0
        %6726 = vmatpush2.msra.mxu0 0.0
        %6727 = vmatprep.subr.mxu0 0.0
        %6728 = vmatpush2.msra.mxu0 0.0
        %6729 = vmatprep.subr.mxu0 0.0
        %6730 = vmatpush2.msra.mxu0 0.0
        %6731 = vmatprep.subr.mxu0 0.0
        %6732 = vmatpush2.msra.mxu0 0.0
        %6733 = vmatprep.mubr.f32.mxu0 0.0
        %6734 = vmatmul.mubr.f32.gmra.mxu0 %v6664
        %v6735 = vpop.f32.mrf.mxu0
        %v6736 = vadd.f32 0.0, %v6735
        %v6737 = vpop.f32.mrf.mxu0
        %6738 = vmatprep.mubr.f32.mxu0 0.0
        %6739 = vmatmul.mubr.f32.gmra.mxu0 %v6667
        %v6740 = vpop.f32.mrf.mxu0
        %v6741 = vadd.f32 0.0, %v6740
        %v6742 = vpop.f32.mrf.mxu0
        %6743 = vdwg.mxu0
        %v6744 = vadd.f32 %v6652, %v6736
        %v6745 = vadd.f32 %v6653, %v6741
        %v6746 = vld [vmem:[#allocation3 + $0xb] sm:$0xff]
        %v6747 = vld [vmem:[#allocation3 + $0x13] sm:$0xff]
        %v6748 = vsel %vm6201, 0.0, %v6746
        %v6749 = vsel %vm6202, 0.0, %v6747
        %s6750 = scalar_lea.vmem %s6, 192
        %v6751 = vld [vmem:[%s6750] sm:$0xff]
        %v6752 = vld [vmem:[%s6750 + $0x8] sm:$0xff]
        %v6753 = vld [vmem:[%s6750 + $0x10] sm:$0xff]
        %v6754 = vld [vmem:[%s6750 + $0x18] sm:$0xff]
        %v6756 = vsel %vm5853, %v6748, 0
        %v6759 = vsel %vm5853, %v6749, 0
        %6761 = vmatprep.subr.mxu0 0.0
        %6762 = vmatpush1.msra.mxu0 0.0
        %6763 = vmatprep.subr.mxu0 0.0
        %6764 = vmatpush1.msra.mxu0 0.0
        %6765 = vmatprep.subr.mxu0 0.0
        %6766 = vmatpush1.msra.mxu0 0.0
        %6767 = vmatprep.subr.mxu0 0.0
        %6768 = vmatpush1.msra.mxu0 0.0
        %6769 = vmatprep.subr.mxu0 0.0
        %6770 = vmatpush1.msra.mxu0 0.0
        %6771 = vmatprep.subr.mxu0 0.0
        %6772 = vmatpush1.msra.mxu0 0.0
        %6773 = vmatprep.subr.mxu0 0.0
        %6774 = vmatpush1.msra.mxu0 0.0
        %6775 = vmatprep.subr.mxu0 0.0
        %6776 = vmatpush1.msra.mxu0 0.0
        %6777 = vmatprep.subr.mxu0 0.0
        %6778 = vmatpush1.msra.mxu0 0.0
        %6779 = vmatprep.subr.mxu0 0.0
        %6780 = vmatpush1.msra.mxu0 0.0
        %6781 = vmatprep.subr.mxu0 0.0
        %6782 = vmatpush1.msra.mxu0 0.0
        %6783 = vmatprep.subr.mxu0 0.0
        %6784 = vmatpush1.msra.mxu0 0.0
        %6785 = vmatprep.subr.mxu0 0.0
        %6786 = vmatpush1.msra.mxu0 %v6754
        %6787 = vmatprep.subr.mxu0 0.0
        %6788 = vmatpush1.msra.mxu0 %v6753
        %6789 = vmatprep.subr.mxu0 0.0
        %6790 = vmatpush1.msra.mxu0 %v6752
        %6791 = vmatprep.subr.mxu0 0.0
        %6792 = vmatpush1.msra.mxu0 %v6751
        %6793 = vmatprep.subr.mxu0 0.0
        %6794 = vmatpush2.msra.mxu0 0.0
        %6795 = vmatprep.subr.mxu0 0.0
        %6796 = vmatpush2.msra.mxu0 0.0
        %6797 = vmatprep.subr.mxu0 0.0
        %6798 = vmatpush2.msra.mxu0 0.0
        %6799 = vmatprep.subr.mxu0 0.0
        %6800 = vmatpush2.msra.mxu0 0.0
        %6801 = vmatprep.subr.mxu0 0.0
        %6802 = vmatpush2.msra.mxu0 0.0
        %6803 = vmatprep.subr.mxu0 0.0
        %6804 = vmatpush2.msra.mxu0 0.0
        %6805 = vmatprep.subr.mxu0 0.0
        %6806 = vmatpush2.msra.mxu0 0.0
        %6807 = vmatprep.subr.mxu0 0.0
        %6808 = vmatpush2.msra.mxu0 0.0
        %6809 = vmatprep.subr.mxu0 0.0
        %6810 = vmatpush2.msra.mxu0 0.0
        %6811 = vmatprep.subr.mxu0 0.0
        %6812 = vmatpush2.msra.mxu0 0.0
        %6813 = vmatprep.subr.mxu0 0.0
        %6814 = vmatpush2.msra.mxu0 0.0
        %6815 = vmatprep.subr.mxu0 0.0
        %6816 = vmatpush2.msra.mxu0 0.0
        %6817 = vmatprep.subr.mxu0 0.0
        %6818 = vmatpush2.msra.mxu0 0.0
        %6819 = vmatprep.subr.mxu0 0.0
        %6820 = vmatpush2.msra.mxu0 0.0
        %6821 = vmatprep.subr.mxu0 0.0
        %6822 = vmatpush2.msra.mxu0 0.0
        %6823 = vmatprep.subr.mxu0 0.0
        %6824 = vmatpush2.msra.mxu0 0.0
        %6825 = vmatprep.mubr.f32.mxu0 0.0
        %6826 = vmatmul.mubr.f32.gmra.mxu0 %v6756
        %v6827 = vpop.f32.mrf.mxu0
        %v6828 = vadd.f32 0.0, %v6827
        %v6829 = vpop.f32.mrf.mxu0
        %6830 = vmatprep.mubr.f32.mxu0 0.0
        %6831 = vmatmul.mubr.f32.gmra.mxu0 %v6759
        %v6832 = vpop.f32.mrf.mxu0
        %v6833 = vadd.f32 0.0, %v6832
        %v6834 = vpop.f32.mrf.mxu0
        %6835 = vdwg.mxu0
        %v6836 = vadd.f32 %v6744, %v6828
        %v6837 = vadd.f32 %v6745, %v6833
        %v6838 = vld [vmem:[#allocation3 + $0xc] sm:$0xff]
        %v6839 = vld [vmem:[#allocation3 + $0x14] sm:$0xff]
        %s6840 = scalar_lea.vmem %s6, 224
        %v6841 = vld [vmem:[%s6840] sm:$0xff]
        %v6842 = vld [vmem:[%s6840 + $0x8] sm:$0xff]
        %v6843 = vld [vmem:[%s6840 + $0x10] sm:$0xff]
        %v6844 = vld [vmem:[%s6840 + $0x18] sm:$0xff]
        %v6846 = vsel %vm5853, %v6838, 0
        %v6849 = vsel %vm5853, %v6839, 0
        %6851 = vmatprep.subr.mxu0 0.0
        %6852 = vmatpush1.msra.mxu0 0.0
        %6853 = vmatprep.subr.mxu0 0.0
        %6854 = vmatpush1.msra.mxu0 0.0
        %6855 = vmatprep.subr.mxu0 0.0
        %6856 = vmatpush1.msra.mxu0 0.0
        %6857 = vmatprep.subr.mxu0 0.0
        %6858 = vmatpush1.msra.mxu0 0.0
        %6859 = vmatprep.subr.mxu0 0.0
        %6860 = vmatpush1.msra.mxu0 0.0
        %6861 = vmatprep.subr.mxu0 0.0
        %6862 = vmatpush1.msra.mxu0 0.0
        %6863 = vmatprep.subr.mxu0 0.0
        %6864 = vmatpush1.msra.mxu0 0.0
        %6865 = vmatprep.subr.mxu0 0.0
        %6866 = vmatpush1.msra.mxu0 0.0
        %6867 = vmatprep.subr.mxu0 0.0
        %6868 = vmatpush1.msra.mxu0 0.0
        %6869 = vmatprep.subr.mxu0 0.0
        %6870 = vmatpush1.msra.mxu0 0.0
        %6871 = vmatprep.subr.mxu0 0.0
        %6872 = vmatpush1.msra.mxu0 0.0
        %6873 = vmatprep.subr.mxu0 0.0
        %6874 = vmatpush1.msra.mxu0 0.0
        %6875 = vmatprep.subr.mxu0 0.0
        %6876 = vmatpush1.msra.mxu0 %v6844
        %6877 = vmatprep.subr.mxu0 0.0
        %6878 = vmatpush1.msra.mxu0 %v6843
        %6879 = vmatprep.subr.mxu0 0.0
        %6880 = vmatpush1.msra.mxu0 %v6842
        %6881 = vmatprep.subr.mxu0 0.0
        %6882 = vmatpush1.msra.mxu0 %v6841
        %6883 = vmatprep.subr.mxu0 0.0
        %6884 = vmatpush2.msra.mxu0 0.0
        %6885 = vmatprep.subr.mxu0 0.0
        %6886 = vmatpush2.msra.mxu0 0.0
        %6887 = vmatprep.subr.mxu0 0.0
        %6888 = vmatpush2.msra.mxu0 0.0
        %6889 = vmatprep.subr.mxu0 0.0
        %6890 = vmatpush2.msra.mxu0 0.0
        %6891 = vmatprep.subr.mxu0 0.0
        %6892 = vmatpush2.msra.mxu0 0.0
        %6893 = vmatprep.subr.mxu0 0.0
        %6894 = vmatpush2.msra.mxu0 0.0
        %6895 = vmatprep.subr.mxu0 0.0
        %6896 = vmatpush2.msra.mxu0 0.0
        %6897 = vmatprep.subr.mxu0 0.0
        %6898 = vmatpush2.msra.mxu0 0.0
        %6899 = vmatprep.subr.mxu0 0.0
        %6900 = vmatpush2.msra.mxu0 0.0
        %6901 = vmatprep.subr.mxu0 0.0
        %6902 = vmatpush2.msra.mxu0 0.0
        %6903 = vmatprep.subr.mxu0 0.0
        %6904 = vmatpush2.msra.mxu0 0.0
        %6905 = vmatprep.subr.mxu0 0.0
        %6906 = vmatpush2.msra.mxu0 0.0
        %6907 = vmatprep.subr.mxu0 0.0
        %6908 = vmatpush2.msra.mxu0 0.0
        %6909 = vmatprep.subr.mxu0 0.0
        %6910 = vmatpush2.msra.mxu0 0.0
        %6911 = vmatprep.subr.mxu0 0.0
        %6912 = vmatpush2.msra.mxu0 0.0
        %6913 = vmatprep.subr.mxu0 0.0
        %6914 = vmatpush2.msra.mxu0 0.0
        %6915 = vmatprep.mubr.f32.mxu0 0.0
        %6916 = vmatmul.mubr.f32.gmra.mxu0 %v6846
        %v6917 = vpop.f32.mrf.mxu0
        %v6918 = vadd.f32 0.0, %v6917
        %v6919 = vpop.f32.mrf.mxu0
        %6920 = vmatprep.mubr.f32.mxu0 0.0
        %6921 = vmatmul.mubr.f32.gmra.mxu0 %v6849
        %v6922 = vpop.f32.mrf.mxu0
        %v6923 = vadd.f32 0.0, %v6922
        %v6924 = vpop.f32.mrf.mxu0
        %6925 = vdwg.mxu0
        %v6926 = vadd.f32 %v6836, %v6918
        %v6927 = vadd.f32 %v6837, %v6923
        %v6928 = vld [vmem:[#allocation3 + $0xd] sm:$0xff]
        %v6929 = vld [vmem:[#allocation3 + $0x15] sm:$0xff]
        %v6930 = vsel %vm6380, 0.0, %v6928
        %v6931 = vsel %vm6381, 0.0, %v6929
        %s6932 = scalar_lea.vmem %s6, 256
        %v6933 = vld [vmem:[%s6932] sm:$0xff]
        %v6934 = vld [vmem:[%s6932 + $0x8] sm:$0xff]
        %v6935 = vld [vmem:[%s6932 + $0x10] sm:$0xff]
        %v6936 = vld [vmem:[%s6932 + $0x18] sm:$0xff]
        %v6938 = vsel %vm5853, %v6930, 0
        %v6941 = vsel %vm5853, %v6931, 0
        %6943 = vmatprep.subr.mxu0 0.0
        %6944 = vmatpush1.msra.mxu0 0.0
        %6945 = vmatprep.subr.mxu0 0.0
        %6946 = vmatpush1.msra.mxu0 0.0
        %6947 = vmatprep.subr.mxu0 0.0
        %6948 = vmatpush1.msra.mxu0 0.0
        %6949 = vmatprep.subr.mxu0 0.0
        %6950 = vmatpush1.msra.mxu0 0.0
        %6951 = vmatprep.subr.mxu0 0.0
        %6952 = vmatpush1.msra.mxu0 0.0
        %6953 = vmatprep.subr.mxu0 0.0
        %6954 = vmatpush1.msra.mxu0 0.0
        %6955 = vmatprep.subr.mxu0 0.0
        %6956 = vmatpush1.msra.mxu0 0.0
        %6957 = vmatprep.subr.mxu0 0.0
        %6958 = vmatpush1.msra.mxu0 0.0
        %6959 = vmatprep.subr.mxu0 0.0
        %6960 = vmatpush1.msra.mxu0 0.0
        %6961 = vmatprep.subr.mxu0 0.0
        %6962 = vmatpush1.msra.mxu0 0.0
        %6963 = vmatprep.subr.mxu0 0.0
        %6964 = vmatpush1.msra.mxu0 0.0
        %6965 = vmatprep.subr.mxu0 0.0
        %6966 = vmatpush1.msra.mxu0 0.0
        %6967 = vmatprep.subr.mxu0 0.0
        %6968 = vmatpush1.msra.mxu0 %v6936
        %6969 = vmatprep.subr.mxu0 0.0
        %6970 = vmatpush1.msra.mxu0 %v6935
        %6971 = vmatprep.subr.mxu0 0.0
        %6972 = vmatpush1.msra.mxu0 %v6934
        %6973 = vmatprep.subr.mxu0 0.0
        %6974 = vmatpush1.msra.mxu0 %v6933
        %6975 = vmatprep.subr.mxu0 0.0
        %6976 = vmatpush2.msra.mxu0 0.0
        %6977 = vmatprep.subr.mxu0 0.0
        %6978 = vmatpush2.msra.mxu0 0.0
        %6979 = vmatprep.subr.mxu0 0.0
        %6980 = vmatpush2.msra.mxu0 0.0
        %6981 = vmatprep.subr.mxu0 0.0
        %6982 = vmatpush2.msra.mxu0 0.0
        %6983 = vmatprep.subr.mxu0 0.0
        %6984 = vmatpush2.msra.mxu0 0.0
        %6985 = vmatprep.subr.mxu0 0.0
        %6986 = vmatpush2.msra.mxu0 0.0
        %6987 = vmatprep.subr.mxu0 0.0
        %6988 = vmatpush2.msra.mxu0 0.0
        %6989 = vmatprep.subr.mxu0 0.0
        %6990 = vmatpush2.msra.mxu0 0.0
        %6991 = vmatprep.subr.mxu0 0.0
        %6992 = vmatpush2.msra.mxu0 0.0
        %6993 = vmatprep.subr.mxu0 0.0
        %6994 = vmatpush2.msra.mxu0 0.0
        %6995 = vmatprep.subr.mxu0 0.0
        %6996 = vmatpush2.msra.mxu0 0.0
        %6997 = vmatprep.subr.mxu0 0.0
        %6998 = vmatpush2.msra.mxu0 0.0
        %6999 = vmatprep.subr.mxu0 0.0
        %7000 = vmatpush2.msra.mxu0 0.0
        %7001 = vmatprep.subr.mxu0 0.0
        %7002 = vmatpush2.msra.mxu0 0.0
        %7003 = vmatprep.subr.mxu0 0.0
        %7004 = vmatpush2.msra.mxu0 0.0
        %7005 = vmatprep.subr.mxu0 0.0
        %7006 = vmatpush2.msra.mxu0 0.0
        %7007 = vmatprep.mubr.f32.mxu0 0.0
        %7008 = vmatmul.mubr.f32.gmra.mxu0 %v6938
        %v7009 = vpop.f32.mrf.mxu0
        %v7010 = vadd.f32 0.0, %v7009
        %v7011 = vpop.f32.mrf.mxu0
        %7012 = vmatprep.mubr.f32.mxu0 0.0
        %7013 = vmatmul.mubr.f32.gmra.mxu0 %v6941
        %v7014 = vpop.f32.mrf.mxu0
        %v7015 = vadd.f32 0.0, %v7014
        %v7016 = vpop.f32.mrf.mxu0
        %7017 = vdwg.mxu0
        %v7018 = vadd.f32 %v6926, %v7010
        %v7019 = vadd.f32 %v6927, %v7015
        %v7020 = vld [vmem:[%s7] sm:$0x1]
        %v7022 = vlaneseq
        %v7023 = vshrl.u32 %v7022, 7
        %v7024 = vsub.s32 0, %v7023
        %v7025 = vrot.slane %v7020, %v7024
        %v7027 = vadd.f32 %v7018, %v7025
        %v7028 = vadd.f32 %v7019, %v7025
        %v7029 = vsel %vm5494, %v7027, -inf
        %v7030 = vsel %vm5494, %v7028, -inf
        %v7031 = vmax.f32 %v7029, %v7030
        %v7032 = vrot.slane %v7031, 4
        %v7033 = vmax.f32 %v7031, %v7032
        %v7034 = vrot.slane %v7033, 2
        %v7035 = vmax.f32 %v7033, %v7034
        %v7036 = vrot.slane %v7035, 1
        %v7037 = vmax.f32 %v7035, %v7036
        %v7038 = vld [vmem:[%s8] sm:$0xff]
        %v7039 = vld [vmem:[%s8 + $0x8] sm:$0xff]
        %v7040 = vld [vmem:[%s8 + $0x10] sm:$0xff]
        %v7041 = vld [vmem:[%s8 + $0x18] sm:$0xff]
        %v7042 = vld [vmem:[%s8 + $0x20] sm:$0xff]
        %v7043 = vld [vmem:[%s8 + $0x28] sm:$0xff]
        %v7044 = vld [vmem:[%s8 + $0x30] sm:$0xff]
        %v7045 = vld [vmem:[%s8 + $0x38] sm:$0xff]
        %v7046 = vld [vmem:[%s9] sm:$0x1]
        %v7048 = vsel %vm5494, %v7037, 0
        %7050 = vmatprep.subr.mxu0 0.0
        %7051 = vmatpush1.msra.mxu0 0.0
        %7052 = vmatprep.subr.mxu0 0.0
        %7053 = vmatpush1.msra.mxu0 0.0
        %7054 = vmatprep.subr.mxu0 0.0
        %7055 = vmatpush1.msra.mxu0 0.0
        %7056 = vmatprep.subr.mxu0 0.0
        %7057 = vmatpush1.msra.mxu0 0.0
        %7058 = vmatprep.subr.mxu0 0.0
        %7059 = vmatpush1.msra.mxu0 0.0
        %7060 = vmatprep.subr.mxu0 0.0
        %7061 = vmatpush1.msra.mxu0 0.0
        %7062 = vmatprep.subr.mxu0 0.0
        %7063 = vmatpush1.msra.mxu0 0.0
        %7064 = vmatprep.subr.mxu0 0.0
        %7065 = vmatpush1.msra.mxu0 0.0
        %7066 = vmatprep.subr.mxu0 0.0
        %7067 = vmatpush1.msra.mxu0 %v7045
        %7068 = vmatprep.subr.mxu0 0.0
        %7069 = vmatpush1.msra.mxu0 %v7044
        %7070 = vmatprep.subr.mxu0 0.0
        %7071 = vmatpush1.msra.mxu0 %v7043
        %7072 = vmatprep.subr.mxu0 0.0
        %7073 = vmatpush1.msra.mxu0 %v7042
        %7074 = vmatprep.subr.mxu0 0.0
        %7075 = vmatpush1.msra.mxu0 %v7041
        %7076 = vmatprep.subr.mxu0 0.0
        %7077 = vmatpush1.msra.mxu0 %v7040
        %7078 = vmatprep.subr.mxu0 0.0
        %7079 = vmatpush1.msra.mxu0 %v7039
        %7080 = vmatprep.subr.mxu0 0.0
        %7081 = vmatpush1.msra.mxu0 %v7038
        %7082 = vmatprep.subr.mxu0 0.0
        %7083 = vmatpush2.msra.mxu0 0.0
        %7084 = vmatprep.subr.mxu0 0.0
        %7085 = vmatpush2.msra.mxu0 0.0
        %7086 = vmatprep.subr.mxu0 0.0
        %7087 = vmatpush2.msra.mxu0 0.0
        %7088 = vmatprep.subr.mxu0 0.0
        %7089 = vmatpush2.msra.mxu0 0.0
        %7090 = vmatprep.subr.mxu0 0.0
        %7091 = vmatpush2.msra.mxu0 0.0
        %7092 = vmatprep.subr.mxu0 0.0
        %7093 = vmatpush2.msra.mxu0 0.0
        %7094 = vmatprep.subr.mxu0 0.0
        %7095 = vmatpush2.msra.mxu0 0.0
        %7096 = vmatprep.subr.mxu0 0.0
        %7097 = vmatpush2.msra.mxu0 0.0
        %7098 = vmatprep.subr.mxu0 0.0
        %7099 = vmatpush2.msra.mxu0 0.0
        %7100 = vmatprep.subr.mxu0 0.0
        %7101 = vmatpush2.msra.mxu0 0.0
        %7102 = vmatprep.subr.mxu0 0.0
        %7103 = vmatpush2.msra.mxu0 0.0
        %7104 = vmatprep.subr.mxu0 0.0
        %7105 = vmatpush2.msra.mxu0 0.0
        %7106 = vmatprep.subr.mxu0 0.0
        %7107 = vmatpush2.msra.mxu0 0.0
        %7108 = vmatprep.subr.mxu0 0.0
        %7109 = vmatpush2.msra.mxu0 0.0
        %7110 = vmatprep.subr.mxu0 0.0
        %7111 = vmatpush2.msra.mxu0 0.0
        %7112 = vmatprep.subr.mxu0 0.0
        %7113 = vmatpush2.msra.mxu0 0.0
        %7114 = vmatprep.mubr.f32.mxu0 0.0
        %7115 = vmatmul.mubr.f32.gmra.mxu0 %v7048
        %v7116 = vpop.f32.mrf.mxu0
        %v7117 = vadd.f32 %v7046, %v7116
        %v7118 = vpop.f32.mrf.mxu0
        %7119 = vdwg.mxu0
        %vm7120 = vcmask 73728
        %7121 = vst.msk [vmem:[%s463] sm:$0x1] %vm7120, %v7117
        %s7122 = sand.u32 %s255, 1
        %s7123 = scalar_lea.sflag [#allocation5], %s7122
        %s7124 = sand.u32 %s255, 1
        %s7125 = scalar_lea.vmem [#allocation4], %s7124
        %s7126 = sand.u32 %s32, 1
        %s7127 = scalar_lea.sflag [#allocation7], %s7126
        %s7128 = sand.u32 %s281, 1
        %s7129 = smul.addr %s7128, 16
        %s7130 = scalar_lea.vmem [#allocation6], %s7129
        %s7131 = sand.u32 %s32, 1
        %s7132 = scalar_lea.sflag [#allocation7], %s7131
        %s7133 = sand.u32 %s307, 1
        %s7134 = smul.addr %s7133, 16
        %s7135 = scalar_lea.vmem [#allocation8], %s7134
        %p7136 = scmp.lt.s32.totalorder %s32, 1
        %s7137 = scalar_select %p7136, %s32, 1
        %s7138 = smul.addr %s7137, 2
        %s7139 = smul.addr %s7138, 8
        %s7140 = scalar_lea.vmem %s13, %s7139
        %p7141 = scmp.lt.s32.totalorder %s32, 1
        %s7142 = scalar_select %p7141, %s32, 1
        %s7143 = smul.addr %s7142, 2
        %s7144 = smul.addr %s7143, 8
        %s7145 = scalar_lea.vmem %s14, %s7144
        // Predicated region
        $region61: #{simple_vq_classifier.1} parent=59 // pred_check
          %p7146 = pneg %p265
        $region62: #{simple_vq_classifier.1} parent=59 // pred_check_branch
          %7148 = sbr.rel (%p7146) target = $region64
        $region63: #{simple_vq_classifier.1} parent=59 // pred_region
          %s7150 = ssub.s32 16, 16
          %7151 = vsyncadd %s7123, %s7150
          %s7152 = smul.addr %s32, 16
          %s7153 = scalar_lea.hbm %s10, %s7152
          %s7155 = sshll.u32 %s7125, 4
          %s7156 = int_to_ptr.vmem [resolvable:$true] %s7155
          %7158 = dma.vmem_to_hbm [thread:$0]  %s7156, 16, %s7153, %s7123
        $region64: #{simple_vq_classifier.1} parent=59 // pred_fallthru
          _
        // Predicated region
        $region65: #{simple_vq_classifier.1} parent=59 // pred_check
          %p7159 = pneg %p291
        $region66: #{simple_vq_classifier.1} parent=59 // pred_check_branch
          %7161 = sbr.rel (%p7159) target = $region68
        $region67: #{simple_vq_classifier.1} parent=59 // pred_region
          %s7163 = ssub.s32 256, 256
          %7164 = vsyncadd %s7127, %s7163
          %s7165 = smul.addr %s32, 2
          %s7166 = smul.addr %s7165, 128
          %s7167 = scalar_lea.hbm %s11, %s7166
          %s7168 = sshll.u32 %s7130, 4
          %s7169 = int_to_ptr.vmem [resolvable:$true] %s7168
          %7174 = dma.vmem_to_hbm [thread:$0]  %s7169, 256, %s7167, %s7127, 128, 128, 8
        $region68: #{simple_vq_classifier.1} parent=59 // pred_fallthru
          _
        // Predicated region
        $region69: #{simple_vq_classifier.1} parent=59 // pred_check
          %p7175 = pneg %p317
        $region70: #{simple_vq_classifier.1} parent=59 // pred_check_branch
          %7177 = sbr.rel (%p7175) target = $region72
        $region71: #{simple_vq_classifier.1} parent=59 // pred_region
          %s7179 = ssub.s32 256, 256
          %7180 = vsyncadd %s7132, %s7179
          %s7181 = smul.addr %s32, 2
          %s7182 = smul.addr %s7181, 128
          %s7183 = scalar_lea.hbm %s12, %s7182
          %s7184 = sshll.u32 %s7135, 4
          %s7185 = int_to_ptr.vmem [resolvable:$true] %s7184
          %7190 = dma.vmem_to_hbm [thread:$0]  %s7185, 256, %s7183, %s7132, 128, 128, 8
        $region72: #{simple_vq_classifier.1} parent=59 // pred_fallthru
          _
        // Predicated region
        $region73: #{simple_vq_classifier.1} parent=59 // pred_check
          %p7191 = pneg %p343
        $region74: #{simple_vq_classifier.1} parent=59 // pred_check_branch
          %7193 = sbr.rel (%p7191) target = $region76
        $region75: #{simple_vq_classifier.1} parent=59 // pred_region
          _
        $region76: #{simple_vq_classifier.1} parent=59 // pred_fallthru
          _
        // Predicated region
        $region77: #{simple_vq_classifier.1} parent=59 // pred_check
          %p7194 = pneg %p369
        $region78: #{simple_vq_classifier.1} parent=59 // pred_check_branch
          %7196 = sbr.rel (%p7194) target = $region80
        $region79: #{simple_vq_classifier.1} parent=59 // pred_region
          _
        $region80: #{simple_vq_classifier.1} parent=59 // pred_fallthru
          _
      $region60: #{simple_vq_classifier.1} parent=5 // pred_fallthru
        _
      %p7197 = scmp.le.s32.totalorder 2, %s27
      // Predicated region
      $region81: #{simple_vq_classifier.1} parent=5 // pred_check
        %p7198 = pneg %p7197
      $region82: #{simple_vq_classifier.1} parent=5 // pred_check_branch
        %7200 = sbr.rel (%p7198) target = $region84
      $region83: #{simple_vq_classifier.1} parent=5 // pred_region
        %s7201 = ssub.s32 %s27, 2
        // Predicated region
        $region85: #{simple_vq_classifier.1} parent=83 // pred_check
          %p7202 = pneg %p271
        $region86: #{simple_vq_classifier.1} parent=83 // pred_check_branch
          %7204 = sbr.rel (%p7202) target = $region88
        $region87: #{simple_vq_classifier.1} parent=83 // pred_region
          %s7205 = sand.u32 %s256, 1
          %s7206 = scalar_lea.sflag [#allocation5], %s7205
          %s7207 = sand.u32 %s256, 1
          %s7208 = scalar_lea.vmem [#allocation4], %s7207
          %7209 = dma.done %s7206, 16
        $region88: #{simple_vq_classifier.1} parent=83 // pred_fallthru
          _
        // Predicated region
        $region89: #{simple_vq_classifier.1} parent=83 // pred_check
          %p7210 = pneg %p297
        $region90: #{simple_vq_classifier.1} parent=83 // pred_check_branch
          %7212 = sbr.rel (%p7210) target = $region92
        $region91: #{simple_vq_classifier.1} parent=83 // pred_region
          %s7213 = sand.u32 %s33, 1
          %s7214 = scalar_lea.sflag [#allocation7], %s7213
          %s7215 = sand.u32 %s282, 1
          %s7216 = smul.addr %s7215, 16
          %s7217 = scalar_lea.vmem [#allocation6], %s7216
          %7218 = dma.done %s7214, 256
        $region92: #{simple_vq_classifier.1} parent=83 // pred_fallthru
          _
        // Predicated region
        $region93: #{simple_vq_classifier.1} parent=83 // pred_check
          %p7219 = pneg %p323
        $region94: #{simple_vq_classifier.1} parent=83 // pred_check_branch
          %7221 = sbr.rel (%p7219) target = $region96
        $region95: #{simple_vq_classifier.1} parent=83 // pred_region
          %s7222 = sand.u32 %s33, 1
          %s7223 = scalar_lea.sflag [#allocation7], %s7222
          %s7224 = sand.u32 %s308, 1
          %s7225 = smul.addr %s7224, 16
          %s7226 = scalar_lea.vmem [#allocation8], %s7225
          %7227 = dma.done %s7223, 256
        $region96: #{simple_vq_classifier.1} parent=83 // pred_fallthru
          _
        // Predicated region
        $region97: #{simple_vq_classifier.1} parent=83 // pred_check
          %p7228 = pneg %p349
        $region98: #{simple_vq_classifier.1} parent=83 // pred_check_branch
          %7230 = sbr.rel (%p7228) target = $region100
        $region99: #{simple_vq_classifier.1} parent=83 // pred_region
          %p7231 = scmp.lt.s32.totalorder %s33, 1
          %s7232 = scalar_select %p7231, %s33, 1
          %s7233 = smul.addr %s7232, 2
          %s7234 = smul.addr %s7233, 8
          %s7235 = scalar_lea.vmem %s13, %s7234
        $region100: #{simple_vq_classifier.1} parent=83 // pred_fallthru
          _
        // Predicated region
        $region101: #{simple_vq_classifier.1} parent=83 // pred_check
          %p7236 = pneg %p375
        $region102: #{simple_vq_classifier.1} parent=83 // pred_check_branch
          %7238 = sbr.rel (%p7236) target = $region104
        $region103: #{simple_vq_classifier.1} parent=83 // pred_region
          %p7239 = scmp.lt.s32.totalorder %s33, 1
          %s7240 = scalar_select %p7239, %s33, 1
          %s7241 = smul.addr %s7240, 2
          %s7242 = smul.addr %s7241, 8
          %s7243 = scalar_lea.vmem %s14, %s7242
        $region104: #{simple_vq_classifier.1} parent=83 // pred_fallthru
          _
      $region84: #{simple_vq_classifier.1} parent=5 // pred_fallthru
        _
    $region6: #{simple_vq_classifier.1} parent=1 // loop_footer
      %s31 = sadd.s32 1, %s27
    $region7: #{simple_vq_classifier.1} parent=1 // loop_footer_branch
      %26 = sbr.rel target = $region3
    $region8: #{simple_vq_classifier.1} parent=1 // loop_exit
      _
    %7244 = vsyncpa [#allocation5], 1
    %s7245 = scalar_lea.sflag [#allocation5], 1
    %7246 = vsyncpa %s7245, 1
    %7247 = vsyncpa [#allocation7], 1
    %s7248 = scalar_lea.sflag [#allocation7], 1
    %7249 = vsyncpa %s7248, 1

</llo_original>
